<compile_context>
chip_gen: v7x
topology: tpu7x:2x2x1
jax: 0.10.0
libtpu: 0.0.40
codegen_flags: <defaults>
</compile_context>

<pallas_src>
import functools
import math

import jax
import jax.numpy as jnp
from jax.experimental import pallas as pl
from jax.experimental.pallas import tpu as pltpu


# ----------------------------------------------------------------------------
# Pallas kernels
# ----------------------------------------------------------------------------
def _stem_conv1_kernel(x_ref, ws_ref, bs_ref, w1_ref, b1_ref, stem_ref, h1_ref):
    # stem 1x1 conv + BN + ReLU, chained with block-0's conv1 + BN + ReLU.
    h = jnp.dot(x_ref[...], ws_ref[...], preferred_element_type=jnp.float32)
    h = jnp.maximum(h + bs_ref[...], 0.0)
    stem_ref[...] = h.astype(stem_ref.dtype)          # needed by block-0 shortcut
    y = jnp.dot(h.astype(jnp.bfloat16), w1_ref[...],
                preferred_element_type=jnp.float32)
    h1_ref[...] = jnp.maximum(y + b1_ref[...], 0.0).astype(h1_ref.dtype)


def _block_tail_kernel(*refs, has_proj, has_next, do_pool, inv_pool):
    # conv2 (grouped 3x3 as packed block-diagonal matmul) + BN2 + ReLU
    # + conv3 + BN3 + shortcut + residual + ReLU
    # + (optional) next block's conv1 + BN + ReLU
    # + (optional, last block) avg_pool2d(8) + fc  -> logits.
    it = iter(refs)
    p_ref = next(it)
    w2_ref = next(it); b2_ref = next(it)
    w3_ref = next(it); b3_ref = next(it)
    if has_proj:
        xs_ref = next(it); wsc_ref = next(it); bsc_ref = next(it)
    else:
        res_ref = next(it)
    if has_next:
        wn_ref = next(it); bn_ref = next(it)
    if do_pool:
        wfc_ref = next(it); bfc_ref = next(it)
    # outputs
    if do_pool:
        logits_ref = next(it)
    else:
        out_ref = next(it)
    if has_next:
        h1n_ref = next(it)

    h2 = jnp.dot(p_ref[...], w2_ref[...], preferred_element_type=jnp.float32)
    h2 = jnp.maximum(h2 + b2_ref[...], 0.0)

    y = jnp.dot(h2.astype(jnp.bfloat16), w3_ref[...],
                preferred_element_type=jnp.float32) + b3_ref[...]
    if has_proj:
        y = y + jnp.dot(xs_ref[...], wsc_ref[...],
                        preferred_element_type=jnp.float32) + bsc_ref[...]
    else:
        y = y + res_ref[...].astype(jnp.float32)
    y = jnp.maximum(y, 0.0)                            # f32 epilogue (all gens)

    if do_pool:
        pooled = jnp.sum(y, axis=0, keepdims=True) * inv_pool      # (1, k*C)
        logits = jnp.dot(pooled, wfc_ref[...],
                         preferred_element_type=jnp.float32) + bfc_ref[...]
        logits_ref[...] = logits[None]                 # (1, 1, ncls)
    else:
        out_ref[...] = y.astype(out_ref.dtype)

    if has_next:
        hn = jnp.dot(y.astype(jnp.bfloat16), wn_ref[...],
                     preferred_element_type=jnp.float32)
        h1n_ref[...] = jnp.maximum(hn + bn_ref[...], 0.0).astype(h1n_ref.dtype)


# ----------------------------------------------------------------------------
# Pallas wrappers (grid over batch, one whole image per step, all lane-dense)
# ----------------------------------------------------------------------------
def _stem_conv1_call(x_p, ws, bs, w1, b1, *, batch, rows):
    Kx = x_p.shape[1]
    Ns = ws.shape[1]
    Ng = w1.shape[1]
    flops = 2 * batch * rows * (Kx * Ns + Ns * Ng)
    byt = (batch * rows * (Kx + Ns + Ng) * 2 + (Kx * Ns + Ns * Ng) * 2
           + (Ns + Ng) * 4)
    return pl.pallas_call(
        _stem_conv1_kernel,
        out_shape=(jax.ShapeDtypeStruct((batch * rows, Ns), jnp.bfloat16),
                   jax.ShapeDtypeStruct((batch * rows, Ng), jnp.bfloat16)),
        grid=(batch,),
        in_specs=[
            pl.BlockSpec((rows, Kx), lambda b: (b, 0)),
            pl.BlockSpec((Kx, Ns), lambda b: (0, 0)),
            pl.BlockSpec((1, Ns), lambda b: (0, 0)),
            pl.BlockSpec((Ns, Ng), lambda b: (0, 0)),
            pl.BlockSpec((1, Ng), lambda b: (0, 0)),
        ],
        out_specs=(pl.BlockSpec((rows, Ns), lambda b: (b, 0)),
                   pl.BlockSpec((rows, Ng), lambda b: (b, 0))),
        compiler_params=pltpu.CompilerParams(dimension_semantics=("parallel",)),
        cost_estimate=pl.CostEstimate(flops=flops, transcendentals=0,
                                      bytes_accessed=byt),
    )(x_p, ws, bs, w1, b1)


def _block_tail_call(patches_p, short, tp, bc, *, batch, rows, is_last,
                     act_dtype=jnp.bfloat16):
    k, gw = bc["k"], bc["gw"]
    Kp = patches_p.shape[1]          # k * 9 * gw
    Ks = short.shape[1]              # k * Cin (proj) or k * 2*gw (identity)
    N2 = k * gw                      # packed conv2 output width (>=128)
    N3 = k * 2 * gw                  # packed conv3 / block output width
    has_proj = bc["has_proj"]
    has_next = "wn" in tp
    do_pool = is_last

    operands = [patches_p, tp["w2"], tp["b2"], tp["w3"], tp["b3"]]
    in_specs = [
        pl.BlockSpec((rows, Kp), lambda b: (b, 0)),
        pl.BlockSpec((Kp, N2), lambda b: (0, 0)),
        pl.BlockSpec((1, N2), lambda b: (0, 0)),
        pl.BlockSpec((N2, N3), lambda b: (0, 0)),
        pl.BlockSpec((1, N3), lambda b: (0, 0)),
    ]
    flops = 2 * batch * rows * (Kp * N2 + N2 * N3)
    if has_proj:
        operands += [short, tp["wsc"], tp["bsc"]]
        in_specs += [pl.BlockSpec((rows, Ks), lambda b: (b, 0)),
                     pl.BlockSpec((Ks, N3), lambda b: (0, 0)),
                     pl.BlockSpec((1, N3), lambda b: (0, 0))]
        flops += 2 * batch * rows * Ks * N3
    else:
        operands += [short]
        in_specs += [pl.BlockSpec((rows, N3), lambda b: (b, 0))]
    if has_next:
        Nn = tp["wn"].shape[1]
        operands += [tp["wn"], tp["bn"]]
        in_specs += [pl.BlockSpec((N3, Nn), lambda b: (0, 0)),
                     pl.BlockSpec((1, Nn), lambda b: (0, 0))]
        flops += 2 * batch * rows * N3 * Nn
    if do_pool:
        ncls = tp["wfc"].shape[1]
        operands += [tp["wfc"], tp["bfc"]]
        in_specs += [pl.BlockSpec((N3, ncls), lambda b: (0, 0)),
                     pl.BlockSpec((1, ncls), lambda b: (0, 0))]
        flops += 2 * batch * N3 * ncls

    out_shapes, out_specs = [], []
    if do_pool:
        # 3-D logits block so the last two block dims equal the full array dims.
        out_shapes.append(jax.ShapeDtypeStruct((batch, 1, ncls), jnp.float32))
        out_specs.append(pl.BlockSpec((1, 1, ncls), lambda b: (b, 0, 0)))
    else:
        out_shapes.append(jax.ShapeDtypeStruct((batch * rows, N3), act_dtype))
        out_specs.append(pl.BlockSpec((rows, N3), lambda b: (b, 0)))
    if has_next:
        out_shapes.append(jax.ShapeDtypeStruct((batch * rows, Nn), act_dtype))
        out_specs.append(pl.BlockSpec((rows, Nn), lambda b: (b, 0)))

    byt = sum(int(a.size) * a.dtype.itemsize for a in operands)
    byt += sum(math.prod(s.shape) * jnp.dtype(s.dtype).itemsize
               for s in out_shapes)

    kernel = functools.partial(_block_tail_kernel, has_proj=has_proj,
                               has_next=has_next, do_pool=do_pool,
                               inv_pool=1.0 / float(rows * k))
    return pl.pallas_call(
        kernel,
        out_shape=tuple(out_shapes),
        grid=(batch,),
        in_specs=in_specs,
        out_specs=tuple(out_specs),
        compiler_params=pltpu.CompilerParams(dimension_semantics=("parallel",)),
        cost_estimate=pl.CostEstimate(flops=flops, transcendentals=0,
                                      bytes_accessed=byt),
    )(*operands)


# ----------------------------------------------------------------------------
# XLA-side glue: 3x3 patch extraction (pad=1, arbitrary stride), tap-major cols.
# ----------------------------------------------------------------------------
def extract_patches(x, stride):
    N, H, W, C = x.shape
    xp = jnp.pad(x, ((0, 0), (1, 1), (1, 1), (0, 0)))
    Ho = (H - 1) // stride + 1
    Wo = (W - 1) // stride + 1
    taps = []
    for dy in range(3):
        for dx in range(3):
            taps.append(
                xp[:, dy:dy + (Ho - 1) * stride + 1:stride,
                      dx:dx + (Wo - 1) * stride + 1:stride, :])
    p = jnp.stack(taps, axis=3)                      # (N, Ho, Wo, 9, C)
    return p.reshape(N * Ho * Wo, 9 * C), Ho, Wo


# ----------------------------------------------------------------------------
# Static architecture config (Python ints only — never traced)
# ----------------------------------------------------------------------------
def make_config(num_blocks=(1, 1, 1), cardinality=2, bottleneck_width=4,
                num_classes=10):
    in_planes = 64
    bw = bottleneck_width
    blocks = []
    for nb, first_stride in zip(num_blocks, (1, 2, 2)):
        for s in [first_stride] + [1] * (nb - 1):
            gw = cardinality * bw
            blocks.append(dict(in_planes=in_planes, stride=s, card=cardinality,
                               cg=bw, gw=gw, k=max(1, 128 // gw),
                               has_proj=(s != 1 or in_planes != 2 * gw)))
            in_planes = 2 * gw
        bw *= 2
    return dict(blocks=blocks, num_classes=num_classes,
                fc_in=cardinality * bottleneck_width * 8)


# ----------------------------------------------------------------------------
# Parameters: BN folded (inference form), Kronecker row-packing pre-applied.
# ----------------------------------------------------------------------------
def make_params(key, cfg):
    keys = iter(jax.random.split(key, 1024))
    nk = lambda: next(keys)
    f32 = jnp.float32

    def conv_w(cin, cout):
        return jax.random.normal(nk(), (cin, cout), f32) / jnp.sqrt(f32(cin))

    def bn(c):
        gamma = 1.0 + 0.1 * jax.random.normal(nk(), (c,), f32)
        beta = 0.1 * jax.random.normal(nk(), (c,), f32)
        mean = 0.1 * jax.random.normal(nk(), (c,), f32)
        var = jax.random.uniform(nk(), (c,), f32, minval=0.5, maxval=1.5)
        scale = gamma / jnp.sqrt(var + 1e-5)
        bias = beta - mean * scale
        return scale, bias

    def fold(w, scale):                      # fold BN scale into weight columns
        return w * scale[None, :]

    def kron_pack(w, k):                     # (K,N) -> block-diag (k*K, k*N) bf16
        return jnp.kron(jnp.eye(k, dtype=f32), w).astype(jnp.bfloat16)

    def tile_bias(b, k):                     # (N,) -> (1, k*N) f32
        return jnp.tile(b, k).reshape(1, -1)

    blocks = cfg["blocks"]

    # raw folded per-conv weights (f32)
    sw = conv_w(3, 64)
    ss, sb = bn(64)
    stem_w, stem_b = fold(sw, ss), sb

    raw = []
    for bc in blocks:
        cin, gw, card, cg = bc["in_planes"], bc["gw"], bc["card"], bc["cg"]
        r = {}
        w1 = conv_w(cin, gw); s1, b1 = bn(gw)
        r["w1"], r["b1"] = fold(w1, s1), b1
        # grouped 3x3 conv weight (card, 9*cg, cg) -> block-diagonal dense
        # (9*gw, gw): rows ordered (tap, group, cin), cols (group, cout).
        w2g = jax.random.normal(nk(), (card, 9 * cg, cg), f32) / jnp.sqrt(
            f32(9 * cg))
        s2, b2 = bn(gw)
        wt = jnp.transpose(w2g.reshape(card, 9, cg, cg), (1, 0, 2, 3))
        dense = jnp.einsum("tgio,gh->tgiho", wt,
                           jnp.eye(card, dtype=f32)).reshape(9 * gw, gw)
        r["w2"], r["b2"] = fold(dense, s2), b2
        w3 = conv_w(gw, 2 * gw); s3, b3 = bn(2 * gw)
        r["w3"], r["b3"] = fold(w3, s3), b3
        if bc["has_proj"]:
            wsc = conv_w(cin, 2 * gw); ssc, bsc = bn(2 * gw)
            r["wsc"], r["bsc"] = fold(wsc, ssc), bsc
        raw.append(r)

    fc_in, ncls = cfg["fc_in"], cfg["num_classes"]
    wfc = jax.random.normal(nk(), (fc_in, ncls), f32) / jnp.sqrt(f32(fc_in))
    bfc = 0.1 * jax.random.normal(nk(), (ncls,), f32)

    # pack into kernel-call granularity (Kronecker block-diag weights)
    k0 = blocks[0]["k"]
    params = {"stem": dict(ws=kron_pack(stem_w, k0), bs=tile_bias(stem_b, k0),
                           w1=kron_pack(raw[0]["w1"], k0),
                           b1=tile_bias(raw[0]["b1"], k0))}

    tails = []
    for i, bc in enumerate(blocks):
        k = bc["k"]
        r = raw[i]
        t = dict(w2=kron_pack(r["w2"], k), b2=tile_bias(r["b2"], k),
                 w3=kron_pack(r["w3"], k), b3=tile_bias(r["b3"], k))
        if bc["has_proj"]:
            t["wsc"] = kron_pack(r["wsc"], k)
            t["bsc"] = tile_bias(r["bsc"], k)
        if i + 1 < len(blocks):
            # chain the next block's conv1+BN+ReLU into this block's tail
            t["wn"] = kron_pack(raw[i + 1]["w1"], k)
            t["bn"] = tile_bias(raw[i + 1]["b1"], k)
        else:
            # fold avg_pool2d(8) + fc into the last tail: tile fc weight over
            # the k packed sub-rows (pool scale applied in-kernel).
            t["wfc"] = jnp.tile(wfc, (k, 1))             # (k*C, ncls) f32
            t["bfc"] = bfc.reshape(1, ncls)
        tails.append(t)
    params["tails"] = tails
    return params


# ----------------------------------------------------------------------------
# Forward pass
# ----------------------------------------------------------------------------
def resnext_forward(x_nchw, params, cfg):
    blocks = cfg["blocks"]
    N, _, H, W = x_nchw.shape
    x = jnp.transpose(x_nchw, (0, 2, 3, 1)).astype(jnp.bfloat16)   # NCHW -> NHWC

    # stem conv (1x1, 3->64) + BN + ReLU, fused with block-0's conv1 + BN + ReLU
    k0 = blocks[0]["k"]
    assert (H * W) % k0 == 0
    rows0 = (H * W) // k0
    st = params["stem"]
    stem_out, h1 = _stem_conv1_call(x.reshape(N * rows0, k0 * 3),
                                    st["ws"], st["bs"], st["w1"], st["b1"],
                                    batch=N, rows=rows0)

    cur, cur_C = stem_out, 64          # packed view of current block's input
    Hc, Wc = H, W
    logits = None
    for i, bc in enumerate(blocks):
        k, gw, stride = bc["k"], bc["gw"], bc["stride"]
        tp = params["tails"][i]

        # TODO(synk): im2col + strided shortcut subsample are XLA glue; an
        # in-kernel 9-tap accumulation would remove them (tiny at these shapes).
        patches, Ho, Wo = extract_patches(h1.reshape(N, Hc, Wc, gw), stride)
        assert (Ho * Wo) % k == 0
        rows = (Ho * Wo) // k
        patches_p = patches.reshape(N * rows, k * 9 * gw)

        if bc["has_proj"]:
            xin = cur.reshape(N, Hc, Wc, cur_C)
            xs = xin if stride == 1 else xin[:, ::stride, ::stride, :]
            short = xs.reshape(N * rows, k * cur_C)
        else:
            short = cur.reshape(N * rows, k * cur_C)   # cur_C == 2*gw

        is_last = (i == len(blocks) - 1)
        if is_last:
            # F.avg_pool2d(out, 8) + view + fc1 assumes a final 8x8 feature map
            assert Ho == 8 and Wo == 8, "avg_pool2d(8) assumes a final 8x8 map"

        outs = _block_tail_call(patches_p, short, tp, bc,
                                batch=N, rows=rows, is_last=is_last)
        if is_last:
            logits = outs[0].reshape(N, -1)
        else:
            cur, h1 = outs[0], outs[1]
            cur_C = 2 * gw
            Hc, Wc = Ho, Wo
    return logits


# ----------------------------------------------------------------------------
if __name__ == "__main__":
    key = jax.random.PRNGKey(0)
    pkey, xkey = jax.random.split(key)

    # Small ResNeXt: num_blocks=[1,1,1], cardinality=2, bottleneck_width=4,
    # num_classes=10.  CIFAR-style 32x32 input (two stride-2 stages -> 8x8 map).
    cfg = make_config(num_blocks=(1, 1, 1), cardinality=2, bottleneck_width=4,
                      num_classes=10)
    params = make_params(pkey, cfg)
    x = jax.random.normal(xkey, (2, 3, 32, 32), jnp.float32)

    forward = jax.jit(functools.partial(resnext_forward, cfg=cfg))
    logits = forward(x, params)
    jax.block_until_ready(logits)
    assert logits.shape == (2, 10)
    print("KERNEL_OK")
</pallas_src>

<mosaic_0001>
module attributes {stable_mosaic.version = 11 : i64} {
  func.func @_stem_conv1_kernel(%arg0: i32, %arg1: memref<64x48xbf16, #tpu.memory_space<vmem>>, %arg2: memref<48x1024xbf16, #tpu.memory_space<vmem>>, %arg3: memref<1x1024xf32, #tpu.memory_space<vmem>>, %arg4: memref<1024x128xbf16, #tpu.memory_space<vmem>>, %arg5: memref<1x128xf32, #tpu.memory_space<vmem>>, %arg6: memref<64x1024xbf16, #tpu.memory_space<vmem>>, %arg7: memref<64x128xbf16, #tpu.memory_space<vmem>>) attributes {dimension_semantics = [#tpu.dimension_semantics<parallel>], iteration_bounds = array<i64: 2>, scalar_prefetch = 0 : i64, scratch_operands = 0 : i64, tpu.core_type = #tpu.core_type<tc>, window_params = [{transform_indices = @transform_0, window_bounds = array<i64: 64, 48>}, {pipeline_mode = #tpu.pipeline_mode<synchronous>, transform_indices = @transform_1, window_bounds = array<i64: 48, 1024>}, {pipeline_mode = #tpu.pipeline_mode<synchronous>, transform_indices = @transform_2, window_bounds = array<i64: 1, 1024>}, {pipeline_mode = #tpu.pipeline_mode<synchronous>, transform_indices = @transform_3, window_bounds = array<i64: 1024, 128>}, {pipeline_mode = #tpu.pipeline_mode<synchronous>, transform_indices = @transform_4, window_bounds = array<i64: 1, 128>}, {transform_indices = @transform_5, window_bounds = array<i64: 64, 1024>}, {transform_indices = @transform_6, window_bounds = array<i64: 64, 128>}]} {
    %c0 = arith.constant 0 : index
    %c0_0 = arith.constant 0 : index
    %0 = vector.load %arg1[%c0, %c0_0] : memref<64x48xbf16, #tpu.memory_space<vmem>>, vector<64x48xbf16>
    %c0_1 = arith.constant 0 : index
    %c0_2 = arith.constant 0 : index
    %1 = vector.load %arg2[%c0_1, %c0_2] : memref<48x1024xbf16, #tpu.memory_space<vmem>>, vector<48x1024xbf16>
    %cst = arith.constant dense<0.000000e+00> : vector<64x1024xf32>
    %2 = tpu.matmul %0, %1, %cst {dimension_numbers = #tpu.dot_dimension_numbers<[1], [0], [0], [1], [0, 0, 1, 1], [], []>} : vector<64x48xbf16>, vector<48x1024xbf16>, vector<64x1024xf32> -> vector<64x1024xf32>
    %c0_3 = arith.constant 0 : index
    %c0_4 = arith.constant 0 : index
    %3 = vector.load %arg3[%c0_3, %c0_4] : memref<1x1024xf32, #tpu.memory_space<vmem>>, vector<1x1024xf32>
    %4 = vector.broadcast %3 : vector<1x1024xf32> to vector<64x1024xf32>
    %5 = arith.addf %2, %4 : vector<64x1024xf32>
    %cst_5 = arith.constant 0.000000e+00 : f32
    %6 = vector.broadcast %cst_5 : f32 to vector<64x1024xf32>
    %7 = arith.maximumf %5, %6 : vector<64x1024xf32>
    %8 = arith.truncf %7 : vector<64x1024xf32> to vector<64x1024xbf16>
    %c0_6 = arith.constant 0 : index
    %c0_7 = arith.constant 0 : index
    %9 = vector.load %arg6[%c0_6, %c0_7] : memref<64x1024xbf16, #tpu.memory_space<vmem>>, vector<64x1024xbf16>
    tpu.vector_store %arg6[%c0_6, %c0_7], %8 {strides = array<i32>} : memref<64x1024xbf16, #tpu.memory_space<vmem>>, vector<64x1024xbf16>,
    %10 = arith.truncf %7 : vector<64x1024xf32> to vector<64x1024xbf16>
    %c0_8 = arith.constant 0 : index
    %c0_9 = arith.constant 0 : index
    %11 = vector.load %arg4[%c0_8, %c0_9] : memref<1024x128xbf16, #tpu.memory_space<vmem>>, vector<1024x128xbf16>
    %cst_10 = arith.constant dense<0.000000e+00> : vector<64x128xf32>
    %12 = tpu.matmul %10, %11, %cst_10 {dimension_numbers = #tpu.dot_dimension_numbers<[1], [0], [0], [1], [0, 0, 1, 1], [], []>} : vector<64x1024xbf16>, vector<1024x128xbf16>, vector<64x128xf32> -> vector<64x128xf32>
    %c0_11 = arith.constant 0 : index
    %c0_12 = arith.constant 0 : index
    %13 = vector.load %arg5[%c0_11, %c0_12] : memref<1x128xf32, #tpu.memory_space<vmem>>, vector<1x128xf32>
    %14 = vector.broadcast %13 : vector<1x128xf32> to vector<64x128xf32>
    %15 = arith.addf %12, %14 : vector<64x128xf32>
    %cst_13 = arith.constant 0.000000e+00 : f32
    %16 = vector.broadcast %cst_13 : f32 to vector<64x128xf32>
    %17 = arith.maximumf %15, %16 : vector<64x128xf32>
    %18 = arith.truncf %17 : vector<64x128xf32> to vector<64x128xbf16>
    %c0_14 = arith.constant 0 : index
    %c0_15 = arith.constant 0 : index
    %19 = vector.load %arg7[%c0_14, %c0_15] : memref<64x128xbf16, #tpu.memory_space<vmem>>, vector<64x128xbf16>
    tpu.vector_store %arg7[%c0_14, %c0_15], %18 {strides = array<i32>} : memref<64x128xbf16, #tpu.memory_space<vmem>>, vector<64x128xbf16>,
    return
  }
  func.func @transform_0(%arg0: i32) -> (i32, i32) {
    %c0_i32 = arith.constant 0 : i32
    %c0_i32_0 = arith.constant 0 : i32
    return %arg0, %c0_i32 : i32, i32
  }
  func.func @transform_1(%arg0: i32) -> (i32, i32) {
    %c0_i32 = arith.constant 0 : i32
    %c0_i32_0 = arith.constant 0 : i32
    %c0_i32_1 = arith.constant 0 : i32
    return %c0_i32, %c0_i32_0 : i32, i32
  }
  func.func @transform_2(%arg0: i32) -> (i32, i32) {
    %c0_i32 = arith.constant 0 : i32
    %c0_i32_0 = arith.constant 0 : i32
    %c0_i32_1 = arith.constant 0 : i32
    return %c0_i32, %c0_i32_0 : i32, i32
  }
  func.func @transform_3(%arg0: i32) -> (i32, i32) {
    %c0_i32 = arith.constant 0 : i32
    %c0_i32_0 = arith.constant 0 : i32
    %c0_i32_1 = arith.constant 0 : i32
    return %c0_i32, %c0_i32_0 : i32, i32
  }
  func.func @transform_4(%arg0: i32) -> (i32, i32) {
    %c0_i32 = arith.constant 0 : i32
    %c0_i32_0 = arith.constant 0 : i32
    %c0_i32_1 = arith.constant 0 : i32
    return %c0_i32, %c0_i32_0 : i32, i32
  }
  func.func @transform_5(%arg0: i32) -> (i32, i32) {
    %c0_i32 = arith.constant 0 : i32
    %c0_i32_0 = arith.constant 0 : i32
    return %arg0, %c0_i32 : i32, i32
  }
  func.func @transform_6(%arg0: i32) -> (i32, i32) {
    %c0_i32 = arith.constant 0 : i32
    %c0_i32_0 = arith.constant 0 : i32
    return %arg0, %c0_i32 : i32, i32
  }
}

module attributes {stable_mosaic.version = 11 : i64} {
  func.func @_block_tail_kernel(%arg0: i32, %arg1: memref<64x1152xbf16, #tpu.memory_space<vmem>>, %arg2: memref<1152x128xbf16, #tpu.memory_space<vmem>>, %arg3: memref<1x128xf32, #tpu.memory_space<vmem>>, %arg4: memref<128x256xbf16, #tpu.memory_space<vmem>>, %arg5: memref<1x256xf32, #tpu.memory_space<vmem>>, %arg6: memref<64x1024xbf16, #tpu.memory_space<vmem>>, %arg7: memref<1024x256xbf16, #tpu.memory_space<vmem>>, %arg8: memref<1x256xf32, #tpu.memory_space<vmem>>, %arg9: memref<256x256xbf16, #tpu.memory_space<vmem>>, %arg10: memref<1x256xf32, #tpu.memory_space<vmem>>, %arg11: memref<64x256xbf16, #tpu.memory_space<vmem>>, %arg12: memref<64x256xbf16, #tpu.memory_space<vmem>>) attributes {dimension_semantics = [#tpu.dimension_semantics<parallel>], iteration_bounds = array<i64: 2>, scalar_prefetch = 0 : i64, scratch_operands = 0 : i64, tpu.core_type = #tpu.core_type<tc>, window_params = [{transform_indices = @transform_0, window_bounds = array<i64: 64, 1152>}, {pipeline_mode = #tpu.pipeline_mode<synchronous>, transform_indices = @transform_1, window_bounds = array<i64: 1152, 128>}, {pipeline_mode = #tpu.pipeline_mode<synchronous>, transform_indices = @transform_2, window_bounds = array<i64: 1, 128>}, {pipeline_mode = #tpu.pipeline_mode<synchronous>, transform_indices = @transform_3, window_bounds = array<i64: 128, 256>}, {pipeline_mode = #tpu.pipeline_mode<synchronous>, transform_indices = @transform_4, window_bounds = array<i64: 1, 256>}, {transform_indices = @transform_5, window_bounds = array<i64: 64, 1024>}, {pipeline_mode = #tpu.pipeline_mode<synchronous>, transform_indices = @transform_6, window_bounds = array<i64: 1024, 256>}, {pipeline_mode = #tpu.pipeline_mode<synchronous>, transform_indices = @transform_7, window_bounds = array<i64: 1, 256>}, {pipeline_mode = #tpu.pipeline_mode<synchronous>, transform_indices = @transform_8, window_bounds = array<i64: 256, 256>}, {pipeline_mode = #tpu.pipeline_mode<synchronous>, transform_indices = @transform_9, window_bounds = array<i64: 1, 256>}, {transform_indices = @transform_10, window_bounds = array<i64: 64, 256>}, {transform_indices = @transform_11, window_bounds = array<i64: 64, 256>}]} {
    %c0 = arith.constant 0 : index
    %c0_0 = arith.constant 0 : index
    %0 = vector.load %arg1[%c0, %c0_0] : memref<64x1152xbf16, #tpu.memory_space<vmem>>, vector<64x1152xbf16>
    %c0_1 = arith.constant 0 : index
    %c0_2 = arith.constant 0 : index
    %1 = vector.load %arg2[%c0_1, %c0_2] : memref<1152x128xbf16, #tpu.memory_space<vmem>>, vector<1152x128xbf16>
    %cst = arith.constant dense<0.000000e+00> : vector<64x128xf32>
    %2 = tpu.matmul %0, %1, %cst {dimension_numbers = #tpu.dot_dimension_numbers<[1], [0], [0], [1], [0, 0, 1, 1], [], []>} : vector<64x1152xbf16>, vector<1152x128xbf16>, vector<64x128xf32> -> vector<64x128xf32>
    %c0_3 = arith.constant 0 : index
    %c0_4 = arith.constant 0 : index
    %3 = vector.load %arg3[%c0_3, %c0_4] : memref<1x128xf32, #tpu.memory_space<vmem>>, vector<1x128xf32>
    %4 = vector.broadcast %3 : vector<1x128xf32> to vector<64x128xf32>
    %5 = arith.addf %2, %4 : vector<64x128xf32>
    %cst_5 = arith.constant 0.000000e+00 : f32
    %6 = vector.broadcast %cst_5 : f32 to vector<64x128xf32>
    %7 = arith.maximumf %5, %6 : vector<64x128xf32>
    %8 = arith.truncf %7 : vector<64x128xf32> to vector<64x128xbf16>
    %c0_6 = arith.constant 0 : index
    %c0_7 = arith.constant 0 : index
    %9 = vector.load %arg4[%c0_6, %c0_7] : memref<128x256xbf16, #tpu.memory_space<vmem>>, vector<128x256xbf16>
    %cst_8 = arith.constant dense<0.000000e+00> : vector<64x256xf32>
    %10 = tpu.matmul %8, %9, %cst_8 {dimension_numbers = #tpu.dot_dimension_numbers<[1], [0], [0], [1], [0, 0, 1, 1], [], []>} : vector<64x128xbf16>, vector<128x256xbf16>, vector<64x256xf32> -> vector<64x256xf32>
    %c0_9 = arith.constant 0 : index
    %c0_10 = arith.constant 0 : index
    %11 = vector.load %arg5[%c0_9, %c0_10] : memref<1x256xf32, #tpu.memory_space<vmem>>, vector<1x256xf32>
    %12 = vector.broadcast %11 : vector<1x256xf32> to vector<64x256xf32>
    %13 = arith.addf %10, %12 : vector<64x256xf32>
    %c0_11 = arith.constant 0 : index
    %c0_12 = arith.constant 0 : index
    %14 = vector.load %arg6[%c0_11, %c0_12] : memref<64x1024xbf16, #tpu.memory_space<vmem>>, vector<64x1024xbf16>
    %c0_13 = arith.constant 0 : index
    %c0_14 = arith.constant 0 : index
    %15 = vector.load %arg7[%c0_13, %c0_14] : memref<1024x256xbf16, #tpu.memory_space<vmem>>, vector<1024x256xbf16>
    %cst_15 = arith.constant dense<0.000000e+00> : vector<64x256xf32>
    %16 = tpu.matmul %14, %15, %cst_15 {dimension_numbers = #tpu.dot_dimension_numbers<[1], [0], [0], [1], [0, 0, 1, 1], [], []>} : vector<64x1024xbf16>, vector<1024x256xbf16>, vector<64x256xf32> -> vector<64x256xf32>
    %17 = arith.addf %13, %16 : vector<64x256xf32>
    %c0_16 = arith.constant 0 : index
    %c0_17 = arith.constant 0 : index
    %18 = vector.load %arg8[%c0_16, %c0_17] : memref<1x256xf32, #tpu.memory_space<vmem>>, vector<1x256xf32>
    %19 = vector.broadcast %18 : vector<1x256xf32> to vector<64x256xf32>
    %20 = arith.addf %17, %19 : vector<64x256xf32>
    %cst_18 = arith.constant 0.000000e+00 : f32
    %21 = vector.broadcast %cst_18 : f32 to vector<64x256xf32>
    %22 = arith.maximumf %20, %21 : vector<64x256xf32>
    %23 = arith.truncf %22 : vector<64x256xf32> to vector<64x256xbf16>
    %c0_19 = arith.constant 0 : index
    %c0_20 = arith.constant 0 : index
    %24 = vector.load %arg11[%c0_19, %c0_20] : memref<64x256xbf16, #tpu.memory_space<vmem>>, vector<64x256xbf16>
    tpu.vector_store %arg11[%c0_19, %c0_20], %23 {strides = array<i32>} : memref<64x256xbf16, #tpu.memory_space<vmem>>, vector<64x256xbf16>,
    %25 = arith.truncf %22 : vector<64x256xf32> to vector<64x256xbf16>
    %c0_21 = arith.constant 0 : index
    %c0_22 = arith.constant 0 : index
    %26 = vector.load %arg9[%c0_21, %c0_22] : memref<256x256xbf16, #tpu.memory_space<vmem>>, vector<256x256xbf16>
    %cst_23 = arith.constant dense<0.000000e+00> : vector<64x256xf32>
    %27 = tpu.matmul %25, %26, %cst_23 {dimension_numbers = #tpu.dot_dimension_numbers<[1], [0], [0], [1], [0, 0, 1, 1], [], []>} : vector<64x256xbf16>, vector<256x256xbf16>, vector<64x256xf32> -> vector<64x256xf32>
    %c0_24 = arith.constant 0 : index
    %c0_25 = arith.constant 0 : index
    %28 = vector.load %arg10[%c0_24, %c0_25] : memref<1x256xf32, #tpu.memory_space<vmem>>, vector<1x256xf32>
    %29 = vector.broadcast %28 : vector<1x256xf32> to vector<64x256xf32>
    %30 = arith.addf %27, %29 : vector<64x256xf32>
    %cst_26 = arith.constant 0.000000e+00 : f32
    %31 = vector.broadcast %cst_26 : f32 to vector<64x256xf32>
    %32 = arith.maximumf %30, %31 : vector<64x256xf32>
    %33 = arith.truncf %32 : vector<64x256xf32> to vector<64x256xbf16>
    %c0_27 = arith.constant 0 : index
    %c0_28 = arith.constant 0 : index
    %34 = vector.load %arg12[%c0_27, %c0_28] : memref<64x256xbf16, #tpu.memory_space<vmem>>, vector<64x256xbf16>
    tpu.vector_store %arg12[%c0_27, %c0_28], %33 {strides = array<i32>} : memref<64x256xbf16, #tpu.memory_space<vmem>>, vector<64x256xbf16>,
    return
  }
  func.func @transform_0(%arg0: i32) -> (i32, i32) {
    %c0_i32 = arith.constant 0 : i32
    %c0_i32_0 = arith.constant 0 : i32
    return %arg0, %c0_i32 : i32, i32
  }
  func.func @transform_1(%arg0: i32) -> (i32, i32) {
    %c0_i32 = arith.constant 0 : i32
    %c0_i32_0 = arith.constant 0 : i32
    %c0_i32_1 = arith.constant 0 : i32
    return %c0_i32, %c0_i32_0 : i32, i32
  }
  func.func @transform_2(%arg0: i32) -> (i32, i32) {
    %c0_i32 = arith.constant 0 : i32
    %c0_i32_0 = arith.constant 0 : i32
    %c0_i32_1 = arith.constant 0 : i32
    return %c0_i32, %c0_i32_0 : i32, i32
  }
  func.func @transform_3(%arg0: i32) -> (i32, i32) {
    %c0_i32 = arith.constant 0 : i32
    %c0_i32_0 = arith.constant 0 : i32
    %c0_i32_1 = arith.constant 0 : i32
    return %c0_i32, %c0_i32_0 : i32, i32
  }
  func.func @transform_4(%arg0: i32) -> (i32, i32) {
    %c0_i32 = arith.constant 0 : i32
    %c0_i32_0 = arith.constant 0 : i32
    %c0_i32_1 = arith.constant 0 : i32
    return %c0_i32, %c0_i32_0 : i32, i32
  }
  func.func @transform_5(%arg0: i32) -> (i32, i32) {
    %c0_i32 = arith.constant 0 : i32
    %c0_i32_0 = arith.constant 0 : i32
    return %arg0, %c0_i32 : i32, i32
  }
  func.func @transform_6(%arg0: i32) -> (i32, i32) {
    %c0_i32 = arith.constant 0 : i32
    %c0_i32_0 = arith.constant 0 : i32
    %c0_i32_1 = arith.constant 0 : i32
    return %c0_i32, %c0_i32_0 : i32, i32
  }
  func.func @transform_7(%arg0: i32) -> (i32, i32) {
    %c0_i32 = arith.constant 0 : i32
    %c0_i32_0 = arith.constant 0 : i32
    %c0_i32_1 = arith.constant 0 : i32
    return %c0_i32, %c0_i32_0 : i32, i32
  }
  func.func @transform_8(%arg0: i32) -> (i32, i32) {
    %c0_i32 = arith.constant 0 : i32
    %c0_i32_0 = arith.constant 0 : i32
    %c0_i32_1 = arith.constant 0 : i32
    return %c0_i32, %c0_i32_0 : i32, i32
  }
  func.func @transform_9(%arg0: i32) -> (i32, i32) {
    %c0_i32 = arith.constant 0 : i32
    %c0_i32_0 = arith.constant 0 : i32
    %c0_i32_1 = arith.constant 0 : i32
    return %c0_i32, %c0_i32_0 : i32, i32
  }
  func.func @transform_10(%arg0: i32) -> (i32, i32) {
    %c0_i32 = arith.constant 0 : i32
    %c0_i32_0 = arith.constant 0 : i32
    return %arg0, %c0_i32 : i32, i32
  }
  func.func @transform_11(%arg0: i32) -> (i32, i32) {
    %c0_i32 = arith.constant 0 : i32
    %c0_i32_0 = arith.constant 0 : i32
    return %arg0, %c0_i32 : i32, i32
  }
}

module attributes {stable_mosaic.version = 11 : i64} {
  func.func @_block_tail_kernel(%arg0: i32, %arg1: memref<32x1152xbf16, #tpu.memory_space<vmem>>, %arg2: memref<1152x128xbf16, #tpu.memory_space<vmem>>, %arg3: memref<1x128xf32, #tpu.memory_space<vmem>>, %arg4: memref<128x256xbf16, #tpu.memory_space<vmem>>, %arg5: memref<1x256xf32, #tpu.memory_space<vmem>>, %arg6: memref<32x128xbf16, #tpu.memory_space<vmem>>, %arg7: memref<128x256xbf16, #tpu.memory_space<vmem>>, %arg8: memref<1x256xf32, #tpu.memory_space<vmem>>, %arg9: memref<256x256xbf16, #tpu.memory_space<vmem>>, %arg10: memref<1x256xf32, #tpu.memory_space<vmem>>, %arg11: memref<32x256xbf16, #tpu.memory_space<vmem>>, %arg12: memref<32x256xbf16, #tpu.memory_space<vmem>>) attributes {dimension_semantics = [#tpu.dimension_semantics<parallel>], iteration_bounds = array<i64: 2>, scalar_prefetch = 0 : i64, scratch_operands = 0 : i64, tpu.core_type = #tpu.core_type<tc>, window_params = [{transform_indices = @transform_0, window_bounds = array<i64: 32, 1152>}, {pipeline_mode = #tpu.pipeline_mode<synchronous>, transform_indices = @transform_1, window_bounds = array<i64: 1152, 128>}, {pipeline_mode = #tpu.pipeline_mode<synchronous>, transform_indices = @transform_2, window_bounds = array<i64: 1, 128>}, {pipeline_mode = #tpu.pipeline_mode<synchronous>, transform_indices = @transform_3, window_bounds = array<i64: 128, 256>}, {pipeline_mode = #tpu.pipeline_mode<synchronous>, transform_indices = @transform_4, window_bounds = array<i64: 1, 256>}, {transform_indices = @transform_5, window_bounds = array<i64: 32, 128>}, {pipeline_mode = #tpu.pipeline_mode<synchronous>, transform_indices = @transform_6, window_bounds = array<i64: 128, 256>}, {pipeline_mode = #tpu.pipeline_mode<synchronous>, transform_indices = @transform_7, window_bounds = array<i64: 1, 256>}, {pipeline_mode = #tpu.pipeline_mode<synchronous>, transform_indices = @transform_8, window_bounds = array<i64: 256, 256>}, {pipeline_mode = #tpu.pipeline_mode<synchronous>, transform_indices = @transform_9, window_bounds = array<i64: 1, 256>}, {transform_indices = @transform_10, window_bounds = array<i64: 32, 256>}, {transform_indices = @transform_11, window_bounds = array<i64: 32, 256>}]} {
    %c0 = arith.constant 0 : index
    %c0_0 = arith.constant 0 : index
    %0 = vector.load %arg1[%c0, %c0_0] : memref<32x1152xbf16, #tpu.memory_space<vmem>>, vector<32x1152xbf16>
    %c0_1 = arith.constant 0 : index
    %c0_2 = arith.constant 0 : index
    %1 = vector.load %arg2[%c0_1, %c0_2] : memref<1152x128xbf16, #tpu.memory_space<vmem>>, vector<1152x128xbf16>
    %cst = arith.constant dense<0.000000e+00> : vector<32x128xf32>
    %2 = tpu.matmul %0, %1, %cst {dimension_numbers = #tpu.dot_dimension_numbers<[1], [0], [0], [1], [0, 0, 1, 1], [], []>} : vector<32x1152xbf16>, vector<1152x128xbf16>, vector<32x128xf32> -> vector<32x128xf32>
    %c0_3 = arith.constant 0 : index
    %c0_4 = arith.constant 0 : index
    %3 = vector.load %arg3[%c0_3, %c0_4] : memref<1x128xf32, #tpu.memory_space<vmem>>, vector<1x128xf32>
    %4 = vector.broadcast %3 : vector<1x128xf32> to vector<32x128xf32>
    %5 = arith.addf %2, %4 : vector<32x128xf32>
    %cst_5 = arith.constant 0.000000e+00 : f32
    %6 = vector.broadcast %cst_5 : f32 to vector<32x128xf32>
    %7 = arith.maximumf %5, %6 : vector<32x128xf32>
    %8 = arith.truncf %7 : vector<32x128xf32> to vector<32x128xbf16>
    %c0_6 = arith.constant 0 : index
    %c0_7 = arith.constant 0 : index
    %9 = vector.load %arg4[%c0_6, %c0_7] : memref<128x256xbf16, #tpu.memory_space<vmem>>, vector<128x256xbf16>
    %cst_8 = arith.constant dense<0.000000e+00> : vector<32x256xf32>
    %10 = tpu.matmul %8, %9, %cst_8 {dimension_numbers = #tpu.dot_dimension_numbers<[1], [0], [0], [1], [0, 0, 1, 1], [], []>} : vector<32x128xbf16>, vector<128x256xbf16>, vector<32x256xf32> -> vector<32x256xf32>
    %c0_9 = arith.constant 0 : index
    %c0_10 = arith.constant 0 : index
    %11 = vector.load %arg5[%c0_9, %c0_10] : memref<1x256xf32, #tpu.memory_space<vmem>>, vector<1x256xf32>
    %12 = vector.broadcast %11 : vector<1x256xf32> to vector<32x256xf32>
    %13 = arith.addf %10, %12 : vector<32x256xf32>
    %c0_11 = arith.constant 0 : index
    %c0_12 = arith.constant 0 : index
    %14 = vector.load %arg6[%c0_11, %c0_12] : memref<32x128xbf16, #tpu.memory_space<vmem>>, vector<32x128xbf16>
    %c0_13 = arith.constant 0 : index
    %c0_14 = arith.constant 0 : index
    %15 = vector.load %arg7[%c0_13, %c0_14] : memref<128x256xbf16, #tpu.memory_space<vmem>>, vector<128x256xbf16>
    %cst_15 = arith.constant dense<0.000000e+00> : vector<32x256xf32>
    %16 = tpu.matmul %14, %15, %cst_15 {dimension_numbers = #tpu.dot_dimension_numbers<[1], [0], [0], [1], [0, 0, 1, 1], [], []>} : vector<32x128xbf16>, vector<128x256xbf16>, vector<32x256xf32> -> vector<32x256xf32>
    %17 = arith.addf %13, %16 : vector<32x256xf32>
    %c0_16 = arith.constant 0 : index
    %c0_17 = arith.constant 0 : index
    %18 = vector.load %arg8[%c0_16, %c0_17] : memref<1x256xf32, #tpu.memory_space<vmem>>, vector<1x256xf32>
    %19 = vector.broadcast %18 : vector<1x256xf32> to vector<32x256xf32>
    %20 = arith.addf %17, %19 : vector<32x256xf32>
    %cst_18 = arith.constant 0.000000e+00 : f32
    %21 = vector.broadcast %cst_18 : f32 to vector<32x256xf32>
    %22 = arith.maximumf %20, %21 : vector<32x256xf32>
    %23 = arith.truncf %22 : vector<32x256xf32> to vector<32x256xbf16>
    %c0_19 = arith.constant 0 : index
    %c0_20 = arith.constant 0 : index
    %24 = vector.load %arg11[%c0_19, %c0_20] : memref<32x256xbf16, #tpu.memory_space<vmem>>, vector<32x256xbf16>
    tpu.vector_store %arg11[%c0_19, %c0_20], %23 {strides = array<i32>} : memref<32x256xbf16, #tpu.memory_space<vmem>>, vector<32x256xbf16>,
    %25 = arith.truncf %22 : vector<32x256xf32> to vector<32x256xbf16>
    %c0_21 = arith.constant 0 : index
    %c0_22 = arith.constant 0 : index
    %26 = vector.load %arg9[%c0_21, %c0_22] : memref<256x256xbf16, #tpu.memory_space<vmem>>, vector<256x256xbf16>
    %cst_23 = arith.constant dense<0.000000e+00> : vector<32x256xf32>
    %27 = tpu.matmul %25, %26, %cst_23 {dimension_numbers = #tpu.dot_dimension_numbers<[1], [0], [0], [1], [0, 0, 1, 1], [], []>} : vector<32x256xbf16>, vector<256x256xbf16>, vector<32x256xf32> -> vector<32x256xf32>
    %c0_24 = arith.constant 0 : index
    %c0_25 = arith.constant 0 : index
    %28 = vector.load %arg10[%c0_24, %c0_25] : memref<1x256xf32, #tpu.memory_space<vmem>>, vector<1x256xf32>
    %29 = vector.broadcast %28 : vector<1x256xf32> to vector<32x256xf32>
    %30 = arith.addf %27, %29 : vector<32x256xf32>
    %cst_26 = arith.constant 0.000000e+00 : f32
    %31 = vector.broadcast %cst_26 : f32 to vector<32x256xf32>
    %32 = arith.maximumf %30, %31 : vector<32x256xf32>
    %33 = arith.truncf %32 : vector<32x256xf32> to vector<32x256xbf16>
    %c0_27 = arith.constant 0 : index
    %c0_28 = arith.constant 0 : index
    %34 = vector.load %arg12[%c0_27, %c0_28] : memref<32x256xbf16, #tpu.memory_space<vmem>>, vector<32x256xbf16>
    tpu.vector_store %arg12[%c0_27, %c0_28], %33 {strides = array<i32>} : memref<32x256xbf16, #tpu.memory_space<vmem>>, vector<32x256xbf16>,
    return
  }
  func.func @transform_0(%arg0: i32) -> (i32, i32) {
    %c0_i32 = arith.constant 0 : i32
    %c0_i32_0 = arith.constant 0 : i32
    return %arg0, %c0_i32 : i32, i32
  }
  func.func @transform_1(%arg0: i32) -> (i32, i32) {
    %c0_i32 = arith.constant 0 : i32
    %c0_i32_0 = arith.constant 0 : i32
    %c0_i32_1 = arith.constant 0 : i32
    return %c0_i32, %c0_i32_0 : i32, i32
  }
  func.func @transform_2(%arg0: i32) -> (i32, i32) {
    %c0_i32 = arith.constant 0 : i32
    %c0_i32_0 = arith.constant 0 : i32
    %c0_i32_1 = arith.constant 0 : i32
    return %c0_i32, %c0_i32_0 : i32, i32
  }
  func.func @transform_3(%arg0: i32) -> (i32, i32) {
    %c0_i32 = arith.constant 0 : i32
    %c0_i32_0 = arith.constant 0 : i32
    %c0_i32_1 = arith.constant 0 : i32
    return %c0_i32, %c0_i32_0 : i32, i32
  }
  func.func @transform_4(%arg0: i32) -> (i32, i32) {
    %c0_i32 = arith.constant 0 : i32
    %c0_i32_0 = arith.constant 0 : i32
    %c0_i32_1 = arith.constant 0 : i32
    return %c0_i32, %c0_i32_0 : i32, i32
  }
  func.func @transform_5(%arg0: i32) -> (i32, i32) {
    %c0_i32 = arith.constant 0 : i32
    %c0_i32_0 = arith.constant 0 : i32
    return %arg0, %c0_i32 : i32, i32
  }
  func.func @transform_6(%arg0: i32) -> (i32, i32) {
    %c0_i32 = arith.constant 0 : i32
    %c0_i32_0 = arith.constant 0 : i32
    %c0_i32_1 = arith.constant 0 : i32
    return %c0_i32, %c0_i32_0 : i32, i32
  }
  func.func @transform_7(%arg0: i32) -> (i32, i32) {
    %c0_i32 = arith.constant 0 : i32
    %c0_i32_0 = arith.constant 0 : i32
    %c0_i32_1 = arith.constant 0 : i32
    return %c0_i32, %c0_i32_0 : i32, i32
  }
  func.func @transform_8(%arg0: i32) -> (i32, i32) {
    %c0_i32 = arith.constant 0 : i32
    %c0_i32_0 = arith.constant 0 : i32
    %c0_i32_1 = arith.constant 0 : i32
    return %c0_i32, %c0_i32_0 : i32, i32
  }
  func.func @transform_9(%arg0: i32) -> (i32, i32) {
    %c0_i32 = arith.constant 0 : i32
    %c0_i32_0 = arith.constant 0 : i32
    %c0_i32_1 = arith.constant 0 : i32
    return %c0_i32, %c0_i32_0 : i32, i32
  }
  func.func @transform_10(%arg0: i32) -> (i32, i32) {
    %c0_i32 = arith.constant 0 : i32
    %c0_i32_0 = arith.constant 0 : i32
    return %arg0, %c0_i32 : i32, i32
  }
  func.func @transform_11(%arg0: i32) -> (i32, i32) {
    %c0_i32 = arith.constant 0 : i32
    %c0_i32_0 = arith.constant 0 : i32
    return %arg0, %c0_i32 : i32, i32
  }
}

module attributes {stable_mosaic.version = 11 : i64} {
  func.func @_block_tail_kernel(%arg0: i32, %arg1: memref<16x1152xbf16, #tpu.memory_space<vmem>>, %arg2: memref<1152x128xbf16, #tpu.memory_space<vmem>>, %arg3: memref<1x128xf32, #tpu.memory_space<vmem>>, %arg4: memref<128x256xbf16, #tpu.memory_space<vmem>>, %arg5: memref<1x256xf32, #tpu.memory_space<vmem>>, %arg6: memref<16x128xbf16, #tpu.memory_space<vmem>>, %arg7: memref<128x256xbf16, #tpu.memory_space<vmem>>, %arg8: memref<1x256xf32, #tpu.memory_space<vmem>>, %arg9: memref<256x10xf32, #tpu.memory_space<vmem>>, %arg10: memref<1x10xf32, #tpu.memory_space<vmem>>, %arg11: memref<1x1x10xf32, #tpu.memory_space<vmem>>) attributes {dimension_semantics = [#tpu.dimension_semantics<parallel>], iteration_bounds = array<i64: 2>, scalar_prefetch = 0 : i64, scratch_operands = 0 : i64, tpu.core_type = #tpu.core_type<tc>, window_params = [{transform_indices = @transform_0, window_bounds = array<i64: 16, 1152>}, {pipeline_mode = #tpu.pipeline_mode<synchronous>, transform_indices = @transform_1, window_bounds = array<i64: 1152, 128>}, {pipeline_mode = #tpu.pipeline_mode<synchronous>, transform_indices = @transform_2, window_bounds = array<i64: 1, 128>}, {pipeline_mode = #tpu.pipeline_mode<synchronous>, transform_indices = @transform_3, window_bounds = array<i64: 128, 256>}, {pipeline_mode = #tpu.pipeline_mode<synchronous>, transform_indices = @transform_4, window_bounds = array<i64: 1, 256>}, {transform_indices = @transform_5, window_bounds = array<i64: 16, 128>}, {pipeline_mode = #tpu.pipeline_mode<synchronous>, transform_indices = @transform_6, window_bounds = array<i64: 128, 256>}, {pipeline_mode = #tpu.pipeline_mode<synchronous>, transform_indices = @transform_7, window_bounds = array<i64: 1, 256>}, {pipeline_mode = #tpu.pipeline_mode<synchronous>, transform_indices = @transform_8, window_bounds = array<i64: 256, 10>}, {pipeline_mode = #tpu.pipeline_mode<synchronous>, transform_indices = @transform_9, window_bounds = array<i64: 1, 10>}, {transform_indices = @transform_10, window_bounds = array<i64: 1, 1, 10>}]} {
    %c0 = arith.constant 0 : index
    %c0_0 = arith.constant 0 : index
    %0 = vector.load %arg1[%c0, %c0_0] : memref<16x1152xbf16, #tpu.memory_space<vmem>>, vector<16x1152xbf16>
    %c0_1 = arith.constant 0 : index
    %c0_2 = arith.constant 0 : index
    %1 = vector.load %arg2[%c0_1, %c0_2] : memref<1152x128xbf16, #tpu.memory_space<vmem>>, vector<1152x128xbf16>
    %cst = arith.constant dense<0.000000e+00> : vector<16x128xf32>
    %2 = tpu.matmul %0, %1, %cst {dimension_numbers = #tpu.dot_dimension_numbers<[1], [0], [0], [1], [0, 0, 1, 1], [], []>} : vector<16x1152xbf16>, vector<1152x128xbf16>, vector<16x128xf32> -> vector<16x128xf32>
    %c0_3 = arith.constant 0 : index
    %c0_4 = arith.constant 0 : index
    %3 = vector.load %arg3[%c0_3, %c0_4] : memref<1x128xf32, #tpu.memory_space<vmem>>, vector<1x128xf32>
    %4 = vector.broadcast %3 : vector<1x128xf32> to vector<16x128xf32>
    %5 = arith.addf %2, %4 : vector<16x128xf32>
    %cst_5 = arith.constant 0.000000e+00 : f32
    %6 = vector.broadcast %cst_5 : f32 to vector<16x128xf32>
    %7 = arith.maximumf %5, %6 : vector<16x128xf32>
    %8 = arith.truncf %7 : vector<16x128xf32> to vector<16x128xbf16>
    %c0_6 = arith.constant 0 : index
    %c0_7 = arith.constant 0 : index
    %9 = vector.load %arg4[%c0_6, %c0_7] : memref<128x256xbf16, #tpu.memory_space<vmem>>, vector<128x256xbf16>
    %cst_8 = arith.constant dense<0.000000e+00> : vector<16x256xf32>
    %10 = tpu.matmul %8, %9, %cst_8 {dimension_numbers = #tpu.dot_dimension_numbers<[1], [0], [0], [1], [0, 0, 1, 1], [], []>} : vector<16x128xbf16>, vector<128x256xbf16>, vector<16x256xf32> -> vector<16x256xf32>
    %c0_9 = arith.constant 0 : index
    %c0_10 = arith.constant 0 : index
    %11 = vector.load %arg5[%c0_9, %c0_10] : memref<1x256xf32, #tpu.memory_space<vmem>>, vector<1x256xf32>
    %12 = vector.broadcast %11 : vector<1x256xf32> to vector<16x256xf32>
    %13 = arith.addf %10, %12 : vector<16x256xf32>
    %c0_11 = arith.constant 0 : index
    %c0_12 = arith.constant 0 : index
    %14 = vector.load %arg6[%c0_11, %c0_12] : memref<16x128xbf16, #tpu.memory_space<vmem>>, vector<16x128xbf16>
    %c0_13 = arith.constant 0 : index
    %c0_14 = arith.constant 0 : index
    %15 = vector.load %arg7[%c0_13, %c0_14] : memref<128x256xbf16, #tpu.memory_space<vmem>>, vector<128x256xbf16>
    %cst_15 = arith.constant dense<0.000000e+00> : vector<16x256xf32>
    %16 = tpu.matmul %14, %15, %cst_15 {dimension_numbers = #tpu.dot_dimension_numbers<[1], [0], [0], [1], [0, 0, 1, 1], [], []>} : vector<16x128xbf16>, vector<128x256xbf16>, vector<16x256xf32> -> vector<16x256xf32>
    %17 = arith.addf %13, %16 : vector<16x256xf32>
    %c0_16 = arith.constant 0 : index
    %c0_17 = arith.constant 0 : index
    %18 = vector.load %arg8[%c0_16, %c0_17] : memref<1x256xf32, #tpu.memory_space<vmem>>, vector<1x256xf32>
    %19 = vector.broadcast %18 : vector<1x256xf32> to vector<16x256xf32>
    %20 = arith.addf %17, %19 : vector<16x256xf32>
    %cst_18 = arith.constant 0.000000e+00 : f32
    %21 = vector.broadcast %cst_18 : f32 to vector<16x256xf32>
    %22 = arith.maximumf %20, %21 : vector<16x256xf32>
    %cst_19 = arith.constant dense<0.000000e+00> : vector<256xf32>
    %23 = vector.multi_reduction <add>, %22, %cst_19 [0] : vector<16x256xf32> to vector<256xf32>
    %24 = vector.shape_cast %23 : vector<256xf32> to vector<1x256xf32>
    %cst_20 = arith.constant 1.562500e-02 : f32
    %25 = vector.broadcast %cst_20 : f32 to vector<1x256xf32>
    %26 = arith.mulf %24, %25 : vector<1x256xf32>
    %c0_21 = arith.constant 0 : index
    %c0_22 = arith.constant 0 : index
    %27 = vector.load %arg9[%c0_21, %c0_22] : memref<256x10xf32, #tpu.memory_space<vmem>>, vector<256x10xf32>
    %cst_23 = arith.constant dense<0.000000e+00> : vector<1x10xf32>
    %28 = tpu.matmul %26, %27, %cst_23 {dimension_numbers = #tpu.dot_dimension_numbers<[1], [0], [0], [1], [0, 0, 1, 1], [], []>} : vector<1x256xf32>, vector<256x10xf32>, vector<1x10xf32> -> vector<1x10xf32>
    %c0_24 = arith.constant 0 : index
    %c0_25 = arith.constant 0 : index
    %29 = vector.load %arg10[%c0_24, %c0_25] : memref<1x10xf32, #tpu.memory_space<vmem>>, vector<1x10xf32>
    %30 = arith.addf %28, %29 : vector<1x10xf32>
    %31 = vector.shape_cast %30 : vector<1x10xf32> to vector<1x1x10xf32>
    %c0_26 = arith.constant 0 : index
    %c0_27 = arith.constant 0 : index
    %c0_28 = arith.constant 0 : index
    %32 = vector.load %arg11[%c0_26, %c0_27, %c0_28] : memref<1x1x10xf32, #tpu.memory_space<vmem>>, vector<1x1x10xf32>
    tpu.vector_store %arg11[%c0_26, %c0_27, %c0_28], %31 {strides = array<i32>} : memref<1x1x10xf32, #tpu.memory_space<vmem>>, vector<1x1x10xf32>,
    return
  }
  func.func @transform_0(%arg0: i32) -> (i32, i32) {
    %c0_i32 = arith.constant 0 : i32
    %c0_i32_0 = arith.constant 0 : i32
    return %arg0, %c0_i32 : i32, i32
  }
  func.func @transform_1(%arg0: i32) -> (i32, i32) {
    %c0_i32 = arith.constant 0 : i32
    %c0_i32_0 = arith.constant 0 : i32
    %c0_i32_1 = arith.constant 0 : i32
    return %c0_i32, %c0_i32_0 : i32, i32
  }
  func.func @transform_2(%arg0: i32) -> (i32, i32) {
    %c0_i32 = arith.constant 0 : i32
    %c0_i32_0 = arith.constant 0 : i32
    %c0_i32_1 = arith.constant 0 : i32
    return %c0_i32, %c0_i32_0 : i32, i32
  }
  func.func @transform_3(%arg0: i32) -> (i32, i32) {
    %c0_i32 = arith.constant 0 : i32
    %c0_i32_0 = arith.constant 0 : i32
    %c0_i32_1 = arith.constant 0 : i32
    return %c0_i32, %c0_i32_0 : i32, i32
  }
  func.func @transform_4(%arg0: i32) -> (i32, i32) {
    %c0_i32 = arith.constant 0 : i32
    %c0_i32_0 = arith.constant 0 : i32
    %c0_i32_1 = arith.constant 0 : i32
    return %c0_i32, %c0_i32_0 : i32, i32
  }
  func.func @transform_5(%arg0: i32) -> (i32, i32) {
    %c0_i32 = arith.constant 0 : i32
    %c0_i32_0 = arith.constant 0 : i32
    return %arg0, %c0_i32 : i32, i32
  }
  func.func @transform_6(%arg0: i32) -> (i32, i32) {
    %c0_i32 = arith.constant 0 : i32
    %c0_i32_0 = arith.constant 0 : i32
    %c0_i32_1 = arith.constant 0 : i32
    return %c0_i32, %c0_i32_0 : i32, i32
  }
  func.func @transform_7(%arg0: i32) -> (i32, i32) {
    %c0_i32 = arith.constant 0 : i32
    %c0_i32_0 = arith.constant 0 : i32
    %c0_i32_1 = arith.constant 0 : i32
    return %c0_i32, %c0_i32_0 : i32, i32
  }
  func.func @transform_8(%arg0: i32) -> (i32, i32) {
    %c0_i32 = arith.constant 0 : i32
    %c0_i32_0 = arith.constant 0 : i32
    %c0_i32_1 = arith.constant 0 : i32
    return %c0_i32, %c0_i32_0 : i32, i32
  }
  func.func @transform_9(%arg0: i32) -> (i32, i32) {
    %c0_i32 = arith.constant 0 : i32
    %c0_i32_0 = arith.constant 0 : i32
    %c0_i32_1 = arith.constant 0 : i32
    return %c0_i32, %c0_i32_0 : i32, i32
  }
  func.func @transform_10(%arg0: i32) -> (i32, i32, i32) {
    %c0_i32 = arith.constant 0 : i32
    %c0_i32_0 = arith.constant 0 : i32
    %c0_i32_1 = arith.constant 0 : i32
    return %arg0, %c0_i32, %c0_i32_0 : i32, i32, i32
  }
}

</mosaic_0001>

<llo_original>
// kernel: resnext_forward.4
$region0: #{resnext_forward.4}
  #allocation0 [shape = 'u32[]', space=smem, size = 0x4, offset = 0x4, fixed_abs, tag = 'smem constant byte address 0x4 - core index']
  #allocation1 [shape = 'u32[144,128]{1,0:T(1,128)}', space=vmem, size = 0x12000, scoped, tag = 'internal scratch']
  %s0 = inlined_call_operand.vmem [shape: bf16[128,48], index: 0, kind: input, shape index: {}]
  %s1 = inlined_call_operand.hbm [shape: bf16[48,1024], index: 1, kind: input, shape index: {}]
  %s2 = inlined_call_operand.hbm [shape: f32[1,1024], index: 2, kind: input, shape index: {}]
  %s3 = inlined_call_operand.hbm [shape: bf16[1024,128], index: 3, kind: input, shape index: {}]
  %s4 = inlined_call_operand.hbm [shape: f32[1,128], index: 4, kind: input, shape index: {}]
  %s5 = inlined_call_operand.vmem [shape: bf16[128,1024], index: 5, kind: output, shape index: {0}]
  %s6 = inlined_call_operand.vmem [shape: bf16[128,128], index: 6, kind: output, shape index: {1}]
  %7 = xla_tuple %s5, %s6
  %s8 = sld [smem:[#allocation0]]
  $region77: #{resnext_forward.4} parent=0
    _
  %s10 = ssub.s32 1, %s8
  %s11 = scalar_select 0, %s10, %s8
  $region1: #{resnext_forward.4} parent=0
    #allocation2 [shape = 'u8[98304]{0}', space=vmem, size = 0x18000, scoped, tag = 'input window, operand 1, single buffered']
    #allocation3 [shape = 's32[2]{0}', space=sflag, size = 0x8, scoped, tag = 'scoped memory for resnext_forward.4']
    #allocation4 [shape = 'u8[4096]{0}', space=vmem, size = 0x1000, scoped, tag = 'input window, operand 2, single buffered']
    #allocation5 [shape = 's32[1]{0}', space=sflag, size = 0x4, scoped, tag = 'scoped memory for resnext_forward.4']
    #allocation6 [shape = 'u8[262144]{0}', space=vmem, size = 0x40000, scoped, tag = 'input window, operand 3, single buffered']
    #allocation7 [shape = 'u8[512]{0}', space=vmem, size = 0x400, scoped, tag = 'input window, operand 4, single buffered']
    #allocation8 [shape = 's32[1]{0}', space=sflag, size = 0x4, scoped, tag = 'scoped memory for resnext_forward.4']
    %12 = vsyncpa [#allocation3], 0
    %13 = vsyncpa [#allocation5], 0
    %14 = vsyncpa [#allocation8], 0
    loop: start=0, step=1, limit=4
    $region2: #{resnext_forward.4} parent=1 // loop_pre_header
      _
    $region3: #{resnext_forward.4} parent=1 // loop_header
      %s16 = sphi 0, %s20
      %p17 = scmp.ge.s32.totalorder %s16, 4
      %s26 = sphi 0, %s28
      %s29 = sphi 0, %s26
      %s30 = sphi 0, %s29
      %s46 = sphi 0, %s30
      %s50 = sphi 0, %s50
      %s52 = sphi 0, %s50
      %s53 = sphi 0, %s52
      %s67 = sphi 0, %s53
      %s71 = sphi 0, %s71
      %s73 = sphi 0, %s71
      %s74 = sphi 0, %s73
      %s88 = sphi 0, %s74
      %s92 = sphi 0, %s92
      %s94 = sphi 0, %s92
      %s95 = sphi 0, %s94
      %s109 = sphi 0, %s95
      %s113 = sphi 0, %s113
      %s115 = sphi 0, %s113
      %s116 = sphi 0, %s115
      %s130 = sphi 0, %s116
      %s136 = sphi 0, %s138
      %s139 = sphi 0, %s136
      %s140 = sphi 0, %s139
      %s156 = sphi 0, %s140
      %s162 = sphi 0, %s164
      %s165 = sphi 0, %s162
      %s166 = sphi 0, %s165
      %s182 = sphi 0, %s166
    $region4: #{resnext_forward.4} parent=1 // loop_header_branch
      %19 = sbr.rel (%p17) target = $region8
    $region5: #{resnext_forward.4} parent=1 // loop_body
      %s21 = ssub.s32 %s16, 1
      %s22 = ssub.s32 %s16, 2
      %s23 = sadd.s32 %s16, 1
      %s24 = ssub.s32 %s16, %s23
      %p25 = scmp.eq.s32.totalorder %s24, 0
      %s27 = sadd.s32 %s26, 1
      %s28 = scalar_select %p25, %s26, %s27
      %p31 = pneg %p25
      %p32 = scmp.eq.s32.totalorder %s16, 1
      %p33 = por %p31, %p32
      %p34 = scmp.ne.s32.totalorder %s26, %s29
      %p35 = scmp.eq.s32.totalorder %s16, 0
      %p36 = por %p34, %p35
      %p37 = scmp.ne.s32.totalorder %s26, %s29
      %p38 = scmp.eq.s32.totalorder %s21, 1
      %p39 = por %p37, %p38
      %p40 = scmp.ne.s32.totalorder %s29, %s30
      %p41 = scmp.eq.s32.totalorder %s21, 0
      %p42 = por %p40, %p41
      %p43 = scmp.ne.s32.totalorder %s29, %s30
      %p44 = scmp.eq.s32.totalorder %s22, 1
      %p45 = por %p43, %p44
      %p47 = scmp.ne.s32.totalorder %s30, %s46
      %p48 = scmp.eq.s32.totalorder %s22, 0
      %p49 = por %p47, %p48
      %s51 = sadd.s32 %s50, 1
      %p54 = scmp.eq.s32.totalorder %s16, 1
      %p55 = scmp.ne.s32.totalorder %s50, %s52
      %p56 = scmp.eq.s32.totalorder %s16, 0
      %p57 = por %p55, %p56
      %p58 = scmp.ne.s32.totalorder %s50, %s52
      %p59 = scmp.eq.s32.totalorder %s21, 1
      %p60 = por %p58, %p59
      %p61 = scmp.ne.s32.totalorder %s52, %s53
      %p62 = scmp.eq.s32.totalorder %s21, 0
      %p63 = por %p61, %p62
      %p64 = scmp.ne.s32.totalorder %s52, %s53
      %p65 = scmp.eq.s32.totalorder %s22, 1
      %p66 = por %p64, %p65
      %p68 = scmp.ne.s32.totalorder %s53, %s67
      %p69 = scmp.eq.s32.totalorder %s22, 0
      %p70 = por %p68, %p69
      %s72 = sadd.s32 %s71, 1
      %p75 = scmp.eq.s32.totalorder %s16, 1
      %p76 = scmp.ne.s32.totalorder %s71, %s73
      %p77 = scmp.eq.s32.totalorder %s16, 0
      %p78 = por %p76, %p77
      %p79 = scmp.ne.s32.totalorder %s71, %s73
      %p80 = scmp.eq.s32.totalorder %s21, 1
      %p81 = por %p79, %p80
      %p82 = scmp.ne.s32.totalorder %s73, %s74
      %p83 = scmp.eq.s32.totalorder %s21, 0
      %p84 = por %p82, %p83
      %p85 = scmp.ne.s32.totalorder %s73, %s74
      %p86 = scmp.eq.s32.totalorder %s22, 1
      %p87 = por %p85, %p86
      %p89 = scmp.ne.s32.totalorder %s74, %s88
      %p90 = scmp.eq.s32.totalorder %s22, 0
      %p91 = por %p89, %p90
      %s93 = sadd.s32 %s92, 1
      %p96 = scmp.eq.s32.totalorder %s16, 1
      %p97 = scmp.ne.s32.totalorder %s92, %s94
      %p98 = scmp.eq.s32.totalorder %s16, 0
      %p99 = por %p97, %p98
      %p100 = scmp.ne.s32.totalorder %s92, %s94
      %p101 = scmp.eq.s32.totalorder %s21, 1
      %p102 = por %p100, %p101
      %p103 = scmp.ne.s32.totalorder %s94, %s95
      %p104 = scmp.eq.s32.totalorder %s21, 0
      %p105 = por %p103, %p104
      %p106 = scmp.ne.s32.totalorder %s94, %s95
      %p107 = scmp.eq.s32.totalorder %s22, 1
      %p108 = por %p106, %p107
      %p110 = scmp.ne.s32.totalorder %s95, %s109
      %p111 = scmp.eq.s32.totalorder %s22, 0
      %p112 = por %p110, %p111
      %s114 = sadd.s32 %s113, 1
      %p117 = scmp.eq.s32.totalorder %s16, 1
      %p118 = scmp.ne.s32.totalorder %s113, %s115
      %p119 = scmp.eq.s32.totalorder %s16, 0
      %p120 = por %p118, %p119
      %p121 = scmp.ne.s32.totalorder %s113, %s115
      %p122 = scmp.eq.s32.totalorder %s21, 1
      %p123 = por %p121, %p122
      %p124 = scmp.ne.s32.totalorder %s115, %s116
      %p125 = scmp.eq.s32.totalorder %s21, 0
      %p126 = por %p124, %p125
      %p127 = scmp.ne.s32.totalorder %s115, %s116
      %p128 = scmp.eq.s32.totalorder %s22, 1
      %p129 = por %p127, %p128
      %p131 = scmp.ne.s32.totalorder %s116, %s130
      %p132 = scmp.eq.s32.totalorder %s22, 0
      %p133 = por %p131, %p132
      %s134 = ssub.s32 %s16, %s23
      %p135 = scmp.eq.s32.totalorder %s134, 0
      %s137 = sadd.s32 %s136, 1
      %s138 = scalar_select %p135, %s136, %s137
      %p141 = pneg %p135
      %p142 = scmp.eq.s32.totalorder %s16, 1
      %p143 = por %p141, %p142
      %p144 = scmp.ne.s32.totalorder %s136, %s139
      %p145 = scmp.eq.s32.totalorder %s16, 0
      %p146 = por %p144, %p145
      %p147 = scmp.ne.s32.totalorder %s136, %s139
      %p148 = scmp.eq.s32.totalorder %s21, 1
      %p149 = por %p147, %p148
      %p150 = scmp.ne.s32.totalorder %s139, %s140
      %p151 = scmp.eq.s32.totalorder %s21, 0
      %p152 = por %p150, %p151
      %p153 = scmp.ne.s32.totalorder %s139, %s140
      %p154 = scmp.eq.s32.totalorder %s22, 1
      %p155 = por %p153, %p154
      %p157 = scmp.ne.s32.totalorder %s140, %s156
      %p158 = scmp.eq.s32.totalorder %s22, 0
      %p159 = por %p157, %p158
      %s160 = ssub.s32 %s16, %s23
      %p161 = scmp.eq.s32.totalorder %s160, 0
      %s163 = sadd.s32 %s162, 1
      %s164 = scalar_select %p161, %s162, %s163
      %p167 = pneg %p161
      %p168 = scmp.eq.s32.totalorder %s16, 1
      %p169 = por %p167, %p168
      %p170 = scmp.ne.s32.totalorder %s162, %s165
      %p171 = scmp.eq.s32.totalorder %s16, 0
      %p172 = por %p170, %p171
      %p173 = scmp.ne.s32.totalorder %s162, %s165
      %p174 = scmp.eq.s32.totalorder %s21, 1
      %p175 = por %p173, %p174
      %p176 = scmp.ne.s32.totalorder %s165, %s166
      %p177 = scmp.eq.s32.totalorder %s21, 0
      %p178 = por %p176, %p177
      %p179 = scmp.ne.s32.totalorder %s165, %s166
      %p180 = scmp.eq.s32.totalorder %s22, 1
      %p181 = por %p179, %p180
      %p183 = scmp.ne.s32.totalorder %s166, %s182
      %p184 = scmp.eq.s32.totalorder %s22, 0
      %p185 = por %p183, %p184
      %p186 = scmp.le.s32.totalorder 1, %s16
      %p187 = scmp.lt.s32.totalorder %s16, 3
      %p188 = pnand %p186, %p187
      %p189 = pneg %p188
      // Predicated region
      $region9: #{resnext_forward.4} parent=5 // pred_check
        _
      $region10: #{resnext_forward.4} parent=5 // pred_check_branch
        %191 = sbr.rel (%p188) target = $region12
      $region11: #{resnext_forward.4} parent=5 // pred_region
        %s192 = ssub.s32 %s16, 1
        // Predicated region
        $region13: #{resnext_forward.4} parent=11 // pred_check
          %p193 = pneg %p63
        $region14: #{resnext_forward.4} parent=11 // pred_check_branch
          %195 = sbr.rel (%p193) target = $region16
        $region15: #{resnext_forward.4} parent=11 // pred_region
          %s197 = ssub.s32 3072, 3072
          %198 = vsyncadd [#allocation3], %s197
          %s199 = sshll.u32 [#allocation2], 4
          %s200 = int_to_ptr.vmem [resolvable:$true] %s199
          %205 = dma.hbm_to_vmem [thread:$0]  %s1, 3072, %s200, [#allocation3], 512, 512, 32
        $region16: #{resnext_forward.4} parent=11 // pred_fallthru
          _
        // Predicated region
        $region17: #{resnext_forward.4} parent=11 // pred_check
          %p206 = pneg %p84
        $region18: #{resnext_forward.4} parent=11 // pred_check_branch
          %208 = sbr.rel (%p206) target = $region20
        $region19: #{resnext_forward.4} parent=11 // pred_region
          %s210 = ssub.s32 128, 128
          %211 = vsyncadd [#allocation5], %s210
          %s213 = sshll.u32 [#allocation4], 4
          %s214 = int_to_ptr.vmem [resolvable:$true] %s213
          %216 = dma.hbm_to_vmem [thread:$0]  %s2, 128, %s214, [#allocation5]
        $region20: #{resnext_forward.4} parent=11 // pred_fallthru
          _
        // Predicated region
        $region21: #{resnext_forward.4} parent=11 // pred_check
          %p217 = pneg %p105
        $region22: #{resnext_forward.4} parent=11 // pred_check_branch
          %219 = sbr.rel (%p217) target = $region24
        $region23: #{resnext_forward.4} parent=11 // pred_region
          %s221 = ssub.s32 8192, 8192
          %222 = vsyncadd [#allocation5], %s221
          %s223 = sshll.u32 [#allocation6], 4
          %s224 = int_to_ptr.vmem [resolvable:$true] %s223
          %229 = dma.hbm_to_vmem [thread:$0]  %s3, 8192, %s224, [#allocation5], 64, 64, 4
        $region24: #{resnext_forward.4} parent=11 // pred_fallthru
          _
        // Predicated region
        $region25: #{resnext_forward.4} parent=11 // pred_check
          %p230 = pneg %p126
        $region26: #{resnext_forward.4} parent=11 // pred_check_branch
          %232 = sbr.rel (%p230) target = $region28
        $region27: #{resnext_forward.4} parent=11 // pred_region
          %s234 = ssub.s32 16, 16
          %235 = vsyncadd [#allocation8], %s234
          %s237 = sshll.u32 [#allocation7], 4
          %s238 = int_to_ptr.vmem [resolvable:$true] %s237
          %240 = dma.hbm_to_vmem [thread:$0]  %s4, 16, %s238, [#allocation8]
        $region28: #{resnext_forward.4} parent=11 // pred_fallthru
          _
      $region12: #{resnext_forward.4} parent=5 // pred_fallthru
        _
      %p241 = scmp.lt.s32.totalorder %s16, 2
      // Predicated region
      $region29: #{resnext_forward.4} parent=5 // pred_check
        %p242 = pneg %p241
      $region30: #{resnext_forward.4} parent=5 // pred_check_branch
        %244 = sbr.rel (%p242) target = $region32
      $region31: #{resnext_forward.4} parent=5 // pred_region
        // Predicated region
        $region33: #{resnext_forward.4} parent=31 // pred_check
          %p245 = pneg %p36
        $region34: #{resnext_forward.4} parent=31 // pred_check_branch
          %247 = sbr.rel (%p245) target = $region36
        $region35: #{resnext_forward.4} parent=31 // pred_region
          %s248 = smul.u32 8, %s16
          %p249 = scmp.lt.s32.totalorder %s248, 15
          %s250 = scalar_select %p249, %s248, 15
          %s251 = smul.addr %s250, 4
          %s252 = scalar_lea.vmem %s0, %s251
          %s253 = smul.u32 8, %s16
        $region36: #{resnext_forward.4} parent=31 // pred_fallthru
          _
      $region32: #{resnext_forward.4} parent=5 // pred_fallthru
        _
      %p254 = scmp.le.s32.totalorder 1, %s16
      %p255 = scmp.lt.s32.totalorder %s16, 3
      %p256 = pnand %p254, %p255
      %p257 = pneg %p256
      // Predicated region
      $region37: #{resnext_forward.4} parent=5 // pred_check
        _
      $region38: #{resnext_forward.4} parent=5 // pred_check_branch
        %259 = sbr.rel (%p256) target = $region40
      $region39: #{resnext_forward.4} parent=5 // pred_region
        %s260 = ssub.s32 %s16, 1
        // Predicated region
        $region41: #{resnext_forward.4} parent=39 // pred_check
          %p261 = pneg %p63
        $region42: #{resnext_forward.4} parent=39 // pred_check_branch
          %263 = sbr.rel (%p261) target = $region44
        $region43: #{resnext_forward.4} parent=39 // pred_region
          %264 = dma.done [#allocation3], 3072
        $region44: #{resnext_forward.4} parent=39 // pred_fallthru
          _
        // Predicated region
        $region45: #{resnext_forward.4} parent=39 // pred_check
          %p265 = pneg %p84
        $region46: #{resnext_forward.4} parent=39 // pred_check_branch
          %267 = sbr.rel (%p265) target = $region48
        $region47: #{resnext_forward.4} parent=39 // pred_region
          %268 = dma.done [#allocation5], 128
        $region48: #{resnext_forward.4} parent=39 // pred_fallthru
          _
        // Predicated region
        $region49: #{resnext_forward.4} parent=39 // pred_check
          %p269 = pneg %p105
        $region50: #{resnext_forward.4} parent=39 // pred_check_branch
          %271 = sbr.rel (%p269) target = $region52
        $region51: #{resnext_forward.4} parent=39 // pred_region
          %272 = dma.done [#allocation5], 8192
        $region52: #{resnext_forward.4} parent=39 // pred_fallthru
          _
        // Predicated region
        $region53: #{resnext_forward.4} parent=39 // pred_check
          %p273 = pneg %p126
        $region54: #{resnext_forward.4} parent=39 // pred_check_branch
          %275 = sbr.rel (%p273) target = $region56
        $region55: #{resnext_forward.4} parent=39 // pred_region
          %276 = dma.done [#allocation8], 16
        $region56: #{resnext_forward.4} parent=39 // pred_fallthru
          _
        %s277 = smul.u32 8, %s21
        %p278 = scmp.lt.s32.totalorder %s277, 15
        %s279 = scalar_select %p278, %s277, 15
        %s280 = smul.addr %s279, 4
        %s281 = scalar_lea.vmem %s0, %s280
        %p282 = pneg %p42
        %p283 = pneg %p39
        %p284 = pneg %p63
        %p285 = pneg %p60
        %p286 = pneg %p84
        %p287 = pneg %p81
        %p288 = pneg %p105
        %p289 = pneg %p102
        %p290 = pneg %p126
        %p291 = pneg %p123
        %p292 = pneg %p152
        %p293 = pneg %p149
        %s294 = smul.u32 8, %s21
        %p295 = scmp.lt.s32.totalorder %s294, 15
        %s296 = scalar_select %p295, %s294, 15
        %s297 = smul.addr %s296, 8
        %s298 = smul.addr %s297, 4
        %s299 = scalar_lea.vmem %s5, %s298
        %p300 = pneg %p178
        %p301 = pneg %p175
        %s302 = smul.u32 8, %s21
        %p303 = scmp.lt.s32.totalorder %s302, 15
        %s304 = scalar_select %p303, %s302, 15
        %s305 = smul.addr %s304, 4
        %s306 = scalar_lea.vmem %s6, %s305
        %s307 = smul.u32 8, %s21
        %p308 = scmp.lt.s32.totalorder %s307, 15
        %s309 = scalar_select %p308, %s307, 15
        %s310 = smul.addr %s309, 4
        %s311 = scalar_lea.vmem %s0, %s310
        %s312 = smul.u32 8, %s21
        %s313 = smul.u32 8, %s21
        %p314 = scmp.lt.s32.totalorder %s313, 15
        %s315 = scalar_select %p314, %s313, 15
        %s316 = smul.addr %s315, 8
        %s317 = smul.addr %s316, 4
        %s318 = scalar_lea.vmem %s5, %s317
        %s319 = smul.u32 8, %s21
        %s320 = smul.u32 8, %s21
        %p321 = scmp.lt.s32.totalorder %s320, 15
        %s322 = scalar_select %p321, %s320, 15
        %s323 = smul.addr %s322, 4
        %s324 = scalar_lea.vmem %s6, %s323
        %s325 = smul.u32 8, %s21
        %v327 = vld [vmem:[%s311] sm:$0xf]
        %v328 = vld [vmem:[%s311 + $0x4] sm:$0xf]
        %v329 = vld [vmem:[%s311 + $0x8] sm:$0xf]
        %v330 = vld [vmem:[%s311 + $0xc] sm:$0xf]
        %v331 = vld [vmem:[%s311 + $0x10] sm:$0xf]
        %v332 = vld [vmem:[%s311 + $0x14] sm:$0xf]
        %v333 = vld [vmem:[%s311 + $0x18] sm:$0xf]
        %v334 = vld [vmem:[%s311 + $0x1c] sm:$0xf]
        %v335 = vld [vmem:[#allocation2] sm:$0xff]
        %v336 = vld [vmem:[#allocation2 + $0x8] sm:$0xff]
        %v337 = vld [vmem:[#allocation2 + $0x10] sm:$0xff]
        %v338 = vld [vmem:[#allocation2 + $0x18] sm:$0xff]
        %v339 = vld [vmem:[#allocation2 + $0x20] sm:$0xff]
        %v340 = vld [vmem:[#allocation2 + $0x28] sm:$0xff]
        %v341 = vld [vmem:[#allocation2 + $0x30] sm:$0xff]
        %v342 = vld [vmem:[#allocation2 + $0x38] sm:$0xff]
        %v343 = vld [vmem:[#allocation2 + $0x40] sm:$0xff]
        %v344 = vld [vmem:[#allocation2 + $0x48] sm:$0xff]
        %v345 = vld [vmem:[#allocation2 + $0x50] sm:$0xff]
        %v346 = vld [vmem:[#allocation2 + $0x58] sm:$0xff]
        %v347 = vld [vmem:[#allocation2 + $0x60] sm:$0xff]
        %v348 = vld [vmem:[#allocation2 + $0x68] sm:$0xff]
        %v349 = vld [vmem:[#allocation2 + $0x70] sm:$0xff]
        %v350 = vld [vmem:[#allocation2 + $0x78] sm:$0xff]
        %v351 = vld [vmem:[#allocation2 + $0x80] sm:$0xff]
        %v352 = vld [vmem:[#allocation2 + $0x88] sm:$0xff]
        %v353 = vld [vmem:[#allocation2 + $0x90] sm:$0xff]
        %v354 = vld [vmem:[#allocation2 + $0x98] sm:$0xff]
        %v355 = vld [vmem:[#allocation2 + $0xa0] sm:$0xff]
        %v356 = vld [vmem:[#allocation2 + $0xa8] sm:$0xff]
        %v357 = vld [vmem:[#allocation2 + $0xb0] sm:$0xff]
        %v358 = vld [vmem:[#allocation2 + $0xb8] sm:$0xff]
        %v359 = vld [vmem:[#allocation4] sm:$0xff]
        %v361 = vlaneseq
        %v362 = vshrl.u32 %v361, 7
        %v363 = vsub.s32 0, %v362
        %v364 = vrot.slane %v359, %v363
        %v365 = vlaneseq
        %v366 = vshrl.u32 %v365, 7
        %v367 = vsub.s32 1, %v366
        %v368 = vrot.slane %v359, %v367
        %v369 = vlaneseq
        %v370 = vshrl.u32 %v369, 7
        %v371 = vsub.s32 2, %v370
        %v372 = vrot.slane %v359, %v371
        %v373 = vlaneseq
        %v374 = vshrl.u32 %v373, 7
        %v375 = vsub.s32 3, %v374
        %v376 = vrot.slane %v359, %v375
        %v377 = vlaneseq
        %v378 = vshrl.u32 %v377, 7
        %v379 = vsub.s32 4, %v378
        %v380 = vrot.slane %v359, %v379
        %v381 = vlaneseq
        %v382 = vshrl.u32 %v381, 7
        %v383 = vsub.s32 5, %v382
        %v384 = vrot.slane %v359, %v383
        %v385 = vlaneseq
        %v386 = vshrl.u32 %v385, 7
        %v387 = vsub.s32 6, %v386
        %v388 = vrot.slane %v359, %v387
        %v389 = vlaneseq
        %v390 = vshrl.u32 %v389, 7
        %v391 = vsub.s32 7, %v390
        %v392 = vrot.slane %v359, %v391
        %v409 = vunpack.c.l.b16 %v327
        %v410 = vunpack.c.l.b16 %v328
        %v411 = vunpack.c.l.b16 %v329
        %v412 = vunpack.c.l.b16 %v330
        %v413 = vunpack.c.l.b16 %v331
        %v414 = vunpack.c.l.b16 %v332
        %v415 = vunpack.c.l.b16 %v333
        %v416 = vunpack.c.l.b16 %v334
        %v417 = vpack.c.b16 %v410, %v409
        %v418 = vpack.c.b16 %v412, %v411
        %v419 = vpack.c.b16 %v414, %v413
        %v420 = vpack.c.b16 %v416, %v415
        %v445 = vunpack.c.l.b16 %v335
        %v446 = vunpack.c.h.b16 %v335
        %v447 = vunpack.c.l.b16 %v336
        %v448 = vunpack.c.h.b16 %v336
        %v449 = vunpack.c.l.b16 %v337
        %v450 = vunpack.c.h.b16 %v337
        %v451 = vunpack.c.l.b16 %v338
        %v452 = vunpack.c.h.b16 %v338
        %v453 = vunpack.c.l.b16 %v339
        %v454 = vunpack.c.h.b16 %v339
        %v455 = vunpack.c.l.b16 %v340
        %v456 = vunpack.c.h.b16 %v340
        %v457 = vunpack.c.l.b16 %v341
        %v458 = vunpack.c.h.b16 %v341
        %v459 = vunpack.c.l.b16 %v342
        %v460 = vunpack.c.h.b16 %v342
        %v461 = vunpack.c.l.b16 %v343
        %v462 = vunpack.c.h.b16 %v343
        %v463 = vunpack.c.l.b16 %v344
        %v464 = vunpack.c.h.b16 %v344
        %v465 = vunpack.c.l.b16 %v345
        %v466 = vunpack.c.h.b16 %v345
        %v467 = vunpack.c.l.b16 %v346
        %v468 = vunpack.c.h.b16 %v346
        %v469 = vunpack.c.l.b16 %v347
        %v470 = vunpack.c.h.b16 %v347
        %v471 = vunpack.c.l.b16 %v348
        %v472 = vunpack.c.h.b16 %v348
        %v473 = vunpack.c.l.b16 %v349
        %v474 = vunpack.c.h.b16 %v349
        %v475 = vunpack.c.l.b16 %v350
        %v476 = vunpack.c.h.b16 %v350
        %v477 = vunpack.c.l.b16 %v351
        %v478 = vunpack.c.h.b16 %v351
        %v479 = vunpack.c.l.b16 %v352
        %v480 = vunpack.c.h.b16 %v352
        %v481 = vunpack.c.l.b16 %v353
        %v482 = vunpack.c.h.b16 %v353
        %v483 = vunpack.c.l.b16 %v354
        %v484 = vunpack.c.h.b16 %v354
        %v485 = vunpack.c.l.b16 %v355
        %v486 = vunpack.c.h.b16 %v355
        %v487 = vunpack.c.l.b16 %v356
        %v488 = vunpack.c.h.b16 %v356
        %v489 = vunpack.c.l.b16 %v357
        %v490 = vunpack.c.h.b16 %v357
        %v491 = vunpack.c.l.b16 %v358
        %v492 = vunpack.c.h.b16 %v358
        %v493 = vpack.c.b16 %v453, %v445
        %v494 = vpack.c.b16 %v454, %v446
        %v495 = vpack.c.b16 %v455, %v447
        %v496 = vpack.c.b16 %v456, %v448
        %v497 = vpack.c.b16 %v457, %v449
        %v498 = vpack.c.b16 %v458, %v450
        %v499 = vpack.c.b16 %v459, %v451
        %v500 = vpack.c.b16 %v460, %v452
        %v501 = vpack.c.b16 %v469, %v461
        %v502 = vpack.c.b16 %v470, %v462
        %v503 = vpack.c.b16 %v471, %v463
        %v504 = vpack.c.b16 %v472, %v464
        %v505 = vpack.c.b16 %v473, %v465
        %v506 = vpack.c.b16 %v474, %v466
        %v507 = vpack.c.b16 %v475, %v467
        %v508 = vpack.c.b16 %v476, %v468
        %v509 = vpack.c.b16 %v485, %v477
        %v510 = vpack.c.b16 %v486, %v478
        %v511 = vpack.c.b16 %v487, %v479
        %v512 = vpack.c.b16 %v488, %v480
        %v513 = vpack.c.b16 %v489, %v481
        %v514 = vpack.c.b16 %v490, %v482
        %v515 = vpack.c.b16 %v491, %v483
        %v516 = vpack.c.b16 %v492, %v484
        %vm541 = vcmask 392192
        %v543 = vsel %vm541, %v417, 0
        %v546 = vsel %vm541, %v418, 0
        %v549 = vsel %vm541, %v419, 0
        %v552 = vsel %vm541, %v420, 0
        %554 = vmatprep.subr.bf16.mxu0 %v494
        %555 = vmatpush1.bf16.msra.mxu0 %v493
        %556 = vmatprep.subr.bf16.mxu0 %v502
        %557 = vmatpush1.bf16.msra.mxu0 %v501
        %558 = vmatprep.subr.bf16.mxu0 %v510
        %559 = vmatpush1.bf16.msra.mxu0 %v509
        %560 = vmatprep.subr.bf16.mxu0 0
        %561 = vmatpush1.bf16.msra.mxu0 0
        %562 = vmatprep.subr.bf16.mxu0 0
        %563 = vmatpush1.bf16.msra.mxu0 0
        %564 = vmatprep.subr.bf16.mxu0 0
        %565 = vmatpush1.bf16.msra.mxu0 0
        %566 = vmatprep.subr.bf16.mxu0 0
        %567 = vmatpush1.bf16.msra.mxu0 0
        %568 = vmatprep.subr.bf16.mxu0 0
        %569 = vmatpush1.bf16.msra.mxu0 0
        %570 = vmatprep.subr.bf16.mxu0 0
        %571 = vmatpush1.bf16.msra.mxu0 0
        %572 = vmatprep.subr.bf16.mxu0 0
        %573 = vmatpush1.bf16.msra.mxu0 0
        %574 = vmatprep.subr.bf16.mxu0 0
        %575 = vmatpush1.bf16.msra.mxu0 0
        %576 = vmatprep.subr.bf16.mxu0 0
        %577 = vmatpush1.bf16.msra.mxu0 0
        %578 = vmatprep.subr.bf16.mxu0 0
        %579 = vmatpush1.bf16.msra.mxu0 0
        %580 = vmatprep.subr.bf16.mxu0 0
        %581 = vmatpush1.bf16.msra.mxu0 0
        %582 = vmatprep.subr.bf16.mxu0 0
        %583 = vmatpush1.bf16.msra.mxu0 0
        %584 = vmatprep.subr.bf16.mxu0 0
        %585 = vmatpush1.bf16.msra.mxu0 0
        %586 = vmatprep.mubr.bf16.mxu0 0
        %587 = vmatmul.mubr.bf16.gmra.mrb[0].mxu0 %v543
        %v588 = vpop.f32.mrb[0].mxu0
        %v589 = vadd.f32 %v364, %v588
        %v590 = vpop.f32.mrb[0].mxu0
        %v591 = vadd.f32 %v368, %v590
        %v592 = vpop.f32.mrb[0].mxu0
        %v593 = vadd.f32 %v364, %v592
        %v594 = vpop.f32.mrb[0].mxu0
        %v595 = vadd.f32 %v368, %v594
        %596 = vmatprep.mubr.bf16.mxu0 0
        %597 = vmatmul.mubr.bf16.gmra.mrb[0].mxu0 %v546
        %v598 = vpop.f32.mrb[0].mxu0
        %v599 = vadd.f32 %v364, %v598
        %v600 = vpop.f32.mrb[0].mxu0
        %v601 = vadd.f32 %v368, %v600
        %v602 = vpop.f32.mrb[0].mxu0
        %v603 = vadd.f32 %v364, %v602
        %v604 = vpop.f32.mrb[0].mxu0
        %v605 = vadd.f32 %v368, %v604
        %606 = vmatprep.mubr.bf16.mxu0 0
        %607 = vmatmul.mubr.bf16.gmra.mrb[0].mxu0 %v549
        %v608 = vpop.f32.mrb[0].mxu0
        %v609 = vadd.f32 %v364, %v608
        %v610 = vpop.f32.mrb[0].mxu0
        %v611 = vadd.f32 %v368, %v610
        %v612 = vpop.f32.mrb[0].mxu0
        %v613 = vadd.f32 %v364, %v612
        %v614 = vpop.f32.mrb[0].mxu0
        %v615 = vadd.f32 %v368, %v614
        %616 = vmatprep.mubr.bf16.mxu0 0
        %617 = vmatmul.mubr.bf16.gmra.mrb[0].mxu0 %v552
        %v618 = vpop.f32.mrb[0].mxu0
        %v619 = vadd.f32 %v364, %v618
        %v620 = vpop.f32.mrb[0].mxu0
        %v621 = vadd.f32 %v368, %v620
        %v622 = vpop.f32.mrb[0].mxu0
        %v623 = vadd.f32 %v364, %v622
        %v624 = vpop.f32.mrb[0].mxu0
        %v625 = vadd.f32 %v368, %v624
        %626 = vdwg.mxu0
        %627 = vmatprep.subr.bf16.mxu0 %v496
        %628 = vmatpush1.bf16.msra.mxu0 %v495
        %629 = vmatprep.subr.bf16.mxu0 %v504
        %630 = vmatpush1.bf16.msra.mxu0 %v503
        %631 = vmatprep.subr.bf16.mxu0 %v512
        %632 = vmatpush1.bf16.msra.mxu0 %v511
        %633 = vmatprep.subr.bf16.mxu0 0
        %634 = vmatpush1.bf16.msra.mxu0 0
        %635 = vmatprep.subr.bf16.mxu0 0
        %636 = vmatpush1.bf16.msra.mxu0 0
        %637 = vmatprep.subr.bf16.mxu0 0
        %638 = vmatpush1.bf16.msra.mxu0 0
        %639 = vmatprep.subr.bf16.mxu0 0
        %640 = vmatpush1.bf16.msra.mxu0 0
        %641 = vmatprep.subr.bf16.mxu0 0
        %642 = vmatpush1.bf16.msra.mxu0 0
        %643 = vmatprep.subr.bf16.mxu0 0
        %644 = vmatpush1.bf16.msra.mxu0 0
        %645 = vmatprep.subr.bf16.mxu0 0
        %646 = vmatpush1.bf16.msra.mxu0 0
        %647 = vmatprep.subr.bf16.mxu0 0
        %648 = vmatpush1.bf16.msra.mxu0 0
        %649 = vmatprep.subr.bf16.mxu0 0
        %650 = vmatpush1.bf16.msra.mxu0 0
        %651 = vmatprep.subr.bf16.mxu0 0
        %652 = vmatpush1.bf16.msra.mxu0 0
        %653 = vmatprep.subr.bf16.mxu0 0
        %654 = vmatpush1.bf16.msra.mxu0 0
        %655 = vmatprep.subr.bf16.mxu0 0
        %656 = vmatpush1.bf16.msra.mxu0 0
        %657 = vmatprep.subr.bf16.mxu0 0
        %658 = vmatpush1.bf16.msra.mxu0 0
        %659 = vmatprep.mubr.bf16.mxu0 0
        %660 = vmatmul.mubr.bf16.gmra.mrb[0].mxu0 %v543
        %v661 = vpop.f32.mrb[0].mxu0
        %v662 = vadd.f32 %v372, %v661
        %v663 = vpop.f32.mrb[0].mxu0
        %v664 = vadd.f32 %v376, %v663
        %v665 = vpop.f32.mrb[0].mxu0
        %v666 = vadd.f32 %v372, %v665
        %v667 = vpop.f32.mrb[0].mxu0
        %v668 = vadd.f32 %v376, %v667
        %669 = vmatprep.mubr.bf16.mxu0 0
        %670 = vmatmul.mubr.bf16.gmra.mrb[0].mxu0 %v546
        %v671 = vpop.f32.mrb[0].mxu0
        %v672 = vadd.f32 %v372, %v671
        %v673 = vpop.f32.mrb[0].mxu0
        %v674 = vadd.f32 %v376, %v673
        %v675 = vpop.f32.mrb[0].mxu0
        %v676 = vadd.f32 %v372, %v675
        %v677 = vpop.f32.mrb[0].mxu0
        %v678 = vadd.f32 %v376, %v677
        %679 = vmatprep.mubr.bf16.mxu0 0
        %680 = vmatmul.mubr.bf16.gmra.mrb[0].mxu0 %v549
        %v681 = vpop.f32.mrb[0].mxu0
        %v682 = vadd.f32 %v372, %v681
        %v683 = vpop.f32.mrb[0].mxu0
        %v684 = vadd.f32 %v376, %v683
        %v685 = vpop.f32.mrb[0].mxu0
        %v686 = vadd.f32 %v372, %v685
        %v687 = vpop.f32.mrb[0].mxu0
        %v688 = vadd.f32 %v376, %v687
        %689 = vmatprep.mubr.bf16.mxu0 0
        %690 = vmatmul.mubr.bf16.gmra.mrb[0].mxu0 %v552
        %v691 = vpop.f32.mrb[0].mxu0
        %v692 = vadd.f32 %v372, %v691
        %v693 = vpop.f32.mrb[0].mxu0
        %v694 = vadd.f32 %v376, %v693
        %v695 = vpop.f32.mrb[0].mxu0
        %v696 = vadd.f32 %v372, %v695
        %v697 = vpop.f32.mrb[0].mxu0
        %v698 = vadd.f32 %v376, %v697
        %699 = vdwg.mxu0
        %700 = vmatprep.subr.bf16.mxu0 %v498
        %701 = vmatpush1.bf16.msra.mxu0 %v497
        %702 = vmatprep.subr.bf16.mxu0 %v506
        %703 = vmatpush1.bf16.msra.mxu0 %v505
        %704 = vmatprep.subr.bf16.mxu0 %v514
        %705 = vmatpush1.bf16.msra.mxu0 %v513
        %706 = vmatprep.subr.bf16.mxu0 0
        %707 = vmatpush1.bf16.msra.mxu0 0
        %708 = vmatprep.subr.bf16.mxu0 0
        %709 = vmatpush1.bf16.msra.mxu0 0
        %710 = vmatprep.subr.bf16.mxu0 0
        %711 = vmatpush1.bf16.msra.mxu0 0
        %712 = vmatprep.subr.bf16.mxu0 0
        %713 = vmatpush1.bf16.msra.mxu0 0
        %714 = vmatprep.subr.bf16.mxu0 0
        %715 = vmatpush1.bf16.msra.mxu0 0
        %716 = vmatprep.subr.bf16.mxu0 0
        %717 = vmatpush1.bf16.msra.mxu0 0
        %718 = vmatprep.subr.bf16.mxu0 0
        %719 = vmatpush1.bf16.msra.mxu0 0
        %720 = vmatprep.subr.bf16.mxu0 0
        %721 = vmatpush1.bf16.msra.mxu0 0
        %722 = vmatprep.subr.bf16.mxu0 0
        %723 = vmatpush1.bf16.msra.mxu0 0
        %724 = vmatprep.subr.bf16.mxu0 0
        %725 = vmatpush1.bf16.msra.mxu0 0
        %726 = vmatprep.subr.bf16.mxu0 0
        %727 = vmatpush1.bf16.msra.mxu0 0
        %728 = vmatprep.subr.bf16.mxu0 0
        %729 = vmatpush1.bf16.msra.mxu0 0
        %730 = vmatprep.subr.bf16.mxu0 0
        %731 = vmatpush1.bf16.msra.mxu0 0
        %732 = vmatprep.mubr.bf16.mxu0 0
        %733 = vmatmul.mubr.bf16.gmra.mrb[0].mxu0 %v543
        %v734 = vpop.f32.mrb[0].mxu0
        %v735 = vadd.f32 %v380, %v734
        %v736 = vpop.f32.mrb[0].mxu0
        %v737 = vadd.f32 %v384, %v736
        %v738 = vpop.f32.mrb[0].mxu0
        %v739 = vadd.f32 %v380, %v738
        %v740 = vpop.f32.mrb[0].mxu0
        %v741 = vadd.f32 %v384, %v740
        %742 = vmatprep.mubr.bf16.mxu0 0
        %743 = vmatmul.mubr.bf16.gmra.mrb[0].mxu0 %v546
        %v744 = vpop.f32.mrb[0].mxu0
        %v745 = vadd.f32 %v380, %v744
        %v746 = vpop.f32.mrb[0].mxu0
        %v747 = vadd.f32 %v384, %v746
        %v748 = vpop.f32.mrb[0].mxu0
        %v749 = vadd.f32 %v380, %v748
        %v750 = vpop.f32.mrb[0].mxu0
        %v751 = vadd.f32 %v384, %v750
        %752 = vmatprep.mubr.bf16.mxu0 0
        %753 = vmatmul.mubr.bf16.gmra.mrb[0].mxu0 %v549
        %v754 = vpop.f32.mrb[0].mxu0
        %v755 = vadd.f32 %v380, %v754
        %v756 = vpop.f32.mrb[0].mxu0
        %v757 = vadd.f32 %v384, %v756
        %v758 = vpop.f32.mrb[0].mxu0
        %v759 = vadd.f32 %v380, %v758
        %v760 = vpop.f32.mrb[0].mxu0
        %v761 = vadd.f32 %v384, %v760
        %762 = vmatprep.mubr.bf16.mxu0 0
        %763 = vmatmul.mubr.bf16.gmra.mrb[0].mxu0 %v552
        %v764 = vpop.f32.mrb[0].mxu0
        %v765 = vadd.f32 %v380, %v764
        %v766 = vpop.f32.mrb[0].mxu0
        %v767 = vadd.f32 %v384, %v766
        %v768 = vpop.f32.mrb[0].mxu0
        %v769 = vadd.f32 %v380, %v768
        %v770 = vpop.f32.mrb[0].mxu0
        %v771 = vadd.f32 %v384, %v770
        %772 = vdwg.mxu0
        %773 = vmatprep.subr.bf16.mxu0 %v500
        %774 = vmatpush1.bf16.msra.mxu0 %v499
        %775 = vmatprep.subr.bf16.mxu0 %v508
        %776 = vmatpush1.bf16.msra.mxu0 %v507
        %777 = vmatprep.subr.bf16.mxu0 %v516
        %778 = vmatpush1.bf16.msra.mxu0 %v515
        %779 = vmatprep.subr.bf16.mxu0 0
        %780 = vmatpush1.bf16.msra.mxu0 0
        %781 = vmatprep.subr.bf16.mxu0 0
        %782 = vmatpush1.bf16.msra.mxu0 0
        %783 = vmatprep.subr.bf16.mxu0 0
        %784 = vmatpush1.bf16.msra.mxu0 0
        %785 = vmatprep.subr.bf16.mxu0 0
        %786 = vmatpush1.bf16.msra.mxu0 0
        %787 = vmatprep.subr.bf16.mxu0 0
        %788 = vmatpush1.bf16.msra.mxu0 0
        %789 = vmatprep.subr.bf16.mxu0 0
        %790 = vmatpush1.bf16.msra.mxu0 0
        %791 = vmatprep.subr.bf16.mxu0 0
        %792 = vmatpush1.bf16.msra.mxu0 0
        %793 = vmatprep.subr.bf16.mxu0 0
        %794 = vmatpush1.bf16.msra.mxu0 0
        %795 = vmatprep.subr.bf16.mxu0 0
        %796 = vmatpush1.bf16.msra.mxu0 0
        %797 = vmatprep.subr.bf16.mxu0 0
        %798 = vmatpush1.bf16.msra.mxu0 0
        %799 = vmatprep.subr.bf16.mxu0 0
        %800 = vmatpush1.bf16.msra.mxu0 0
        %801 = vmatprep.subr.bf16.mxu0 0
        %802 = vmatpush1.bf16.msra.mxu0 0
        %803 = vmatprep.subr.bf16.mxu0 0
        %804 = vmatpush1.bf16.msra.mxu0 0
        %805 = vmatprep.mubr.bf16.mxu0 0
        %806 = vmatmul.mubr.bf16.gmra.mrb[0].mxu0 %v543
        %v807 = vpop.f32.mrb[0].mxu0
        %v808 = vadd.f32 %v388, %v807
        %v809 = vpop.f32.mrb[0].mxu0
        %v810 = vadd.f32 %v392, %v809
        %v811 = vpop.f32.mrb[0].mxu0
        %v812 = vadd.f32 %v388, %v811
        %v813 = vpop.f32.mrb[0].mxu0
        %v814 = vadd.f32 %v392, %v813
        %815 = vmatprep.mubr.bf16.mxu0 0
        %816 = vmatmul.mubr.bf16.gmra.mrb[0].mxu0 %v546
        %v817 = vpop.f32.mrb[0].mxu0
        %v818 = vadd.f32 %v388, %v817
        %v819 = vpop.f32.mrb[0].mxu0
        %v820 = vadd.f32 %v392, %v819
        %v821 = vpop.f32.mrb[0].mxu0
        %v822 = vadd.f32 %v388, %v821
        %v823 = vpop.f32.mrb[0].mxu0
        %v824 = vadd.f32 %v392, %v823
        %825 = vmatprep.mubr.bf16.mxu0 0
        %826 = vmatmul.mubr.bf16.gmra.mrb[0].mxu0 %v549
        %v827 = vpop.f32.mrb[0].mxu0
        %v828 = vadd.f32 %v388, %v827
        %v829 = vpop.f32.mrb[0].mxu0
        %v830 = vadd.f32 %v392, %v829
        %v831 = vpop.f32.mrb[0].mxu0
        %v832 = vadd.f32 %v388, %v831
        %v833 = vpop.f32.mrb[0].mxu0
        %v834 = vadd.f32 %v392, %v833
        %835 = vmatprep.mubr.bf16.mxu0 0
        %836 = vmatmul.mubr.bf16.gmra.mrb[0].mxu0 %v552
        %v837 = vpop.f32.mrb[0].mxu0
        %v838 = vadd.f32 %v388, %v837
        %v839 = vpop.f32.mrb[0].mxu0
        %v840 = vadd.f32 %v392, %v839
        %v841 = vpop.f32.mrb[0].mxu0
        %v842 = vadd.f32 %v388, %v841
        %v843 = vpop.f32.mrb[0].mxu0
        %v844 = vadd.f32 %v392, %v843
        %845 = vdwg.mxu0
        %v846 = vmax.f32 %v589, 0.0
        %v847 = vmax.f32 %v591, 0.0
        %v848 = vmax.f32 %v662, 0.0
        %v849 = vmax.f32 %v664, 0.0
        %v850 = vmax.f32 %v735, 0.0
        %v851 = vmax.f32 %v737, 0.0
        %v852 = vmax.f32 %v808, 0.0
        %v853 = vmax.f32 %v810, 0.0
        %v854 = vmax.f32 %v593, 0.0
        %v855 = vmax.f32 %v595, 0.0
        %v856 = vmax.f32 %v666, 0.0
        %v857 = vmax.f32 %v668, 0.0
        %v858 = vmax.f32 %v739, 0.0
        %v859 = vmax.f32 %v741, 0.0
        %v860 = vmax.f32 %v812, 0.0
        %v861 = vmax.f32 %v814, 0.0
        %v862 = vmax.f32 %v599, 0.0
        %v863 = vmax.f32 %v601, 0.0
        %v864 = vmax.f32 %v672, 0.0
        %v865 = vmax.f32 %v674, 0.0
        %v866 = vmax.f32 %v745, 0.0
        %v867 = vmax.f32 %v747, 0.0
        %v868 = vmax.f32 %v818, 0.0
        %v869 = vmax.f32 %v820, 0.0
        %v870 = vmax.f32 %v603, 0.0
        %v871 = vmax.f32 %v605, 0.0
        %v872 = vmax.f32 %v676, 0.0
        %v873 = vmax.f32 %v678, 0.0
        %v874 = vmax.f32 %v749, 0.0
        %v875 = vmax.f32 %v751, 0.0
        %v876 = vmax.f32 %v822, 0.0
        %v877 = vmax.f32 %v824, 0.0
        %v878 = vmax.f32 %v609, 0.0
        %v879 = vmax.f32 %v611, 0.0
        %v880 = vmax.f32 %v682, 0.0
        %v881 = vmax.f32 %v684, 0.0
        %v882 = vmax.f32 %v755, 0.0
        %v883 = vmax.f32 %v757, 0.0
        %v884 = vmax.f32 %v828, 0.0
        %v885 = vmax.f32 %v830, 0.0
        %v886 = vmax.f32 %v613, 0.0
        %v887 = vmax.f32 %v615, 0.0
        %v888 = vmax.f32 %v686, 0.0
        %v889 = vmax.f32 %v688, 0.0
        %v890 = vmax.f32 %v759, 0.0
        %v891 = vmax.f32 %v761, 0.0
        %v892 = vmax.f32 %v832, 0.0
        %v893 = vmax.f32 %v834, 0.0
        %v894 = vmax.f32 %v619, 0.0
        %v895 = vmax.f32 %v621, 0.0
        %v896 = vmax.f32 %v692, 0.0
        %v897 = vmax.f32 %v694, 0.0
        %v898 = vmax.f32 %v765, 0.0
        %v899 = vmax.f32 %v767, 0.0
        %v900 = vmax.f32 %v838, 0.0
        %v901 = vmax.f32 %v840, 0.0
        %v902 = vmax.f32 %v623, 0.0
        %v903 = vmax.f32 %v625, 0.0
        %v904 = vmax.f32 %v696, 0.0
        %v905 = vmax.f32 %v698, 0.0
        %v906 = vmax.f32 %v769, 0.0
        %v907 = vmax.f32 %v771, 0.0
        %v908 = vmax.f32 %v842, 0.0
        %v909 = vmax.f32 %v844, 0.0
        %v910 = vpack.c.bf16 %v854, %v846
        %v911 = vpack.c.bf16 %v855, %v847
        %v912 = vpack.c.bf16 %v856, %v848
        %v913 = vpack.c.bf16 %v857, %v849
        %v914 = vpack.c.bf16 %v858, %v850
        %v915 = vpack.c.bf16 %v859, %v851
        %v916 = vpack.c.bf16 %v860, %v852
        %v917 = vpack.c.bf16 %v861, %v853
        %v918 = vpack.c.bf16 %v870, %v862
        %v919 = vpack.c.bf16 %v871, %v863
        %v920 = vpack.c.bf16 %v872, %v864
        %v921 = vpack.c.bf16 %v873, %v865
        %v922 = vpack.c.bf16 %v874, %v866
        %v923 = vpack.c.bf16 %v875, %v867
        %v924 = vpack.c.bf16 %v876, %v868
        %v925 = vpack.c.bf16 %v877, %v869
        %v926 = vpack.c.bf16 %v886, %v878
        %v927 = vpack.c.bf16 %v887, %v879
        %v928 = vpack.c.bf16 %v888, %v880
        %v929 = vpack.c.bf16 %v889, %v881
        %v930 = vpack.c.bf16 %v890, %v882
        %v931 = vpack.c.bf16 %v891, %v883
        %v932 = vpack.c.bf16 %v892, %v884
        %v933 = vpack.c.bf16 %v893, %v885
        %v934 = vpack.c.bf16 %v902, %v894
        %v935 = vpack.c.bf16 %v903, %v895
        %v936 = vpack.c.bf16 %v904, %v896
        %v937 = vpack.c.bf16 %v905, %v897
        %v938 = vpack.c.bf16 %v906, %v898
        %v939 = vpack.c.bf16 %v907, %v899
        %v940 = vpack.c.bf16 %v908, %v900
        %v941 = vpack.c.bf16 %v909, %v901
        %v974 = vunpack.c.l.b16 %v910
        %v975 = vunpack.c.l.b16 %v911
        %v976 = vunpack.c.l.b16 %v912
        %v977 = vunpack.c.l.b16 %v913
        %v978 = vunpack.c.l.b16 %v914
        %v979 = vunpack.c.l.b16 %v915
        %v980 = vunpack.c.l.b16 %v916
        %v981 = vunpack.c.l.b16 %v917
        %v982 = vunpack.c.h.b16 %v910
        %v983 = vunpack.c.h.b16 %v911
        %v984 = vunpack.c.h.b16 %v912
        %v985 = vunpack.c.h.b16 %v913
        %v986 = vunpack.c.h.b16 %v914
        %v987 = vunpack.c.h.b16 %v915
        %v988 = vunpack.c.h.b16 %v916
        %v989 = vunpack.c.h.b16 %v917
        %v990 = vunpack.c.l.b16 %v918
        %v991 = vunpack.c.l.b16 %v919
        %v992 = vunpack.c.l.b16 %v920
        %v993 = vunpack.c.l.b16 %v921
        %v994 = vunpack.c.l.b16 %v922
        %v995 = vunpack.c.l.b16 %v923
        %v996 = vunpack.c.l.b16 %v924
        %v997 = vunpack.c.l.b16 %v925
        %v998 = vunpack.c.h.b16 %v918
        %v999 = vunpack.c.h.b16 %v919
        %v1000 = vunpack.c.h.b16 %v920
        %v1001 = vunpack.c.h.b16 %v921
        %v1002 = vunpack.c.h.b16 %v922
        %v1003 = vunpack.c.h.b16 %v923
        %v1004 = vunpack.c.h.b16 %v924
        %v1005 = vunpack.c.h.b16 %v925
        %v1006 = vunpack.c.l.b16 %v926
        %v1007 = vunpack.c.l.b16 %v927
        %v1008 = vunpack.c.l.b16 %v928
        %v1009 = vunpack.c.l.b16 %v929
        %v1010 = vunpack.c.l.b16 %v930
        %v1011 = vunpack.c.l.b16 %v931
        %v1012 = vunpack.c.l.b16 %v932
        %v1013 = vunpack.c.l.b16 %v933
        %v1014 = vunpack.c.h.b16 %v926
        %v1015 = vunpack.c.h.b16 %v927
        %v1016 = vunpack.c.h.b16 %v928
        %v1017 = vunpack.c.h.b16 %v929
        %v1018 = vunpack.c.h.b16 %v930
        %v1019 = vunpack.c.h.b16 %v931
        %v1020 = vunpack.c.h.b16 %v932
        %v1021 = vunpack.c.h.b16 %v933
        %v1022 = vunpack.c.l.b16 %v934
        %v1023 = vunpack.c.l.b16 %v935
        %v1024 = vunpack.c.l.b16 %v936
        %v1025 = vunpack.c.l.b16 %v937
        %v1026 = vunpack.c.l.b16 %v938
        %v1027 = vunpack.c.l.b16 %v939
        %v1028 = vunpack.c.l.b16 %v940
        %v1029 = vunpack.c.l.b16 %v941
        %v1030 = vunpack.c.h.b16 %v934
        %v1031 = vunpack.c.h.b16 %v935
        %v1032 = vunpack.c.h.b16 %v936
        %v1033 = vunpack.c.h.b16 %v937
        %v1034 = vunpack.c.h.b16 %v938
        %v1035 = vunpack.c.h.b16 %v939
        %v1036 = vunpack.c.h.b16 %v940
        %v1037 = vunpack.c.h.b16 %v941
        %v1038 = vpack.c.b16 %v975, %v974
        %v1039 = vpack.c.b16 %v977, %v976
        %v1040 = vpack.c.b16 %v979, %v978
        %v1041 = vpack.c.b16 %v981, %v980
        %v1042 = vpack.c.b16 %v983, %v982
        %v1043 = vpack.c.b16 %v985, %v984
        %v1044 = vpack.c.b16 %v987, %v986
        %v1045 = vpack.c.b16 %v989, %v988
        %v1046 = vpack.c.b16 %v991, %v990
        %v1047 = vpack.c.b16 %v993, %v992
        %v1048 = vpack.c.b16 %v995, %v994
        %v1049 = vpack.c.b16 %v997, %v996
        %v1050 = vpack.c.b16 %v999, %v998
        %v1051 = vpack.c.b16 %v1001, %v1000
        %v1052 = vpack.c.b16 %v1003, %v1002
        %v1053 = vpack.c.b16 %v1005, %v1004
        %v1054 = vpack.c.b16 %v1007, %v1006
        %v1055 = vpack.c.b16 %v1009, %v1008
        %v1056 = vpack.c.b16 %v1011, %v1010
        %v1057 = vpack.c.b16 %v1013, %v1012
        %v1058 = vpack.c.b16 %v1015, %v1014
        %v1059 = vpack.c.b16 %v1017, %v1016
        %v1060 = vpack.c.b16 %v1019, %v1018
        %v1061 = vpack.c.b16 %v1021, %v1020
        %v1062 = vpack.c.b16 %v1023, %v1022
        %v1063 = vpack.c.b16 %v1025, %v1024
        %v1064 = vpack.c.b16 %v1027, %v1026
        %v1065 = vpack.c.b16 %v1029, %v1028
        %v1066 = vpack.c.b16 %v1031, %v1030
        %v1067 = vpack.c.b16 %v1033, %v1032
        %v1068 = vpack.c.b16 %v1035, %v1034
        %v1069 = vpack.c.b16 %v1037, %v1036
        %1102 = vst [vmem:[%s318] sm:$0xff] %v1038
        %1103 = vst [vmem:[%s318 + $0x8] sm:$0xff] %v1039
        %1104 = vst [vmem:[%s318 + $0x10] sm:$0xff] %v1040
        %1105 = vst [vmem:[%s318 + $0x18] sm:$0xff] %v1041
        %1106 = vst [vmem:[%s318 + $0x20] sm:$0xff] %v1042
        %1107 = vst [vmem:[%s318 + $0x28] sm:$0xff] %v1043
        %1108 = vst [vmem:[%s318 + $0x30] sm:$0xff] %v1044
        %1109 = vst [vmem:[%s318 + $0x38] sm:$0xff] %v1045
        %1110 = vst [vmem:[%s318 + $0x40] sm:$0xff] %v1046
        %1111 = vst [vmem:[%s318 + $0x48] sm:$0xff] %v1047
        %1112 = vst [vmem:[%s318 + $0x50] sm:$0xff] %v1048
        %1113 = vst [vmem:[%s318 + $0x58] sm:$0xff] %v1049
        %1114 = vst [vmem:[%s318 + $0x60] sm:$0xff] %v1050
        %1115 = vst [vmem:[%s318 + $0x68] sm:$0xff] %v1051
        %1116 = vst [vmem:[%s318 + $0x70] sm:$0xff] %v1052
        %1117 = vst [vmem:[%s318 + $0x78] sm:$0xff] %v1053
        %1118 = vst [vmem:[%s318 + $0x80] sm:$0xff] %v1054
        %1119 = vst [vmem:[%s318 + $0x88] sm:$0xff] %v1055
        %1120 = vst [vmem:[%s318 + $0x90] sm:$0xff] %v1056
        %1121 = vst [vmem:[%s318 + $0x98] sm:$0xff] %v1057
        %1122 = vst [vmem:[%s318 + $0xa0] sm:$0xff] %v1058
        %1123 = vst [vmem:[%s318 + $0xa8] sm:$0xff] %v1059
        %1124 = vst [vmem:[%s318 + $0xb0] sm:$0xff] %v1060
        %1125 = vst [vmem:[%s318 + $0xb8] sm:$0xff] %v1061
        %1126 = vst [vmem:[%s318 + $0xc0] sm:$0xff] %v1062
        %1127 = vst [vmem:[%s318 + $0xc8] sm:$0xff] %v1063
        %1128 = vst [vmem:[%s318 + $0xd0] sm:$0xff] %v1064
        %1129 = vst [vmem:[%s318 + $0xd8] sm:$0xff] %v1065
        %1130 = vst [vmem:[%s318 + $0xe0] sm:$0xff] %v1066
        %1131 = vst [vmem:[%s318 + $0xe8] sm:$0xff] %v1067
        %1132 = vst [vmem:[%s318 + $0xf0] sm:$0xff] %v1068
        %1133 = vst [vmem:[%s318 + $0xf8] sm:$0xff] %v1069
        %v1134 = vld [vmem:[#allocation6] sm:$0xf]
        %v1135 = vld [vmem:[#allocation6 + $0x4] sm:$0xf]
        %v1136 = vld [vmem:[#allocation6 + $0x8] sm:$0xf]
        %v1137 = vld [vmem:[#allocation6 + $0xc] sm:$0xf]
        %v1138 = vld [vmem:[#allocation6 + $0x10] sm:$0xf]
        %v1139 = vld [vmem:[#allocation6 + $0x14] sm:$0xf]
        %v1140 = vld [vmem:[#allocation6 + $0x18] sm:$0xf]
        %v1141 = vld [vmem:[#allocation6 + $0x1c] sm:$0xf]
        %v1142 = vld [vmem:[#allocation6 + $0x20] sm:$0xf]
        %v1143 = vld [vmem:[#allocation6 + $0x24] sm:$0xf]
        %v1144 = vld [vmem:[#allocation6 + $0x28] sm:$0xf]
        %v1145 = vld [vmem:[#allocation6 + $0x2c] sm:$0xf]
        %v1146 = vld [vmem:[#allocation6 + $0x30] sm:$0xf]
        %v1147 = vld [vmem:[#allocation6 + $0x34] sm:$0xf]
        %v1148 = vld [vmem:[#allocation6 + $0x38] sm:$0xf]
        %v1149 = vld [vmem:[#allocation6 + $0x3c] sm:$0xf]
        %v1150 = vld [vmem:[#allocation6 + $0x40] sm:$0xf]
        %v1151 = vld [vmem:[#allocation6 + $0x44] sm:$0xf]
        %v1152 = vld [vmem:[#allocation6 + $0x48] sm:$0xf]
        %v1153 = vld [vmem:[#allocation6 + $0x4c] sm:$0xf]
        %v1154 = vld [vmem:[#allocation6 + $0x50] sm:$0xf]
        %v1155 = vld [vmem:[#allocation6 + $0x54] sm:$0xf]
        %v1156 = vld [vmem:[#allocation6 + $0x58] sm:$0xf]
        %v1157 = vld [vmem:[#allocation6 + $0x5c] sm:$0xf]
        %v1158 = vld [vmem:[#allocation6 + $0x60] sm:$0xf]
        %v1159 = vld [vmem:[#allocation6 + $0x64] sm:$0xf]
        %v1160 = vld [vmem:[#allocation6 + $0x68] sm:$0xf]
        %v1161 = vld [vmem:[#allocation6 + $0x6c] sm:$0xf]
        %v1162 = vld [vmem:[#allocation6 + $0x70] sm:$0xf]
        %v1163 = vld [vmem:[#allocation6 + $0x74] sm:$0xf]
        %v1164 = vld [vmem:[#allocation6 + $0x78] sm:$0xf]
        %v1165 = vld [vmem:[#allocation6 + $0x7c] sm:$0xf]
        %v1166 = vld [vmem:[#allocation6 + $0x80] sm:$0xf]
        %v1167 = vld [vmem:[#allocation6 + $0x84] sm:$0xf]
        %v1168 = vld [vmem:[#allocation6 + $0x88] sm:$0xf]
        %v1169 = vld [vmem:[#allocation6 + $0x8c] sm:$0xf]
        %v1170 = vld [vmem:[#allocation6 + $0x90] sm:$0xf]
        %v1171 = vld [vmem:[#allocation6 + $0x94] sm:$0xf]
        %v1172 = vld [vmem:[#allocation6 + $0x98] sm:$0xf]
        %v1173 = vld [vmem:[#allocation6 + $0x9c] sm:$0xf]
        %v1174 = vld [vmem:[#allocation6 + $0xa0] sm:$0xf]
        %v1175 = vld [vmem:[#allocation6 + $0xa4] sm:$0xf]
        %v1176 = vld [vmem:[#allocation6 + $0xa8] sm:$0xf]
        %v1177 = vld [vmem:[#allocation6 + $0xac] sm:$0xf]
        %v1178 = vld [vmem:[#allocation6 + $0xb0] sm:$0xf]
        %v1179 = vld [vmem:[#allocation6 + $0xb4] sm:$0xf]
        %v1180 = vld [vmem:[#allocation6 + $0xb8] sm:$0xf]
        %v1181 = vld [vmem:[#allocation6 + $0xbc] sm:$0xf]
        %v1182 = vld [vmem:[#allocation6 + $0xc0] sm:$0xf]
        %v1183 = vld [vmem:[#allocation6 + $0xc4] sm:$0xf]
        %v1184 = vld [vmem:[#allocation6 + $0xc8] sm:$0xf]
        %v1185 = vld [vmem:[#allocation6 + $0xcc] sm:$0xf]
        %v1186 = vld [vmem:[#allocation6 + $0xd0] sm:$0xf]
        %v1187 = vld [vmem:[#allocation6 + $0xd4] sm:$0xf]
        %v1188 = vld [vmem:[#allocation6 + $0xd8] sm:$0xf]
        %v1189 = vld [vmem:[#allocation6 + $0xdc] sm:$0xf]
        %v1190 = vld [vmem:[#allocation6 + $0xe0] sm:$0xf]
        %v1191 = vld [vmem:[#allocation6 + $0xe4] sm:$0xf]
        %v1192 = vld [vmem:[#allocation6 + $0xe8] sm:$0xf]
        %v1193 = vld [vmem:[#allocation6 + $0xec] sm:$0xf]
        %v1194 = vld [vmem:[#allocation6 + $0xf0] sm:$0xf]
        %v1195 = vld [vmem:[#allocation6 + $0xf4] sm:$0xf]
        %v1196 = vld [vmem:[#allocation6 + $0xf8] sm:$0xf]
        %v1197 = vld [vmem:[#allocation6 + $0xfc] sm:$0xf]
        %v1198 = vld [vmem:[#allocation6 + $0x100] sm:$0xf]
        %v1199 = vld [vmem:[#allocation6 + $0x104] sm:$0xf]
        %v1200 = vld [vmem:[#allocation6 + $0x108] sm:$0xf]
        %v1201 = vld [vmem:[#allocation6 + $0x10c] sm:$0xf]
        %v1202 = vld [vmem:[#allocation6 + $0x110] sm:$0xf]
        %v1203 = vld [vmem:[#allocation6 + $0x114] sm:$0xf]
        %v1204 = vld [vmem:[#allocation6 + $0x118] sm:$0xf]
        %v1205 = vld [vmem:[#allocation6 + $0x11c] sm:$0xf]
        %v1206 = vld [vmem:[#allocation6 + $0x120] sm:$0xf]
        %v1207 = vld [vmem:[#allocation6 + $0x124] sm:$0xf]
        %v1208 = vld [vmem:[#allocation6 + $0x128] sm:$0xf]
        %v1209 = vld [vmem:[#allocation6 + $0x12c] sm:$0xf]
        %v1210 = vld [vmem:[#allocation6 + $0x130] sm:$0xf]
        %v1211 = vld [vmem:[#allocation6 + $0x134] sm:$0xf]
        %v1212 = vld [vmem:[#allocation6 + $0x138] sm:$0xf]
        %v1213 = vld [vmem:[#allocation6 + $0x13c] sm:$0xf]
        %v1214 = vld [vmem:[#allocation6 + $0x140] sm:$0xf]
        %v1215 = vld [vmem:[#allocation6 + $0x144] sm:$0xf]
        %v1216 = vld [vmem:[#allocation6 + $0x148] sm:$0xf]
        %v1217 = vld [vmem:[#allocation6 + $0x14c] sm:$0xf]
        %v1218 = vld [vmem:[#allocation6 + $0x150] sm:$0xf]
        %v1219 = vld [vmem:[#allocation6 + $0x154] sm:$0xf]
        %v1220 = vld [vmem:[#allocation6 + $0x158] sm:$0xf]
        %v1221 = vld [vmem:[#allocation6 + $0x15c] sm:$0xf]
        %v1222 = vld [vmem:[#allocation6 + $0x160] sm:$0xf]
        %v1223 = vld [vmem:[#allocation6 + $0x164] sm:$0xf]
        %v1224 = vld [vmem:[#allocation6 + $0x168] sm:$0xf]
        %v1225 = vld [vmem:[#allocation6 + $0x16c] sm:$0xf]
        %v1226 = vld [vmem:[#allocation6 + $0x170] sm:$0xf]
        %v1227 = vld [vmem:[#allocation6 + $0x174] sm:$0xf]
        %v1228 = vld [vmem:[#allocation6 + $0x178] sm:$0xf]
        %v1229 = vld [vmem:[#allocation6 + $0x17c] sm:$0xf]
        %v1230 = vld [vmem:[#allocation6 + $0x180] sm:$0xf]
        %v1231 = vld [vmem:[#allocation6 + $0x184] sm:$0xf]
        %v1232 = vld [vmem:[#allocation6 + $0x188] sm:$0xf]
        %v1233 = vld [vmem:[#allocation6 + $0x18c] sm:$0xf]
        %v1234 = vld [vmem:[#allocation6 + $0x190] sm:$0xf]
        %v1235 = vld [vmem:[#allocation6 + $0x194] sm:$0xf]
        %v1236 = vld [vmem:[#allocation6 + $0x198] sm:$0xf]
        %v1237 = vld [vmem:[#allocation6 + $0x19c] sm:$0xf]
        %v1238 = vld [vmem:[#allocation6 + $0x1a0] sm:$0xf]
        %v1239 = vld [vmem:[#allocation6 + $0x1a4] sm:$0xf]
        %v1240 = vld [vmem:[#allocation6 + $0x1a8] sm:$0xf]
        %v1241 = vld [vmem:[#allocation6 + $0x1ac] sm:$0xf]
        %v1242 = vld [vmem:[#allocation6 + $0x1b0] sm:$0xf]
        %v1243 = vld [vmem:[#allocation6 + $0x1b4] sm:$0xf]
        %v1244 = vld [vmem:[#allocation6 + $0x1b8] sm:$0xf]
        %v1245 = vld [vmem:[#allocation6 + $0x1bc] sm:$0xf]
        %v1246 = vld [vmem:[#allocation6 + $0x1c0] sm:$0xf]
        %v1247 = vld [vmem:[#allocation6 + $0x1c4] sm:$0xf]
        %v1248 = vld [vmem:[#allocation6 + $0x1c8] sm:$0xf]
        %v1249 = vld [vmem:[#allocation6 + $0x1cc] sm:$0xf]
        %v1250 = vld [vmem:[#allocation6 + $0x1d0] sm:$0xf]
        %v1251 = vld [vmem:[#allocation6 + $0x1d4] sm:$0xf]
        %v1252 = vld [vmem:[#allocation6 + $0x1d8] sm:$0xf]
        %v1253 = vld [vmem:[#allocation6 + $0x1dc] sm:$0xf]
        %v1254 = vld [vmem:[#allocation6 + $0x1e0] sm:$0xf]
        %v1255 = vld [vmem:[#allocation6 + $0x1e4] sm:$0xf]
        %v1256 = vld [vmem:[#allocation6 + $0x1e8] sm:$0xf]
        %v1257 = vld [vmem:[#allocation6 + $0x1ec] sm:$0xf]
        %v1258 = vld [vmem:[#allocation6 + $0x1f0] sm:$0xf]
        %v1259 = vld [vmem:[#allocation6 + $0x1f4] sm:$0xf]
        %v1260 = vld [vmem:[#allocation6 + $0x1f8] sm:$0xf]
        %v1261 = vld [vmem:[#allocation6 + $0x1fc] sm:$0xf]
        %v1262 = vld [vmem:[#allocation7] sm:$0x1]
        %v1264 = vlaneseq
        %v1265 = vshrl.u32 %v1264, 7
        %v1266 = vsub.s32 0, %v1265
        %v1267 = vrot.slane %v1262, %v1266
        %v1397 = vunpack.c.l.b16 %v1134
        %v1398 = vunpack.c.l.b16 %v1135
        %v1399 = vunpack.c.l.b16 %v1136
        %v1400 = vunpack.c.l.b16 %v1137
        %v1401 = vunpack.c.l.b16 %v1138
        %v1402 = vunpack.c.l.b16 %v1139
        %v1403 = vunpack.c.l.b16 %v1140
        %v1404 = vunpack.c.l.b16 %v1141
        %v1405 = vunpack.c.l.b16 %v1142
        %v1406 = vunpack.c.l.b16 %v1143
        %v1407 = vunpack.c.l.b16 %v1144
        %v1408 = vunpack.c.l.b16 %v1145
        %v1409 = vunpack.c.l.b16 %v1146
        %v1410 = vunpack.c.l.b16 %v1147
        %v1411 = vunpack.c.l.b16 %v1148
        %v1412 = vunpack.c.l.b16 %v1149
        %v1413 = vunpack.c.l.b16 %v1150
        %v1414 = vunpack.c.l.b16 %v1151
        %v1415 = vunpack.c.l.b16 %v1152
        %v1416 = vunpack.c.l.b16 %v1153
        %v1417 = vunpack.c.l.b16 %v1154
        %v1418 = vunpack.c.l.b16 %v1155
        %v1419 = vunpack.c.l.b16 %v1156
        %v1420 = vunpack.c.l.b16 %v1157
        %v1421 = vunpack.c.l.b16 %v1158
        %v1422 = vunpack.c.l.b16 %v1159
        %v1423 = vunpack.c.l.b16 %v1160
        %v1424 = vunpack.c.l.b16 %v1161
        %v1425 = vunpack.c.l.b16 %v1162
        %v1426 = vunpack.c.l.b16 %v1163
        %v1427 = vunpack.c.l.b16 %v1164
        %v1428 = vunpack.c.l.b16 %v1165
        %v1429 = vunpack.c.l.b16 %v1166
        %v1430 = vunpack.c.l.b16 %v1167
        %v1431 = vunpack.c.l.b16 %v1168
        %v1432 = vunpack.c.l.b16 %v1169
        %v1433 = vunpack.c.l.b16 %v1170
        %v1434 = vunpack.c.l.b16 %v1171
        %v1435 = vunpack.c.l.b16 %v1172
        %v1436 = vunpack.c.l.b16 %v1173
        %v1437 = vunpack.c.l.b16 %v1174
        %v1438 = vunpack.c.l.b16 %v1175
        %v1439 = vunpack.c.l.b16 %v1176
        %v1440 = vunpack.c.l.b16 %v1177
        %v1441 = vunpack.c.l.b16 %v1178
        %v1442 = vunpack.c.l.b16 %v1179
        %v1443 = vunpack.c.l.b16 %v1180
        %v1444 = vunpack.c.l.b16 %v1181
        %v1445 = vunpack.c.l.b16 %v1182
        %v1446 = vunpack.c.l.b16 %v1183
        %v1447 = vunpack.c.l.b16 %v1184
        %v1448 = vunpack.c.l.b16 %v1185
        %v1449 = vunpack.c.l.b16 %v1186
        %v1450 = vunpack.c.l.b16 %v1187
        %v1451 = vunpack.c.l.b16 %v1188
        %v1452 = vunpack.c.l.b16 %v1189
        %v1453 = vunpack.c.l.b16 %v1190
        %v1454 = vunpack.c.l.b16 %v1191
        %v1455 = vunpack.c.l.b16 %v1192
        %v1456 = vunpack.c.l.b16 %v1193
        %v1457 = vunpack.c.l.b16 %v1194
        %v1458 = vunpack.c.l.b16 %v1195
        %v1459 = vunpack.c.l.b16 %v1196
        %v1460 = vunpack.c.l.b16 %v1197
        %v1461 = vunpack.c.l.b16 %v1198
        %v1462 = vunpack.c.l.b16 %v1199
        %v1463 = vunpack.c.l.b16 %v1200
        %v1464 = vunpack.c.l.b16 %v1201
        %v1465 = vunpack.c.l.b16 %v1202
        %v1466 = vunpack.c.l.b16 %v1203
        %v1467 = vunpack.c.l.b16 %v1204
        %v1468 = vunpack.c.l.b16 %v1205
        %v1469 = vunpack.c.l.b16 %v1206
        %v1470 = vunpack.c.l.b16 %v1207
        %v1471 = vunpack.c.l.b16 %v1208
        %v1472 = vunpack.c.l.b16 %v1209
        %v1473 = vunpack.c.l.b16 %v1210
        %v1474 = vunpack.c.l.b16 %v1211
        %v1475 = vunpack.c.l.b16 %v1212
        %v1476 = vunpack.c.l.b16 %v1213
        %v1477 = vunpack.c.l.b16 %v1214
        %v1478 = vunpack.c.l.b16 %v1215
        %v1479 = vunpack.c.l.b16 %v1216
        %v1480 = vunpack.c.l.b16 %v1217
        %v1481 = vunpack.c.l.b16 %v1218
        %v1482 = vunpack.c.l.b16 %v1219
        %v1483 = vunpack.c.l.b16 %v1220
        %v1484 = vunpack.c.l.b16 %v1221
        %v1485 = vunpack.c.l.b16 %v1222
        %v1486 = vunpack.c.l.b16 %v1223
        %v1487 = vunpack.c.l.b16 %v1224
        %v1488 = vunpack.c.l.b16 %v1225
        %v1489 = vunpack.c.l.b16 %v1226
        %v1490 = vunpack.c.l.b16 %v1227
        %v1491 = vunpack.c.l.b16 %v1228
        %v1492 = vunpack.c.l.b16 %v1229
        %v1493 = vunpack.c.l.b16 %v1230
        %v1494 = vunpack.c.l.b16 %v1231
        %v1495 = vunpack.c.l.b16 %v1232
        %v1496 = vunpack.c.l.b16 %v1233
        %v1497 = vunpack.c.l.b16 %v1234
        %v1498 = vunpack.c.l.b16 %v1235
        %v1499 = vunpack.c.l.b16 %v1236
        %v1500 = vunpack.c.l.b16 %v1237
        %v1501 = vunpack.c.l.b16 %v1238
        %v1502 = vunpack.c.l.b16 %v1239
        %v1503 = vunpack.c.l.b16 %v1240
        %v1504 = vunpack.c.l.b16 %v1241
        %v1505 = vunpack.c.l.b16 %v1242
        %v1506 = vunpack.c.l.b16 %v1243
        %v1507 = vunpack.c.l.b16 %v1244
        %v1508 = vunpack.c.l.b16 %v1245
        %v1509 = vunpack.c.l.b16 %v1246
        %v1510 = vunpack.c.l.b16 %v1247
        %v1511 = vunpack.c.l.b16 %v1248
        %v1512 = vunpack.c.l.b16 %v1249
        %v1513 = vunpack.c.l.b16 %v1250
        %v1514 = vunpack.c.l.b16 %v1251
        %v1515 = vunpack.c.l.b16 %v1252
        %v1516 = vunpack.c.l.b16 %v1253
        %v1517 = vunpack.c.l.b16 %v1254
        %v1518 = vunpack.c.l.b16 %v1255
        %v1519 = vunpack.c.l.b16 %v1256
        %v1520 = vunpack.c.l.b16 %v1257
        %v1521 = vunpack.c.l.b16 %v1258
        %v1522 = vunpack.c.l.b16 %v1259
        %v1523 = vunpack.c.l.b16 %v1260
        %v1524 = vunpack.c.l.b16 %v1261
        %v1525 = vpack.c.b16 %v1398, %v1397
        %v1526 = vpack.c.b16 %v1400, %v1399
        %v1527 = vpack.c.b16 %v1402, %v1401
        %v1528 = vpack.c.b16 %v1404, %v1403
        %v1529 = vpack.c.b16 %v1406, %v1405
        %v1530 = vpack.c.b16 %v1408, %v1407
        %v1531 = vpack.c.b16 %v1410, %v1409
        %v1532 = vpack.c.b16 %v1412, %v1411
        %v1533 = vpack.c.b16 %v1414, %v1413
        %v1534 = vpack.c.b16 %v1416, %v1415
        %v1535 = vpack.c.b16 %v1418, %v1417
        %v1536 = vpack.c.b16 %v1420, %v1419
        %v1537 = vpack.c.b16 %v1422, %v1421
        %v1538 = vpack.c.b16 %v1424, %v1423
        %v1539 = vpack.c.b16 %v1426, %v1425
        %v1540 = vpack.c.b16 %v1428, %v1427
        %v1541 = vpack.c.b16 %v1430, %v1429
        %v1542 = vpack.c.b16 %v1432, %v1431
        %v1543 = vpack.c.b16 %v1434, %v1433
        %v1544 = vpack.c.b16 %v1436, %v1435
        %v1545 = vpack.c.b16 %v1438, %v1437
        %v1546 = vpack.c.b16 %v1440, %v1439
        %v1547 = vpack.c.b16 %v1442, %v1441
        %v1548 = vpack.c.b16 %v1444, %v1443
        %v1549 = vpack.c.b16 %v1446, %v1445
        %v1550 = vpack.c.b16 %v1448, %v1447
        %v1551 = vpack.c.b16 %v1450, %v1449
        %v1552 = vpack.c.b16 %v1452, %v1451
        %v1553 = vpack.c.b16 %v1454, %v1453
        %v1554 = vpack.c.b16 %v1456, %v1455
        %v1555 = vpack.c.b16 %v1458, %v1457
        %v1556 = vpack.c.b16 %v1460, %v1459
        %v1557 = vpack.c.b16 %v1462, %v1461
        %v1558 = vpack.c.b16 %v1464, %v1463
        %v1559 = vpack.c.b16 %v1466, %v1465
        %v1560 = vpack.c.b16 %v1468, %v1467
        %v1561 = vpack.c.b16 %v1470, %v1469
        %v1562 = vpack.c.b16 %v1472, %v1471
        %v1563 = vpack.c.b16 %v1474, %v1473
        %v1564 = vpack.c.b16 %v1476, %v1475
        %v1565 = vpack.c.b16 %v1478, %v1477
        %v1566 = vpack.c.b16 %v1480, %v1479
        %v1567 = vpack.c.b16 %v1482, %v1481
        %v1568 = vpack.c.b16 %v1484, %v1483
        %v1569 = vpack.c.b16 %v1486, %v1485
        %v1570 = vpack.c.b16 %v1488, %v1487
        %v1571 = vpack.c.b16 %v1490, %v1489
        %v1572 = vpack.c.b16 %v1492, %v1491
        %v1573 = vpack.c.b16 %v1494, %v1493
        %v1574 = vpack.c.b16 %v1496, %v1495
        %v1575 = vpack.c.b16 %v1498, %v1497
        %v1576 = vpack.c.b16 %v1500, %v1499
        %v1577 = vpack.c.b16 %v1502, %v1501
        %v1578 = vpack.c.b16 %v1504, %v1503
        %v1579 = vpack.c.b16 %v1506, %v1505
        %v1580 = vpack.c.b16 %v1508, %v1507
        %v1581 = vpack.c.b16 %v1510, %v1509
        %v1582 = vpack.c.b16 %v1512, %v1511
        %v1583 = vpack.c.b16 %v1514, %v1513
        %v1584 = vpack.c.b16 %v1516, %v1515
        %v1585 = vpack.c.b16 %v1518, %v1517
        %v1586 = vpack.c.b16 %v1520, %v1519
        %v1587 = vpack.c.b16 %v1522, %v1521
        %v1588 = vpack.c.b16 %v1524, %v1523
        %1653 = vmatprep.subr.bf16.mxu0 0
        %1654 = vmatpush1.bf16.msra.mxu0 %v1525
        %1655 = vmatprep.subr.bf16.mxu0 0
        %1656 = vmatpush1.bf16.msra.mxu0 %v1526
        %1657 = vmatprep.subr.bf16.mxu0 0
        %1658 = vmatpush1.bf16.msra.mxu0 %v1527
        %1659 = vmatprep.subr.bf16.mxu0 0
        %1660 = vmatpush1.bf16.msra.mxu0 %v1528
        %1661 = vmatprep.subr.bf16.mxu0 0
        %1662 = vmatpush1.bf16.msra.mxu0 %v1529
        %1663 = vmatprep.subr.bf16.mxu0 0
        %1664 = vmatpush1.bf16.msra.mxu0 %v1530
        %1665 = vmatprep.subr.bf16.mxu0 0
        %1666 = vmatpush1.bf16.msra.mxu0 %v1531
        %1667 = vmatprep.subr.bf16.mxu0 0
        %1668 = vmatpush1.bf16.msra.mxu0 %v1532
        %1669 = vmatprep.subr.bf16.mxu0 0
        %1670 = vmatpush1.bf16.msra.mxu0 %v1533
        %1671 = vmatprep.subr.bf16.mxu0 0
        %1672 = vmatpush1.bf16.msra.mxu0 %v1534
        %1673 = vmatprep.subr.bf16.mxu0 0
        %1674 = vmatpush1.bf16.msra.mxu0 %v1535
        %1675 = vmatprep.subr.bf16.mxu0 0
        %1676 = vmatpush1.bf16.msra.mxu0 %v1536
        %1677 = vmatprep.subr.bf16.mxu0 0
        %1678 = vmatpush1.bf16.msra.mxu0 %v1537
        %1679 = vmatprep.subr.bf16.mxu0 0
        %1680 = vmatpush1.bf16.msra.mxu0 %v1538
        %1681 = vmatprep.subr.bf16.mxu0 0
        %1682 = vmatpush1.bf16.msra.mxu0 %v1539
        %1683 = vmatprep.subr.bf16.mxu0 0
        %1684 = vmatpush1.bf16.msra.mxu0 %v1540
        %1685 = vmatprep.mubr.bf16.mxu0 %v911
        %1686 = vmatmul.mubr.bf16.gmra.mrb[0].mxu0 %v910
        %v1687 = vpop.f32.mrb[0].mxu0
        %v1688 = vadd.f32 %v1267, %v1687
        %v1689 = vpop.f32.mrb[0].mxu0
        %v1690 = vpop.f32.mrb[0].mxu0
        %v1691 = vadd.f32 %v1267, %v1690
        %v1692 = vpop.f32.mrb[0].mxu0
        %1693 = vmatprep.mubr.bf16.mxu0 %v919
        %1694 = vmatmul.mubr.bf16.gmra.mrb[0].mxu0 %v918
        %v1695 = vpop.f32.mrb[0].mxu0
        %v1696 = vadd.f32 %v1267, %v1695
        %v1697 = vpop.f32.mrb[0].mxu0
        %v1698 = vpop.f32.mrb[0].mxu0
        %v1699 = vadd.f32 %v1267, %v1698
        %v1700 = vpop.f32.mrb[0].mxu0
        %1701 = vmatprep.mubr.bf16.mxu0 %v927
        %1702 = vmatmul.mubr.bf16.gmra.mrb[0].mxu0 %v926
        %v1703 = vpop.f32.mrb[0].mxu0
        %v1704 = vadd.f32 %v1267, %v1703
        %v1705 = vpop.f32.mrb[0].mxu0
        %v1706 = vpop.f32.mrb[0].mxu0
        %v1707 = vadd.f32 %v1267, %v1706
        %v1708 = vpop.f32.mrb[0].mxu0
        %1709 = vmatprep.mubr.bf16.mxu0 %v935
        %1710 = vmatmul.mubr.bf16.gmra.mrb[0].mxu0 %v934
        %v1711 = vpop.f32.mrb[0].mxu0
        %v1712 = vadd.f32 %v1267, %v1711
        %v1713 = vpop.f32.mrb[0].mxu0
        %v1714 = vpop.f32.mrb[0].mxu0
        %v1715 = vadd.f32 %v1267, %v1714
        %v1716 = vpop.f32.mrb[0].mxu0
        %1717 = vdwg.mxu0
        %1718 = vmatprep.subr.bf16.mxu0 0
        %1719 = vmatpush1.bf16.msra.mxu0 %v1541
        %1720 = vmatprep.subr.bf16.mxu0 0
        %1721 = vmatpush1.bf16.msra.mxu0 %v1542
        %1722 = vmatprep.subr.bf16.mxu0 0
        %1723 = vmatpush1.bf16.msra.mxu0 %v1543
        %1724 = vmatprep.subr.bf16.mxu0 0
        %1725 = vmatpush1.bf16.msra.mxu0 %v1544
        %1726 = vmatprep.subr.bf16.mxu0 0
        %1727 = vmatpush1.bf16.msra.mxu0 %v1545
        %1728 = vmatprep.subr.bf16.mxu0 0
        %1729 = vmatpush1.bf16.msra.mxu0 %v1546
        %1730 = vmatprep.subr.bf16.mxu0 0
        %1731 = vmatpush1.bf16.msra.mxu0 %v1547
        %1732 = vmatprep.subr.bf16.mxu0 0
        %1733 = vmatpush1.bf16.msra.mxu0 %v1548
        %1734 = vmatprep.subr.bf16.mxu0 0
        %1735 = vmatpush1.bf16.msra.mxu0 %v1549
        %1736 = vmatprep.subr.bf16.mxu0 0
        %1737 = vmatpush1.bf16.msra.mxu0 %v1550
        %1738 = vmatprep.subr.bf16.mxu0 0
        %1739 = vmatpush1.bf16.msra.mxu0 %v1551
        %1740 = vmatprep.subr.bf16.mxu0 0
        %1741 = vmatpush1.bf16.msra.mxu0 %v1552
        %1742 = vmatprep.subr.bf16.mxu0 0
        %1743 = vmatpush1.bf16.msra.mxu0 %v1553
        %1744 = vmatprep.subr.bf16.mxu0 0
        %1745 = vmatpush1.bf16.msra.mxu0 %v1554
        %1746 = vmatprep.subr.bf16.mxu0 0
        %1747 = vmatpush1.bf16.msra.mxu0 %v1555
        %1748 = vmatprep.subr.bf16.mxu0 0
        %1749 = vmatpush1.bf16.msra.mxu0 %v1556
        %1750 = vmatprep.mubr.bf16.mxu0 %v913
        %1751 = vmatmul.mubr.bf16.gmra.mrb[0].mxu0 %v912
        %v1752 = vpop.f32.mrb[0].mxu0
        %v1753 = vadd.f32 %v1688, %v1752
        %v1754 = vpop.f32.mrb[0].mxu0
        %v1755 = vpop.f32.mrb[0].mxu0
        %v1756 = vadd.f32 %v1691, %v1755
        %v1757 = vpop.f32.mrb[0].mxu0
        %1758 = vmatprep.mubr.bf16.mxu0 %v921
        %1759 = vmatmul.mubr.bf16.gmra.mrb[0].mxu0 %v920
        %v1760 = vpop.f32.mrb[0].mxu0
        %v1761 = vadd.f32 %v1696, %v1760
        %v1762 = vpop.f32.mrb[0].mxu0
        %v1763 = vpop.f32.mrb[0].mxu0
        %v1764 = vadd.f32 %v1699, %v1763
        %v1765 = vpop.f32.mrb[0].mxu0
        %1766 = vmatprep.mubr.bf16.mxu0 %v929
        %1767 = vmatmul.mubr.bf16.gmra.mrb[0].mxu0 %v928
        %v1768 = vpop.f32.mrb[0].mxu0
        %v1769 = vadd.f32 %v1704, %v1768
        %v1770 = vpop.f32.mrb[0].mxu0
        %v1771 = vpop.f32.mrb[0].mxu0
        %v1772 = vadd.f32 %v1707, %v1771
        %v1773 = vpop.f32.mrb[0].mxu0
        %1774 = vmatprep.mubr.bf16.mxu0 %v937
        %1775 = vmatmul.mubr.bf16.gmra.mrb[0].mxu0 %v936
        %v1776 = vpop.f32.mrb[0].mxu0
        %v1777 = vadd.f32 %v1712, %v1776
        %v1778 = vpop.f32.mrb[0].mxu0
        %v1779 = vpop.f32.mrb[0].mxu0
        %v1780 = vadd.f32 %v1715, %v1779
        %v1781 = vpop.f32.mrb[0].mxu0
        %1782 = vdwg.mxu0
        %1783 = vmatprep.subr.bf16.mxu0 0
        %1784 = vmatpush1.bf16.msra.mxu0 %v1557
        %1785 = vmatprep.subr.bf16.mxu0 0
        %1786 = vmatpush1.bf16.msra.mxu0 %v1558
        %1787 = vmatprep.subr.bf16.mxu0 0
        %1788 = vmatpush1.bf16.msra.mxu0 %v1559
        %1789 = vmatprep.subr.bf16.mxu0 0
        %1790 = vmatpush1.bf16.msra.mxu0 %v1560
        %1791 = vmatprep.subr.bf16.mxu0 0
        %1792 = vmatpush1.bf16.msra.mxu0 %v1561
        %1793 = vmatprep.subr.bf16.mxu0 0
        %1794 = vmatpush1.bf16.msra.mxu0 %v1562
        %1795 = vmatprep.subr.bf16.mxu0 0
        %1796 = vmatpush1.bf16.msra.mxu0 %v1563
        %1797 = vmatprep.subr.bf16.mxu0 0
        %1798 = vmatpush1.bf16.msra.mxu0 %v1564
        %1799 = vmatprep.subr.bf16.mxu0 0
        %1800 = vmatpush1.bf16.msra.mxu0 %v1565
        %1801 = vmatprep.subr.bf16.mxu0 0
        %1802 = vmatpush1.bf16.msra.mxu0 %v1566
        %1803 = vmatprep.subr.bf16.mxu0 0
        %1804 = vmatpush1.bf16.msra.mxu0 %v1567
        %1805 = vmatprep.subr.bf16.mxu0 0
        %1806 = vmatpush1.bf16.msra.mxu0 %v1568
        %1807 = vmatprep.subr.bf16.mxu0 0
        %1808 = vmatpush1.bf16.msra.mxu0 %v1569
        %1809 = vmatprep.subr.bf16.mxu0 0
        %1810 = vmatpush1.bf16.msra.mxu0 %v1570
        %1811 = vmatprep.subr.bf16.mxu0 0
        %1812 = vmatpush1.bf16.msra.mxu0 %v1571
        %1813 = vmatprep.subr.bf16.mxu0 0
        %1814 = vmatpush1.bf16.msra.mxu0 %v1572
        %1815 = vmatprep.mubr.bf16.mxu0 %v915
        %1816 = vmatmul.mubr.bf16.gmra.mrb[0].mxu0 %v914
        %v1817 = vpop.f32.mrb[0].mxu0
        %v1818 = vadd.f32 %v1753, %v1817
        %v1819 = vpop.f32.mrb[0].mxu0
        %v1820 = vpop.f32.mrb[0].mxu0
        %v1821 = vadd.f32 %v1756, %v1820
        %v1822 = vpop.f32.mrb[0].mxu0
        %1823 = vmatprep.mubr.bf16.mxu0 %v923
        %1824 = vmatmul.mubr.bf16.gmra.mrb[0].mxu0 %v922
        %v1825 = vpop.f32.mrb[0].mxu0
        %v1826 = vadd.f32 %v1761, %v1825
        %v1827 = vpop.f32.mrb[0].mxu0
        %v1828 = vpop.f32.mrb[0].mxu0
        %v1829 = vadd.f32 %v1764, %v1828
        %v1830 = vpop.f32.mrb[0].mxu0
        %1831 = vmatprep.mubr.bf16.mxu0 %v931
        %1832 = vmatmul.mubr.bf16.gmra.mrb[0].mxu0 %v930
        %v1833 = vpop.f32.mrb[0].mxu0
        %v1834 = vadd.f32 %v1769, %v1833
        %v1835 = vpop.f32.mrb[0].mxu0
        %v1836 = vpop.f32.mrb[0].mxu0
        %v1837 = vadd.f32 %v1772, %v1836
        %v1838 = vpop.f32.mrb[0].mxu0
        %1839 = vmatprep.mubr.bf16.mxu0 %v939
        %1840 = vmatmul.mubr.bf16.gmra.mrb[0].mxu0 %v938
        %v1841 = vpop.f32.mrb[0].mxu0
        %v1842 = vadd.f32 %v1777, %v1841
        %v1843 = vpop.f32.mrb[0].mxu0
        %v1844 = vpop.f32.mrb[0].mxu0
        %v1845 = vadd.f32 %v1780, %v1844
        %v1846 = vpop.f32.mrb[0].mxu0
        %1847 = vdwg.mxu0
        %1848 = vmatprep.subr.bf16.mxu0 0
        %1849 = vmatpush1.bf16.msra.mxu0 %v1573
        %1850 = vmatprep.subr.bf16.mxu0 0
        %1851 = vmatpush1.bf16.msra.mxu0 %v1574
        %1852 = vmatprep.subr.bf16.mxu0 0
        %1853 = vmatpush1.bf16.msra.mxu0 %v1575
        %1854 = vmatprep.subr.bf16.mxu0 0
        %1855 = vmatpush1.bf16.msra.mxu0 %v1576
        %1856 = vmatprep.subr.bf16.mxu0 0
        %1857 = vmatpush1.bf16.msra.mxu0 %v1577
        %1858 = vmatprep.subr.bf16.mxu0 0
        %1859 = vmatpush1.bf16.msra.mxu0 %v1578
        %1860 = vmatprep.subr.bf16.mxu0 0
        %1861 = vmatpush1.bf16.msra.mxu0 %v1579
        %1862 = vmatprep.subr.bf16.mxu0 0
        %1863 = vmatpush1.bf16.msra.mxu0 %v1580
        %1864 = vmatprep.subr.bf16.mxu0 0
        %1865 = vmatpush1.bf16.msra.mxu0 %v1581
        %1866 = vmatprep.subr.bf16.mxu0 0
        %1867 = vmatpush1.bf16.msra.mxu0 %v1582
        %1868 = vmatprep.subr.bf16.mxu0 0
        %1869 = vmatpush1.bf16.msra.mxu0 %v1583
        %1870 = vmatprep.subr.bf16.mxu0 0
        %1871 = vmatpush1.bf16.msra.mxu0 %v1584
        %1872 = vmatprep.subr.bf16.mxu0 0
        %1873 = vmatpush1.bf16.msra.mxu0 %v1585
        %1874 = vmatprep.subr.bf16.mxu0 0
        %1875 = vmatpush1.bf16.msra.mxu0 %v1586
        %1876 = vmatprep.subr.bf16.mxu0 0
        %1877 = vmatpush1.bf16.msra.mxu0 %v1587
        %1878 = vmatprep.subr.bf16.mxu0 0
        %1879 = vmatpush1.bf16.msra.mxu0 %v1588
        %1880 = vmatprep.mubr.bf16.mxu0 %v917
        %1881 = vmatmul.mubr.bf16.gmra.mrb[0].mxu0 %v916
        %v1882 = vpop.f32.mrb[0].mxu0
        %v1883 = vadd.f32 %v1818, %v1882
        %v1884 = vpop.f32.mrb[0].mxu0
        %v1885 = vpop.f32.mrb[0].mxu0
        %v1886 = vadd.f32 %v1821, %v1885
        %v1887 = vpop.f32.mrb[0].mxu0
        %1888 = vmatprep.mubr.bf16.mxu0 %v925
        %1889 = vmatmul.mubr.bf16.gmra.mrb[0].mxu0 %v924
        %v1890 = vpop.f32.mrb[0].mxu0
        %v1891 = vadd.f32 %v1826, %v1890
        %v1892 = vpop.f32.mrb[0].mxu0
        %v1893 = vpop.f32.mrb[0].mxu0
        %v1894 = vadd.f32 %v1829, %v1893
        %v1895 = vpop.f32.mrb[0].mxu0
        %1896 = vmatprep.mubr.bf16.mxu0 %v933
        %1897 = vmatmul.mubr.bf16.gmra.mrb[0].mxu0 %v932
        %v1898 = vpop.f32.mrb[0].mxu0
        %v1899 = vadd.f32 %v1834, %v1898
        %v1900 = vpop.f32.mrb[0].mxu0
        %v1901 = vpop.f32.mrb[0].mxu0
        %v1902 = vadd.f32 %v1837, %v1901
        %v1903 = vpop.f32.mrb[0].mxu0
        %1904 = vmatprep.mubr.bf16.mxu0 %v941
        %1905 = vmatmul.mubr.bf16.gmra.mrb[0].mxu0 %v940
        %v1906 = vpop.f32.mrb[0].mxu0
        %v1907 = vadd.f32 %v1842, %v1906
        %v1908 = vpop.f32.mrb[0].mxu0
        %v1909 = vpop.f32.mrb[0].mxu0
        %v1910 = vadd.f32 %v1845, %v1909
        %v1911 = vpop.f32.mrb[0].mxu0
        %1912 = vdwg.mxu0
        %v1913 = vmax.f32 %v1883, 0.0
        %v1914 = vmax.f32 %v1886, 0.0
        %v1915 = vmax.f32 %v1891, 0.0
        %v1916 = vmax.f32 %v1894, 0.0
        %v1917 = vmax.f32 %v1899, 0.0
        %v1918 = vmax.f32 %v1902, 0.0
        %v1919 = vmax.f32 %v1907, 0.0
        %v1920 = vmax.f32 %v1910, 0.0
        %v1921 = vpack.c.bf16 %v1914, %v1913
        %v1922 = vpack.c.bf16 %v1916, %v1915
        %v1923 = vpack.c.bf16 %v1918, %v1917
        %v1924 = vpack.c.bf16 %v1920, %v1919
        %v1929 = vunpack.c.l.b16 %v1921
        %v1930 = vunpack.c.h.b16 %v1921
        %v1931 = vunpack.c.l.b16 %v1922
        %v1932 = vunpack.c.h.b16 %v1922
        %v1933 = vunpack.c.l.b16 %v1923
        %v1934 = vunpack.c.h.b16 %v1923
        %v1935 = vunpack.c.l.b16 %v1924
        %v1936 = vunpack.c.h.b16 %v1924
        %v1937 = vpack.c.b16 %v1929, %v1929
        %v1938 = vpack.c.b16 %v1930, %v1930
        %v1939 = vpack.c.b16 %v1931, %v1931
        %v1940 = vpack.c.b16 %v1932, %v1932
        %v1941 = vpack.c.b16 %v1933, %v1933
        %v1942 = vpack.c.b16 %v1934, %v1934
        %v1943 = vpack.c.b16 %v1935, %v1935
        %v1944 = vpack.c.b16 %v1936, %v1936
        %1953 = vst [vmem:[%s324] sm:$0xf] %v1937
        %1954 = vst [vmem:[%s324 + $0x4] sm:$0xf] %v1938
        %1955 = vst [vmem:[%s324 + $0x8] sm:$0xf] %v1939
        %1956 = vst [vmem:[%s324 + $0xc] sm:$0xf] %v1940
        %1957 = vst [vmem:[%s324 + $0x10] sm:$0xf] %v1941
        %1958 = vst [vmem:[%s324 + $0x14] sm:$0xf] %v1942
        %1959 = vst [vmem:[%s324 + $0x18] sm:$0xf] %v1943
        %1960 = vst [vmem:[%s324 + $0x1c] sm:$0xf] %v1944
        %s1961 = smul.u32 8, %s21
        %p1962 = scmp.lt.s32.totalorder %s1961, 15
        %s1963 = scalar_select %p1962, %s1961, 15
        %s1964 = smul.addr %s1963, 8
        %s1965 = smul.addr %s1964, 4
        %s1966 = scalar_lea.vmem %s5, %s1965
        %s1967 = smul.u32 8, %s21
        %p1968 = scmp.lt.s32.totalorder %s1967, 15
        %s1969 = scalar_select %p1968, %s1967, 15
        %s1970 = smul.addr %s1969, 4
        %s1971 = scalar_lea.vmem %s6, %s1970
        // Predicated region
        $region57: #{resnext_forward.4} parent=39 // pred_check
          %p1972 = pneg %p149
        $region58: #{resnext_forward.4} parent=39 // pred_check_branch
          %1974 = sbr.rel (%p1972) target = $region60
        $region59: #{resnext_forward.4} parent=39 // pred_region
          %s1975 = smul.u32 8, %s21
        $region60: #{resnext_forward.4} parent=39 // pred_fallthru
          _
        // Predicated region
        $region61: #{resnext_forward.4} parent=39 // pred_check
          %p1976 = pneg %p175
        $region62: #{resnext_forward.4} parent=39 // pred_check_branch
          %1978 = sbr.rel (%p1976) target = $region64
        $region63: #{resnext_forward.4} parent=39 // pred_region
          %s1979 = smul.u32 8, %s21
        $region64: #{resnext_forward.4} parent=39 // pred_fallthru
          _
      $region40: #{resnext_forward.4} parent=5 // pred_fallthru
        _
      %p1980 = scmp.le.s32.totalorder 2, %s16
      // Predicated region
      $region65: #{resnext_forward.4} parent=5 // pred_check
        %p1981 = pneg %p1980
      $region66: #{resnext_forward.4} parent=5 // pred_check_branch
        %1983 = sbr.rel (%p1981) target = $region68
      $region67: #{resnext_forward.4} parent=5 // pred_region
        %s1984 = ssub.s32 %s16, 2
        // Predicated region
        $region69: #{resnext_forward.4} parent=67 // pred_check
          %p1985 = pneg %p155
        $region70: #{resnext_forward.4} parent=67 // pred_check_branch
          %1987 = sbr.rel (%p1985) target = $region72
        $region71: #{resnext_forward.4} parent=67 // pred_region
          %s1988 = smul.u32 8, %s22
          %p1989 = scmp.lt.s32.totalorder %s1988, 15
          %s1990 = scalar_select %p1989, %s1988, 15
          %s1991 = smul.addr %s1990, 8
          %s1992 = smul.addr %s1991, 4
          %s1993 = scalar_lea.vmem %s5, %s1992
        $region72: #{resnext_forward.4} parent=67 // pred_fallthru
          _
        // Predicated region
        $region73: #{resnext_forward.4} parent=67 // pred_check
          %p1994 = pneg %p181
        $region74: #{resnext_forward.4} parent=67 // pred_check_branch
          %1996 = sbr.rel (%p1994) target = $region76
        $region75: #{resnext_forward.4} parent=67 // pred_region
          %s1997 = smul.u32 8, %s22
          %p1998 = scmp.lt.s32.totalorder %s1997, 15
          %s1999 = scalar_select %p1998, %s1997, 15
          %s2000 = smul.addr %s1999, 4
          %s2001 = scalar_lea.vmem %s6, %s2000
        $region76: #{resnext_forward.4} parent=67 // pred_fallthru
          _
      $region68: #{resnext_forward.4} parent=5 // pred_fallthru
        _
    $region6: #{resnext_forward.4} parent=1 // loop_footer
      %s20 = sadd.s32 1, %s16
    $region7: #{resnext_forward.4} parent=1 // loop_footer_branch
      %15 = sbr.rel target = $region3
    $region8: #{resnext_forward.4} parent=1 // loop_exit
      _
    %2002 = vsyncpa [#allocation3], 1
    %s2003 = scalar_lea.sflag [#allocation3], 1
    %2004 = vsyncpa %s2003, 1
    %2005 = vsyncpa [#allocation5], 1
    %2006 = vsyncpa [#allocation8], 1

// kernel: resnext_forward.5
$region0: #{resnext_forward.5}
  #allocation0 [shape = 'u32[]', space=smem, size = 0x4, offset = 0x4, fixed_abs, tag = 'smem constant byte address 0x4 - core index']
  #allocation1 [shape = 'u32[144,128]{1,0:T(1,128)}', space=vmem, size = 0x12000, scoped, tag = 'internal scratch']
  %s0 = inlined_call_operand.vmem [shape: bf16[128,1152], index: 0, kind: input, shape index: {}]
  %s1 = inlined_call_operand.vmem [shape: bf16[1152,128], index: 1, kind: input, shape index: {}]
  %s2 = inlined_call_operand.vmem [shape: f32[1,128], index: 2, kind: input, shape index: {}]
  %s3 = inlined_call_operand.vmem [shape: bf16[128,256], index: 3, kind: input, shape index: {}]
  %s4 = inlined_call_operand.vmem [shape: f32[1,256], index: 4, kind: input, shape index: {}]
  %s5 = inlined_call_operand.vmem [shape: bf16[128,1024], index: 5, kind: input, shape index: {}]
  %s6 = inlined_call_operand.vmem [shape: bf16[1024,256], index: 6, kind: input, shape index: {}]
  %s7 = inlined_call_operand.vmem [shape: f32[1,256], index: 7, kind: input, shape index: {}]
  %s8 = inlined_call_operand.vmem [shape: bf16[256,256], index: 8, kind: input, shape index: {}]
  %s9 = inlined_call_operand.vmem [shape: f32[1,256], index: 9, kind: input, shape index: {}]
  %s10 = inlined_call_operand.vmem [shape: bf16[128,256], index: 10, kind: output, shape index: {0}]
  %s11 = inlined_call_operand.vmem [shape: bf16[128,256], index: 11, kind: output, shape index: {1}]
  %12 = xla_tuple %s10, %s11
  %s13 = sld [smem:[#allocation0]]
  $region81: #{resnext_forward.5} parent=0
    _
  %s15 = ssub.s32 1, %s13
  %s16 = scalar_select 0, %s15, %s13
  loop: start=0, step=1, limit=4
  $region2: #{resnext_forward.5} parent=0 // loop_pre_header
    _
  $region3: #{resnext_forward.5} parent=0 // loop_header
    %s18 = sphi 0, %s22
    %p19 = scmp.ge.s32.totalorder %s18, 4
    %s28 = sphi 0, %s30
    %s31 = sphi 0, %s28
    %s32 = sphi 0, %s31
    %s48 = sphi 0, %s32
    %s52 = sphi 0, %s52
    %s54 = sphi 0, %s52
    %s55 = sphi 0, %s54
    %s69 = sphi 0, %s55
    %s73 = sphi 0, %s73
    %s75 = sphi 0, %s73
    %s76 = sphi 0, %s75
    %s90 = sphi 0, %s76
    %s94 = sphi 0, %s94
    %s96 = sphi 0, %s94
    %s97 = sphi 0, %s96
    %s111 = sphi 0, %s97
    %s115 = sphi 0, %s115
    %s117 = sphi 0, %s115
    %s118 = sphi 0, %s117
    %s132 = sphi 0, %s118
    %s138 = sphi 0, %s140
    %s141 = sphi 0, %s138
    %s142 = sphi 0, %s141
    %s158 = sphi 0, %s142
    %s162 = sphi 0, %s162
    %s164 = sphi 0, %s162
    %s165 = sphi 0, %s164
    %s179 = sphi 0, %s165
    %s183 = sphi 0, %s183
    %s185 = sphi 0, %s183
    %s186 = sphi 0, %s185
    %s200 = sphi 0, %s186
    %s204 = sphi 0, %s204
    %s206 = sphi 0, %s204
    %s207 = sphi 0, %s206
    %s221 = sphi 0, %s207
    %s225 = sphi 0, %s225
    %s227 = sphi 0, %s225
    %s228 = sphi 0, %s227
    %s242 = sphi 0, %s228
    %s248 = sphi 0, %s250
    %s251 = sphi 0, %s248
    %s252 = sphi 0, %s251
    %s268 = sphi 0, %s252
    %s274 = sphi 0, %s276
    %s277 = sphi 0, %s274
    %s278 = sphi 0, %s277
    %s294 = sphi 0, %s278
  $region4: #{resnext_forward.5} parent=0 // loop_header_branch
    %21 = sbr.rel (%p19) target = $region8
  $region5: #{resnext_forward.5} parent=0 // loop_body
    %s23 = ssub.s32 %s18, 1
    %s24 = ssub.s32 %s18, 2
    %s25 = sadd.s32 %s18, 1
    %s26 = ssub.s32 %s18, %s25
    %p27 = scmp.eq.s32.totalorder %s26, 0
    %s29 = sadd.s32 %s28, 1
    %s30 = scalar_select %p27, %s28, %s29
    %p33 = pneg %p27
    %p34 = scmp.eq.s32.totalorder %s18, 1
    %p35 = por %p33, %p34
    %p36 = scmp.ne.s32.totalorder %s28, %s31
    %p37 = scmp.eq.s32.totalorder %s18, 0
    %p38 = por %p36, %p37
    %p39 = scmp.ne.s32.totalorder %s28, %s31
    %p40 = scmp.eq.s32.totalorder %s23, 1
    %p41 = por %p39, %p40
    %p42 = scmp.ne.s32.totalorder %s31, %s32
    %p43 = scmp.eq.s32.totalorder %s23, 0
    %p44 = por %p42, %p43
    %p45 = scmp.ne.s32.totalorder %s31, %s32
    %p46 = scmp.eq.s32.totalorder %s24, 1
    %p47 = por %p45, %p46
    %p49 = scmp.ne.s32.totalorder %s32, %s48
    %p50 = scmp.eq.s32.totalorder %s24, 0
    %p51 = por %p49, %p50
    %s53 = sadd.s32 %s52, 1
    %p56 = scmp.eq.s32.totalorder %s18, 1
    %p57 = scmp.ne.s32.totalorder %s52, %s54
    %p58 = scmp.eq.s32.totalorder %s18, 0
    %p59 = por %p57, %p58
    %p60 = scmp.ne.s32.totalorder %s52, %s54
    %p61 = scmp.eq.s32.totalorder %s23, 1
    %p62 = por %p60, %p61
    %p63 = scmp.ne.s32.totalorder %s54, %s55
    %p64 = scmp.eq.s32.totalorder %s23, 0
    %p65 = por %p63, %p64
    %p66 = scmp.ne.s32.totalorder %s54, %s55
    %p67 = scmp.eq.s32.totalorder %s24, 1
    %p68 = por %p66, %p67
    %p70 = scmp.ne.s32.totalorder %s55, %s69
    %p71 = scmp.eq.s32.totalorder %s24, 0
    %p72 = por %p70, %p71
    %s74 = sadd.s32 %s73, 1
    %p77 = scmp.eq.s32.totalorder %s18, 1
    %p78 = scmp.ne.s32.totalorder %s73, %s75
    %p79 = scmp.eq.s32.totalorder %s18, 0
    %p80 = por %p78, %p79
    %p81 = scmp.ne.s32.totalorder %s73, %s75
    %p82 = scmp.eq.s32.totalorder %s23, 1
    %p83 = por %p81, %p82
    %p84 = scmp.ne.s32.totalorder %s75, %s76
    %p85 = scmp.eq.s32.totalorder %s23, 0
    %p86 = por %p84, %p85
    %p87 = scmp.ne.s32.totalorder %s75, %s76
    %p88 = scmp.eq.s32.totalorder %s24, 1
    %p89 = por %p87, %p88
    %p91 = scmp.ne.s32.totalorder %s76, %s90
    %p92 = scmp.eq.s32.totalorder %s24, 0
    %p93 = por %p91, %p92
    %s95 = sadd.s32 %s94, 1
    %p98 = scmp.eq.s32.totalorder %s18, 1
    %p99 = scmp.ne.s32.totalorder %s94, %s96
    %p100 = scmp.eq.s32.totalorder %s18, 0
    %p101 = por %p99, %p100
    %p102 = scmp.ne.s32.totalorder %s94, %s96
    %p103 = scmp.eq.s32.totalorder %s23, 1
    %p104 = por %p102, %p103
    %p105 = scmp.ne.s32.totalorder %s96, %s97
    %p106 = scmp.eq.s32.totalorder %s23, 0
    %p107 = por %p105, %p106
    %p108 = scmp.ne.s32.totalorder %s96, %s97
    %p109 = scmp.eq.s32.totalorder %s24, 1
    %p110 = por %p108, %p109
    %p112 = scmp.ne.s32.totalorder %s97, %s111
    %p113 = scmp.eq.s32.totalorder %s24, 0
    %p114 = por %p112, %p113
    %s116 = sadd.s32 %s115, 1
    %p119 = scmp.eq.s32.totalorder %s18, 1
    %p120 = scmp.ne.s32.totalorder %s115, %s117
    %p121 = scmp.eq.s32.totalorder %s18, 0
    %p122 = por %p120, %p121
    %p123 = scmp.ne.s32.totalorder %s115, %s117
    %p124 = scmp.eq.s32.totalorder %s23, 1
    %p125 = por %p123, %p124
    %p126 = scmp.ne.s32.totalorder %s117, %s118
    %p127 = scmp.eq.s32.totalorder %s23, 0
    %p128 = por %p126, %p127
    %p129 = scmp.ne.s32.totalorder %s117, %s118
    %p130 = scmp.eq.s32.totalorder %s24, 1
    %p131 = por %p129, %p130
    %p133 = scmp.ne.s32.totalorder %s118, %s132
    %p134 = scmp.eq.s32.totalorder %s24, 0
    %p135 = por %p133, %p134
    %s136 = ssub.s32 %s18, %s25
    %p137 = scmp.eq.s32.totalorder %s136, 0
    %s139 = sadd.s32 %s138, 1
    %s140 = scalar_select %p137, %s138, %s139
    %p143 = pneg %p137
    %p144 = scmp.eq.s32.totalorder %s18, 1
    %p145 = por %p143, %p144
    %p146 = scmp.ne.s32.totalorder %s138, %s141
    %p147 = scmp.eq.s32.totalorder %s18, 0
    %p148 = por %p146, %p147
    %p149 = scmp.ne.s32.totalorder %s138, %s141
    %p150 = scmp.eq.s32.totalorder %s23, 1
    %p151 = por %p149, %p150
    %p152 = scmp.ne.s32.totalorder %s141, %s142
    %p153 = scmp.eq.s32.totalorder %s23, 0
    %p154 = por %p152, %p153
    %p155 = scmp.ne.s32.totalorder %s141, %s142
    %p156 = scmp.eq.s32.totalorder %s24, 1
    %p157 = por %p155, %p156
    %p159 = scmp.ne.s32.totalorder %s142, %s158
    %p160 = scmp.eq.s32.totalorder %s24, 0
    %p161 = por %p159, %p160
    %s163 = sadd.s32 %s162, 1
    %p166 = scmp.eq.s32.totalorder %s18, 1
    %p167 = scmp.ne.s32.totalorder %s162, %s164
    %p168 = scmp.eq.s32.totalorder %s18, 0
    %p169 = por %p167, %p168
    %p170 = scmp.ne.s32.totalorder %s162, %s164
    %p171 = scmp.eq.s32.totalorder %s23, 1
    %p172 = por %p170, %p171
    %p173 = scmp.ne.s32.totalorder %s164, %s165
    %p174 = scmp.eq.s32.totalorder %s23, 0
    %p175 = por %p173, %p174
    %p176 = scmp.ne.s32.totalorder %s164, %s165
    %p177 = scmp.eq.s32.totalorder %s24, 1
    %p178 = por %p176, %p177
    %p180 = scmp.ne.s32.totalorder %s165, %s179
    %p181 = scmp.eq.s32.totalorder %s24, 0
    %p182 = por %p180, %p181
    %s184 = sadd.s32 %s183, 1
    %p187 = scmp.eq.s32.totalorder %s18, 1
    %p188 = scmp.ne.s32.totalorder %s183, %s185
    %p189 = scmp.eq.s32.totalorder %s18, 0
    %p190 = por %p188, %p189
    %p191 = scmp.ne.s32.totalorder %s183, %s185
    %p192 = scmp.eq.s32.totalorder %s23, 1
    %p193 = por %p191, %p192
    %p194 = scmp.ne.s32.totalorder %s185, %s186
    %p195 = scmp.eq.s32.totalorder %s23, 0
    %p196 = por %p194, %p195
    %p197 = scmp.ne.s32.totalorder %s185, %s186
    %p198 = scmp.eq.s32.totalorder %s24, 1
    %p199 = por %p197, %p198
    %p201 = scmp.ne.s32.totalorder %s186, %s200
    %p202 = scmp.eq.s32.totalorder %s24, 0
    %p203 = por %p201, %p202
    %s205 = sadd.s32 %s204, 1
    %p208 = scmp.eq.s32.totalorder %s18, 1
    %p209 = scmp.ne.s32.totalorder %s204, %s206
    %p210 = scmp.eq.s32.totalorder %s18, 0
    %p211 = por %p209, %p210
    %p212 = scmp.ne.s32.totalorder %s204, %s206
    %p213 = scmp.eq.s32.totalorder %s23, 1
    %p214 = por %p212, %p213
    %p215 = scmp.ne.s32.totalorder %s206, %s207
    %p216 = scmp.eq.s32.totalorder %s23, 0
    %p217 = por %p215, %p216
    %p218 = scmp.ne.s32.totalorder %s206, %s207
    %p219 = scmp.eq.s32.totalorder %s24, 1
    %p220 = por %p218, %p219
    %p222 = scmp.ne.s32.totalorder %s207, %s221
    %p223 = scmp.eq.s32.totalorder %s24, 0
    %p224 = por %p222, %p223
    %s226 = sadd.s32 %s225, 1
    %p229 = scmp.eq.s32.totalorder %s18, 1
    %p230 = scmp.ne.s32.totalorder %s225, %s227
    %p231 = scmp.eq.s32.totalorder %s18, 0
    %p232 = por %p230, %p231
    %p233 = scmp.ne.s32.totalorder %s225, %s227
    %p234 = scmp.eq.s32.totalorder %s23, 1
    %p235 = por %p233, %p234
    %p236 = scmp.ne.s32.totalorder %s227, %s228
    %p237 = scmp.eq.s32.totalorder %s23, 0
    %p238 = por %p236, %p237
    %p239 = scmp.ne.s32.totalorder %s227, %s228
    %p240 = scmp.eq.s32.totalorder %s24, 1
    %p241 = por %p239, %p240
    %p243 = scmp.ne.s32.totalorder %s228, %s242
    %p244 = scmp.eq.s32.totalorder %s24, 0
    %p245 = por %p243, %p244
    %s246 = ssub.s32 %s18, %s25
    %p247 = scmp.eq.s32.totalorder %s246, 0
    %s249 = sadd.s32 %s248, 1
    %s250 = scalar_select %p247, %s248, %s249
    %p253 = pneg %p247
    %p254 = scmp.eq.s32.totalorder %s18, 1
    %p255 = por %p253, %p254
    %p256 = scmp.ne.s32.totalorder %s248, %s251
    %p257 = scmp.eq.s32.totalorder %s18, 0
    %p258 = por %p256, %p257
    %p259 = scmp.ne.s32.totalorder %s248, %s251
    %p260 = scmp.eq.s32.totalorder %s23, 1
    %p261 = por %p259, %p260
    %p262 = scmp.ne.s32.totalorder %s251, %s252
    %p263 = scmp.eq.s32.totalorder %s23, 0
    %p264 = por %p262, %p263
    %p265 = scmp.ne.s32.totalorder %s251, %s252
    %p266 = scmp.eq.s32.totalorder %s24, 1
    %p267 = por %p265, %p266
    %p269 = scmp.ne.s32.totalorder %s252, %s268
    %p270 = scmp.eq.s32.totalorder %s24, 0
    %p271 = por %p269, %p270
    %s272 = ssub.s32 %s18, %s25
    %p273 = scmp.eq.s32.totalorder %s272, 0
    %s275 = sadd.s32 %s274, 1
    %s276 = scalar_select %p273, %s274, %s275
    %p279 = pneg %p273
    %p280 = scmp.eq.s32.totalorder %s18, 1
    %p281 = por %p279, %p280
    %p282 = scmp.ne.s32.totalorder %s274, %s277
    %p283 = scmp.eq.s32.totalorder %s18, 0
    %p284 = por %p282, %p283
    %p285 = scmp.ne.s32.totalorder %s274, %s277
    %p286 = scmp.eq.s32.totalorder %s23, 1
    %p287 = por %p285, %p286
    %p288 = scmp.ne.s32.totalorder %s277, %s278
    %p289 = scmp.eq.s32.totalorder %s23, 0
    %p290 = por %p288, %p289
    %p291 = scmp.ne.s32.totalorder %s277, %s278
    %p292 = scmp.eq.s32.totalorder %s24, 1
    %p293 = por %p291, %p292
    %p295 = scmp.ne.s32.totalorder %s278, %s294
    %p296 = scmp.eq.s32.totalorder %s24, 0
    %p297 = por %p295, %p296
    %p298 = scmp.le.s32.totalorder 1, %s18
    %p299 = scmp.lt.s32.totalorder %s18, 3
    %p300 = pnand %p298, %p299
    %p301 = pneg %p300
    // Predicated region
    $region9: #{resnext_forward.5} parent=5 // pred_check
      _
    $region10: #{resnext_forward.5} parent=5 // pred_check_branch
      %303 = sbr.rel (%p300) target = $region12
    $region11: #{resnext_forward.5} parent=5 // pred_region
      %s304 = ssub.s32 %s18, 1
      // Predicated region
      $region13: #{resnext_forward.5} parent=11 // pred_check
        %p305 = pneg %p65
      $region14: #{resnext_forward.5} parent=11 // pred_check_branch
        %307 = sbr.rel (%p305) target = $region16
      $region15: #{resnext_forward.5} parent=11 // pred_region
        _
      $region16: #{resnext_forward.5} parent=11 // pred_fallthru
        _
      // Predicated region
      $region17: #{resnext_forward.5} parent=11 // pred_check
        %p308 = pneg %p86
      $region18: #{resnext_forward.5} parent=11 // pred_check_branch
        %310 = sbr.rel (%p308) target = $region20
      $region19: #{resnext_forward.5} parent=11 // pred_region
        _
      $region20: #{resnext_forward.5} parent=11 // pred_fallthru
        _
      // Predicated region
      $region21: #{resnext_forward.5} parent=11 // pred_check
        %p311 = pneg %p107
      $region22: #{resnext_forward.5} parent=11 // pred_check_branch
        %313 = sbr.rel (%p311) target = $region24
      $region23: #{resnext_forward.5} parent=11 // pred_region
        _
      $region24: #{resnext_forward.5} parent=11 // pred_fallthru
        _
      // Predicated region
      $region25: #{resnext_forward.5} parent=11 // pred_check
        %p314 = pneg %p128
      $region26: #{resnext_forward.5} parent=11 // pred_check_branch
        %316 = sbr.rel (%p314) target = $region28
      $region27: #{resnext_forward.5} parent=11 // pred_region
        _
      $region28: #{resnext_forward.5} parent=11 // pred_fallthru
        _
      // Predicated region
      $region29: #{resnext_forward.5} parent=11 // pred_check
        %p317 = pneg %p175
      $region30: #{resnext_forward.5} parent=11 // pred_check_branch
        %319 = sbr.rel (%p317) target = $region32
      $region31: #{resnext_forward.5} parent=11 // pred_region
        _
      $region32: #{resnext_forward.5} parent=11 // pred_fallthru
        _
      // Predicated region
      $region33: #{resnext_forward.5} parent=11 // pred_check
        %p320 = pneg %p196
      $region34: #{resnext_forward.5} parent=11 // pred_check_branch
        %322 = sbr.rel (%p320) target = $region36
      $region35: #{resnext_forward.5} parent=11 // pred_region
        _
      $region36: #{resnext_forward.5} parent=11 // pred_fallthru
        _
      // Predicated region
      $region37: #{resnext_forward.5} parent=11 // pred_check
        %p323 = pneg %p217
      $region38: #{resnext_forward.5} parent=11 // pred_check_branch
        %325 = sbr.rel (%p323) target = $region40
      $region39: #{resnext_forward.5} parent=11 // pred_region
        _
      $region40: #{resnext_forward.5} parent=11 // pred_fallthru
        _
      // Predicated region
      $region41: #{resnext_forward.5} parent=11 // pred_check
        %p326 = pneg %p238
      $region42: #{resnext_forward.5} parent=11 // pred_check_branch
        %328 = sbr.rel (%p326) target = $region44
      $region43: #{resnext_forward.5} parent=11 // pred_region
        _
      $region44: #{resnext_forward.5} parent=11 // pred_fallthru
        _
    $region12: #{resnext_forward.5} parent=5 // pred_fallthru
      _
    %p329 = scmp.lt.s32.totalorder %s18, 2
    // Predicated region
    $region45: #{resnext_forward.5} parent=5 // pred_check
      %p330 = pneg %p329
    $region46: #{resnext_forward.5} parent=5 // pred_check_branch
      %332 = sbr.rel (%p330) target = $region48
    $region47: #{resnext_forward.5} parent=5 // pred_region
      // Predicated region
      $region49: #{resnext_forward.5} parent=47 // pred_check
        %p333 = pneg %p38
      $region50: #{resnext_forward.5} parent=47 // pred_check_branch
        %335 = sbr.rel (%p333) target = $region52
      $region51: #{resnext_forward.5} parent=47 // pred_region
        %s336 = smul.u32 8, %s18
        %p337 = scmp.lt.s32.totalorder %s336, 15
        %s338 = scalar_select %p337, %s336, 15
        %s339 = smul.addr %s338, 9
        %s340 = smul.addr %s339, 4
        %s341 = scalar_lea.vmem %s0, %s340
        %s342 = smul.u32 8, %s18
      $region52: #{resnext_forward.5} parent=47 // pred_fallthru
        _
      // Predicated region
      $region53: #{resnext_forward.5} parent=47 // pred_check
        %p343 = pneg %p148
      $region54: #{resnext_forward.5} parent=47 // pred_check_branch
        %345 = sbr.rel (%p343) target = $region56
      $region55: #{resnext_forward.5} parent=47 // pred_region
        %s346 = smul.u32 8, %s18
        %p347 = scmp.lt.s32.totalorder %s346, 15
        %s348 = scalar_select %p347, %s346, 15
        %s349 = smul.addr %s348, 8
        %s350 = smul.addr %s349, 4
        %s351 = scalar_lea.vmem %s5, %s350
        %s352 = smul.u32 8, %s18
      $region56: #{resnext_forward.5} parent=47 // pred_fallthru
        _
    $region48: #{resnext_forward.5} parent=5 // pred_fallthru
      _
    %p353 = scmp.le.s32.totalorder 1, %s18
    %p354 = scmp.lt.s32.totalorder %s18, 3
    %p355 = pnand %p353, %p354
    %p356 = pneg %p355
    // Predicated region
    $region57: #{resnext_forward.5} parent=5 // pred_check
      _
    $region58: #{resnext_forward.5} parent=5 // pred_check_branch
      %358 = sbr.rel (%p355) target = $region60
    $region59: #{resnext_forward.5} parent=5 // pred_region
      %s359 = ssub.s32 %s18, 1
      %s360 = smul.u32 8, %s23
      %p361 = scmp.lt.s32.totalorder %s360, 15
      %s362 = scalar_select %p361, %s360, 15
      %s363 = smul.addr %s362, 9
      %s364 = smul.addr %s363, 4
      %s365 = scalar_lea.vmem %s0, %s364
      %p366 = pneg %p44
      %p367 = pneg %p41
      %p368 = pneg %p65
      %p369 = pneg %p62
      %p370 = pneg %p86
      %p371 = pneg %p83
      %p372 = pneg %p107
      %p373 = pneg %p104
      %p374 = pneg %p128
      %p375 = pneg %p125
      %s376 = smul.u32 8, %s23
      %p377 = scmp.lt.s32.totalorder %s376, 15
      %s378 = scalar_select %p377, %s376, 15
      %s379 = smul.addr %s378, 8
      %s380 = smul.addr %s379, 4
      %s381 = scalar_lea.vmem %s5, %s380
      %p382 = pneg %p154
      %p383 = pneg %p151
      %p384 = pneg %p175
      %p385 = pneg %p172
      %p386 = pneg %p196
      %p387 = pneg %p193
      %p388 = pneg %p217
      %p389 = pneg %p214
      %p390 = pneg %p238
      %p391 = pneg %p235
      %p392 = pneg %p264
      %p393 = pneg %p261
      %s394 = smul.u32 8, %s23
      %p395 = scmp.lt.s32.totalorder %s394, 15
      %s396 = scalar_select %p395, %s394, 15
      %s397 = smul.addr %s396, 2
      %s398 = smul.addr %s397, 4
      %s399 = scalar_lea.vmem %s10, %s398
      %p400 = pneg %p290
      %p401 = pneg %p287
      %s402 = smul.u32 8, %s23
      %p403 = scmp.lt.s32.totalorder %s402, 15
      %s404 = scalar_select %p403, %s402, 15
      %s405 = smul.addr %s404, 2
      %s406 = smul.addr %s405, 4
      %s407 = scalar_lea.vmem %s11, %s406
      %s408 = smul.u32 8, %s23
      %p409 = scmp.lt.s32.totalorder %s408, 15
      %s410 = scalar_select %p409, %s408, 15
      %s411 = smul.addr %s410, 9
      %s412 = smul.addr %s411, 4
      %s413 = scalar_lea.vmem %s0, %s412
      %s414 = smul.u32 8, %s23
      %s415 = smul.u32 8, %s23
      %p416 = scmp.lt.s32.totalorder %s415, 15
      %s417 = scalar_select %p416, %s415, 15
      %s418 = smul.addr %s417, 8
      %s419 = smul.addr %s418, 4
      %s420 = scalar_lea.vmem %s5, %s419
      %s421 = smul.u32 8, %s23
      %s422 = smul.u32 8, %s23
      %p423 = scmp.lt.s32.totalorder %s422, 15
      %s424 = scalar_select %p423, %s422, 15
      %s425 = smul.addr %s424, 2
      %s426 = smul.addr %s425, 4
      %s427 = scalar_lea.vmem %s10, %s426
      %s428 = smul.u32 8, %s23
      %s429 = smul.u32 8, %s23
      %p430 = scmp.lt.s32.totalorder %s429, 15
      %s431 = scalar_select %p430, %s429, 15
      %s432 = smul.addr %s431, 2
      %s433 = smul.addr %s432, 4
      %s434 = scalar_lea.vmem %s11, %s433
      %s435 = smul.u32 8, %s23
      %v437 = vld [vmem:[%s413] sm:$0xff]
      %v438 = vld [vmem:[%s413 + $0x8] sm:$0xff]
      %v439 = vld [vmem:[%s413 + $0x10] sm:$0xff]
      %v440 = vld [vmem:[%s413 + $0x18] sm:$0xff]
      %v441 = vld [vmem:[%s413 + $0x20] sm:$0xf]
      %v442 = vld [vmem:[%s413 + $0x24] sm:$0xff]
      %v443 = vld [vmem:[%s413 + $0x2c] sm:$0xff]
      %v444 = vld [vmem:[%s413 + $0x34] sm:$0xff]
      %v445 = vld [vmem:[%s413 + $0x3c] sm:$0xff]
      %v446 = vld [vmem:[%s413 + $0x44] sm:$0xf]
      %v447 = vld [vmem:[%s413 + $0x48] sm:$0xff]
      %v448 = vld [vmem:[%s413 + $0x50] sm:$0xff]
      %v449 = vld [vmem:[%s413 + $0x58] sm:$0xff]
      %v450 = vld [vmem:[%s413 + $0x60] sm:$0xff]
      %v451 = vld [vmem:[%s413 + $0x68] sm:$0xf]
      %v452 = vld [vmem:[%s413 + $0x6c] sm:$0xff]
      %v453 = vld [vmem:[%s413 + $0x74] sm:$0xff]
      %v454 = vld [vmem:[%s413 + $0x7c] sm:$0xff]
      %v455 = vld [vmem:[%s413 + $0x84] sm:$0xff]
      %v456 = vld [vmem:[%s413 + $0x8c] sm:$0xf]
      %v457 = vld [vmem:[%s413 + $0x90] sm:$0xff]
      %v458 = vld [vmem:[%s413 + $0x98] sm:$0xff]
      %v459 = vld [vmem:[%s413 + $0xa0] sm:$0xff]
      %v460 = vld [vmem:[%s413 + $0xa8] sm:$0xff]
      %v461 = vld [vmem:[%s413 + $0xb0] sm:$0xf]
      %v462 = vld [vmem:[%s413 + $0xb4] sm:$0xff]
      %v463 = vld [vmem:[%s413 + $0xbc] sm:$0xff]
      %v464 = vld [vmem:[%s413 + $0xc4] sm:$0xff]
      %v465 = vld [vmem:[%s413 + $0xcc] sm:$0xff]
      %v466 = vld [vmem:[%s413 + $0xd4] sm:$0xf]
      %v467 = vld [vmem:[%s413 + $0xd8] sm:$0xff]
      %v468 = vld [vmem:[%s413 + $0xe0] sm:$0xff]
      %v469 = vld [vmem:[%s413 + $0xe8] sm:$0xff]
      %v470 = vld [vmem:[%s413 + $0xf0] sm:$0xff]
      %v471 = vld [vmem:[%s413 + $0xf8] sm:$0xf]
      %v472 = vld [vmem:[%s413 + $0xfc] sm:$0xff]
      %v473 = vld [vmem:[%s413 + $0x104] sm:$0xff]
      %v474 = vld [vmem:[%s413 + $0x10c] sm:$0xff]
      %v475 = vld [vmem:[%s413 + $0x114] sm:$0xff]
      %v476 = vld [vmem:[%s413 + $0x11c] sm:$0xf]
      %v477 = vld [vmem:[%s1] sm:$0xf]
      %v478 = vld [vmem:[%s1 + $0x4] sm:$0xf]
      %v479 = vld [vmem:[%s1 + $0x8] sm:$0xf]
      %v480 = vld [vmem:[%s1 + $0xc] sm:$0xf]
      %v481 = vld [vmem:[%s1 + $0x10] sm:$0xf]
      %v482 = vld [vmem:[%s1 + $0x14] sm:$0xf]
      %v483 = vld [vmem:[%s1 + $0x18] sm:$0xf]
      %v484 = vld [vmem:[%s1 + $0x1c] sm:$0xf]
      %v485 = vld [vmem:[%s1 + $0x20] sm:$0xf]
      %v486 = vld [vmem:[%s1 + $0x24] sm:$0xf]
      %v487 = vld [vmem:[%s1 + $0x28] sm:$0xf]
      %v488 = vld [vmem:[%s1 + $0x2c] sm:$0xf]
      %v489 = vld [vmem:[%s1 + $0x30] sm:$0xf]
      %v490 = vld [vmem:[%s1 + $0x34] sm:$0xf]
      %v491 = vld [vmem:[%s1 + $0x38] sm:$0xf]
      %v492 = vld [vmem:[%s1 + $0x3c] sm:$0xf]
      %v493 = vld [vmem:[%s1 + $0x40] sm:$0xf]
      %v494 = vld [vmem:[%s1 + $0x44] sm:$0xf]
      %v495 = vld [vmem:[%s1 + $0x48] sm:$0xf]
      %v496 = vld [vmem:[%s1 + $0x4c] sm:$0xf]
      %v497 = vld [vmem:[%s1 + $0x50] sm:$0xf]
      %v498 = vld [vmem:[%s1 + $0x54] sm:$0xf]
      %v499 = vld [vmem:[%s1 + $0x58] sm:$0xf]
      %v500 = vld [vmem:[%s1 + $0x5c] sm:$0xf]
      %v501 = vld [vmem:[%s1 + $0x60] sm:$0xf]
      %v502 = vld [vmem:[%s1 + $0x64] sm:$0xf]
      %v503 = vld [vmem:[%s1 + $0x68] sm:$0xf]
      %v504 = vld [vmem:[%s1 + $0x6c] sm:$0xf]
      %v505 = vld [vmem:[%s1 + $0x70] sm:$0xf]
      %v506 = vld [vmem:[%s1 + $0x74] sm:$0xf]
      %v507 = vld [vmem:[%s1 + $0x78] sm:$0xf]
      %v508 = vld [vmem:[%s1 + $0x7c] sm:$0xf]
      %v509 = vld [vmem:[%s1 + $0x80] sm:$0xf]
      %v510 = vld [vmem:[%s1 + $0x84] sm:$0xf]
      %v511 = vld [vmem:[%s1 + $0x88] sm:$0xf]
      %v512 = vld [vmem:[%s1 + $0x8c] sm:$0xf]
      %v513 = vld [vmem:[%s1 + $0x90] sm:$0xf]
      %v514 = vld [vmem:[%s1 + $0x94] sm:$0xf]
      %v515 = vld [vmem:[%s1 + $0x98] sm:$0xf]
      %v516 = vld [vmem:[%s1 + $0x9c] sm:$0xf]
      %v517 = vld [vmem:[%s1 + $0xa0] sm:$0xf]
      %v518 = vld [vmem:[%s1 + $0xa4] sm:$0xf]
      %v519 = vld [vmem:[%s1 + $0xa8] sm:$0xf]
      %v520 = vld [vmem:[%s1 + $0xac] sm:$0xf]
      %v521 = vld [vmem:[%s1 + $0xb0] sm:$0xf]
      %v522 = vld [vmem:[%s1 + $0xb4] sm:$0xf]
      %v523 = vld [vmem:[%s1 + $0xb8] sm:$0xf]
      %v524 = vld [vmem:[%s1 + $0xbc] sm:$0xf]
      %v525 = vld [vmem:[%s1 + $0xc0] sm:$0xf]
      %v526 = vld [vmem:[%s1 + $0xc4] sm:$0xf]
      %v527 = vld [vmem:[%s1 + $0xc8] sm:$0xf]
      %v528 = vld [vmem:[%s1 + $0xcc] sm:$0xf]
      %v529 = vld [vmem:[%s1 + $0xd0] sm:$0xf]
      %v530 = vld [vmem:[%s1 + $0xd4] sm:$0xf]
      %v531 = vld [vmem:[%s1 + $0xd8] sm:$0xf]
      %v532 = vld [vmem:[%s1 + $0xdc] sm:$0xf]
      %v533 = vld [vmem:[%s1 + $0xe0] sm:$0xf]
      %v534 = vld [vmem:[%s1 + $0xe4] sm:$0xf]
      %v535 = vld [vmem:[%s1 + $0xe8] sm:$0xf]
      %v536 = vld [vmem:[%s1 + $0xec] sm:$0xf]
      %v537 = vld [vmem:[%s1 + $0xf0] sm:$0xf]
      %v538 = vld [vmem:[%s1 + $0xf4] sm:$0xf]
      %v539 = vld [vmem:[%s1 + $0xf8] sm:$0xf]
      %v540 = vld [vmem:[%s1 + $0xfc] sm:$0xf]
      %v541 = vld [vmem:[%s1 + $0x100] sm:$0xf]
      %v542 = vld [vmem:[%s1 + $0x104] sm:$0xf]
      %v543 = vld [vmem:[%s1 + $0x108] sm:$0xf]
      %v544 = vld [vmem:[%s1 + $0x10c] sm:$0xf]
      %v545 = vld [vmem:[%s1 + $0x110] sm:$0xf]
      %v546 = vld [vmem:[%s1 + $0x114] sm:$0xf]
      %v547 = vld [vmem:[%s1 + $0x118] sm:$0xf]
      %v548 = vld [vmem:[%s1 + $0x11c] sm:$0xf]
      %v549 = vld [vmem:[%s1 + $0x120] sm:$0xf]
      %v550 = vld [vmem:[%s1 + $0x124] sm:$0xf]
      %v551 = vld [vmem:[%s1 + $0x128] sm:$0xf]
      %v552 = vld [vmem:[%s1 + $0x12c] sm:$0xf]
      %v553 = vld [vmem:[%s1 + $0x130] sm:$0xf]
      %v554 = vld [vmem:[%s1 + $0x134] sm:$0xf]
      %v555 = vld [vmem:[%s1 + $0x138] sm:$0xf]
      %v556 = vld [vmem:[%s1 + $0x13c] sm:$0xf]
      %v557 = vld [vmem:[%s1 + $0x140] sm:$0xf]
      %v558 = vld [vmem:[%s1 + $0x144] sm:$0xf]
      %v559 = vld [vmem:[%s1 + $0x148] sm:$0xf]
      %v560 = vld [vmem:[%s1 + $0x14c] sm:$0xf]
      %v561 = vld [vmem:[%s1 + $0x150] sm:$0xf]
      %v562 = vld [vmem:[%s1 + $0x154] sm:$0xf]
      %v563 = vld [vmem:[%s1 + $0x158] sm:$0xf]
      %v564 = vld [vmem:[%s1 + $0x15c] sm:$0xf]
      %v565 = vld [vmem:[%s1 + $0x160] sm:$0xf]
      %v566 = vld [vmem:[%s1 + $0x164] sm:$0xf]
      %v567 = vld [vmem:[%s1 + $0x168] sm:$0xf]
      %v568 = vld [vmem:[%s1 + $0x16c] sm:$0xf]
      %v569 = vld [vmem:[%s1 + $0x170] sm:$0xf]
      %v570 = vld [vmem:[%s1 + $0x174] sm:$0xf]
      %v571 = vld [vmem:[%s1 + $0x178] sm:$0xf]
      %v572 = vld [vmem:[%s1 + $0x17c] sm:$0xf]
      %v573 = vld [vmem:[%s1 + $0x180] sm:$0xf]
      %v574 = vld [vmem:[%s1 + $0x184] sm:$0xf]
      %v575 = vld [vmem:[%s1 + $0x188] sm:$0xf]
      %v576 = vld [vmem:[%s1 + $0x18c] sm:$0xf]
      %v577 = vld [vmem:[%s1 + $0x190] sm:$0xf]
      %v578 = vld [vmem:[%s1 + $0x194] sm:$0xf]
      %v579 = vld [vmem:[%s1 + $0x198] sm:$0xf]
      %v580 = vld [vmem:[%s1 + $0x19c] sm:$0xf]
      %v581 = vld [vmem:[%s1 + $0x1a0] sm:$0xf]
      %v582 = vld [vmem:[%s1 + $0x1a4] sm:$0xf]
      %v583 = vld [vmem:[%s1 + $0x1a8] sm:$0xf]
      %v584 = vld [vmem:[%s1 + $0x1ac] sm:$0xf]
      %v585 = vld [vmem:[%s1 + $0x1b0] sm:$0xf]
      %v586 = vld [vmem:[%s1 + $0x1b4] sm:$0xf]
      %v587 = vld [vmem:[%s1 + $0x1b8] sm:$0xf]
      %v588 = vld [vmem:[%s1 + $0x1bc] sm:$0xf]
      %v589 = vld [vmem:[%s1 + $0x1c0] sm:$0xf]
      %v590 = vld [vmem:[%s1 + $0x1c4] sm:$0xf]
      %v591 = vld [vmem:[%s1 + $0x1c8] sm:$0xf]
      %v592 = vld [vmem:[%s1 + $0x1cc] sm:$0xf]
      %v593 = vld [vmem:[%s1 + $0x1d0] sm:$0xf]
      %v594 = vld [vmem:[%s1 + $0x1d4] sm:$0xf]
      %v595 = vld [vmem:[%s1 + $0x1d8] sm:$0xf]
      %v596 = vld [vmem:[%s1 + $0x1dc] sm:$0xf]
      %v597 = vld [vmem:[%s1 + $0x1e0] sm:$0xf]
      %v598 = vld [vmem:[%s1 + $0x1e4] sm:$0xf]
      %v599 = vld [vmem:[%s1 + $0x1e8] sm:$0xf]
      %v600 = vld [vmem:[%s1 + $0x1ec] sm:$0xf]
      %v601 = vld [vmem:[%s1 + $0x1f0] sm:$0xf]
      %v602 = vld [vmem:[%s1 + $0x1f4] sm:$0xf]
      %v603 = vld [vmem:[%s1 + $0x1f8] sm:$0xf]
      %v604 = vld [vmem:[%s1 + $0x1fc] sm:$0xf]
      %v605 = vld [vmem:[%s1 + $0x200] sm:$0xf]
      %v606 = vld [vmem:[%s1 + $0x204] sm:$0xf]
      %v607 = vld [vmem:[%s1 + $0x208] sm:$0xf]
      %v608 = vld [vmem:[%s1 + $0x20c] sm:$0xf]
      %v609 = vld [vmem:[%s1 + $0x210] sm:$0xf]
      %v610 = vld [vmem:[%s1 + $0x214] sm:$0xf]
      %v611 = vld [vmem:[%s1 + $0x218] sm:$0xf]
      %v612 = vld [vmem:[%s1 + $0x21c] sm:$0xf]
      %v613 = vld [vmem:[%s1 + $0x220] sm:$0xf]
      %v614 = vld [vmem:[%s1 + $0x224] sm:$0xf]
      %v615 = vld [vmem:[%s1 + $0x228] sm:$0xf]
      %v616 = vld [vmem:[%s1 + $0x22c] sm:$0xf]
      %v617 = vld [vmem:[%s1 + $0x230] sm:$0xf]
      %v618 = vld [vmem:[%s1 + $0x234] sm:$0xf]
      %v619 = vld [vmem:[%s1 + $0x238] sm:$0xf]
      %v620 = vld [vmem:[%s1 + $0x23c] sm:$0xf]
      %v621 = vld [vmem:[%s2] sm:$0x1]
      %v623 = vlaneseq
      %v624 = vshrl.u32 %v623, 7
      %v625 = vsub.s32 0, %v624
      %v626 = vrot.slane %v621, %v625
      %v668 = vunpack.c.l.b16 %v437
      %v669 = vunpack.c.h.b16 %v437
      %v670 = vunpack.c.l.b16 %v438
      %v671 = vunpack.c.h.b16 %v438
      %v672 = vunpack.c.l.b16 %v439
      %v673 = vunpack.c.h.b16 %v439
      %v674 = vunpack.c.l.b16 %v440
      %v675 = vunpack.c.h.b16 %v440
      %v676 = vunpack.c.l.b16 %v441
      %v677 = vunpack.c.l.b16 %v442
      %v678 = vunpack.c.h.b16 %v442
      %v679 = vunpack.c.l.b16 %v443
      %v680 = vunpack.c.h.b16 %v443
      %v681 = vunpack.c.l.b16 %v444
      %v682 = vunpack.c.h.b16 %v444
      %v683 = vunpack.c.l.b16 %v445
      %v684 = vunpack.c.h.b16 %v445
      %v685 = vunpack.c.l.b16 %v446
      %v686 = vunpack.c.l.b16 %v447
      %v687 = vunpack.c.h.b16 %v447
      %v688 = vunpack.c.l.b16 %v448
      %v689 = vunpack.c.h.b16 %v448
      %v690 = vunpack.c.l.b16 %v449
      %v691 = vunpack.c.h.b16 %v449
      %v692 = vunpack.c.l.b16 %v450
      %v693 = vunpack.c.h.b16 %v450
      %v694 = vunpack.c.l.b16 %v451
      %v695 = vunpack.c.l.b16 %v452
      %v696 = vunpack.c.h.b16 %v452
      %v697 = vunpack.c.l.b16 %v453
      %v698 = vunpack.c.h.b16 %v453
      %v699 = vunpack.c.l.b16 %v454
      %v700 = vunpack.c.h.b16 %v454
      %v701 = vunpack.c.l.b16 %v455
      %v702 = vunpack.c.h.b16 %v455
      %v703 = vunpack.c.l.b16 %v456
      %v704 = vunpack.c.l.b16 %v457
      %v705 = vunpack.c.h.b16 %v457
      %v706 = vunpack.c.l.b16 %v458
      %v707 = vunpack.c.h.b16 %v458
      %v708 = vunpack.c.l.b16 %v459
      %v709 = vunpack.c.h.b16 %v459
      %v710 = vunpack.c.l.b16 %v460
      %v711 = vunpack.c.h.b16 %v460
      %v712 = vunpack.c.l.b16 %v461
      %v713 = vunpack.c.l.b16 %v462
      %v714 = vunpack.c.h.b16 %v462
      %v715 = vunpack.c.l.b16 %v463
      %v716 = vunpack.c.h.b16 %v463
      %v717 = vunpack.c.l.b16 %v464
      %v718 = vunpack.c.h.b16 %v464
      %v719 = vunpack.c.l.b16 %v465
      %v720 = vunpack.c.h.b16 %v465
      %v721 = vunpack.c.l.b16 %v466
      %v722 = vunpack.c.l.b16 %v467
      %v723 = vunpack.c.h.b16 %v467
      %v724 = vunpack.c.l.b16 %v468
      %v725 = vunpack.c.h.b16 %v468
      %v726 = vunpack.c.l.b16 %v469
      %v727 = vunpack.c.h.b16 %v469
      %v728 = vunpack.c.l.b16 %v470
      %v729 = vunpack.c.h.b16 %v470
      %v730 = vunpack.c.l.b16 %v471
      %v731 = vunpack.c.l.b16 %v472
      %v732 = vunpack.c.h.b16 %v472
      %v733 = vunpack.c.l.b16 %v473
      %v734 = vunpack.c.h.b16 %v473
      %v735 = vunpack.c.l.b16 %v474
      %v736 = vunpack.c.h.b16 %v474
      %v737 = vunpack.c.l.b16 %v475
      %v738 = vunpack.c.h.b16 %v475
      %v739 = vunpack.c.l.b16 %v476
      %v740 = vpack.c.b16 %v677, %v668
      %v741 = vpack.c.b16 %v678, %v669
      %v742 = vpack.c.b16 %v679, %v670
      %v743 = vpack.c.b16 %v680, %v671
      %v744 = vpack.c.b16 %v681, %v672
      %v745 = vpack.c.b16 %v682, %v673
      %v746 = vpack.c.b16 %v683, %v674
      %v747 = vpack.c.b16 %v684, %v675
      %v748 = vpack.c.b16 %v685, %v676
      %v749 = vpack.c.b16 %v695, %v686
      %v750 = vpack.c.b16 %v696, %v687
      %v751 = vpack.c.b16 %v697, %v688
      %v752 = vpack.c.b16 %v698, %v689
      %v753 = vpack.c.b16 %v699, %v690
      %v754 = vpack.c.b16 %v700, %v691
      %v755 = vpack.c.b16 %v701, %v692
      %v756 = vpack.c.b16 %v702, %v693
      %v757 = vpack.c.b16 %v703, %v694
      %v758 = vpack.c.b16 %v713, %v704
      %v759 = vpack.c.b16 %v714, %v705
      %v760 = vpack.c.b16 %v715, %v706
      %v761 = vpack.c.b16 %v716, %v707
      %v762 = vpack.c.b16 %v717, %v708
      %v763 = vpack.c.b16 %v718, %v709
      %v764 = vpack.c.b16 %v719, %v710
      %v765 = vpack.c.b16 %v720, %v711
      %v766 = vpack.c.b16 %v721, %v712
      %v767 = vpack.c.b16 %v731, %v722
      %v768 = vpack.c.b16 %v732, %v723
      %v769 = vpack.c.b16 %v733, %v724
      %v770 = vpack.c.b16 %v734, %v725
      %v771 = vpack.c.b16 %v735, %v726
      %v772 = vpack.c.b16 %v736, %v727
      %v773 = vpack.c.b16 %v737, %v728
      %v774 = vpack.c.b16 %v738, %v729
      %v775 = vpack.c.b16 %v739, %v730
      %v956 = vunpack.c.l.b16 %v477
      %v957 = vunpack.c.l.b16 %v478
      %v958 = vunpack.c.l.b16 %v479
      %v959 = vunpack.c.l.b16 %v480
      %v960 = vunpack.c.l.b16 %v481
      %v961 = vunpack.c.l.b16 %v482
      %v962 = vunpack.c.l.b16 %v483
      %v963 = vunpack.c.l.b16 %v484
      %v964 = vunpack.c.l.b16 %v485
      %v965 = vunpack.c.l.b16 %v486
      %v966 = vunpack.c.l.b16 %v487
      %v967 = vunpack.c.l.b16 %v488
      %v968 = vunpack.c.l.b16 %v489
      %v969 = vunpack.c.l.b16 %v490
      %v970 = vunpack.c.l.b16 %v491
      %v971 = vunpack.c.l.b16 %v492
      %v972 = vunpack.c.l.b16 %v493
      %v973 = vunpack.c.l.b16 %v494
      %v974 = vunpack.c.l.b16 %v495
      %v975 = vunpack.c.l.b16 %v496
      %v976 = vunpack.c.l.b16 %v497
      %v977 = vunpack.c.l.b16 %v498
      %v978 = vunpack.c.l.b16 %v499
      %v979 = vunpack.c.l.b16 %v500
      %v980 = vunpack.c.l.b16 %v501
      %v981 = vunpack.c.l.b16 %v502
      %v982 = vunpack.c.l.b16 %v503
      %v983 = vunpack.c.l.b16 %v504
      %v984 = vunpack.c.l.b16 %v505
      %v985 = vunpack.c.l.b16 %v506
      %v986 = vunpack.c.l.b16 %v507
      %v987 = vunpack.c.l.b16 %v508
      %v988 = vunpack.c.l.b16 %v509
      %v989 = vunpack.c.l.b16 %v510
      %v990 = vunpack.c.l.b16 %v511
      %v991 = vunpack.c.l.b16 %v512
      %v992 = vunpack.c.l.b16 %v513
      %v993 = vunpack.c.l.b16 %v514
      %v994 = vunpack.c.l.b16 %v515
      %v995 = vunpack.c.l.b16 %v516
      %v996 = vunpack.c.l.b16 %v517
      %v997 = vunpack.c.l.b16 %v518
      %v998 = vunpack.c.l.b16 %v519
      %v999 = vunpack.c.l.b16 %v520
      %v1000 = vunpack.c.l.b16 %v521
      %v1001 = vunpack.c.l.b16 %v522
      %v1002 = vunpack.c.l.b16 %v523
      %v1003 = vunpack.c.l.b16 %v524
      %v1004 = vunpack.c.l.b16 %v525
      %v1005 = vunpack.c.l.b16 %v526
      %v1006 = vunpack.c.l.b16 %v527
      %v1007 = vunpack.c.l.b16 %v528
      %v1008 = vunpack.c.l.b16 %v529
      %v1009 = vunpack.c.l.b16 %v530
      %v1010 = vunpack.c.l.b16 %v531
      %v1011 = vunpack.c.l.b16 %v532
      %v1012 = vunpack.c.l.b16 %v533
      %v1013 = vunpack.c.l.b16 %v534
      %v1014 = vunpack.c.l.b16 %v535
      %v1015 = vunpack.c.l.b16 %v536
      %v1016 = vunpack.c.l.b16 %v537
      %v1017 = vunpack.c.l.b16 %v538
      %v1018 = vunpack.c.l.b16 %v539
      %v1019 = vunpack.c.l.b16 %v540
      %v1020 = vunpack.c.l.b16 %v541
      %v1021 = vunpack.c.l.b16 %v542
      %v1022 = vunpack.c.l.b16 %v543
      %v1023 = vunpack.c.l.b16 %v544
      %v1024 = vunpack.c.l.b16 %v545
      %v1025 = vunpack.c.l.b16 %v546
      %v1026 = vunpack.c.l.b16 %v547
      %v1027 = vunpack.c.l.b16 %v548
      %v1028 = vunpack.c.l.b16 %v549
      %v1029 = vunpack.c.l.b16 %v550
      %v1030 = vunpack.c.l.b16 %v551
      %v1031 = vunpack.c.l.b16 %v552
      %v1032 = vunpack.c.l.b16 %v553
      %v1033 = vunpack.c.l.b16 %v554
      %v1034 = vunpack.c.l.b16 %v555
      %v1035 = vunpack.c.l.b16 %v556
      %v1036 = vunpack.c.l.b16 %v557
      %v1037 = vunpack.c.l.b16 %v558
      %v1038 = vunpack.c.l.b16 %v559
      %v1039 = vunpack.c.l.b16 %v560
      %v1040 = vunpack.c.l.b16 %v561
      %v1041 = vunpack.c.l.b16 %v562
      %v1042 = vunpack.c.l.b16 %v563
      %v1043 = vunpack.c.l.b16 %v564
      %v1044 = vunpack.c.l.b16 %v565
      %v1045 = vunpack.c.l.b16 %v566
      %v1046 = vunpack.c.l.b16 %v567
      %v1047 = vunpack.c.l.b16 %v568
      %v1048 = vunpack.c.l.b16 %v569
      %v1049 = vunpack.c.l.b16 %v570
      %v1050 = vunpack.c.l.b16 %v571
      %v1051 = vunpack.c.l.b16 %v572
      %v1052 = vunpack.c.l.b16 %v573
      %v1053 = vunpack.c.l.b16 %v574
      %v1054 = vunpack.c.l.b16 %v575
      %v1055 = vunpack.c.l.b16 %v576
      %v1056 = vunpack.c.l.b16 %v577
      %v1057 = vunpack.c.l.b16 %v578
      %v1058 = vunpack.c.l.b16 %v579
      %v1059 = vunpack.c.l.b16 %v580
      %v1060 = vunpack.c.l.b16 %v581
      %v1061 = vunpack.c.l.b16 %v582
      %v1062 = vunpack.c.l.b16 %v583
      %v1063 = vunpack.c.l.b16 %v584
      %v1064 = vunpack.c.l.b16 %v585
      %v1065 = vunpack.c.l.b16 %v586
      %v1066 = vunpack.c.l.b16 %v587
      %v1067 = vunpack.c.l.b16 %v588
      %v1068 = vunpack.c.l.b16 %v589
      %v1069 = vunpack.c.l.b16 %v590
      %v1070 = vunpack.c.l.b16 %v591
      %v1071 = vunpack.c.l.b16 %v592
      %v1072 = vunpack.c.l.b16 %v593
      %v1073 = vunpack.c.l.b16 %v594
      %v1074 = vunpack.c.l.b16 %v595
      %v1075 = vunpack.c.l.b16 %v596
      %v1076 = vunpack.c.l.b16 %v597
      %v1077 = vunpack.c.l.b16 %v598
      %v1078 = vunpack.c.l.b16 %v599
      %v1079 = vunpack.c.l.b16 %v600
      %v1080 = vunpack.c.l.b16 %v601
      %v1081 = vunpack.c.l.b16 %v602
      %v1082 = vunpack.c.l.b16 %v603
      %v1083 = vunpack.c.l.b16 %v604
      %v1084 = vunpack.c.l.b16 %v605
      %v1085 = vunpack.c.l.b16 %v606
      %v1086 = vunpack.c.l.b16 %v607
      %v1087 = vunpack.c.l.b16 %v608
      %v1088 = vunpack.c.l.b16 %v609
      %v1089 = vunpack.c.l.b16 %v610
      %v1090 = vunpack.c.l.b16 %v611
      %v1091 = vunpack.c.l.b16 %v612
      %v1092 = vunpack.c.l.b16 %v613
      %v1093 = vunpack.c.l.b16 %v614
      %v1094 = vunpack.c.l.b16 %v615
      %v1095 = vunpack.c.l.b16 %v616
      %v1096 = vunpack.c.l.b16 %v617
      %v1097 = vunpack.c.l.b16 %v618
      %v1098 = vunpack.c.l.b16 %v619
      %v1099 = vunpack.c.l.b16 %v620
      %v1100 = vpack.c.b16 %v957, %v956
      %v1101 = vpack.c.b16 %v959, %v958
      %v1102 = vpack.c.b16 %v961, %v960
      %v1103 = vpack.c.b16 %v963, %v962
      %v1104 = vpack.c.b16 %v965, %v964
      %v1105 = vpack.c.b16 %v967, %v966
      %v1106 = vpack.c.b16 %v969, %v968
      %v1107 = vpack.c.b16 %v971, %v970
      %v1108 = vpack.c.b16 %v973, %v972
      %v1109 = vpack.c.b16 %v975, %v974
      %v1110 = vpack.c.b16 %v977, %v976
      %v1111 = vpack.c.b16 %v979, %v978
      %v1112 = vpack.c.b16 %v981, %v980
      %v1113 = vpack.c.b16 %v983, %v982
      %v1114 = vpack.c.b16 %v985, %v984
      %v1115 = vpack.c.b16 %v987, %v986
      %v1116 = vpack.c.b16 %v989, %v988
      %v1117 = vpack.c.b16 %v991, %v990
      %v1118 = vpack.c.b16 %v993, %v992
      %v1119 = vpack.c.b16 %v995, %v994
      %v1120 = vpack.c.b16 %v997, %v996
      %v1121 = vpack.c.b16 %v999, %v998
      %v1122 = vpack.c.b16 %v1001, %v1000
      %v1123 = vpack.c.b16 %v1003, %v1002
      %v1124 = vpack.c.b16 %v1005, %v1004
      %v1125 = vpack.c.b16 %v1007, %v1006
      %v1126 = vpack.c.b16 %v1009, %v1008
      %v1127 = vpack.c.b16 %v1011, %v1010
      %v1128 = vpack.c.b16 %v1013, %v1012
      %v1129 = vpack.c.b16 %v1015, %v1014
      %v1130 = vpack.c.b16 %v1017, %v1016
      %v1131 = vpack.c.b16 %v1019, %v1018
      %v1132 = vpack.c.b16 %v1021, %v1020
      %v1133 = vpack.c.b16 %v1023, %v1022
      %v1134 = vpack.c.b16 %v1025, %v1024
      %v1135 = vpack.c.b16 %v1027, %v1026
      %v1136 = vpack.c.b16 %v1029, %v1028
      %v1137 = vpack.c.b16 %v1031, %v1030
      %v1138 = vpack.c.b16 %v1033, %v1032
      %v1139 = vpack.c.b16 %v1035, %v1034
      %v1140 = vpack.c.b16 %v1037, %v1036
      %v1141 = vpack.c.b16 %v1039, %v1038
      %v1142 = vpack.c.b16 %v1041, %v1040
      %v1143 = vpack.c.b16 %v1043, %v1042
      %v1144 = vpack.c.b16 %v1045, %v1044
      %v1145 = vpack.c.b16 %v1047, %v1046
      %v1146 = vpack.c.b16 %v1049, %v1048
      %v1147 = vpack.c.b16 %v1051, %v1050
      %v1148 = vpack.c.b16 %v1053, %v1052
      %v1149 = vpack.c.b16 %v1055, %v1054
      %v1150 = vpack.c.b16 %v1057, %v1056
      %v1151 = vpack.c.b16 %v1059, %v1058
      %v1152 = vpack.c.b16 %v1061, %v1060
      %v1153 = vpack.c.b16 %v1063, %v1062
      %v1154 = vpack.c.b16 %v1065, %v1064
      %v1155 = vpack.c.b16 %v1067, %v1066
      %v1156 = vpack.c.b16 %v1069, %v1068
      %v1157 = vpack.c.b16 %v1071, %v1070
      %v1158 = vpack.c.b16 %v1073, %v1072
      %v1159 = vpack.c.b16 %v1075, %v1074
      %v1160 = vpack.c.b16 %v1077, %v1076
      %v1161 = vpack.c.b16 %v1079, %v1078
      %v1162 = vpack.c.b16 %v1081, %v1080
      %v1163 = vpack.c.b16 %v1083, %v1082
      %v1164 = vpack.c.b16 %v1085, %v1084
      %v1165 = vpack.c.b16 %v1087, %v1086
      %v1166 = vpack.c.b16 %v1089, %v1088
      %v1167 = vpack.c.b16 %v1091, %v1090
      %v1168 = vpack.c.b16 %v1093, %v1092
      %v1169 = vpack.c.b16 %v1095, %v1094
      %v1170 = vpack.c.b16 %v1097, %v1096
      %v1171 = vpack.c.b16 %v1099, %v1098
      %1244 = vmatprep.subr.bf16.mxu0 0
      %1245 = vmatpush1.bf16.msra.mxu0 %v1100
      %1246 = vmatprep.subr.bf16.mxu0 0
      %1247 = vmatpush1.bf16.msra.mxu0 %v1101
      %1248 = vmatprep.subr.bf16.mxu0 0
      %1249 = vmatpush1.bf16.msra.mxu0 %v1102
      %1250 = vmatprep.subr.bf16.mxu0 0
      %1251 = vmatpush1.bf16.msra.mxu0 %v1103
      %1252 = vmatprep.subr.bf16.mxu0 0
      %1253 = vmatpush1.bf16.msra.mxu0 %v1104
      %1254 = vmatprep.subr.bf16.mxu0 0
      %1255 = vmatpush1.bf16.msra.mxu0 %v1105
      %1256 = vmatprep.subr.bf16.mxu0 0
      %1257 = vmatpush1.bf16.msra.mxu0 %v1106
      %1258 = vmatprep.subr.bf16.mxu0 0
      %1259 = vmatpush1.bf16.msra.mxu0 %v1107
      %1260 = vmatprep.subr.bf16.mxu0 0
      %1261 = vmatpush1.bf16.msra.mxu0 %v1108
      %1262 = vmatprep.subr.bf16.mxu0 0
      %1263 = vmatpush1.bf16.msra.mxu0 %v1109
      %1264 = vmatprep.subr.bf16.mxu0 0
      %1265 = vmatpush1.bf16.msra.mxu0 %v1110
      %1266 = vmatprep.subr.bf16.mxu0 0
      %1267 = vmatpush1.bf16.msra.mxu0 %v1111
      %1268 = vmatprep.subr.bf16.mxu0 0
      %1269 = vmatpush1.bf16.msra.mxu0 %v1112
      %1270 = vmatprep.subr.bf16.mxu0 0
      %1271 = vmatpush1.bf16.msra.mxu0 %v1113
      %1272 = vmatprep.subr.bf16.mxu0 0
      %1273 = vmatpush1.bf16.msra.mxu0 %v1114
      %1274 = vmatprep.subr.bf16.mxu0 0
      %1275 = vmatpush1.bf16.msra.mxu0 %v1115
      %1276 = vmatprep.mubr.bf16.mxu0 %v741
      %1277 = vmatmul.mubr.bf16.gmra.mrb[0].mxu0 %v740
      %v1278 = vpop.f32.mrb[0].mxu0
      %v1279 = vadd.f32 %v626, %v1278
      %v1280 = vpop.f32.mrb[0].mxu0
      %v1281 = vpop.f32.mrb[0].mxu0
      %v1282 = vadd.f32 %v626, %v1281
      %v1283 = vpop.f32.mrb[0].mxu0
      %1284 = vmatprep.mubr.bf16.mxu0 %v750
      %1285 = vmatmul.mubr.bf16.gmra.mrb[0].mxu0 %v749
      %v1286 = vpop.f32.mrb[0].mxu0
      %v1287 = vadd.f32 %v626, %v1286
      %v1288 = vpop.f32.mrb[0].mxu0
      %v1289 = vpop.f32.mrb[0].mxu0
      %v1290 = vadd.f32 %v626, %v1289
      %v1291 = vpop.f32.mrb[0].mxu0
      %1292 = vmatprep.mubr.bf16.mxu0 %v759
      %1293 = vmatmul.mubr.bf16.gmra.mrb[0].mxu0 %v758
      %v1294 = vpop.f32.mrb[0].mxu0
      %v1295 = vadd.f32 %v626, %v1294
      %v1296 = vpop.f32.mrb[0].mxu0
      %v1297 = vpop.f32.mrb[0].mxu0
      %v1298 = vadd.f32 %v626, %v1297
      %v1299 = vpop.f32.mrb[0].mxu0
      %1300 = vmatprep.mubr.bf16.mxu0 %v768
      %1301 = vmatmul.mubr.bf16.gmra.mrb[0].mxu0 %v767
      %v1302 = vpop.f32.mrb[0].mxu0
      %v1303 = vadd.f32 %v626, %v1302
      %v1304 = vpop.f32.mrb[0].mxu0
      %v1305 = vpop.f32.mrb[0].mxu0
      %v1306 = vadd.f32 %v626, %v1305
      %v1307 = vpop.f32.mrb[0].mxu0
      %1308 = vdwg.mxu0
      %1309 = vmatprep.subr.bf16.mxu0 0
      %1310 = vmatpush1.bf16.msra.mxu0 %v1116
      %1311 = vmatprep.subr.bf16.mxu0 0
      %1312 = vmatpush1.bf16.msra.mxu0 %v1117
      %1313 = vmatprep.subr.bf16.mxu0 0
      %1314 = vmatpush1.bf16.msra.mxu0 %v1118
      %1315 = vmatprep.subr.bf16.mxu0 0
      %1316 = vmatpush1.bf16.msra.mxu0 %v1119
      %1317 = vmatprep.subr.bf16.mxu0 0
      %1318 = vmatpush1.bf16.msra.mxu0 %v1120
      %1319 = vmatprep.subr.bf16.mxu0 0
      %1320 = vmatpush1.bf16.msra.mxu0 %v1121
      %1321 = vmatprep.subr.bf16.mxu0 0
      %1322 = vmatpush1.bf16.msra.mxu0 %v1122
      %1323 = vmatprep.subr.bf16.mxu0 0
      %1324 = vmatpush1.bf16.msra.mxu0 %v1123
      %1325 = vmatprep.subr.bf16.mxu0 0
      %1326 = vmatpush1.bf16.msra.mxu0 %v1124
      %1327 = vmatprep.subr.bf16.mxu0 0
      %1328 = vmatpush1.bf16.msra.mxu0 %v1125
      %1329 = vmatprep.subr.bf16.mxu0 0
      %1330 = vmatpush1.bf16.msra.mxu0 %v1126
      %1331 = vmatprep.subr.bf16.mxu0 0
      %1332 = vmatpush1.bf16.msra.mxu0 %v1127
      %1333 = vmatprep.subr.bf16.mxu0 0
      %1334 = vmatpush1.bf16.msra.mxu0 %v1128
      %1335 = vmatprep.subr.bf16.mxu0 0
      %1336 = vmatpush1.bf16.msra.mxu0 %v1129
      %1337 = vmatprep.subr.bf16.mxu0 0
      %1338 = vmatpush1.bf16.msra.mxu0 %v1130
      %1339 = vmatprep.subr.bf16.mxu0 0
      %1340 = vmatpush1.bf16.msra.mxu0 %v1131
      %1341 = vmatprep.mubr.bf16.mxu0 %v743
      %1342 = vmatmul.mubr.bf16.gmra.mrb[0].mxu0 %v742
      %v1343 = vpop.f32.mrb[0].mxu0
      %v1344 = vadd.f32 %v1279, %v1343
      %v1345 = vpop.f32.mrb[0].mxu0
      %v1346 = vpop.f32.mrb[0].mxu0
      %v1347 = vadd.f32 %v1282, %v1346
      %v1348 = vpop.f32.mrb[0].mxu0
      %1349 = vmatprep.mubr.bf16.mxu0 %v752
      %1350 = vmatmul.mubr.bf16.gmra.mrb[0].mxu0 %v751
      %v1351 = vpop.f32.mrb[0].mxu0
      %v1352 = vadd.f32 %v1287, %v1351
      %v1353 = vpop.f32.mrb[0].mxu0
      %v1354 = vpop.f32.mrb[0].mxu0
      %v1355 = vadd.f32 %v1290, %v1354
      %v1356 = vpop.f32.mrb[0].mxu0
      %1357 = vmatprep.mubr.bf16.mxu0 %v761
      %1358 = vmatmul.mubr.bf16.gmra.mrb[0].mxu0 %v760
      %v1359 = vpop.f32.mrb[0].mxu0
      %v1360 = vadd.f32 %v1295, %v1359
      %v1361 = vpop.f32.mrb[0].mxu0
      %v1362 = vpop.f32.mrb[0].mxu0
      %v1363 = vadd.f32 %v1298, %v1362
      %v1364 = vpop.f32.mrb[0].mxu0
      %1365 = vmatprep.mubr.bf16.mxu0 %v770
      %1366 = vmatmul.mubr.bf16.gmra.mrb[0].mxu0 %v769
      %v1367 = vpop.f32.mrb[0].mxu0
      %v1368 = vadd.f32 %v1303, %v1367
      %v1369 = vpop.f32.mrb[0].mxu0
      %v1370 = vpop.f32.mrb[0].mxu0
      %v1371 = vadd.f32 %v1306, %v1370
      %v1372 = vpop.f32.mrb[0].mxu0
      %1373 = vdwg.mxu0
      %1374 = vmatprep.subr.bf16.mxu0 0
      %1375 = vmatpush1.bf16.msra.mxu0 %v1132
      %1376 = vmatprep.subr.bf16.mxu0 0
      %1377 = vmatpush1.bf16.msra.mxu0 %v1133
      %1378 = vmatprep.subr.bf16.mxu0 0
      %1379 = vmatpush1.bf16.msra.mxu0 %v1134
      %1380 = vmatprep.subr.bf16.mxu0 0
      %1381 = vmatpush1.bf16.msra.mxu0 %v1135
      %1382 = vmatprep.subr.bf16.mxu0 0
      %1383 = vmatpush1.bf16.msra.mxu0 %v1136
      %1384 = vmatprep.subr.bf16.mxu0 0
      %1385 = vmatpush1.bf16.msra.mxu0 %v1137
      %1386 = vmatprep.subr.bf16.mxu0 0
      %1387 = vmatpush1.bf16.msra.mxu0 %v1138
      %1388 = vmatprep.subr.bf16.mxu0 0
      %1389 = vmatpush1.bf16.msra.mxu0 %v1139
      %1390 = vmatprep.subr.bf16.mxu0 0
      %1391 = vmatpush1.bf16.msra.mxu0 %v1140
      %1392 = vmatprep.subr.bf16.mxu0 0
      %1393 = vmatpush1.bf16.msra.mxu0 %v1141
      %1394 = vmatprep.subr.bf16.mxu0 0
      %1395 = vmatpush1.bf16.msra.mxu0 %v1142
      %1396 = vmatprep.subr.bf16.mxu0 0
      %1397 = vmatpush1.bf16.msra.mxu0 %v1143
      %1398 = vmatprep.subr.bf16.mxu0 0
      %1399 = vmatpush1.bf16.msra.mxu0 %v1144
      %1400 = vmatprep.subr.bf16.mxu0 0
      %1401 = vmatpush1.bf16.msra.mxu0 %v1145
      %1402 = vmatprep.subr.bf16.mxu0 0
      %1403 = vmatpush1.bf16.msra.mxu0 %v1146
      %1404 = vmatprep.subr.bf16.mxu0 0
      %1405 = vmatpush1.bf16.msra.mxu0 %v1147
      %1406 = vmatprep.mubr.bf16.mxu0 %v745
      %1407 = vmatmul.mubr.bf16.gmra.mrb[0].mxu0 %v744
      %v1408 = vpop.f32.mrb[0].mxu0
      %v1409 = vadd.f32 %v1344, %v1408
      %v1410 = vpop.f32.mrb[0].mxu0
      %v1411 = vpop.f32.mrb[0].mxu0
      %v1412 = vadd.f32 %v1347, %v1411
      %v1413 = vpop.f32.mrb[0].mxu0
      %1414 = vmatprep.mubr.bf16.mxu0 %v754
      %1415 = vmatmul.mubr.bf16.gmra.mrb[0].mxu0 %v753
      %v1416 = vpop.f32.mrb[0].mxu0
      %v1417 = vadd.f32 %v1352, %v1416
      %v1418 = vpop.f32.mrb[0].mxu0
      %v1419 = vpop.f32.mrb[0].mxu0
      %v1420 = vadd.f32 %v1355, %v1419
      %v1421 = vpop.f32.mrb[0].mxu0
      %1422 = vmatprep.mubr.bf16.mxu0 %v763
      %1423 = vmatmul.mubr.bf16.gmra.mrb[0].mxu0 %v762
      %v1424 = vpop.f32.mrb[0].mxu0
      %v1425 = vadd.f32 %v1360, %v1424
      %v1426 = vpop.f32.mrb[0].mxu0
      %v1427 = vpop.f32.mrb[0].mxu0
      %v1428 = vadd.f32 %v1363, %v1427
      %v1429 = vpop.f32.mrb[0].mxu0
      %1430 = vmatprep.mubr.bf16.mxu0 %v772
      %1431 = vmatmul.mubr.bf16.gmra.mrb[0].mxu0 %v771
      %v1432 = vpop.f32.mrb[0].mxu0
      %v1433 = vadd.f32 %v1368, %v1432
      %v1434 = vpop.f32.mrb[0].mxu0
      %v1435 = vpop.f32.mrb[0].mxu0
      %v1436 = vadd.f32 %v1371, %v1435
      %v1437 = vpop.f32.mrb[0].mxu0
      %1438 = vdwg.mxu0
      %1439 = vmatprep.subr.bf16.mxu0 0
      %1440 = vmatpush1.bf16.msra.mxu0 %v1148
      %1441 = vmatprep.subr.bf16.mxu0 0
      %1442 = vmatpush1.bf16.msra.mxu0 %v1149
      %1443 = vmatprep.subr.bf16.mxu0 0
      %1444 = vmatpush1.bf16.msra.mxu0 %v1150
      %1445 = vmatprep.subr.bf16.mxu0 0
      %1446 = vmatpush1.bf16.msra.mxu0 %v1151
      %1447 = vmatprep.subr.bf16.mxu0 0
      %1448 = vmatpush1.bf16.msra.mxu0 %v1152
      %1449 = vmatprep.subr.bf16.mxu0 0
      %1450 = vmatpush1.bf16.msra.mxu0 %v1153
      %1451 = vmatprep.subr.bf16.mxu0 0
      %1452 = vmatpush1.bf16.msra.mxu0 %v1154
      %1453 = vmatprep.subr.bf16.mxu0 0
      %1454 = vmatpush1.bf16.msra.mxu0 %v1155
      %1455 = vmatprep.subr.bf16.mxu0 0
      %1456 = vmatpush1.bf16.msra.mxu0 %v1156
      %1457 = vmatprep.subr.bf16.mxu0 0
      %1458 = vmatpush1.bf16.msra.mxu0 %v1157
      %1459 = vmatprep.subr.bf16.mxu0 0
      %1460 = vmatpush1.bf16.msra.mxu0 %v1158
      %1461 = vmatprep.subr.bf16.mxu0 0
      %1462 = vmatpush1.bf16.msra.mxu0 %v1159
      %1463 = vmatprep.subr.bf16.mxu0 0
      %1464 = vmatpush1.bf16.msra.mxu0 %v1160
      %1465 = vmatprep.subr.bf16.mxu0 0
      %1466 = vmatpush1.bf16.msra.mxu0 %v1161
      %1467 = vmatprep.subr.bf16.mxu0 0
      %1468 = vmatpush1.bf16.msra.mxu0 %v1162
      %1469 = vmatprep.subr.bf16.mxu0 0
      %1470 = vmatpush1.bf16.msra.mxu0 %v1163
      %1471 = vmatprep.mubr.bf16.mxu0 %v747
      %1472 = vmatmul.mubr.bf16.gmra.mrb[0].mxu0 %v746
      %v1473 = vpop.f32.mrb[0].mxu0
      %v1474 = vadd.f32 %v1409, %v1473
      %v1475 = vpop.f32.mrb[0].mxu0
      %v1476 = vpop.f32.mrb[0].mxu0
      %v1477 = vadd.f32 %v1412, %v1476
      %v1478 = vpop.f32.mrb[0].mxu0
      %1479 = vmatprep.mubr.bf16.mxu0 %v756
      %1480 = vmatmul.mubr.bf16.gmra.mrb[0].mxu0 %v755
      %v1481 = vpop.f32.mrb[0].mxu0
      %v1482 = vadd.f32 %v1417, %v1481
      %v1483 = vpop.f32.mrb[0].mxu0
      %v1484 = vpop.f32.mrb[0].mxu0
      %v1485 = vadd.f32 %v1420, %v1484
      %v1486 = vpop.f32.mrb[0].mxu0
      %1487 = vmatprep.mubr.bf16.mxu0 %v765
      %1488 = vmatmul.mubr.bf16.gmra.mrb[0].mxu0 %v764
      %v1489 = vpop.f32.mrb[0].mxu0
      %v1490 = vadd.f32 %v1425, %v1489
      %v1491 = vpop.f32.mrb[0].mxu0
      %v1492 = vpop.f32.mrb[0].mxu0
      %v1493 = vadd.f32 %v1428, %v1492
      %v1494 = vpop.f32.mrb[0].mxu0
      %1495 = vmatprep.mubr.bf16.mxu0 %v774
      %1496 = vmatmul.mubr.bf16.gmra.mrb[0].mxu0 %v773
      %v1497 = vpop.f32.mrb[0].mxu0
      %v1498 = vadd.f32 %v1433, %v1497
      %v1499 = vpop.f32.mrb[0].mxu0
      %v1500 = vpop.f32.mrb[0].mxu0
      %v1501 = vadd.f32 %v1436, %v1500
      %v1502 = vpop.f32.mrb[0].mxu0
      %1503 = vdwg.mxu0
      %1504 = vmatprep.subr.bf16.mxu0 0
      %1505 = vmatpush1.bf16.msra.mxu0 %v1164
      %1506 = vmatprep.subr.bf16.mxu0 0
      %1507 = vmatpush1.bf16.msra.mxu0 %v1165
      %1508 = vmatprep.subr.bf16.mxu0 0
      %1509 = vmatpush1.bf16.msra.mxu0 %v1166
      %1510 = vmatprep.subr.bf16.mxu0 0
      %1511 = vmatpush1.bf16.msra.mxu0 %v1167
      %1512 = vmatprep.subr.bf16.mxu0 0
      %1513 = vmatpush1.bf16.msra.mxu0 %v1168
      %1514 = vmatprep.subr.bf16.mxu0 0
      %1515 = vmatpush1.bf16.msra.mxu0 %v1169
      %1516 = vmatprep.subr.bf16.mxu0 0
      %1517 = vmatpush1.bf16.msra.mxu0 %v1170
      %1518 = vmatprep.subr.bf16.mxu0 0
      %1519 = vmatpush1.bf16.msra.mxu0 %v1171
      %1520 = vmatprep.subr.bf16.mxu0 0
      %1521 = vmatpush1.bf16.msra.mxu0 0
      %1522 = vmatprep.subr.bf16.mxu0 0
      %1523 = vmatpush1.bf16.msra.mxu0 0
      %1524 = vmatprep.subr.bf16.mxu0 0
      %1525 = vmatpush1.bf16.msra.mxu0 0
      %1526 = vmatprep.subr.bf16.mxu0 0
      %1527 = vmatpush1.bf16.msra.mxu0 0
      %1528 = vmatprep.subr.bf16.mxu0 0
      %1529 = vmatpush1.bf16.msra.mxu0 0
      %1530 = vmatprep.subr.bf16.mxu0 0
      %1531 = vmatpush1.bf16.msra.mxu0 0
      %1532 = vmatprep.subr.bf16.mxu0 0
      %1533 = vmatpush1.bf16.msra.mxu0 0
      %1534 = vmatprep.subr.bf16.mxu0 0
      %1535 = vmatpush1.bf16.msra.mxu0 0
      %1536 = vmatprep.mubr.bf16.mxu0 0
      %1537 = vmatmul.mubr.bf16.gmra.mrb[0].mxu0 %v748
      %v1538 = vpop.f32.mrb[0].mxu0
      %v1539 = vadd.f32 %v1474, %v1538
      %v1540 = vpop.f32.mrb[0].mxu0
      %v1541 = vpop.f32.mrb[0].mxu0
      %v1542 = vadd.f32 %v1477, %v1541
      %v1543 = vpop.f32.mrb[0].mxu0
      %1544 = vmatprep.mubr.bf16.mxu0 0
      %1545 = vmatmul.mubr.bf16.gmra.mrb[0].mxu0 %v757
      %v1546 = vpop.f32.mrb[0].mxu0
      %v1547 = vadd.f32 %v1482, %v1546
      %v1548 = vpop.f32.mrb[0].mxu0
      %v1549 = vpop.f32.mrb[0].mxu0
      %v1550 = vadd.f32 %v1485, %v1549
      %v1551 = vpop.f32.mrb[0].mxu0
      %1552 = vmatprep.mubr.bf16.mxu0 0
      %1553 = vmatmul.mubr.bf16.gmra.mrb[0].mxu0 %v766
      %v1554 = vpop.f32.mrb[0].mxu0
      %v1555 = vadd.f32 %v1490, %v1554
      %v1556 = vpop.f32.mrb[0].mxu0
      %v1557 = vpop.f32.mrb[0].mxu0
      %v1558 = vadd.f32 %v1493, %v1557
      %v1559 = vpop.f32.mrb[0].mxu0
      %1560 = vmatprep.mubr.bf16.mxu0 0
      %1561 = vmatmul.mubr.bf16.gmra.mrb[0].mxu0 %v775
      %v1562 = vpop.f32.mrb[0].mxu0
      %v1563 = vadd.f32 %v1498, %v1562
      %v1564 = vpop.f32.mrb[0].mxu0
      %v1565 = vpop.f32.mrb[0].mxu0
      %v1566 = vadd.f32 %v1501, %v1565
      %v1567 = vpop.f32.mrb[0].mxu0
      %1568 = vdwg.mxu0
      %v1569 = vmax.f32 %v1539, 0.0
      %v1570 = vmax.f32 %v1542, 0.0
      %v1571 = vmax.f32 %v1547, 0.0
      %v1572 = vmax.f32 %v1550, 0.0
      %v1573 = vmax.f32 %v1555, 0.0
      %v1574 = vmax.f32 %v1558, 0.0
      %v1575 = vmax.f32 %v1563, 0.0
      %v1576 = vmax.f32 %v1566, 0.0
      %v1577 = vpack.c.bf16 %v1570, %v1569
      %v1578 = vpack.c.bf16 %v1572, %v1571
      %v1579 = vpack.c.bf16 %v1574, %v1573
      %v1580 = vpack.c.bf16 %v1576, %v1575
      %v1581 = vld [vmem:[%s3] sm:$0xff]
      %v1582 = vld [vmem:[%s3 + $0x8] sm:$0xff]
      %v1583 = vld [vmem:[%s3 + $0x10] sm:$0xff]
      %v1584 = vld [vmem:[%s3 + $0x18] sm:$0xff]
      %v1585 = vld [vmem:[%s3 + $0x20] sm:$0xff]
      %v1586 = vld [vmem:[%s3 + $0x28] sm:$0xff]
      %v1587 = vld [vmem:[%s3 + $0x30] sm:$0xff]
      %v1588 = vld [vmem:[%s3 + $0x38] sm:$0xff]
      %v1589 = vld [vmem:[%s3 + $0x40] sm:$0xff]
      %v1590 = vld [vmem:[%s3 + $0x48] sm:$0xff]
      %v1591 = vld [vmem:[%s3 + $0x50] sm:$0xff]
      %v1592 = vld [vmem:[%s3 + $0x58] sm:$0xff]
      %v1593 = vld [vmem:[%s3 + $0x60] sm:$0xff]
      %v1594 = vld [vmem:[%s3 + $0x68] sm:$0xff]
      %v1595 = vld [vmem:[%s3 + $0x70] sm:$0xff]
      %v1596 = vld [vmem:[%s3 + $0x78] sm:$0xff]
      %v1597 = vld [vmem:[%s4] sm:$0x3]
      %v1599 = vlaneseq
      %v1600 = vshrl.u32 %v1599, 7
      %v1601 = vsub.s32 0, %v1600
      %v1602 = vrot.slane %v1597, %v1601
      %v1603 = vlaneseq
      %v1604 = vshrl.u32 %v1603, 7
      %v1605 = vsub.s32 1, %v1604
      %v1606 = vrot.slane %v1597, %v1605
      %v1625 = vunpack.c.l.b16 %v1581
      %v1626 = vunpack.c.h.b16 %v1581
      %v1627 = vunpack.c.l.b16 %v1582
      %v1628 = vunpack.c.h.b16 %v1582
      %v1629 = vunpack.c.l.b16 %v1583
      %v1630 = vunpack.c.h.b16 %v1583
      %v1631 = vunpack.c.l.b16 %v1584
      %v1632 = vunpack.c.h.b16 %v1584
      %v1633 = vunpack.c.l.b16 %v1585
      %v1634 = vunpack.c.h.b16 %v1585
      %v1635 = vunpack.c.l.b16 %v1586
      %v1636 = vunpack.c.h.b16 %v1586
      %v1637 = vunpack.c.l.b16 %v1587
      %v1638 = vunpack.c.h.b16 %v1587
      %v1639 = vunpack.c.l.b16 %v1588
      %v1640 = vunpack.c.h.b16 %v1588
      %v1641 = vunpack.c.l.b16 %v1589
      %v1642 = vunpack.c.h.b16 %v1589
      %v1643 = vunpack.c.l.b16 %v1590
      %v1644 = vunpack.c.h.b16 %v1590
      %v1645 = vunpack.c.l.b16 %v1591
      %v1646 = vunpack.c.h.b16 %v1591
      %v1647 = vunpack.c.l.b16 %v1592
      %v1648 = vunpack.c.h.b16 %v1592
      %v1649 = vunpack.c.l.b16 %v1593
      %v1650 = vunpack.c.h.b16 %v1593
      %v1651 = vunpack.c.l.b16 %v1594
      %v1652 = vunpack.c.h.b16 %v1594
      %v1653 = vunpack.c.l.b16 %v1595
      %v1654 = vunpack.c.h.b16 %v1595
      %v1655 = vunpack.c.l.b16 %v1596
      %v1656 = vunpack.c.h.b16 %v1596
      %v1657 = vpack.c.b16 %v1627, %v1625
      %v1658 = vpack.c.b16 %v1628, %v1626
      %v1659 = vpack.c.b16 %v1631, %v1629
      %v1660 = vpack.c.b16 %v1632, %v1630
      %v1661 = vpack.c.b16 %v1635, %v1633
      %v1662 = vpack.c.b16 %v1636, %v1634
      %v1663 = vpack.c.b16 %v1639, %v1637
      %v1664 = vpack.c.b16 %v1640, %v1638
      %v1665 = vpack.c.b16 %v1643, %v1641
      %v1666 = vpack.c.b16 %v1644, %v1642
      %v1667 = vpack.c.b16 %v1647, %v1645
      %v1668 = vpack.c.b16 %v1648, %v1646
      %v1669 = vpack.c.b16 %v1651, %v1649
      %v1670 = vpack.c.b16 %v1652, %v1650
      %v1671 = vpack.c.b16 %v1655, %v1653
      %v1672 = vpack.c.b16 %v1656, %v1654
      %1689 = vmatprep.subr.bf16.mxu0 %v1658
      %1690 = vmatpush1.bf16.msra.mxu0 %v1657
      %1691 = vmatprep.subr.bf16.mxu0 %v1660
      %1692 = vmatpush1.bf16.msra.mxu0 %v1659
      %1693 = vmatprep.subr.bf16.mxu0 %v1662
      %1694 = vmatpush1.bf16.msra.mxu0 %v1661
      %1695 = vmatprep.subr.bf16.mxu0 %v1664
      %1696 = vmatpush1.bf16.msra.mxu0 %v1663
      %1697 = vmatprep.subr.bf16.mxu0 %v1666
      %1698 = vmatpush1.bf16.msra.mxu0 %v1665
      %1699 = vmatprep.subr.bf16.mxu0 %v1668
      %1700 = vmatpush1.bf16.msra.mxu0 %v1667
      %1701 = vmatprep.subr.bf16.mxu0 %v1670
      %1702 = vmatpush1.bf16.msra.mxu0 %v1669
      %1703 = vmatprep.subr.bf16.mxu0 %v1672
      %1704 = vmatpush1.bf16.msra.mxu0 %v1671
      %1705 = vmatprep.subr.bf16.mxu0 0
      %1706 = vmatpush1.bf16.msra.mxu0 0
      %1707 = vmatprep.subr.bf16.mxu0 0
      %1708 = vmatpush1.bf16.msra.mxu0 0
      %1709 = vmatprep.subr.bf16.mxu0 0
      %1710 = vmatpush1.bf16.msra.mxu0 0
      %1711 = vmatprep.subr.bf16.mxu0 0
      %1712 = vmatpush1.bf16.msra.mxu0 0
      %1713 = vmatprep.subr.bf16.mxu0 0
      %1714 = vmatpush1.bf16.msra.mxu0 0
      %1715 = vmatprep.subr.bf16.mxu0 0
      %1716 = vmatpush1.bf16.msra.mxu0 0
      %1717 = vmatprep.subr.bf16.mxu0 0
      %1718 = vmatpush1.bf16.msra.mxu0 0
      %1719 = vmatprep.subr.bf16.mxu0 0
      %1720 = vmatpush1.bf16.msra.mxu0 0
      %1721 = vmatprep.mubr.bf16.mxu0 0
      %1722 = vmatmul.mubr.bf16.gmra.mrb[0].mxu0 %v1577
      %v1723 = vpop.f32.mrb[0].mxu0
      %v1724 = vadd.f32 %v1602, %v1723
      %v1725 = vpop.f32.mrb[0].mxu0
      %v1726 = vadd.f32 %v1606, %v1725
      %v1727 = vpop.f32.mrb[0].mxu0
      %v1728 = vadd.f32 %v1602, %v1727
      %v1729 = vpop.f32.mrb[0].mxu0
      %v1730 = vadd.f32 %v1606, %v1729
      %1731 = vmatprep.mubr.bf16.mxu0 0
      %1732 = vmatmul.mubr.bf16.gmra.mrb[0].mxu0 %v1578
      %v1733 = vpop.f32.mrb[0].mxu0
      %v1734 = vadd.f32 %v1602, %v1733
      %v1735 = vpop.f32.mrb[0].mxu0
      %v1736 = vadd.f32 %v1606, %v1735
      %v1737 = vpop.f32.mrb[0].mxu0
      %v1738 = vadd.f32 %v1602, %v1737
      %v1739 = vpop.f32.mrb[0].mxu0
      %v1740 = vadd.f32 %v1606, %v1739
      %1741 = vmatprep.mubr.bf16.mxu0 0
      %1742 = vmatmul.mubr.bf16.gmra.mrb[0].mxu0 %v1579
      %v1743 = vpop.f32.mrb[0].mxu0
      %v1744 = vadd.f32 %v1602, %v1743
      %v1745 = vpop.f32.mrb[0].mxu0
      %v1746 = vadd.f32 %v1606, %v1745
      %v1747 = vpop.f32.mrb[0].mxu0
      %v1748 = vadd.f32 %v1602, %v1747
      %v1749 = vpop.f32.mrb[0].mxu0
      %v1750 = vadd.f32 %v1606, %v1749
      %1751 = vmatprep.mubr.bf16.mxu0 0
      %1752 = vmatmul.mubr.bf16.gmra.mrb[0].mxu0 %v1580
      %v1753 = vpop.f32.mrb[0].mxu0
      %v1754 = vadd.f32 %v1602, %v1753
      %v1755 = vpop.f32.mrb[0].mxu0
      %v1756 = vadd.f32 %v1606, %v1755
      %v1757 = vpop.f32.mrb[0].mxu0
      %v1758 = vadd.f32 %v1602, %v1757
      %v1759 = vpop.f32.mrb[0].mxu0
      %v1760 = vadd.f32 %v1606, %v1759
      %1761 = vdwg.mxu0
      %v1762 = vld [vmem:[%s420] sm:$0xff]
      %v1763 = vld [vmem:[%s420 + $0x8] sm:$0xff]
      %v1764 = vld [vmem:[%s420 + $0x10] sm:$0xff]
      %v1765 = vld [vmem:[%s420 + $0x18] sm:$0xff]
      %v1766 = vld [vmem:[%s420 + $0x20] sm:$0xff]
      %v1767 = vld [vmem:[%s420 + $0x28] sm:$0xff]
      %v1768 = vld [vmem:[%s420 + $0x30] sm:$0xff]
      %v1769 = vld [vmem:[%s420 + $0x38] sm:$0xff]
      %v1770 = vld [vmem:[%s420 + $0x40] sm:$0xff]
      %v1771 = vld [vmem:[%s420 + $0x48] sm:$0xff]
      %v1772 = vld [vmem:[%s420 + $0x50] sm:$0xff]
      %v1773 = vld [vmem:[%s420 + $0x58] sm:$0xff]
      %v1774 = vld [vmem:[%s420 + $0x60] sm:$0xff]
      %v1775 = vld [vmem:[%s420 + $0x68] sm:$0xff]
      %v1776 = vld [vmem:[%s420 + $0x70] sm:$0xff]
      %v1777 = vld [vmem:[%s420 + $0x78] sm:$0xff]
      %v1778 = vld [vmem:[%s420 + $0x80] sm:$0xff]
      %v1779 = vld [vmem:[%s420 + $0x88] sm:$0xff]
      %v1780 = vld [vmem:[%s420 + $0x90] sm:$0xff]
      %v1781 = vld [vmem:[%s420 + $0x98] sm:$0xff]
      %v1782 = vld [vmem:[%s420 + $0xa0] sm:$0xff]
      %v1783 = vld [vmem:[%s420 + $0xa8] sm:$0xff]
      %v1784 = vld [vmem:[%s420 + $0xb0] sm:$0xff]
      %v1785 = vld [vmem:[%s420 + $0xb8] sm:$0xff]
      %v1786 = vld [vmem:[%s420 + $0xc0] sm:$0xff]
      %v1787 = vld [vmem:[%s420 + $0xc8] sm:$0xff]
      %v1788 = vld [vmem:[%s420 + $0xd0] sm:$0xff]
      %v1789 = vld [vmem:[%s420 + $0xd8] sm:$0xff]
      %v1790 = vld [vmem:[%s420 + $0xe0] sm:$0xff]
      %v1791 = vld [vmem:[%s420 + $0xe8] sm:$0xff]
      %v1792 = vld [vmem:[%s420 + $0xf0] sm:$0xff]
      %v1793 = vld [vmem:[%s420 + $0xf8] sm:$0xff]
      %v1794 = vld [vmem:[%s6] sm:$0xff]
      %v1795 = vld [vmem:[%s6 + $0x8] sm:$0xff]
      %v1796 = vld [vmem:[%s6 + $0x10] sm:$0xff]
      %v1797 = vld [vmem:[%s6 + $0x18] sm:$0xff]
      %v1798 = vld [vmem:[%s6 + $0x20] sm:$0xff]
      %v1799 = vld [vmem:[%s6 + $0x28] sm:$0xff]
      %v1800 = vld [vmem:[%s6 + $0x30] sm:$0xff]
      %v1801 = vld [vmem:[%s6 + $0x38] sm:$0xff]
      %v1802 = vld [vmem:[%s6 + $0x40] sm:$0xff]
      %v1803 = vld [vmem:[%s6 + $0x48] sm:$0xff]
      %v1804 = vld [vmem:[%s6 + $0x50] sm:$0xff]
      %v1805 = vld [vmem:[%s6 + $0x58] sm:$0xff]
      %v1806 = vld [vmem:[%s6 + $0x60] sm:$0xff]
      %v1807 = vld [vmem:[%s6 + $0x68] sm:$0xff]
      %v1808 = vld [vmem:[%s6 + $0x70] sm:$0xff]
      %v1809 = vld [vmem:[%s6 + $0x78] sm:$0xff]
      %v1810 = vld [vmem:[%s6 + $0x80] sm:$0xff]
      %v1811 = vld [vmem:[%s6 + $0x88] sm:$0xff]
      %v1812 = vld [vmem:[%s6 + $0x90] sm:$0xff]
      %v1813 = vld [vmem:[%s6 + $0x98] sm:$0xff]
      %v1814 = vld [vmem:[%s6 + $0xa0] sm:$0xff]
      %v1815 = vld [vmem:[%s6 + $0xa8] sm:$0xff]
      %v1816 = vld [vmem:[%s6 + $0xb0] sm:$0xff]
      %v1817 = vld [vmem:[%s6 + $0xb8] sm:$0xff]
      %v1818 = vld [vmem:[%s6 + $0xc0] sm:$0xff]
      %v1819 = vld [vmem:[%s6 + $0xc8] sm:$0xff]
      %v1820 = vld [vmem:[%s6 + $0xd0] sm:$0xff]
      %v1821 = vld [vmem:[%s6 + $0xd8] sm:$0xff]
      %v1822 = vld [vmem:[%s6 + $0xe0] sm:$0xff]
      %v1823 = vld [vmem:[%s6 + $0xe8] sm:$0xff]
      %v1824 = vld [vmem:[%s6 + $0xf0] sm:$0xff]
      %v1825 = vld [vmem:[%s6 + $0xf8] sm:$0xff]
      %v1826 = vld [vmem:[%s6 + $0x100] sm:$0xff]
      %v1827 = vld [vmem:[%s6 + $0x108] sm:$0xff]
      %v1828 = vld [vmem:[%s6 + $0x110] sm:$0xff]
      %v1829 = vld [vmem:[%s6 + $0x118] sm:$0xff]
      %v1830 = vld [vmem:[%s6 + $0x120] sm:$0xff]
      %v1831 = vld [vmem:[%s6 + $0x128] sm:$0xff]
      %v1832 = vld [vmem:[%s6 + $0x130] sm:$0xff]
      %v1833 = vld [vmem:[%s6 + $0x138] sm:$0xff]
      %v1834 = vld [vmem:[%s6 + $0x140] sm:$0xff]
      %v1835 = vld [vmem:[%s6 + $0x148] sm:$0xff]
      %v1836 = vld [vmem:[%s6 + $0x150] sm:$0xff]
      %v1837 = vld [vmem:[%s6 + $0x158] sm:$0xff]
      %v1838 = vld [vmem:[%s6 + $0x160] sm:$0xff]
      %v1839 = vld [vmem:[%s6 + $0x168] sm:$0xff]
      %v1840 = vld [vmem:[%s6 + $0x170] sm:$0xff]
      %v1841 = vld [vmem:[%s6 + $0x178] sm:$0xff]
      %v1842 = vld [vmem:[%s6 + $0x180] sm:$0xff]
      %v1843 = vld [vmem:[%s6 + $0x188] sm:$0xff]
      %v1844 = vld [vmem:[%s6 + $0x190] sm:$0xff]
      %v1845 = vld [vmem:[%s6 + $0x198] sm:$0xff]
      %v1846 = vld [vmem:[%s6 + $0x1a0] sm:$0xff]
      %v1847 = vld [vmem:[%s6 + $0x1a8] sm:$0xff]
      %v1848 = vld [vmem:[%s6 + $0x1b0] sm:$0xff]
      %v1849 = vld [vmem:[%s6 + $0x1b8] sm:$0xff]
      %v1850 = vld [vmem:[%s6 + $0x1c0] sm:$0xff]
      %v1851 = vld [vmem:[%s6 + $0x1c8] sm:$0xff]
      %v1852 = vld [vmem:[%s6 + $0x1d0] sm:$0xff]
      %v1853 = vld [vmem:[%s6 + $0x1d8] sm:$0xff]
      %v1854 = vld [vmem:[%s6 + $0x1e0] sm:$0xff]
      %v1855 = vld [vmem:[%s6 + $0x1e8] sm:$0xff]
      %v1856 = vld [vmem:[%s6 + $0x1f0] sm:$0xff]
      %v1857 = vld [vmem:[%s6 + $0x1f8] sm:$0xff]
      %v1858 = vld [vmem:[%s6 + $0x200] sm:$0xff]
      %v1859 = vld [vmem:[%s6 + $0x208] sm:$0xff]
      %v1860 = vld [vmem:[%s6 + $0x210] sm:$0xff]
      %v1861 = vld [vmem:[%s6 + $0x218] sm:$0xff]
      %v1862 = vld [vmem:[%s6 + $0x220] sm:$0xff]
      %v1863 = vld [vmem:[%s6 + $0x228] sm:$0xff]
      %v1864 = vld [vmem:[%s6 + $0x230] sm:$0xff]
      %v1865 = vld [vmem:[%s6 + $0x238] sm:$0xff]
      %v1866 = vld [vmem:[%s6 + $0x240] sm:$0xff]
      %v1867 = vld [vmem:[%s6 + $0x248] sm:$0xff]
      %v1868 = vld [vmem:[%s6 + $0x250] sm:$0xff]
      %v1869 = vld [vmem:[%s6 + $0x258] sm:$0xff]
      %v1870 = vld [vmem:[%s6 + $0x260] sm:$0xff]
      %v1871 = vld [vmem:[%s6 + $0x268] sm:$0xff]
      %v1872 = vld [vmem:[%s6 + $0x270] sm:$0xff]
      %v1873 = vld [vmem:[%s6 + $0x278] sm:$0xff]
      %v1874 = vld [vmem:[%s6 + $0x280] sm:$0xff]
      %v1875 = vld [vmem:[%s6 + $0x288] sm:$0xff]
      %v1876 = vld [vmem:[%s6 + $0x290] sm:$0xff]
      %v1877 = vld [vmem:[%s6 + $0x298] sm:$0xff]
      %v1878 = vld [vmem:[%s6 + $0x2a0] sm:$0xff]
      %v1879 = vld [vmem:[%s6 + $0x2a8] sm:$0xff]
      %v1880 = vld [vmem:[%s6 + $0x2b0] sm:$0xff]
      %v1881 = vld [vmem:[%s6 + $0x2b8] sm:$0xff]
      %v1882 = vld [vmem:[%s6 + $0x2c0] sm:$0xff]
      %v1883 = vld [vmem:[%s6 + $0x2c8] sm:$0xff]
      %v1884 = vld [vmem:[%s6 + $0x2d0] sm:$0xff]
      %v1885 = vld [vmem:[%s6 + $0x2d8] sm:$0xff]
      %v1886 = vld [vmem:[%s6 + $0x2e0] sm:$0xff]
      %v1887 = vld [vmem:[%s6 + $0x2e8] sm:$0xff]
      %v1888 = vld [vmem:[%s6 + $0x2f0] sm:$0xff]
      %v1889 = vld [vmem:[%s6 + $0x2f8] sm:$0xff]
      %v1890 = vld [vmem:[%s6 + $0x300] sm:$0xff]
      %v1891 = vld [vmem:[%s6 + $0x308] sm:$0xff]
      %v1892 = vld [vmem:[%s6 + $0x310] sm:$0xff]
      %v1893 = vld [vmem:[%s6 + $0x318] sm:$0xff]
      %v1894 = vld [vmem:[%s6 + $0x320] sm:$0xff]
      %v1895 = vld [vmem:[%s6 + $0x328] sm:$0xff]
      %v1896 = vld [vmem:[%s6 + $0x330] sm:$0xff]
      %v1897 = vld [vmem:[%s6 + $0x338] sm:$0xff]
      %v1898 = vld [vmem:[%s6 + $0x340] sm:$0xff]
      %v1899 = vld [vmem:[%s6 + $0x348] sm:$0xff]
      %v1900 = vld [vmem:[%s6 + $0x350] sm:$0xff]
      %v1901 = vld [vmem:[%s6 + $0x358] sm:$0xff]
      %v1902 = vld [vmem:[%s6 + $0x360] sm:$0xff]
      %v1903 = vld [vmem:[%s6 + $0x368] sm:$0xff]
      %v1904 = vld [vmem:[%s6 + $0x370] sm:$0xff]
      %v1905 = vld [vmem:[%s6 + $0x378] sm:$0xff]
      %v1906 = vld [vmem:[%s6 + $0x380] sm:$0xff]
      %v1907 = vld [vmem:[%s6 + $0x388] sm:$0xff]
      %v1908 = vld [vmem:[%s6 + $0x390] sm:$0xff]
      %v1909 = vld [vmem:[%s6 + $0x398] sm:$0xff]
      %v1910 = vld [vmem:[%s6 + $0x3a0] sm:$0xff]
      %v1911 = vld [vmem:[%s6 + $0x3a8] sm:$0xff]
      %v1912 = vld [vmem:[%s6 + $0x3b0] sm:$0xff]
      %v1913 = vld [vmem:[%s6 + $0x3b8] sm:$0xff]
      %v1914 = vld [vmem:[%s6 + $0x3c0] sm:$0xff]
      %v1915 = vld [vmem:[%s6 + $0x3c8] sm:$0xff]
      %v1916 = vld [vmem:[%s6 + $0x3d0] sm:$0xff]
      %v1917 = vld [vmem:[%s6 + $0x3d8] sm:$0xff]
      %v1918 = vld [vmem:[%s6 + $0x3e0] sm:$0xff]
      %v1919 = vld [vmem:[%s6 + $0x3e8] sm:$0xff]
      %v1920 = vld [vmem:[%s6 + $0x3f0] sm:$0xff]
      %v1921 = vld [vmem:[%s6 + $0x3f8] sm:$0xff]
      %v1954 = vunpack.c.l.b16 %v1762
      %v1955 = vunpack.c.h.b16 %v1762
      %v1956 = vunpack.c.l.b16 %v1763
      %v1957 = vunpack.c.h.b16 %v1763
      %v1958 = vunpack.c.l.b16 %v1764
      %v1959 = vunpack.c.h.b16 %v1764
      %v1960 = vunpack.c.l.b16 %v1765
      %v1961 = vunpack.c.h.b16 %v1765
      %v1962 = vunpack.c.l.b16 %v1766
      %v1963 = vunpack.c.h.b16 %v1766
      %v1964 = vunpack.c.l.b16 %v1767
      %v1965 = vunpack.c.h.b16 %v1767
      %v1966 = vunpack.c.l.b16 %v1768
      %v1967 = vunpack.c.h.b16 %v1768
      %v1968 = vunpack.c.l.b16 %v1769
      %v1969 = vunpack.c.h.b16 %v1769
      %v1970 = vunpack.c.l.b16 %v1770
      %v1971 = vunpack.c.h.b16 %v1770
      %v1972 = vunpack.c.l.b16 %v1771
      %v1973 = vunpack.c.h.b16 %v1771
      %v1974 = vunpack.c.l.b16 %v1772
      %v1975 = vunpack.c.h.b16 %v1772
      %v1976 = vunpack.c.l.b16 %v1773
      %v1977 = vunpack.c.h.b16 %v1773
      %v1978 = vunpack.c.l.b16 %v1774
      %v1979 = vunpack.c.h.b16 %v1774
      %v1980 = vunpack.c.l.b16 %v1775
      %v1981 = vunpack.c.h.b16 %v1775
      %v1982 = vunpack.c.l.b16 %v1776
      %v1983 = vunpack.c.h.b16 %v1776
      %v1984 = vunpack.c.l.b16 %v1777
      %v1985 = vunpack.c.h.b16 %v1777
      %v1986 = vunpack.c.l.b16 %v1778
      %v1987 = vunpack.c.h.b16 %v1778
      %v1988 = vunpack.c.l.b16 %v1779
      %v1989 = vunpack.c.h.b16 %v1779
      %v1990 = vunpack.c.l.b16 %v1780
      %v1991 = vunpack.c.h.b16 %v1780
      %v1992 = vunpack.c.l.b16 %v1781
      %v1993 = vunpack.c.h.b16 %v1781
      %v1994 = vunpack.c.l.b16 %v1782
      %v1995 = vunpack.c.h.b16 %v1782
      %v1996 = vunpack.c.l.b16 %v1783
      %v1997 = vunpack.c.h.b16 %v1783
      %v1998 = vunpack.c.l.b16 %v1784
      %v1999 = vunpack.c.h.b16 %v1784
      %v2000 = vunpack.c.l.b16 %v1785
      %v2001 = vunpack.c.h.b16 %v1785
      %v2002 = vunpack.c.l.b16 %v1786
      %v2003 = vunpack.c.h.b16 %v1786
      %v2004 = vunpack.c.l.b16 %v1787
      %v2005 = vunpack.c.h.b16 %v1787
      %v2006 = vunpack.c.l.b16 %v1788
      %v2007 = vunpack.c.h.b16 %v1788
      %v2008 = vunpack.c.l.b16 %v1789
      %v2009 = vunpack.c.h.b16 %v1789
      %v2010 = vunpack.c.l.b16 %v1790
      %v2011 = vunpack.c.h.b16 %v1790
      %v2012 = vunpack.c.l.b16 %v1791
      %v2013 = vunpack.c.h.b16 %v1791
      %v2014 = vunpack.c.l.b16 %v1792
      %v2015 = vunpack.c.h.b16 %v1792
      %v2016 = vunpack.c.l.b16 %v1793
      %v2017 = vunpack.c.h.b16 %v1793
      %v2018 = vpack.c.b16 %v1962, %v1954
      %v2019 = vpack.c.b16 %v1963, %v1955
      %v2020 = vpack.c.b16 %v1964, %v1956
      %v2021 = vpack.c.b16 %v1965, %v1957
      %v2022 = vpack.c.b16 %v1966, %v1958
      %v2023 = vpack.c.b16 %v1967, %v1959
      %v2024 = vpack.c.b16 %v1968, %v1960
      %v2025 = vpack.c.b16 %v1969, %v1961
      %v2026 = vpack.c.b16 %v1978, %v1970
      %v2027 = vpack.c.b16 %v1979, %v1971
      %v2028 = vpack.c.b16 %v1980, %v1972
      %v2029 = vpack.c.b16 %v1981, %v1973
      %v2030 = vpack.c.b16 %v1982, %v1974
      %v2031 = vpack.c.b16 %v1983, %v1975
      %v2032 = vpack.c.b16 %v1984, %v1976
      %v2033 = vpack.c.b16 %v1985, %v1977
      %v2034 = vpack.c.b16 %v1994, %v1986
      %v2035 = vpack.c.b16 %v1995, %v1987
      %v2036 = vpack.c.b16 %v1996, %v1988
      %v2037 = vpack.c.b16 %v1997, %v1989
      %v2038 = vpack.c.b16 %v1998, %v1990
      %v2039 = vpack.c.b16 %v1999, %v1991
      %v2040 = vpack.c.b16 %v2000, %v1992
      %v2041 = vpack.c.b16 %v2001, %v1993
      %v2042 = vpack.c.b16 %v2010, %v2002
      %v2043 = vpack.c.b16 %v2011, %v2003
      %v2044 = vpack.c.b16 %v2012, %v2004
      %v2045 = vpack.c.b16 %v2013, %v2005
      %v2046 = vpack.c.b16 %v2014, %v2006
      %v2047 = vpack.c.b16 %v2015, %v2007
      %v2048 = vpack.c.b16 %v2016, %v2008
      %v2049 = vpack.c.b16 %v2017, %v2009
      %v2210 = vunpack.c.l.b16 %v1794
      %v2211 = vunpack.c.h.b16 %v1794
      %v2212 = vunpack.c.l.b16 %v1795
      %v2213 = vunpack.c.h.b16 %v1795
      %v2214 = vunpack.c.l.b16 %v1796
      %v2215 = vunpack.c.h.b16 %v1796
      %v2216 = vunpack.c.l.b16 %v1797
      %v2217 = vunpack.c.h.b16 %v1797
      %v2218 = vunpack.c.l.b16 %v1798
      %v2219 = vunpack.c.h.b16 %v1798
      %v2220 = vunpack.c.l.b16 %v1799
      %v2221 = vunpack.c.h.b16 %v1799
      %v2222 = vunpack.c.l.b16 %v1800
      %v2223 = vunpack.c.h.b16 %v1800
      %v2224 = vunpack.c.l.b16 %v1801
      %v2225 = vunpack.c.h.b16 %v1801
      %v2226 = vunpack.c.l.b16 %v1802
      %v2227 = vunpack.c.h.b16 %v1802
      %v2228 = vunpack.c.l.b16 %v1803
      %v2229 = vunpack.c.h.b16 %v1803
      %v2230 = vunpack.c.l.b16 %v1804
      %v2231 = vunpack.c.h.b16 %v1804
      %v2232 = vunpack.c.l.b16 %v1805
      %v2233 = vunpack.c.h.b16 %v1805
      %v2234 = vunpack.c.l.b16 %v1806
      %v2235 = vunpack.c.h.b16 %v1806
      %v2236 = vunpack.c.l.b16 %v1807
      %v2237 = vunpack.c.h.b16 %v1807
      %v2238 = vunpack.c.l.b16 %v1808
      %v2239 = vunpack.c.h.b16 %v1808
      %v2240 = vunpack.c.l.b16 %v1809
      %v2241 = vunpack.c.h.b16 %v1809
      %v2242 = vunpack.c.l.b16 %v1810
      %v2243 = vunpack.c.h.b16 %v1810
      %v2244 = vunpack.c.l.b16 %v1811
      %v2245 = vunpack.c.h.b16 %v1811
      %v2246 = vunpack.c.l.b16 %v1812
      %v2247 = vunpack.c.h.b16 %v1812
      %v2248 = vunpack.c.l.b16 %v1813
      %v2249 = vunpack.c.h.b16 %v1813
      %v2250 = vunpack.c.l.b16 %v1814
      %v2251 = vunpack.c.h.b16 %v1814
      %v2252 = vunpack.c.l.b16 %v1815
      %v2253 = vunpack.c.h.b16 %v1815
      %v2254 = vunpack.c.l.b16 %v1816
      %v2255 = vunpack.c.h.b16 %v1816
      %v2256 = vunpack.c.l.b16 %v1817
      %v2257 = vunpack.c.h.b16 %v1817
      %v2258 = vunpack.c.l.b16 %v1818
      %v2259 = vunpack.c.h.b16 %v1818
      %v2260 = vunpack.c.l.b16 %v1819
      %v2261 = vunpack.c.h.b16 %v1819
      %v2262 = vunpack.c.l.b16 %v1820
      %v2263 = vunpack.c.h.b16 %v1820
      %v2264 = vunpack.c.l.b16 %v1821
      %v2265 = vunpack.c.h.b16 %v1821
      %v2266 = vunpack.c.l.b16 %v1822
      %v2267 = vunpack.c.h.b16 %v1822
      %v2268 = vunpack.c.l.b16 %v1823
      %v2269 = vunpack.c.h.b16 %v1823
      %v2270 = vunpack.c.l.b16 %v1824
      %v2271 = vunpack.c.h.b16 %v1824
      %v2272 = vunpack.c.l.b16 %v1825
      %v2273 = vunpack.c.h.b16 %v1825
      %v2274 = vunpack.c.l.b16 %v1826
      %v2275 = vunpack.c.h.b16 %v1826
      %v2276 = vunpack.c.l.b16 %v1827
      %v2277 = vunpack.c.h.b16 %v1827
      %v2278 = vunpack.c.l.b16 %v1828
      %v2279 = vunpack.c.h.b16 %v1828
      %v2280 = vunpack.c.l.b16 %v1829
      %v2281 = vunpack.c.h.b16 %v1829
      %v2282 = vunpack.c.l.b16 %v1830
      %v2283 = vunpack.c.h.b16 %v1830
      %v2284 = vunpack.c.l.b16 %v1831
      %v2285 = vunpack.c.h.b16 %v1831
      %v2286 = vunpack.c.l.b16 %v1832
      %v2287 = vunpack.c.h.b16 %v1832
      %v2288 = vunpack.c.l.b16 %v1833
      %v2289 = vunpack.c.h.b16 %v1833
      %v2290 = vunpack.c.l.b16 %v1834
      %v2291 = vunpack.c.h.b16 %v1834
      %v2292 = vunpack.c.l.b16 %v1835
      %v2293 = vunpack.c.h.b16 %v1835
      %v2294 = vunpack.c.l.b16 %v1836
      %v2295 = vunpack.c.h.b16 %v1836
      %v2296 = vunpack.c.l.b16 %v1837
      %v2297 = vunpack.c.h.b16 %v1837
      %v2298 = vunpack.c.l.b16 %v1838
      %v2299 = vunpack.c.h.b16 %v1838
      %v2300 = vunpack.c.l.b16 %v1839
      %v2301 = vunpack.c.h.b16 %v1839
      %v2302 = vunpack.c.l.b16 %v1840
      %v2303 = vunpack.c.h.b16 %v1840
      %v2304 = vunpack.c.l.b16 %v1841
      %v2305 = vunpack.c.h.b16 %v1841
      %v2306 = vunpack.c.l.b16 %v1842
      %v2307 = vunpack.c.h.b16 %v1842
      %v2308 = vunpack.c.l.b16 %v1843
      %v2309 = vunpack.c.h.b16 %v1843
      %v2310 = vunpack.c.l.b16 %v1844
      %v2311 = vunpack.c.h.b16 %v1844
      %v2312 = vunpack.c.l.b16 %v1845
      %v2313 = vunpack.c.h.b16 %v1845
      %v2314 = vunpack.c.l.b16 %v1846
      %v2315 = vunpack.c.h.b16 %v1846
      %v2316 = vunpack.c.l.b16 %v1847
      %v2317 = vunpack.c.h.b16 %v1847
      %v2318 = vunpack.c.l.b16 %v1848
      %v2319 = vunpack.c.h.b16 %v1848
      %v2320 = vunpack.c.l.b16 %v1849
      %v2321 = vunpack.c.h.b16 %v1849
      %v2322 = vunpack.c.l.b16 %v1850
      %v2323 = vunpack.c.h.b16 %v1850
      %v2324 = vunpack.c.l.b16 %v1851
      %v2325 = vunpack.c.h.b16 %v1851
      %v2326 = vunpack.c.l.b16 %v1852
      %v2327 = vunpack.c.h.b16 %v1852
      %v2328 = vunpack.c.l.b16 %v1853
      %v2329 = vunpack.c.h.b16 %v1853
      %v2330 = vunpack.c.l.b16 %v1854
      %v2331 = vunpack.c.h.b16 %v1854
      %v2332 = vunpack.c.l.b16 %v1855
      %v2333 = vunpack.c.h.b16 %v1855
      %v2334 = vunpack.c.l.b16 %v1856
      %v2335 = vunpack.c.h.b16 %v1856
      %v2336 = vunpack.c.l.b16 %v1857
      %v2337 = vunpack.c.h.b16 %v1857
      %v2338 = vunpack.c.l.b16 %v1858
      %v2339 = vunpack.c.h.b16 %v1858
      %v2340 = vunpack.c.l.b16 %v1859
      %v2341 = vunpack.c.h.b16 %v1859
      %v2342 = vunpack.c.l.b16 %v1860
      %v2343 = vunpack.c.h.b16 %v1860
      %v2344 = vunpack.c.l.b16 %v1861
      %v2345 = vunpack.c.h.b16 %v1861
      %v2346 = vunpack.c.l.b16 %v1862
      %v2347 = vunpack.c.h.b16 %v1862
      %v2348 = vunpack.c.l.b16 %v1863
      %v2349 = vunpack.c.h.b16 %v1863
      %v2350 = vunpack.c.l.b16 %v1864
      %v2351 = vunpack.c.h.b16 %v1864
      %v2352 = vunpack.c.l.b16 %v1865
      %v2353 = vunpack.c.h.b16 %v1865
      %v2354 = vunpack.c.l.b16 %v1866
      %v2355 = vunpack.c.h.b16 %v1866
      %v2356 = vunpack.c.l.b16 %v1867
      %v2357 = vunpack.c.h.b16 %v1867
      %v2358 = vunpack.c.l.b16 %v1868
      %v2359 = vunpack.c.h.b16 %v1868
      %v2360 = vunpack.c.l.b16 %v1869
      %v2361 = vunpack.c.h.b16 %v1869
      %v2362 = vunpack.c.l.b16 %v1870
      %v2363 = vunpack.c.h.b16 %v1870
      %v2364 = vunpack.c.l.b16 %v1871
      %v2365 = vunpack.c.h.b16 %v1871
      %v2366 = vunpack.c.l.b16 %v1872
      %v2367 = vunpack.c.h.b16 %v1872
      %v2368 = vunpack.c.l.b16 %v1873
      %v2369 = vunpack.c.h.b16 %v1873
      %v2370 = vunpack.c.l.b16 %v1874
      %v2371 = vunpack.c.h.b16 %v1874
      %v2372 = vunpack.c.l.b16 %v1875
      %v2373 = vunpack.c.h.b16 %v1875
      %v2374 = vunpack.c.l.b16 %v1876
      %v2375 = vunpack.c.h.b16 %v1876
      %v2376 = vunpack.c.l.b16 %v1877
      %v2377 = vunpack.c.h.b16 %v1877
      %v2378 = vunpack.c.l.b16 %v1878
      %v2379 = vunpack.c.h.b16 %v1878
      %v2380 = vunpack.c.l.b16 %v1879
      %v2381 = vunpack.c.h.b16 %v1879
      %v2382 = vunpack.c.l.b16 %v1880
      %v2383 = vunpack.c.h.b16 %v1880
      %v2384 = vunpack.c.l.b16 %v1881
      %v2385 = vunpack.c.h.b16 %v1881
      %v2386 = vunpack.c.l.b16 %v1882
      %v2387 = vunpack.c.h.b16 %v1882
      %v2388 = vunpack.c.l.b16 %v1883
      %v2389 = vunpack.c.h.b16 %v1883
      %v2390 = vunpack.c.l.b16 %v1884
      %v2391 = vunpack.c.h.b16 %v1884
      %v2392 = vunpack.c.l.b16 %v1885
      %v2393 = vunpack.c.h.b16 %v1885
      %v2394 = vunpack.c.l.b16 %v1886
      %v2395 = vunpack.c.h.b16 %v1886
      %v2396 = vunpack.c.l.b16 %v1887
      %v2397 = vunpack.c.h.b16 %v1887
      %v2398 = vunpack.c.l.b16 %v1888
      %v2399 = vunpack.c.h.b16 %v1888
      %v2400 = vunpack.c.l.b16 %v1889
      %v2401 = vunpack.c.h.b16 %v1889
      %v2402 = vunpack.c.l.b16 %v1890
      %v2403 = vunpack.c.h.b16 %v1890
      %v2404 = vunpack.c.l.b16 %v1891
      %v2405 = vunpack.c.h.b16 %v1891
      %v2406 = vunpack.c.l.b16 %v1892
      %v2407 = vunpack.c.h.b16 %v1892
      %v2408 = vunpack.c.l.b16 %v1893
      %v2409 = vunpack.c.h.b16 %v1893
      %v2410 = vunpack.c.l.b16 %v1894
      %v2411 = vunpack.c.h.b16 %v1894
      %v2412 = vunpack.c.l.b16 %v1895
      %v2413 = vunpack.c.h.b16 %v1895
      %v2414 = vunpack.c.l.b16 %v1896
      %v2415 = vunpack.c.h.b16 %v1896
      %v2416 = vunpack.c.l.b16 %v1897
      %v2417 = vunpack.c.h.b16 %v1897
      %v2418 = vunpack.c.l.b16 %v1898
      %v2419 = vunpack.c.h.b16 %v1898
      %v2420 = vunpack.c.l.b16 %v1899
      %v2421 = vunpack.c.h.b16 %v1899
      %v2422 = vunpack.c.l.b16 %v1900
      %v2423 = vunpack.c.h.b16 %v1900
      %v2424 = vunpack.c.l.b16 %v1901
      %v2425 = vunpack.c.h.b16 %v1901
      %v2426 = vunpack.c.l.b16 %v1902
      %v2427 = vunpack.c.h.b16 %v1902
      %v2428 = vunpack.c.l.b16 %v1903
      %v2429 = vunpack.c.h.b16 %v1903
      %v2430 = vunpack.c.l.b16 %v1904
      %v2431 = vunpack.c.h.b16 %v1904
      %v2432 = vunpack.c.l.b16 %v1905
      %v2433 = vunpack.c.h.b16 %v1905
      %v2434 = vunpack.c.l.b16 %v1906
      %v2435 = vunpack.c.h.b16 %v1906
      %v2436 = vunpack.c.l.b16 %v1907
      %v2437 = vunpack.c.h.b16 %v1907
      %v2438 = vunpack.c.l.b16 %v1908
      %v2439 = vunpack.c.h.b16 %v1908
      %v2440 = vunpack.c.l.b16 %v1909
      %v2441 = vunpack.c.h.b16 %v1909
      %v2442 = vunpack.c.l.b16 %v1910
      %v2443 = vunpack.c.h.b16 %v1910
      %v2444 = vunpack.c.l.b16 %v1911
      %v2445 = vunpack.c.h.b16 %v1911
      %v2446 = vunpack.c.l.b16 %v1912
      %v2447 = vunpack.c.h.b16 %v1912
      %v2448 = vunpack.c.l.b16 %v1913
      %v2449 = vunpack.c.h.b16 %v1913
      %v2450 = vunpack.c.l.b16 %v1914
      %v2451 = vunpack.c.h.b16 %v1914
      %v2452 = vunpack.c.l.b16 %v1915
      %v2453 = vunpack.c.h.b16 %v1915
      %v2454 = vunpack.c.l.b16 %v1916
      %v2455 = vunpack.c.h.b16 %v1916
      %v2456 = vunpack.c.l.b16 %v1917
      %v2457 = vunpack.c.h.b16 %v1917
      %v2458 = vunpack.c.l.b16 %v1918
      %v2459 = vunpack.c.h.b16 %v1918
      %v2460 = vunpack.c.l.b16 %v1919
      %v2461 = vunpack.c.h.b16 %v1919
      %v2462 = vunpack.c.l.b16 %v1920
      %v2463 = vunpack.c.h.b16 %v1920
      %v2464 = vunpack.c.l.b16 %v1921
      %v2465 = vunpack.c.h.b16 %v1921
      %v2466 = vpack.c.b16 %v2212, %v2210
      %v2467 = vpack.c.b16 %v2213, %v2211
      %v2468 = vpack.c.b16 %v2216, %v2214
      %v2469 = vpack.c.b16 %v2217, %v2215
      %v2470 = vpack.c.b16 %v2220, %v2218
      %v2471 = vpack.c.b16 %v2221, %v2219
      %v2472 = vpack.c.b16 %v2224, %v2222
      %v2473 = vpack.c.b16 %v2225, %v2223
      %v2474 = vpack.c.b16 %v2228, %v2226
      %v2475 = vpack.c.b16 %v2229, %v2227
      %v2476 = vpack.c.b16 %v2232, %v2230
      %v2477 = vpack.c.b16 %v2233, %v2231
      %v2478 = vpack.c.b16 %v2236, %v2234
      %v2479 = vpack.c.b16 %v2237, %v2235
      %v2480 = vpack.c.b16 %v2240, %v2238
      %v2481 = vpack.c.b16 %v2241, %v2239
      %v2482 = vpack.c.b16 %v2244, %v2242
      %v2483 = vpack.c.b16 %v2245, %v2243
      %v2484 = vpack.c.b16 %v2248, %v2246
      %v2485 = vpack.c.b16 %v2249, %v2247
      %v2486 = vpack.c.b16 %v2252, %v2250
      %v2487 = vpack.c.b16 %v2253, %v2251
      %v2488 = vpack.c.b16 %v2256, %v2254
      %v2489 = vpack.c.b16 %v2257, %v2255
      %v2490 = vpack.c.b16 %v2260, %v2258
      %v2491 = vpack.c.b16 %v2261, %v2259
      %v2492 = vpack.c.b16 %v2264, %v2262
      %v2493 = vpack.c.b16 %v2265, %v2263
      %v2494 = vpack.c.b16 %v2268, %v2266
      %v2495 = vpack.c.b16 %v2269, %v2267
      %v2496 = vpack.c.b16 %v2272, %v2270
      %v2497 = vpack.c.b16 %v2273, %v2271
      %v2498 = vpack.c.b16 %v2276, %v2274
      %v2499 = vpack.c.b16 %v2277, %v2275
      %v2500 = vpack.c.b16 %v2280, %v2278
      %v2501 = vpack.c.b16 %v2281, %v2279
      %v2502 = vpack.c.b16 %v2284, %v2282
      %v2503 = vpack.c.b16 %v2285, %v2283
      %v2504 = vpack.c.b16 %v2288, %v2286
      %v2505 = vpack.c.b16 %v2289, %v2287
      %v2506 = vpack.c.b16 %v2292, %v2290
      %v2507 = vpack.c.b16 %v2293, %v2291
      %v2508 = vpack.c.b16 %v2296, %v2294
      %v2509 = vpack.c.b16 %v2297, %v2295
      %v2510 = vpack.c.b16 %v2300, %v2298
      %v2511 = vpack.c.b16 %v2301, %v2299
      %v2512 = vpack.c.b16 %v2304, %v2302
      %v2513 = vpack.c.b16 %v2305, %v2303
      %v2514 = vpack.c.b16 %v2308, %v2306
      %v2515 = vpack.c.b16 %v2309, %v2307
      %v2516 = vpack.c.b16 %v2312, %v2310
      %v2517 = vpack.c.b16 %v2313, %v2311
      %v2518 = vpack.c.b16 %v2316, %v2314
      %v2519 = vpack.c.b16 %v2317, %v2315
      %v2520 = vpack.c.b16 %v2320, %v2318
      %v2521 = vpack.c.b16 %v2321, %v2319
      %v2522 = vpack.c.b16 %v2324, %v2322
      %v2523 = vpack.c.b16 %v2325, %v2323
      %v2524 = vpack.c.b16 %v2328, %v2326
      %v2525 = vpack.c.b16 %v2329, %v2327
      %v2526 = vpack.c.b16 %v2332, %v2330
      %v2527 = vpack.c.b16 %v2333, %v2331
      %v2528 = vpack.c.b16 %v2336, %v2334
      %v2529 = vpack.c.b16 %v2337, %v2335
      %v2530 = vpack.c.b16 %v2340, %v2338
      %v2531 = vpack.c.b16 %v2341, %v2339
      %v2532 = vpack.c.b16 %v2344, %v2342
      %v2533 = vpack.c.b16 %v2345, %v2343
      %v2534 = vpack.c.b16 %v2348, %v2346
      %v2535 = vpack.c.b16 %v2349, %v2347
      %v2536 = vpack.c.b16 %v2352, %v2350
      %v2537 = vpack.c.b16 %v2353, %v2351
      %v2538 = vpack.c.b16 %v2356, %v2354
      %v2539 = vpack.c.b16 %v2357, %v2355
      %v2540 = vpack.c.b16 %v2360, %v2358
      %v2541 = vpack.c.b16 %v2361, %v2359
      %v2542 = vpack.c.b16 %v2364, %v2362
      %v2543 = vpack.c.b16 %v2365, %v2363
      %v2544 = vpack.c.b16 %v2368, %v2366
      %v2545 = vpack.c.b16 %v2369, %v2367
      %v2546 = vpack.c.b16 %v2372, %v2370
      %v2547 = vpack.c.b16 %v2373, %v2371
      %v2548 = vpack.c.b16 %v2376, %v2374
      %v2549 = vpack.c.b16 %v2377, %v2375
      %v2550 = vpack.c.b16 %v2380, %v2378
      %v2551 = vpack.c.b16 %v2381, %v2379
      %v2552 = vpack.c.b16 %v2384, %v2382
      %v2553 = vpack.c.b16 %v2385, %v2383
      %v2554 = vpack.c.b16 %v2388, %v2386
      %v2555 = vpack.c.b16 %v2389, %v2387
      %v2556 = vpack.c.b16 %v2392, %v2390
      %v2557 = vpack.c.b16 %v2393, %v2391
      %v2558 = vpack.c.b16 %v2396, %v2394
      %v2559 = vpack.c.b16 %v2397, %v2395
      %v2560 = vpack.c.b16 %v2400, %v2398
      %v2561 = vpack.c.b16 %v2401, %v2399
      %v2562 = vpack.c.b16 %v2404, %v2402
      %v2563 = vpack.c.b16 %v2405, %v2403
      %v2564 = vpack.c.b16 %v2408, %v2406
      %v2565 = vpack.c.b16 %v2409, %v2407
      %v2566 = vpack.c.b16 %v2412, %v2410
      %v2567 = vpack.c.b16 %v2413, %v2411
      %v2568 = vpack.c.b16 %v2416, %v2414
      %v2569 = vpack.c.b16 %v2417, %v2415
      %v2570 = vpack.c.b16 %v2420, %v2418
      %v2571 = vpack.c.b16 %v2421, %v2419
      %v2572 = vpack.c.b16 %v2424, %v2422
      %v2573 = vpack.c.b16 %v2425, %v2423
      %v2574 = vpack.c.b16 %v2428, %v2426
      %v2575 = vpack.c.b16 %v2429, %v2427
      %v2576 = vpack.c.b16 %v2432, %v2430
      %v2577 = vpack.c.b16 %v2433, %v2431
      %v2578 = vpack.c.b16 %v2436, %v2434
      %v2579 = vpack.c.b16 %v2437, %v2435
      %v2580 = vpack.c.b16 %v2440, %v2438
      %v2581 = vpack.c.b16 %v2441, %v2439
      %v2582 = vpack.c.b16 %v2444, %v2442
      %v2583 = vpack.c.b16 %v2445, %v2443
      %v2584 = vpack.c.b16 %v2448, %v2446
      %v2585 = vpack.c.b16 %v2449, %v2447
      %v2586 = vpack.c.b16 %v2452, %v2450
      %v2587 = vpack.c.b16 %v2453, %v2451
      %v2588 = vpack.c.b16 %v2456, %v2454
      %v2589 = vpack.c.b16 %v2457, %v2455
      %v2590 = vpack.c.b16 %v2460, %v2458
      %v2591 = vpack.c.b16 %v2461, %v2459
      %v2592 = vpack.c.b16 %v2464, %v2462
      %v2593 = vpack.c.b16 %v2465, %v2463
      %2722 = vmatprep.subr.bf16.mxu0 %v2467
      %2723 = vmatpush1.bf16.msra.mxu0 %v2466
      %2724 = vmatprep.subr.bf16.mxu0 %v2469
      %2725 = vmatpush1.bf16.msra.mxu0 %v2468
      %2726 = vmatprep.subr.bf16.mxu0 %v2471
      %2727 = vmatpush1.bf16.msra.mxu0 %v2470
      %2728 = vmatprep.subr.bf16.mxu0 %v2473
      %2729 = vmatpush1.bf16.msra.mxu0 %v2472
      %2730 = vmatprep.subr.bf16.mxu0 %v2475
      %2731 = vmatpush1.bf16.msra.mxu0 %v2474
      %2732 = vmatprep.subr.bf16.mxu0 %v2477
      %2733 = vmatpush1.bf16.msra.mxu0 %v2476
      %2734 = vmatprep.subr.bf16.mxu0 %v2479
      %2735 = vmatpush1.bf16.msra.mxu0 %v2478
      %2736 = vmatprep.subr.bf16.mxu0 %v2481
      %2737 = vmatpush1.bf16.msra.mxu0 %v2480
      %2738 = vmatprep.subr.bf16.mxu0 %v2483
      %2739 = vmatpush1.bf16.msra.mxu0 %v2482
      %2740 = vmatprep.subr.bf16.mxu0 %v2485
      %2741 = vmatpush1.bf16.msra.mxu0 %v2484
      %2742 = vmatprep.subr.bf16.mxu0 %v2487
      %2743 = vmatpush1.bf16.msra.mxu0 %v2486
      %2744 = vmatprep.subr.bf16.mxu0 %v2489
      %2745 = vmatpush1.bf16.msra.mxu0 %v2488
      %2746 = vmatprep.subr.bf16.mxu0 %v2491
      %2747 = vmatpush1.bf16.msra.mxu0 %v2490
      %2748 = vmatprep.subr.bf16.mxu0 %v2493
      %2749 = vmatpush1.bf16.msra.mxu0 %v2492
      %2750 = vmatprep.subr.bf16.mxu0 %v2495
      %2751 = vmatpush1.bf16.msra.mxu0 %v2494
      %2752 = vmatprep.subr.bf16.mxu0 %v2497
      %2753 = vmatpush1.bf16.msra.mxu0 %v2496
      %2754 = vmatprep.mubr.bf16.mxu0 %v2019
      %2755 = vmatmul.mubr.bf16.gmra.mrb[0].mxu0 %v2018
      %v2756 = vpop.f32.mrb[0].mxu0
      %v2757 = vadd.f32 0.0, %v2756
      %v2758 = vpop.f32.mrb[0].mxu0
      %v2759 = vadd.f32 0.0, %v2758
      %v2760 = vpop.f32.mrb[0].mxu0
      %v2761 = vadd.f32 0.0, %v2760
      %v2762 = vpop.f32.mrb[0].mxu0
      %v2763 = vadd.f32 0.0, %v2762
      %2764 = vmatprep.mubr.bf16.mxu0 %v2027
      %2765 = vmatmul.mubr.bf16.gmra.mrb[0].mxu0 %v2026
      %v2766 = vpop.f32.mrb[0].mxu0
      %v2767 = vadd.f32 0.0, %v2766
      %v2768 = vpop.f32.mrb[0].mxu0
      %v2769 = vadd.f32 0.0, %v2768
      %v2770 = vpop.f32.mrb[0].mxu0
      %v2771 = vadd.f32 0.0, %v2770
      %v2772 = vpop.f32.mrb[0].mxu0
      %v2773 = vadd.f32 0.0, %v2772
      %2774 = vmatprep.mubr.bf16.mxu0 %v2035
      %2775 = vmatmul.mubr.bf16.gmra.mrb[0].mxu0 %v2034
      %v2776 = vpop.f32.mrb[0].mxu0
      %v2777 = vadd.f32 0.0, %v2776
      %v2778 = vpop.f32.mrb[0].mxu0
      %v2779 = vadd.f32 0.0, %v2778
      %v2780 = vpop.f32.mrb[0].mxu0
      %v2781 = vadd.f32 0.0, %v2780
      %v2782 = vpop.f32.mrb[0].mxu0
      %v2783 = vadd.f32 0.0, %v2782
      %2784 = vmatprep.mubr.bf16.mxu0 %v2043
      %2785 = vmatmul.mubr.bf16.gmra.mrb[0].mxu0 %v2042
      %v2786 = vpop.f32.mrb[0].mxu0
      %v2787 = vadd.f32 0.0, %v2786
      %v2788 = vpop.f32.mrb[0].mxu0
      %v2789 = vadd.f32 0.0, %v2788
      %v2790 = vpop.f32.mrb[0].mxu0
      %v2791 = vadd.f32 0.0, %v2790
      %v2792 = vpop.f32.mrb[0].mxu0
      %v2793 = vadd.f32 0.0, %v2792
      %2794 = vdwg.mxu0
      %2795 = vmatprep.subr.bf16.mxu0 %v2499
      %2796 = vmatpush1.bf16.msra.mxu0 %v2498
      %2797 = vmatprep.subr.bf16.mxu0 %v2501
      %2798 = vmatpush1.bf16.msra.mxu0 %v2500
      %2799 = vmatprep.subr.bf16.mxu0 %v2503
      %2800 = vmatpush1.bf16.msra.mxu0 %v2502
      %2801 = vmatprep.subr.bf16.mxu0 %v2505
      %2802 = vmatpush1.bf16.msra.mxu0 %v2504
      %2803 = vmatprep.subr.bf16.mxu0 %v2507
      %2804 = vmatpush1.bf16.msra.mxu0 %v2506
      %2805 = vmatprep.subr.bf16.mxu0 %v2509
      %2806 = vmatpush1.bf16.msra.mxu0 %v2508
      %2807 = vmatprep.subr.bf16.mxu0 %v2511
      %2808 = vmatpush1.bf16.msra.mxu0 %v2510
      %2809 = vmatprep.subr.bf16.mxu0 %v2513
      %2810 = vmatpush1.bf16.msra.mxu0 %v2512
      %2811 = vmatprep.subr.bf16.mxu0 %v2515
      %2812 = vmatpush1.bf16.msra.mxu0 %v2514
      %2813 = vmatprep.subr.bf16.mxu0 %v2517
      %2814 = vmatpush1.bf16.msra.mxu0 %v2516
      %2815 = vmatprep.subr.bf16.mxu0 %v2519
      %2816 = vmatpush1.bf16.msra.mxu0 %v2518
      %2817 = vmatprep.subr.bf16.mxu0 %v2521
      %2818 = vmatpush1.bf16.msra.mxu0 %v2520
      %2819 = vmatprep.subr.bf16.mxu0 %v2523
      %2820 = vmatpush1.bf16.msra.mxu0 %v2522
      %2821 = vmatprep.subr.bf16.mxu0 %v2525
      %2822 = vmatpush1.bf16.msra.mxu0 %v2524
      %2823 = vmatprep.subr.bf16.mxu0 %v2527
      %2824 = vmatpush1.bf16.msra.mxu0 %v2526
      %2825 = vmatprep.subr.bf16.mxu0 %v2529
      %2826 = vmatpush1.bf16.msra.mxu0 %v2528
      %2827 = vmatprep.mubr.bf16.mxu0 %v2021
      %2828 = vmatmul.mubr.bf16.gmra.mrb[0].mxu0 %v2020
      %v2829 = vpop.f32.mrb[0].mxu0
      %v2830 = vadd.f32 %v2757, %v2829
      %v2831 = vpop.f32.mrb[0].mxu0
      %v2832 = vadd.f32 %v2759, %v2831
      %v2833 = vpop.f32.mrb[0].mxu0
      %v2834 = vadd.f32 %v2761, %v2833
      %v2835 = vpop.f32.mrb[0].mxu0
      %v2836 = vadd.f32 %v2763, %v2835
      %2837 = vmatprep.mubr.bf16.mxu0 %v2029
      %2838 = vmatmul.mubr.bf16.gmra.mrb[0].mxu0 %v2028
      %v2839 = vpop.f32.mrb[0].mxu0
      %v2840 = vadd.f32 %v2767, %v2839
      %v2841 = vpop.f32.mrb[0].mxu0
      %v2842 = vadd.f32 %v2769, %v2841
      %v2843 = vpop.f32.mrb[0].mxu0
      %v2844 = vadd.f32 %v2771, %v2843
      %v2845 = vpop.f32.mrb[0].mxu0
      %v2846 = vadd.f32 %v2773, %v2845
      %2847 = vmatprep.mubr.bf16.mxu0 %v2037
      %2848 = vmatmul.mubr.bf16.gmra.mrb[0].mxu0 %v2036
      %v2849 = vpop.f32.mrb[0].mxu0
      %v2850 = vadd.f32 %v2777, %v2849
      %v2851 = vpop.f32.mrb[0].mxu0
      %v2852 = vadd.f32 %v2779, %v2851
      %v2853 = vpop.f32.mrb[0].mxu0
      %v2854 = vadd.f32 %v2781, %v2853
      %v2855 = vpop.f32.mrb[0].mxu0
      %v2856 = vadd.f32 %v2783, %v2855
      %2857 = vmatprep.mubr.bf16.mxu0 %v2045
      %2858 = vmatmul.mubr.bf16.gmra.mrb[0].mxu0 %v2044
      %v2859 = vpop.f32.mrb[0].mxu0
      %v2860 = vadd.f32 %v2787, %v2859
      %v2861 = vpop.f32.mrb[0].mxu0
      %v2862 = vadd.f32 %v2789, %v2861
      %v2863 = vpop.f32.mrb[0].mxu0
      %v2864 = vadd.f32 %v2791, %v2863
      %v2865 = vpop.f32.mrb[0].mxu0
      %v2866 = vadd.f32 %v2793, %v2865
      %2867 = vdwg.mxu0
      %2868 = vmatprep.subr.bf16.mxu0 %v2531
      %2869 = vmatpush1.bf16.msra.mxu0 %v2530
      %2870 = vmatprep.subr.bf16.mxu0 %v2533
      %2871 = vmatpush1.bf16.msra.mxu0 %v2532
      %2872 = vmatprep.subr.bf16.mxu0 %v2535
      %2873 = vmatpush1.bf16.msra.mxu0 %v2534
      %2874 = vmatprep.subr.bf16.mxu0 %v2537
      %2875 = vmatpush1.bf16.msra.mxu0 %v2536
      %2876 = vmatprep.subr.bf16.mxu0 %v2539
      %2877 = vmatpush1.bf16.msra.mxu0 %v2538
      %2878 = vmatprep.subr.bf16.mxu0 %v2541
      %2879 = vmatpush1.bf16.msra.mxu0 %v2540
      %2880 = vmatprep.subr.bf16.mxu0 %v2543
      %2881 = vmatpush1.bf16.msra.mxu0 %v2542
      %2882 = vmatprep.subr.bf16.mxu0 %v2545
      %2883 = vmatpush1.bf16.msra.mxu0 %v2544
      %2884 = vmatprep.subr.bf16.mxu0 %v2547
      %2885 = vmatpush1.bf16.msra.mxu0 %v2546
      %2886 = vmatprep.subr.bf16.mxu0 %v2549
      %2887 = vmatpush1.bf16.msra.mxu0 %v2548
      %2888 = vmatprep.subr.bf16.mxu0 %v2551
      %2889 = vmatpush1.bf16.msra.mxu0 %v2550
      %2890 = vmatprep.subr.bf16.mxu0 %v2553
      %2891 = vmatpush1.bf16.msra.mxu0 %v2552
      %2892 = vmatprep.subr.bf16.mxu0 %v2555
      %2893 = vmatpush1.bf16.msra.mxu0 %v2554
      %2894 = vmatprep.subr.bf16.mxu0 %v2557
      %2895 = vmatpush1.bf16.msra.mxu0 %v2556
      %2896 = vmatprep.subr.bf16.mxu0 %v2559
      %2897 = vmatpush1.bf16.msra.mxu0 %v2558
      %2898 = vmatprep.subr.bf16.mxu0 %v2561
      %2899 = vmatpush1.bf16.msra.mxu0 %v2560
      %2900 = vmatprep.mubr.bf16.mxu0 %v2023
      %2901 = vmatmul.mubr.bf16.gmra.mrb[0].mxu0 %v2022
      %v2902 = vpop.f32.mrb[0].mxu0
      %v2903 = vadd.f32 %v2830, %v2902
      %v2904 = vpop.f32.mrb[0].mxu0
      %v2905 = vadd.f32 %v2832, %v2904
      %v2906 = vpop.f32.mrb[0].mxu0
      %v2907 = vadd.f32 %v2834, %v2906
      %v2908 = vpop.f32.mrb[0].mxu0
      %v2909 = vadd.f32 %v2836, %v2908
      %2910 = vmatprep.mubr.bf16.mxu0 %v2031
      %2911 = vmatmul.mubr.bf16.gmra.mrb[0].mxu0 %v2030
      %v2912 = vpop.f32.mrb[0].mxu0
      %v2913 = vadd.f32 %v2840, %v2912
      %v2914 = vpop.f32.mrb[0].mxu0
      %v2915 = vadd.f32 %v2842, %v2914
      %v2916 = vpop.f32.mrb[0].mxu0
      %v2917 = vadd.f32 %v2844, %v2916
      %v2918 = vpop.f32.mrb[0].mxu0
      %v2919 = vadd.f32 %v2846, %v2918
      %2920 = vmatprep.mubr.bf16.mxu0 %v2039
      %2921 = vmatmul.mubr.bf16.gmra.mrb[0].mxu0 %v2038
      %v2922 = vpop.f32.mrb[0].mxu0
      %v2923 = vadd.f32 %v2850, %v2922
      %v2924 = vpop.f32.mrb[0].mxu0
      %v2925 = vadd.f32 %v2852, %v2924
      %v2926 = vpop.f32.mrb[0].mxu0
      %v2927 = vadd.f32 %v2854, %v2926
      %v2928 = vpop.f32.mrb[0].mxu0
      %v2929 = vadd.f32 %v2856, %v2928
      %2930 = vmatprep.mubr.bf16.mxu0 %v2047
      %2931 = vmatmul.mubr.bf16.gmra.mrb[0].mxu0 %v2046
      %v2932 = vpop.f32.mrb[0].mxu0
      %v2933 = vadd.f32 %v2860, %v2932
      %v2934 = vpop.f32.mrb[0].mxu0
      %v2935 = vadd.f32 %v2862, %v2934
      %v2936 = vpop.f32.mrb[0].mxu0
      %v2937 = vadd.f32 %v2864, %v2936
      %v2938 = vpop.f32.mrb[0].mxu0
      %v2939 = vadd.f32 %v2866, %v2938
      %2940 = vdwg.mxu0
      %2941 = vmatprep.subr.bf16.mxu0 %v2563
      %2942 = vmatpush1.bf16.msra.mxu0 %v2562
      %2943 = vmatprep.subr.bf16.mxu0 %v2565
      %2944 = vmatpush1.bf16.msra.mxu0 %v2564
      %2945 = vmatprep.subr.bf16.mxu0 %v2567
      %2946 = vmatpush1.bf16.msra.mxu0 %v2566
      %2947 = vmatprep.subr.bf16.mxu0 %v2569
      %2948 = vmatpush1.bf16.msra.mxu0 %v2568
      %2949 = vmatprep.subr.bf16.mxu0 %v2571
      %2950 = vmatpush1.bf16.msra.mxu0 %v2570
      %2951 = vmatprep.subr.bf16.mxu0 %v2573
      %2952 = vmatpush1.bf16.msra.mxu0 %v2572
      %2953 = vmatprep.subr.bf16.mxu0 %v2575
      %2954 = vmatpush1.bf16.msra.mxu0 %v2574
      %2955 = vmatprep.subr.bf16.mxu0 %v2577
      %2956 = vmatpush1.bf16.msra.mxu0 %v2576
      %2957 = vmatprep.subr.bf16.mxu0 %v2579
      %2958 = vmatpush1.bf16.msra.mxu0 %v2578
      %2959 = vmatprep.subr.bf16.mxu0 %v2581
      %2960 = vmatpush1.bf16.msra.mxu0 %v2580
      %2961 = vmatprep.subr.bf16.mxu0 %v2583
      %2962 = vmatpush1.bf16.msra.mxu0 %v2582
      %2963 = vmatprep.subr.bf16.mxu0 %v2585
      %2964 = vmatpush1.bf16.msra.mxu0 %v2584
      %2965 = vmatprep.subr.bf16.mxu0 %v2587
      %2966 = vmatpush1.bf16.msra.mxu0 %v2586
      %2967 = vmatprep.subr.bf16.mxu0 %v2589
      %2968 = vmatpush1.bf16.msra.mxu0 %v2588
      %2969 = vmatprep.subr.bf16.mxu0 %v2591
      %2970 = vmatpush1.bf16.msra.mxu0 %v2590
      %2971 = vmatprep.subr.bf16.mxu0 %v2593
      %2972 = vmatpush1.bf16.msra.mxu0 %v2592
      %2973 = vmatprep.mubr.bf16.mxu0 %v2025
      %2974 = vmatmul.mubr.bf16.gmra.mrb[0].mxu0 %v2024
      %v2975 = vpop.f32.mrb[0].mxu0
      %v2976 = vadd.f32 %v2903, %v2975
      %v2977 = vpop.f32.mrb[0].mxu0
      %v2978 = vadd.f32 %v2905, %v2977
      %v2979 = vpop.f32.mrb[0].mxu0
      %v2980 = vadd.f32 %v2907, %v2979
      %v2981 = vpop.f32.mrb[0].mxu0
      %v2982 = vadd.f32 %v2909, %v2981
      %2983 = vmatprep.mubr.bf16.mxu0 %v2033
      %2984 = vmatmul.mubr.bf16.gmra.mrb[0].mxu0 %v2032
      %v2985 = vpop.f32.mrb[0].mxu0
      %v2986 = vadd.f32 %v2913, %v2985
      %v2987 = vpop.f32.mrb[0].mxu0
      %v2988 = vadd.f32 %v2915, %v2987
      %v2989 = vpop.f32.mrb[0].mxu0
      %v2990 = vadd.f32 %v2917, %v2989
      %v2991 = vpop.f32.mrb[0].mxu0
      %v2992 = vadd.f32 %v2919, %v2991
      %2993 = vmatprep.mubr.bf16.mxu0 %v2041
      %2994 = vmatmul.mubr.bf16.gmra.mrb[0].mxu0 %v2040
      %v2995 = vpop.f32.mrb[0].mxu0
      %v2996 = vadd.f32 %v2923, %v2995
      %v2997 = vpop.f32.mrb[0].mxu0
      %v2998 = vadd.f32 %v2925, %v2997
      %v2999 = vpop.f32.mrb[0].mxu0
      %v3000 = vadd.f32 %v2927, %v2999
      %v3001 = vpop.f32.mrb[0].mxu0
      %v3002 = vadd.f32 %v2929, %v3001
      %3003 = vmatprep.mubr.bf16.mxu0 %v2049
      %3004 = vmatmul.mubr.bf16.gmra.mrb[0].mxu0 %v2048
      %v3005 = vpop.f32.mrb[0].mxu0
      %v3006 = vadd.f32 %v2933, %v3005
      %v3007 = vpop.f32.mrb[0].mxu0
      %v3008 = vadd.f32 %v2935, %v3007
      %v3009 = vpop.f32.mrb[0].mxu0
      %v3010 = vadd.f32 %v2937, %v3009
      %v3011 = vpop.f32.mrb[0].mxu0
      %v3012 = vadd.f32 %v2939, %v3011
      %3013 = vdwg.mxu0
      %v3014 = vadd.f32 %v1724, %v2976
      %v3015 = vadd.f32 %v1726, %v2978
      %v3016 = vadd.f32 %v1728, %v2980
      %v3017 = vadd.f32 %v1730, %v2982
      %v3018 = vadd.f32 %v1734, %v2986
      %v3019 = vadd.f32 %v1736, %v2988
      %v3020 = vadd.f32 %v1738, %v2990
      %v3021 = vadd.f32 %v1740, %v2992
      %v3022 = vadd.f32 %v1744, %v2996
      %v3023 = vadd.f32 %v1746, %v2998
      %v3024 = vadd.f32 %v1748, %v3000
      %v3025 = vadd.f32 %v1750, %v3002
      %v3026 = vadd.f32 %v1754, %v3006
      %v3027 = vadd.f32 %v1756, %v3008
      %v3028 = vadd.f32 %v1758, %v3010
      %v3029 = vadd.f32 %v1760, %v3012
      %v3030 = vld [vmem:[%s7] sm:$0x3]
      %v3032 = vlaneseq
      %v3033 = vshrl.u32 %v3032, 7
      %v3034 = vsub.s32 0, %v3033
      %v3035 = vrot.slane %v3030, %v3034
      %v3036 = vlaneseq
      %v3037 = vshrl.u32 %v3036, 7
      %v3038 = vsub.s32 1, %v3037
      %v3039 = vrot.slane %v3030, %v3038
      %v3042 = vadd.f32 %v3014, %v3035
      %v3043 = vadd.f32 %v3015, %v3039
      %v3044 = vadd.f32 %v3016, %v3035
      %v3045 = vadd.f32 %v3017, %v3039
      %v3046 = vadd.f32 %v3018, %v3035
      %v3047 = vadd.f32 %v3019, %v3039
      %v3048 = vadd.f32 %v3020, %v3035
      %v3049 = vadd.f32 %v3021, %v3039
      %v3050 = vadd.f32 %v3022, %v3035
      %v3051 = vadd.f32 %v3023, %v3039
      %v3052 = vadd.f32 %v3024, %v3035
      %v3053 = vadd.f32 %v3025, %v3039
      %v3054 = vadd.f32 %v3026, %v3035
      %v3055 = vadd.f32 %v3027, %v3039
      %v3056 = vadd.f32 %v3028, %v3035
      %v3057 = vadd.f32 %v3029, %v3039
      %v3058 = vmax.f32 %v3042, 0.0
      %v3059 = vmax.f32 %v3043, 0.0
      %v3060 = vmax.f32 %v3044, 0.0
      %v3061 = vmax.f32 %v3045, 0.0
      %v3062 = vmax.f32 %v3046, 0.0
      %v3063 = vmax.f32 %v3047, 0.0
      %v3064 = vmax.f32 %v3048, 0.0
      %v3065 = vmax.f32 %v3049, 0.0
      %v3066 = vmax.f32 %v3050, 0.0
      %v3067 = vmax.f32 %v3051, 0.0
      %v3068 = vmax.f32 %v3052, 0.0
      %v3069 = vmax.f32 %v3053, 0.0
      %v3070 = vmax.f32 %v3054, 0.0
      %v3071 = vmax.f32 %v3055, 0.0
      %v3072 = vmax.f32 %v3056, 0.0
      %v3073 = vmax.f32 %v3057, 0.0
      %v3074 = vpack.c.bf16 %v3060, %v3058
      %v3075 = vpack.c.bf16 %v3061, %v3059
      %v3076 = vpack.c.bf16 %v3064, %v3062
      %v3077 = vpack.c.bf16 %v3065, %v3063
      %v3078 = vpack.c.bf16 %v3068, %v3066
      %v3079 = vpack.c.bf16 %v3069, %v3067
      %v3080 = vpack.c.bf16 %v3072, %v3070
      %v3081 = vpack.c.bf16 %v3073, %v3071
      %v3090 = vunpack.c.l.b16 %v3074
      %v3091 = vunpack.c.l.b16 %v3075
      %v3092 = vunpack.c.h.b16 %v3074
      %v3093 = vunpack.c.h.b16 %v3075
      %v3094 = vunpack.c.l.b16 %v3076
      %v3095 = vunpack.c.l.b16 %v3077
      %v3096 = vunpack.c.h.b16 %v3076
      %v3097 = vunpack.c.h.b16 %v3077
      %v3098 = vunpack.c.l.b16 %v3078
      %v3099 = vunpack.c.l.b16 %v3079
      %v3100 = vunpack.c.h.b16 %v3078
      %v3101 = vunpack.c.h.b16 %v3079
      %v3102 = vunpack.c.l.b16 %v3080
      %v3103 = vunpack.c.l.b16 %v3081
      %v3104 = vunpack.c.h.b16 %v3080
      %v3105 = vunpack.c.h.b16 %v3081
      %v3106 = vpack.c.b16 %v3091, %v3090
      %v3107 = vpack.c.b16 %v3093, %v3092
      %v3108 = vpack.c.b16 %v3095, %v3094
      %v3109 = vpack.c.b16 %v3097, %v3096
      %v3110 = vpack.c.b16 %v3099, %v3098
      %v3111 = vpack.c.b16 %v3101, %v3100
      %v3112 = vpack.c.b16 %v3103, %v3102
      %v3113 = vpack.c.b16 %v3105, %v3104
      %3122 = vst [vmem:[%s427] sm:$0xff] %v3106
      %3123 = vst [vmem:[%s427 + $0x8] sm:$0xff] %v3107
      %3124 = vst [vmem:[%s427 + $0x10] sm:$0xff] %v3108
      %3125 = vst [vmem:[%s427 + $0x18] sm:$0xff] %v3109
      %3126 = vst [vmem:[%s427 + $0x20] sm:$0xff] %v3110
      %3127 = vst [vmem:[%s427 + $0x28] sm:$0xff] %v3111
      %3128 = vst [vmem:[%s427 + $0x30] sm:$0xff] %v3112
      %3129 = vst [vmem:[%s427 + $0x38] sm:$0xff] %v3113
      %v3130 = vld [vmem:[%s8] sm:$0xff]
      %v3131 = vld [vmem:[%s8 + $0x8] sm:$0xff]
      %v3132 = vld [vmem:[%s8 + $0x10] sm:$0xff]
      %v3133 = vld [vmem:[%s8 + $0x18] sm:$0xff]
      %v3134 = vld [vmem:[%s8 + $0x20] sm:$0xff]
      %v3135 = vld [vmem:[%s8 + $0x28] sm:$0xff]
      %v3136 = vld [vmem:[%s8 + $0x30] sm:$0xff]
      %v3137 = vld [vmem:[%s8 + $0x38] sm:$0xff]
      %v3138 = vld [vmem:[%s8 + $0x40] sm:$0xff]
      %v3139 = vld [vmem:[%s8 + $0x48] sm:$0xff]
      %v3140 = vld [vmem:[%s8 + $0x50] sm:$0xff]
      %v3141 = vld [vmem:[%s8 + $0x58] sm:$0xff]
      %v3142 = vld [vmem:[%s8 + $0x60] sm:$0xff]
      %v3143 = vld [vmem:[%s8 + $0x68] sm:$0xff]
      %v3144 = vld [vmem:[%s8 + $0x70] sm:$0xff]
      %v3145 = vld [vmem:[%s8 + $0x78] sm:$0xff]
      %v3146 = vld [vmem:[%s8 + $0x80] sm:$0xff]
      %v3147 = vld [vmem:[%s8 + $0x88] sm:$0xff]
      %v3148 = vld [vmem:[%s8 + $0x90] sm:$0xff]
      %v3149 = vld [vmem:[%s8 + $0x98] sm:$0xff]
      %v3150 = vld [vmem:[%s8 + $0xa0] sm:$0xff]
      %v3151 = vld [vmem:[%s8 + $0xa8] sm:$0xff]
      %v3152 = vld [vmem:[%s8 + $0xb0] sm:$0xff]
      %v3153 = vld [vmem:[%s8 + $0xb8] sm:$0xff]
      %v3154 = vld [vmem:[%s8 + $0xc0] sm:$0xff]
      %v3155 = vld [vmem:[%s8 + $0xc8] sm:$0xff]
      %v3156 = vld [vmem:[%s8 + $0xd0] sm:$0xff]
      %v3157 = vld [vmem:[%s8 + $0xd8] sm:$0xff]
      %v3158 = vld [vmem:[%s8 + $0xe0] sm:$0xff]
      %v3159 = vld [vmem:[%s8 + $0xe8] sm:$0xff]
      %v3160 = vld [vmem:[%s8 + $0xf0] sm:$0xff]
      %v3161 = vld [vmem:[%s8 + $0xf8] sm:$0xff]
      %v3162 = vld [vmem:[%s9] sm:$0x3]
      %v3164 = vlaneseq
      %v3165 = vshrl.u32 %v3164, 7
      %v3166 = vsub.s32 0, %v3165
      %v3167 = vrot.slane %v3162, %v3166
      %v3168 = vlaneseq
      %v3169 = vshrl.u32 %v3168, 7
      %v3170 = vsub.s32 1, %v3169
      %v3171 = vrot.slane %v3162, %v3170
      %v3206 = vunpack.c.l.b16 %v3130
      %v3207 = vunpack.c.h.b16 %v3130
      %v3208 = vunpack.c.l.b16 %v3131
      %v3209 = vunpack.c.h.b16 %v3131
      %v3210 = vunpack.c.l.b16 %v3132
      %v3211 = vunpack.c.h.b16 %v3132
      %v3212 = vunpack.c.l.b16 %v3133
      %v3213 = vunpack.c.h.b16 %v3133
      %v3214 = vunpack.c.l.b16 %v3134
      %v3215 = vunpack.c.h.b16 %v3134
      %v3216 = vunpack.c.l.b16 %v3135
      %v3217 = vunpack.c.h.b16 %v3135
      %v3218 = vunpack.c.l.b16 %v3136
      %v3219 = vunpack.c.h.b16 %v3136
      %v3220 = vunpack.c.l.b16 %v3137
      %v3221 = vunpack.c.h.b16 %v3137
      %v3222 = vunpack.c.l.b16 %v3138
      %v3223 = vunpack.c.h.b16 %v3138
      %v3224 = vunpack.c.l.b16 %v3139
      %v3225 = vunpack.c.h.b16 %v3139
      %v3226 = vunpack.c.l.b16 %v3140
      %v3227 = vunpack.c.h.b16 %v3140
      %v3228 = vunpack.c.l.b16 %v3141
      %v3229 = vunpack.c.h.b16 %v3141
      %v3230 = vunpack.c.l.b16 %v3142
      %v3231 = vunpack.c.h.b16 %v3142
      %v3232 = vunpack.c.l.b16 %v3143
      %v3233 = vunpack.c.h.b16 %v3143
      %v3234 = vunpack.c.l.b16 %v3144
      %v3235 = vunpack.c.h.b16 %v3144
      %v3236 = vunpack.c.l.b16 %v3145
      %v3237 = vunpack.c.h.b16 %v3145
      %v3238 = vunpack.c.l.b16 %v3146
      %v3239 = vunpack.c.h.b16 %v3146
      %v3240 = vunpack.c.l.b16 %v3147
      %v3241 = vunpack.c.h.b16 %v3147
      %v3242 = vunpack.c.l.b16 %v3148
      %v3243 = vunpack.c.h.b16 %v3148
      %v3244 = vunpack.c.l.b16 %v3149
      %v3245 = vunpack.c.h.b16 %v3149
      %v3246 = vunpack.c.l.b16 %v3150
      %v3247 = vunpack.c.h.b16 %v3150
      %v3248 = vunpack.c.l.b16 %v3151
      %v3249 = vunpack.c.h.b16 %v3151
      %v3250 = vunpack.c.l.b16 %v3152
      %v3251 = vunpack.c.h.b16 %v3152
      %v3252 = vunpack.c.l.b16 %v3153
      %v3253 = vunpack.c.h.b16 %v3153
      %v3254 = vunpack.c.l.b16 %v3154
      %v3255 = vunpack.c.h.b16 %v3154
      %v3256 = vunpack.c.l.b16 %v3155
      %v3257 = vunpack.c.h.b16 %v3155
      %v3258 = vunpack.c.l.b16 %v3156
      %v3259 = vunpack.c.h.b16 %v3156
      %v3260 = vunpack.c.l.b16 %v3157
      %v3261 = vunpack.c.h.b16 %v3157
      %v3262 = vunpack.c.l.b16 %v3158
      %v3263 = vunpack.c.h.b16 %v3158
      %v3264 = vunpack.c.l.b16 %v3159
      %v3265 = vunpack.c.h.b16 %v3159
      %v3266 = vunpack.c.l.b16 %v3160
      %v3267 = vunpack.c.h.b16 %v3160
      %v3268 = vunpack.c.l.b16 %v3161
      %v3269 = vunpack.c.h.b16 %v3161
      %v3270 = vpack.c.b16 %v3208, %v3206
      %v3271 = vpack.c.b16 %v3209, %v3207
      %v3272 = vpack.c.b16 %v3212, %v3210
      %v3273 = vpack.c.b16 %v3213, %v3211
      %v3274 = vpack.c.b16 %v3216, %v3214
      %v3275 = vpack.c.b16 %v3217, %v3215
      %v3276 = vpack.c.b16 %v3220, %v3218
      %v3277 = vpack.c.b16 %v3221, %v3219
      %v3278 = vpack.c.b16 %v3224, %v3222
      %v3279 = vpack.c.b16 %v3225, %v3223
      %v3280 = vpack.c.b16 %v3228, %v3226
      %v3281 = vpack.c.b16 %v3229, %v3227
      %v3282 = vpack.c.b16 %v3232, %v3230
      %v3283 = vpack.c.b16 %v3233, %v3231
      %v3284 = vpack.c.b16 %v3236, %v3234
      %v3285 = vpack.c.b16 %v3237, %v3235
      %v3286 = vpack.c.b16 %v3240, %v3238
      %v3287 = vpack.c.b16 %v3241, %v3239
      %v3288 = vpack.c.b16 %v3244, %v3242
      %v3289 = vpack.c.b16 %v3245, %v3243
      %v3290 = vpack.c.b16 %v3248, %v3246
      %v3291 = vpack.c.b16 %v3249, %v3247
      %v3292 = vpack.c.b16 %v3252, %v3250
      %v3293 = vpack.c.b16 %v3253, %v3251
      %v3294 = vpack.c.b16 %v3256, %v3254
      %v3295 = vpack.c.b16 %v3257, %v3255
      %v3296 = vpack.c.b16 %v3260, %v3258
      %v3297 = vpack.c.b16 %v3261, %v3259
      %v3298 = vpack.c.b16 %v3264, %v3262
      %v3299 = vpack.c.b16 %v3265, %v3263
      %v3300 = vpack.c.b16 %v3268, %v3266
      %v3301 = vpack.c.b16 %v3269, %v3267
      %3334 = vmatprep.subr.bf16.mxu0 %v3271
      %3335 = vmatpush1.bf16.msra.mxu0 %v3270
      %3336 = vmatprep.subr.bf16.mxu0 %v3273
      %3337 = vmatpush1.bf16.msra.mxu0 %v3272
      %3338 = vmatprep.subr.bf16.mxu0 %v3275
      %3339 = vmatpush1.bf16.msra.mxu0 %v3274
      %3340 = vmatprep.subr.bf16.mxu0 %v3277
      %3341 = vmatpush1.bf16.msra.mxu0 %v3276
      %3342 = vmatprep.subr.bf16.mxu0 %v3279
      %3343 = vmatpush1.bf16.msra.mxu0 %v3278
      %3344 = vmatprep.subr.bf16.mxu0 %v3281
      %3345 = vmatpush1.bf16.msra.mxu0 %v3280
      %3346 = vmatprep.subr.bf16.mxu0 %v3283
      %3347 = vmatpush1.bf16.msra.mxu0 %v3282
      %3348 = vmatprep.subr.bf16.mxu0 %v3285
      %3349 = vmatpush1.bf16.msra.mxu0 %v3284
      %3350 = vmatprep.subr.bf16.mxu0 %v3287
      %3351 = vmatpush1.bf16.msra.mxu0 %v3286
      %3352 = vmatprep.subr.bf16.mxu0 %v3289
      %3353 = vmatpush1.bf16.msra.mxu0 %v3288
      %3354 = vmatprep.subr.bf16.mxu0 %v3291
      %3355 = vmatpush1.bf16.msra.mxu0 %v3290
      %3356 = vmatprep.subr.bf16.mxu0 %v3293
      %3357 = vmatpush1.bf16.msra.mxu0 %v3292
      %3358 = vmatprep.subr.bf16.mxu0 %v3295
      %3359 = vmatpush1.bf16.msra.mxu0 %v3294
      %3360 = vmatprep.subr.bf16.mxu0 %v3297
      %3361 = vmatpush1.bf16.msra.mxu0 %v3296
      %3362 = vmatprep.subr.bf16.mxu0 %v3299
      %3363 = vmatpush1.bf16.msra.mxu0 %v3298
      %3364 = vmatprep.subr.bf16.mxu0 %v3301
      %3365 = vmatpush1.bf16.msra.mxu0 %v3300
      %3366 = vmatprep.mubr.bf16.mxu0 %v3075
      %3367 = vmatmul.mubr.bf16.gmra.mrb[0].mxu0 %v3074
      %v3368 = vpop.f32.mrb[0].mxu0
      %v3369 = vadd.f32 %v3167, %v3368
      %v3370 = vpop.f32.mrb[0].mxu0
      %v3371 = vadd.f32 %v3171, %v3370
      %v3372 = vpop.f32.mrb[0].mxu0
      %v3373 = vadd.f32 %v3167, %v3372
      %v3374 = vpop.f32.mrb[0].mxu0
      %v3375 = vadd.f32 %v3171, %v3374
      %3376 = vmatprep.mubr.bf16.mxu0 %v3077
      %3377 = vmatmul.mubr.bf16.gmra.mrb[0].mxu0 %v3076
      %v3378 = vpop.f32.mrb[0].mxu0
      %v3379 = vadd.f32 %v3167, %v3378
      %v3380 = vpop.f32.mrb[0].mxu0
      %v3381 = vadd.f32 %v3171, %v3380
      %v3382 = vpop.f32.mrb[0].mxu0
      %v3383 = vadd.f32 %v3167, %v3382
      %v3384 = vpop.f32.mrb[0].mxu0
      %v3385 = vadd.f32 %v3171, %v3384
      %3386 = vmatprep.mubr.bf16.mxu0 %v3079
      %3387 = vmatmul.mubr.bf16.gmra.mrb[0].mxu0 %v3078
      %v3388 = vpop.f32.mrb[0].mxu0
      %v3389 = vadd.f32 %v3167, %v3388
      %v3390 = vpop.f32.mrb[0].mxu0
      %v3391 = vadd.f32 %v3171, %v3390
      %v3392 = vpop.f32.mrb[0].mxu0
      %v3393 = vadd.f32 %v3167, %v3392
      %v3394 = vpop.f32.mrb[0].mxu0
      %v3395 = vadd.f32 %v3171, %v3394
      %3396 = vmatprep.mubr.bf16.mxu0 %v3081
      %3397 = vmatmul.mubr.bf16.gmra.mrb[0].mxu0 %v3080
      %v3398 = vpop.f32.mrb[0].mxu0
      %v3399 = vadd.f32 %v3167, %v3398
      %v3400 = vpop.f32.mrb[0].mxu0
      %v3401 = vadd.f32 %v3171, %v3400
      %v3402 = vpop.f32.mrb[0].mxu0
      %v3403 = vadd.f32 %v3167, %v3402
      %v3404 = vpop.f32.mrb[0].mxu0
      %v3405 = vadd.f32 %v3171, %v3404
      %3406 = vdwg.mxu0
      %v3407 = vmax.f32 %v3369, 0.0
      %v3408 = vmax.f32 %v3371, 0.0
      %v3409 = vmax.f32 %v3373, 0.0
      %v3410 = vmax.f32 %v3375, 0.0
      %v3411 = vmax.f32 %v3379, 0.0
      %v3412 = vmax.f32 %v3381, 0.0
      %v3413 = vmax.f32 %v3383, 0.0
      %v3414 = vmax.f32 %v3385, 0.0
      %v3415 = vmax.f32 %v3389, 0.0
      %v3416 = vmax.f32 %v3391, 0.0
      %v3417 = vmax.f32 %v3393, 0.0
      %v3418 = vmax.f32 %v3395, 0.0
      %v3419 = vmax.f32 %v3399, 0.0
      %v3420 = vmax.f32 %v3401, 0.0
      %v3421 = vmax.f32 %v3403, 0.0
      %v3422 = vmax.f32 %v3405, 0.0
      %v3423 = vpack.c.bf16 %v3409, %v3407
      %v3424 = vpack.c.bf16 %v3410, %v3408
      %v3425 = vpack.c.bf16 %v3413, %v3411
      %v3426 = vpack.c.bf16 %v3414, %v3412
      %v3427 = vpack.c.bf16 %v3417, %v3415
      %v3428 = vpack.c.bf16 %v3418, %v3416
      %v3429 = vpack.c.bf16 %v3421, %v3419
      %v3430 = vpack.c.bf16 %v3422, %v3420
      %v3439 = vunpack.c.l.b16 %v3423
      %v3440 = vunpack.c.l.b16 %v3424
      %v3441 = vunpack.c.h.b16 %v3423
      %v3442 = vunpack.c.h.b16 %v3424
      %v3443 = vunpack.c.l.b16 %v3425
      %v3444 = vunpack.c.l.b16 %v3426
      %v3445 = vunpack.c.h.b16 %v3425
      %v3446 = vunpack.c.h.b16 %v3426
      %v3447 = vunpack.c.l.b16 %v3427
      %v3448 = vunpack.c.l.b16 %v3428
      %v3449 = vunpack.c.h.b16 %v3427
      %v3450 = vunpack.c.h.b16 %v3428
      %v3451 = vunpack.c.l.b16 %v3429
      %v3452 = vunpack.c.l.b16 %v3430
      %v3453 = vunpack.c.h.b16 %v3429
      %v3454 = vunpack.c.h.b16 %v3430
      %v3455 = vpack.c.b16 %v3440, %v3439
      %v3456 = vpack.c.b16 %v3442, %v3441
      %v3457 = vpack.c.b16 %v3444, %v3443
      %v3458 = vpack.c.b16 %v3446, %v3445
      %v3459 = vpack.c.b16 %v3448, %v3447
      %v3460 = vpack.c.b16 %v3450, %v3449
      %v3461 = vpack.c.b16 %v3452, %v3451
      %v3462 = vpack.c.b16 %v3454, %v3453
      %3471 = vst [vmem:[%s434] sm:$0xff] %v3455
      %3472 = vst [vmem:[%s434 + $0x8] sm:$0xff] %v3456
      %3473 = vst [vmem:[%s434 + $0x10] sm:$0xff] %v3457
      %3474 = vst [vmem:[%s434 + $0x18] sm:$0xff] %v3458
      %3475 = vst [vmem:[%s434 + $0x20] sm:$0xff] %v3459
      %3476 = vst [vmem:[%s434 + $0x28] sm:$0xff] %v3460
      %3477 = vst [vmem:[%s434 + $0x30] sm:$0xff] %v3461
      %3478 = vst [vmem:[%s434 + $0x38] sm:$0xff] %v3462
      %s3479 = smul.u32 8, %s23
      %p3480 = scmp.lt.s32.totalorder %s3479, 15
      %s3481 = scalar_select %p3480, %s3479, 15
      %s3482 = smul.addr %s3481, 2
      %s3483 = smul.addr %s3482, 4
      %s3484 = scalar_lea.vmem %s10, %s3483
      %s3485 = smul.u32 8, %s23
      %p3486 = scmp.lt.s32.totalorder %s3485, 15
      %s3487 = scalar_select %p3486, %s3485, 15
      %s3488 = smul.addr %s3487, 2
      %s3489 = smul.addr %s3488, 4
      %s3490 = scalar_lea.vmem %s11, %s3489
      // Predicated region
      $region61: #{resnext_forward.5} parent=59 // pred_check
        %p3491 = pneg %p261
      $region62: #{resnext_forward.5} parent=59 // pred_check_branch
        %3493 = sbr.rel (%p3491) target = $region64
      $region63: #{resnext_forward.5} parent=59 // pred_region
        %s3494 = smul.u32 8, %s23
      $region64: #{resnext_forward.5} parent=59 // pred_fallthru
        _
      // Predicated region
      $region65: #{resnext_forward.5} parent=59 // pred_check
        %p3495 = pneg %p287
      $region66: #{resnext_forward.5} parent=59 // pred_check_branch
        %3497 = sbr.rel (%p3495) target = $region68
      $region67: #{resnext_forward.5} parent=59 // pred_region
        %s3498 = smul.u32 8, %s23
      $region68: #{resnext_forward.5} parent=59 // pred_fallthru
        _
    $region60: #{resnext_forward.5} parent=5 // pred_fallthru
      _
    %p3499 = scmp.le.s32.totalorder 2, %s18
    // Predicated region
    $region69: #{resnext_forward.5} parent=5 // pred_check
      %p3500 = pneg %p3499
    $region70: #{resnext_forward.5} parent=5 // pred_check_branch
      %3502 = sbr.rel (%p3500) target = $region72
    $region71: #{resnext_forward.5} parent=5 // pred_region
      %s3503 = ssub.s32 %s18, 2
      // Predicated region
      $region73: #{resnext_forward.5} parent=71 // pred_check
        %p3504 = pneg %p267
      $region74: #{resnext_forward.5} parent=71 // pred_check_branch
        %3506 = sbr.rel (%p3504) target = $region76
      $region75: #{resnext_forward.5} parent=71 // pred_region
        %s3507 = smul.u32 8, %s24
        %p3508 = scmp.lt.s32.totalorder %s3507, 15
        %s3509 = scalar_select %p3508, %s3507, 15
        %s3510 = smul.addr %s3509, 2
        %s3511 = smul.addr %s3510, 4
        %s3512 = scalar_lea.vmem %s10, %s3511
      $region76: #{resnext_forward.5} parent=71 // pred_fallthru
        _
      // Predicated region
      $region77: #{resnext_forward.5} parent=71 // pred_check
        %p3513 = pneg %p293
      $region78: #{resnext_forward.5} parent=71 // pred_check_branch
        %3515 = sbr.rel (%p3513) target = $region80
      $region79: #{resnext_forward.5} parent=71 // pred_region
        %s3516 = smul.u32 8, %s24
        %p3517 = scmp.lt.s32.totalorder %s3516, 15
        %s3518 = scalar_select %p3517, %s3516, 15
        %s3519 = smul.addr %s3518, 2
        %s3520 = smul.addr %s3519, 4
        %s3521 = scalar_lea.vmem %s11, %s3520
      $region80: #{resnext_forward.5} parent=71 // pred_fallthru
        _
    $region72: #{resnext_forward.5} parent=5 // pred_fallthru
      _
  $region6: #{resnext_forward.5} parent=0 // loop_footer
    %s22 = sadd.s32 1, %s18
  $region7: #{resnext_forward.5} parent=0 // loop_footer_branch
    %17 = sbr.rel target = $region3
  $region8: #{resnext_forward.5} parent=0 // loop_exit
    _

// kernel: resnext_forward.6
$region0: #{resnext_forward.6}
  #allocation0 [shape = 'u32[]', space=smem, size = 0x4, offset = 0x4, fixed_abs, tag = 'smem constant byte address 0x4 - core index']
  #allocation1 [shape = 'u32[144,128]{1,0:T(1,128)}', space=vmem, size = 0x12000, scoped, tag = 'internal scratch']
  %s0 = inlined_call_operand.vmem [shape: bf16[64,1152], index: 0, kind: input, shape index: {}]
  %s1 = inlined_call_operand.vmem [shape: bf16[1152,128], index: 1, kind: input, shape index: {}]
  %s2 = inlined_call_operand.vmem [shape: f32[1,128], index: 2, kind: input, shape index: {}]
  %s3 = inlined_call_operand.vmem [shape: bf16[128,256], index: 3, kind: input, shape index: {}]
  %s4 = inlined_call_operand.vmem [shape: f32[1,256], index: 4, kind: input, shape index: {}]
  %s5 = inlined_call_operand.vmem [shape: bf16[64,128], index: 5, kind: input, shape index: {}]
  %s6 = inlined_call_operand.vmem [shape: bf16[128,256], index: 6, kind: input, shape index: {}]
  %s7 = inlined_call_operand.vmem [shape: f32[1,256], index: 7, kind: input, shape index: {}]
  %s8 = inlined_call_operand.vmem [shape: bf16[256,256], index: 8, kind: input, shape index: {}]
  %s9 = inlined_call_operand.vmem [shape: f32[1,256], index: 9, kind: input, shape index: {}]
  %s10 = inlined_call_operand.vmem [shape: bf16[64,256], index: 10, kind: output, shape index: {0}]
  %s11 = inlined_call_operand.vmem [shape: bf16[64,256], index: 11, kind: output, shape index: {1}]
  %12 = xla_tuple %s10, %s11
  %s13 = sld [smem:[#allocation0]]
  $region81: #{resnext_forward.6} parent=0
    _
  %s15 = ssub.s32 1, %s13
  %s16 = scalar_select 0, %s15, %s13
  loop: start=0, step=1, limit=4
  $region2: #{resnext_forward.6} parent=0 // loop_pre_header
    _
  $region3: #{resnext_forward.6} parent=0 // loop_header
    %s18 = sphi 0, %s22
    %p19 = scmp.ge.s32.totalorder %s18, 4
    %s28 = sphi 0, %s30
    %s31 = sphi 0, %s28
    %s32 = sphi 0, %s31
    %s48 = sphi 0, %s32
    %s52 = sphi 0, %s52
    %s54 = sphi 0, %s52
    %s55 = sphi 0, %s54
    %s69 = sphi 0, %s55
    %s73 = sphi 0, %s73
    %s75 = sphi 0, %s73
    %s76 = sphi 0, %s75
    %s90 = sphi 0, %s76
    %s94 = sphi 0, %s94
    %s96 = sphi 0, %s94
    %s97 = sphi 0, %s96
    %s111 = sphi 0, %s97
    %s115 = sphi 0, %s115
    %s117 = sphi 0, %s115
    %s118 = sphi 0, %s117
    %s132 = sphi 0, %s118
    %s138 = sphi 0, %s140
    %s141 = sphi 0, %s138
    %s142 = sphi 0, %s141
    %s158 = sphi 0, %s142
    %s162 = sphi 0, %s162
    %s164 = sphi 0, %s162
    %s165 = sphi 0, %s164
    %s179 = sphi 0, %s165
    %s183 = sphi 0, %s183
    %s185 = sphi 0, %s183
    %s186 = sphi 0, %s185
    %s200 = sphi 0, %s186
    %s204 = sphi 0, %s204
    %s206 = sphi 0, %s204
    %s207 = sphi 0, %s206
    %s221 = sphi 0, %s207
    %s225 = sphi 0, %s225
    %s227 = sphi 0, %s225
    %s228 = sphi 0, %s227
    %s242 = sphi 0, %s228
    %s248 = sphi 0, %s250
    %s251 = sphi 0, %s248
    %s252 = sphi 0, %s251
    %s268 = sphi 0, %s252
    %s274 = sphi 0, %s276
    %s277 = sphi 0, %s274
    %s278 = sphi 0, %s277
    %s294 = sphi 0, %s278
  $region4: #{resnext_forward.6} parent=0 // loop_header_branch
    %21 = sbr.rel (%p19) target = $region8
  $region5: #{resnext_forward.6} parent=0 // loop_body
    %s23 = ssub.s32 %s18, 1
    %s24 = ssub.s32 %s18, 2
    %s25 = sadd.s32 %s18, 1
    %s26 = ssub.s32 %s18, %s25
    %p27 = scmp.eq.s32.totalorder %s26, 0
    %s29 = sadd.s32 %s28, 1
    %s30 = scalar_select %p27, %s28, %s29
    %p33 = pneg %p27
    %p34 = scmp.eq.s32.totalorder %s18, 1
    %p35 = por %p33, %p34
    %p36 = scmp.ne.s32.totalorder %s28, %s31
    %p37 = scmp.eq.s32.totalorder %s18, 0
    %p38 = por %p36, %p37
    %p39 = scmp.ne.s32.totalorder %s28, %s31
    %p40 = scmp.eq.s32.totalorder %s23, 1
    %p41 = por %p39, %p40
    %p42 = scmp.ne.s32.totalorder %s31, %s32
    %p43 = scmp.eq.s32.totalorder %s23, 0
    %p44 = por %p42, %p43
    %p45 = scmp.ne.s32.totalorder %s31, %s32
    %p46 = scmp.eq.s32.totalorder %s24, 1
    %p47 = por %p45, %p46
    %p49 = scmp.ne.s32.totalorder %s32, %s48
    %p50 = scmp.eq.s32.totalorder %s24, 0
    %p51 = por %p49, %p50
    %s53 = sadd.s32 %s52, 1
    %p56 = scmp.eq.s32.totalorder %s18, 1
    %p57 = scmp.ne.s32.totalorder %s52, %s54
    %p58 = scmp.eq.s32.totalorder %s18, 0
    %p59 = por %p57, %p58
    %p60 = scmp.ne.s32.totalorder %s52, %s54
    %p61 = scmp.eq.s32.totalorder %s23, 1
    %p62 = por %p60, %p61
    %p63 = scmp.ne.s32.totalorder %s54, %s55
    %p64 = scmp.eq.s32.totalorder %s23, 0
    %p65 = por %p63, %p64
    %p66 = scmp.ne.s32.totalorder %s54, %s55
    %p67 = scmp.eq.s32.totalorder %s24, 1
    %p68 = por %p66, %p67
    %p70 = scmp.ne.s32.totalorder %s55, %s69
    %p71 = scmp.eq.s32.totalorder %s24, 0
    %p72 = por %p70, %p71
    %s74 = sadd.s32 %s73, 1
    %p77 = scmp.eq.s32.totalorder %s18, 1
    %p78 = scmp.ne.s32.totalorder %s73, %s75
    %p79 = scmp.eq.s32.totalorder %s18, 0
    %p80 = por %p78, %p79
    %p81 = scmp.ne.s32.totalorder %s73, %s75
    %p82 = scmp.eq.s32.totalorder %s23, 1
    %p83 = por %p81, %p82
    %p84 = scmp.ne.s32.totalorder %s75, %s76
    %p85 = scmp.eq.s32.totalorder %s23, 0
    %p86 = por %p84, %p85
    %p87 = scmp.ne.s32.totalorder %s75, %s76
    %p88 = scmp.eq.s32.totalorder %s24, 1
    %p89 = por %p87, %p88
    %p91 = scmp.ne.s32.totalorder %s76, %s90
    %p92 = scmp.eq.s32.totalorder %s24, 0
    %p93 = por %p91, %p92
    %s95 = sadd.s32 %s94, 1
    %p98 = scmp.eq.s32.totalorder %s18, 1
    %p99 = scmp.ne.s32.totalorder %s94, %s96
    %p100 = scmp.eq.s32.totalorder %s18, 0
    %p101 = por %p99, %p100
    %p102 = scmp.ne.s32.totalorder %s94, %s96
    %p103 = scmp.eq.s32.totalorder %s23, 1
    %p104 = por %p102, %p103
    %p105 = scmp.ne.s32.totalorder %s96, %s97
    %p106 = scmp.eq.s32.totalorder %s23, 0
    %p107 = por %p105, %p106
    %p108 = scmp.ne.s32.totalorder %s96, %s97
    %p109 = scmp.eq.s32.totalorder %s24, 1
    %p110 = por %p108, %p109
    %p112 = scmp.ne.s32.totalorder %s97, %s111
    %p113 = scmp.eq.s32.totalorder %s24, 0
    %p114 = por %p112, %p113
    %s116 = sadd.s32 %s115, 1
    %p119 = scmp.eq.s32.totalorder %s18, 1
    %p120 = scmp.ne.s32.totalorder %s115, %s117
    %p121 = scmp.eq.s32.totalorder %s18, 0
    %p122 = por %p120, %p121
    %p123 = scmp.ne.s32.totalorder %s115, %s117
    %p124 = scmp.eq.s32.totalorder %s23, 1
    %p125 = por %p123, %p124
    %p126 = scmp.ne.s32.totalorder %s117, %s118
    %p127 = scmp.eq.s32.totalorder %s23, 0
    %p128 = por %p126, %p127
    %p129 = scmp.ne.s32.totalorder %s117, %s118
    %p130 = scmp.eq.s32.totalorder %s24, 1
    %p131 = por %p129, %p130
    %p133 = scmp.ne.s32.totalorder %s118, %s132
    %p134 = scmp.eq.s32.totalorder %s24, 0
    %p135 = por %p133, %p134
    %s136 = ssub.s32 %s18, %s25
    %p137 = scmp.eq.s32.totalorder %s136, 0
    %s139 = sadd.s32 %s138, 1
    %s140 = scalar_select %p137, %s138, %s139
    %p143 = pneg %p137
    %p144 = scmp.eq.s32.totalorder %s18, 1
    %p145 = por %p143, %p144
    %p146 = scmp.ne.s32.totalorder %s138, %s141
    %p147 = scmp.eq.s32.totalorder %s18, 0
    %p148 = por %p146, %p147
    %p149 = scmp.ne.s32.totalorder %s138, %s141
    %p150 = scmp.eq.s32.totalorder %s23, 1
    %p151 = por %p149, %p150
    %p152 = scmp.ne.s32.totalorder %s141, %s142
    %p153 = scmp.eq.s32.totalorder %s23, 0
    %p154 = por %p152, %p153
    %p155 = scmp.ne.s32.totalorder %s141, %s142
    %p156 = scmp.eq.s32.totalorder %s24, 1
    %p157 = por %p155, %p156
    %p159 = scmp.ne.s32.totalorder %s142, %s158
    %p160 = scmp.eq.s32.totalorder %s24, 0
    %p161 = por %p159, %p160
    %s163 = sadd.s32 %s162, 1
    %p166 = scmp.eq.s32.totalorder %s18, 1
    %p167 = scmp.ne.s32.totalorder %s162, %s164
    %p168 = scmp.eq.s32.totalorder %s18, 0
    %p169 = por %p167, %p168
    %p170 = scmp.ne.s32.totalorder %s162, %s164
    %p171 = scmp.eq.s32.totalorder %s23, 1
    %p172 = por %p170, %p171
    %p173 = scmp.ne.s32.totalorder %s164, %s165
    %p174 = scmp.eq.s32.totalorder %s23, 0
    %p175 = por %p173, %p174
    %p176 = scmp.ne.s32.totalorder %s164, %s165
    %p177 = scmp.eq.s32.totalorder %s24, 1
    %p178 = por %p176, %p177
    %p180 = scmp.ne.s32.totalorder %s165, %s179
    %p181 = scmp.eq.s32.totalorder %s24, 0
    %p182 = por %p180, %p181
    %s184 = sadd.s32 %s183, 1
    %p187 = scmp.eq.s32.totalorder %s18, 1
    %p188 = scmp.ne.s32.totalorder %s183, %s185
    %p189 = scmp.eq.s32.totalorder %s18, 0
    %p190 = por %p188, %p189
    %p191 = scmp.ne.s32.totalorder %s183, %s185
    %p192 = scmp.eq.s32.totalorder %s23, 1
    %p193 = por %p191, %p192
    %p194 = scmp.ne.s32.totalorder %s185, %s186
    %p195 = scmp.eq.s32.totalorder %s23, 0
    %p196 = por %p194, %p195
    %p197 = scmp.ne.s32.totalorder %s185, %s186
    %p198 = scmp.eq.s32.totalorder %s24, 1
    %p199 = por %p197, %p198
    %p201 = scmp.ne.s32.totalorder %s186, %s200
    %p202 = scmp.eq.s32.totalorder %s24, 0
    %p203 = por %p201, %p202
    %s205 = sadd.s32 %s204, 1
    %p208 = scmp.eq.s32.totalorder %s18, 1
    %p209 = scmp.ne.s32.totalorder %s204, %s206
    %p210 = scmp.eq.s32.totalorder %s18, 0
    %p211 = por %p209, %p210
    %p212 = scmp.ne.s32.totalorder %s204, %s206
    %p213 = scmp.eq.s32.totalorder %s23, 1
    %p214 = por %p212, %p213
    %p215 = scmp.ne.s32.totalorder %s206, %s207
    %p216 = scmp.eq.s32.totalorder %s23, 0
    %p217 = por %p215, %p216
    %p218 = scmp.ne.s32.totalorder %s206, %s207
    %p219 = scmp.eq.s32.totalorder %s24, 1
    %p220 = por %p218, %p219
    %p222 = scmp.ne.s32.totalorder %s207, %s221
    %p223 = scmp.eq.s32.totalorder %s24, 0
    %p224 = por %p222, %p223
    %s226 = sadd.s32 %s225, 1
    %p229 = scmp.eq.s32.totalorder %s18, 1
    %p230 = scmp.ne.s32.totalorder %s225, %s227
    %p231 = scmp.eq.s32.totalorder %s18, 0
    %p232 = por %p230, %p231
    %p233 = scmp.ne.s32.totalorder %s225, %s227
    %p234 = scmp.eq.s32.totalorder %s23, 1
    %p235 = por %p233, %p234
    %p236 = scmp.ne.s32.totalorder %s227, %s228
    %p237 = scmp.eq.s32.totalorder %s23, 0
    %p238 = por %p236, %p237
    %p239 = scmp.ne.s32.totalorder %s227, %s228
    %p240 = scmp.eq.s32.totalorder %s24, 1
    %p241 = por %p239, %p240
    %p243 = scmp.ne.s32.totalorder %s228, %s242
    %p244 = scmp.eq.s32.totalorder %s24, 0
    %p245 = por %p243, %p244
    %s246 = ssub.s32 %s18, %s25
    %p247 = scmp.eq.s32.totalorder %s246, 0
    %s249 = sadd.s32 %s248, 1
    %s250 = scalar_select %p247, %s248, %s249
    %p253 = pneg %p247
    %p254 = scmp.eq.s32.totalorder %s18, 1
    %p255 = por %p253, %p254
    %p256 = scmp.ne.s32.totalorder %s248, %s251
    %p257 = scmp.eq.s32.totalorder %s18, 0
    %p258 = por %p256, %p257
    %p259 = scmp.ne.s32.totalorder %s248, %s251
    %p260 = scmp.eq.s32.totalorder %s23, 1
    %p261 = por %p259, %p260
    %p262 = scmp.ne.s32.totalorder %s251, %s252
    %p263 = scmp.eq.s32.totalorder %s23, 0
    %p264 = por %p262, %p263
    %p265 = scmp.ne.s32.totalorder %s251, %s252
    %p266 = scmp.eq.s32.totalorder %s24, 1
    %p267 = por %p265, %p266
    %p269 = scmp.ne.s32.totalorder %s252, %s268
    %p270 = scmp.eq.s32.totalorder %s24, 0
    %p271 = por %p269, %p270
    %s272 = ssub.s32 %s18, %s25
    %p273 = scmp.eq.s32.totalorder %s272, 0
    %s275 = sadd.s32 %s274, 1
    %s276 = scalar_select %p273, %s274, %s275
    %p279 = pneg %p273
    %p280 = scmp.eq.s32.totalorder %s18, 1
    %p281 = por %p279, %p280
    %p282 = scmp.ne.s32.totalorder %s274, %s277
    %p283 = scmp.eq.s32.totalorder %s18, 0
    %p284 = por %p282, %p283
    %p285 = scmp.ne.s32.totalorder %s274, %s277
    %p286 = scmp.eq.s32.totalorder %s23, 1
    %p287 = por %p285, %p286
    %p288 = scmp.ne.s32.totalorder %s277, %s278
    %p289 = scmp.eq.s32.totalorder %s23, 0
    %p290 = por %p288, %p289
    %p291 = scmp.ne.s32.totalorder %s277, %s278
    %p292 = scmp.eq.s32.totalorder %s24, 1
    %p293 = por %p291, %p292
    %p295 = scmp.ne.s32.totalorder %s278, %s294
    %p296 = scmp.eq.s32.totalorder %s24, 0
    %p297 = por %p295, %p296
    %p298 = scmp.le.s32.totalorder 1, %s18
    %p299 = scmp.lt.s32.totalorder %s18, 3
    %p300 = pnand %p298, %p299
    %p301 = pneg %p300
    // Predicated region
    $region9: #{resnext_forward.6} parent=5 // pred_check
      _
    $region10: #{resnext_forward.6} parent=5 // pred_check_branch
      %303 = sbr.rel (%p300) target = $region12
    $region11: #{resnext_forward.6} parent=5 // pred_region
      %s304 = ssub.s32 %s18, 1
      // Predicated region
      $region13: #{resnext_forward.6} parent=11 // pred_check
        %p305 = pneg %p65
      $region14: #{resnext_forward.6} parent=11 // pred_check_branch
        %307 = sbr.rel (%p305) target = $region16
      $region15: #{resnext_forward.6} parent=11 // pred_region
        _
      $region16: #{resnext_forward.6} parent=11 // pred_fallthru
        _
      // Predicated region
      $region17: #{resnext_forward.6} parent=11 // pred_check
        %p308 = pneg %p86
      $region18: #{resnext_forward.6} parent=11 // pred_check_branch
        %310 = sbr.rel (%p308) target = $region20
      $region19: #{resnext_forward.6} parent=11 // pred_region
        _
      $region20: #{resnext_forward.6} parent=11 // pred_fallthru
        _
      // Predicated region
      $region21: #{resnext_forward.6} parent=11 // pred_check
        %p311 = pneg %p107
      $region22: #{resnext_forward.6} parent=11 // pred_check_branch
        %313 = sbr.rel (%p311) target = $region24
      $region23: #{resnext_forward.6} parent=11 // pred_region
        _
      $region24: #{resnext_forward.6} parent=11 // pred_fallthru
        _
      // Predicated region
      $region25: #{resnext_forward.6} parent=11 // pred_check
        %p314 = pneg %p128
      $region26: #{resnext_forward.6} parent=11 // pred_check_branch
        %316 = sbr.rel (%p314) target = $region28
      $region27: #{resnext_forward.6} parent=11 // pred_region
        _
      $region28: #{resnext_forward.6} parent=11 // pred_fallthru
        _
      // Predicated region
      $region29: #{resnext_forward.6} parent=11 // pred_check
        %p317 = pneg %p175
      $region30: #{resnext_forward.6} parent=11 // pred_check_branch
        %319 = sbr.rel (%p317) target = $region32
      $region31: #{resnext_forward.6} parent=11 // pred_region
        _
      $region32: #{resnext_forward.6} parent=11 // pred_fallthru
        _
      // Predicated region
      $region33: #{resnext_forward.6} parent=11 // pred_check
        %p320 = pneg %p196
      $region34: #{resnext_forward.6} parent=11 // pred_check_branch
        %322 = sbr.rel (%p320) target = $region36
      $region35: #{resnext_forward.6} parent=11 // pred_region
        _
      $region36: #{resnext_forward.6} parent=11 // pred_fallthru
        _
      // Predicated region
      $region37: #{resnext_forward.6} parent=11 // pred_check
        %p323 = pneg %p217
      $region38: #{resnext_forward.6} parent=11 // pred_check_branch
        %325 = sbr.rel (%p323) target = $region40
      $region39: #{resnext_forward.6} parent=11 // pred_region
        _
      $region40: #{resnext_forward.6} parent=11 // pred_fallthru
        _
      // Predicated region
      $region41: #{resnext_forward.6} parent=11 // pred_check
        %p326 = pneg %p238
      $region42: #{resnext_forward.6} parent=11 // pred_check_branch
        %328 = sbr.rel (%p326) target = $region44
      $region43: #{resnext_forward.6} parent=11 // pred_region
        _
      $region44: #{resnext_forward.6} parent=11 // pred_fallthru
        _
    $region12: #{resnext_forward.6} parent=5 // pred_fallthru
      _
    %p329 = scmp.lt.s32.totalorder %s18, 2
    // Predicated region
    $region45: #{resnext_forward.6} parent=5 // pred_check
      %p330 = pneg %p329
    $region46: #{resnext_forward.6} parent=5 // pred_check_branch
      %332 = sbr.rel (%p330) target = $region48
    $region47: #{resnext_forward.6} parent=5 // pred_region
      // Predicated region
      $region49: #{resnext_forward.6} parent=47 // pred_check
        %p333 = pneg %p38
      $region50: #{resnext_forward.6} parent=47 // pred_check_branch
        %335 = sbr.rel (%p333) target = $region52
      $region51: #{resnext_forward.6} parent=47 // pred_region
        %s336 = smul.u32 4, %s18
        %p337 = scmp.lt.s32.totalorder %s336, 7
        %s338 = scalar_select %p337, %s336, 7
        %s339 = smul.addr %s338, 9
        %s340 = smul.addr %s339, 4
        %s341 = scalar_lea.vmem %s0, %s340
        %s342 = smul.u32 4, %s18
      $region52: #{resnext_forward.6} parent=47 // pred_fallthru
        _
      // Predicated region
      $region53: #{resnext_forward.6} parent=47 // pred_check
        %p343 = pneg %p148
      $region54: #{resnext_forward.6} parent=47 // pred_check_branch
        %345 = sbr.rel (%p343) target = $region56
      $region55: #{resnext_forward.6} parent=47 // pred_region
        %s346 = smul.u32 4, %s18
        %p347 = scmp.lt.s32.totalorder %s346, 7
        %s348 = scalar_select %p347, %s346, 7
        %s349 = smul.addr %s348, 4
        %s350 = scalar_lea.vmem %s5, %s349
        %s351 = smul.u32 4, %s18
      $region56: #{resnext_forward.6} parent=47 // pred_fallthru
        _
    $region48: #{resnext_forward.6} parent=5 // pred_fallthru
      _
    %p352 = scmp.le.s32.totalorder 1, %s18
    %p353 = scmp.lt.s32.totalorder %s18, 3
    %p354 = pnand %p352, %p353
    %p355 = pneg %p354
    // Predicated region
    $region57: #{resnext_forward.6} parent=5 // pred_check
      _
    $region58: #{resnext_forward.6} parent=5 // pred_check_branch
      %357 = sbr.rel (%p354) target = $region60
    $region59: #{resnext_forward.6} parent=5 // pred_region
      %s358 = ssub.s32 %s18, 1
      %s359 = smul.u32 4, %s23
      %p360 = scmp.lt.s32.totalorder %s359, 7
      %s361 = scalar_select %p360, %s359, 7
      %s362 = smul.addr %s361, 9
      %s363 = smul.addr %s362, 4
      %s364 = scalar_lea.vmem %s0, %s363
      %p365 = pneg %p44
      %p366 = pneg %p41
      %p367 = pneg %p65
      %p368 = pneg %p62
      %p369 = pneg %p86
      %p370 = pneg %p83
      %p371 = pneg %p107
      %p372 = pneg %p104
      %p373 = pneg %p128
      %p374 = pneg %p125
      %s375 = smul.u32 4, %s23
      %p376 = scmp.lt.s32.totalorder %s375, 7
      %s377 = scalar_select %p376, %s375, 7
      %s378 = smul.addr %s377, 4
      %s379 = scalar_lea.vmem %s5, %s378
      %p380 = pneg %p154
      %p381 = pneg %p151
      %p382 = pneg %p175
      %p383 = pneg %p172
      %p384 = pneg %p196
      %p385 = pneg %p193
      %p386 = pneg %p217
      %p387 = pneg %p214
      %p388 = pneg %p238
      %p389 = pneg %p235
      %p390 = pneg %p264
      %p391 = pneg %p261
      %s392 = smul.u32 4, %s23
      %p393 = scmp.lt.s32.totalorder %s392, 7
      %s394 = scalar_select %p393, %s392, 7
      %s395 = smul.addr %s394, 2
      %s396 = smul.addr %s395, 4
      %s397 = scalar_lea.vmem %s10, %s396
      %p398 = pneg %p290
      %p399 = pneg %p287
      %s400 = smul.u32 4, %s23
      %p401 = scmp.lt.s32.totalorder %s400, 7
      %s402 = scalar_select %p401, %s400, 7
      %s403 = smul.addr %s402, 2
      %s404 = smul.addr %s403, 4
      %s405 = scalar_lea.vmem %s11, %s404
      %s406 = smul.u32 4, %s23
      %p407 = scmp.lt.s32.totalorder %s406, 7
      %s408 = scalar_select %p407, %s406, 7
      %s409 = smul.addr %s408, 9
      %s410 = smul.addr %s409, 4
      %s411 = scalar_lea.vmem %s0, %s410
      %s412 = smul.u32 4, %s23
      %s413 = smul.u32 4, %s23
      %p414 = scmp.lt.s32.totalorder %s413, 7
      %s415 = scalar_select %p414, %s413, 7
      %s416 = smul.addr %s415, 4
      %s417 = scalar_lea.vmem %s5, %s416
      %s418 = smul.u32 4, %s23
      %s419 = smul.u32 4, %s23
      %p420 = scmp.lt.s32.totalorder %s419, 7
      %s421 = scalar_select %p420, %s419, 7
      %s422 = smul.addr %s421, 2
      %s423 = smul.addr %s422, 4
      %s424 = scalar_lea.vmem %s10, %s423
      %s425 = smul.u32 4, %s23
      %s426 = smul.u32 4, %s23
      %p427 = scmp.lt.s32.totalorder %s426, 7
      %s428 = scalar_select %p427, %s426, 7
      %s429 = smul.addr %s428, 2
      %s430 = smul.addr %s429, 4
      %s431 = scalar_lea.vmem %s11, %s430
      %s432 = smul.u32 4, %s23
      %v434 = vld [vmem:[%s411] sm:$0xff]
      %v435 = vld [vmem:[%s411 + $0x8] sm:$0xff]
      %v436 = vld [vmem:[%s411 + $0x10] sm:$0xff]
      %v437 = vld [vmem:[%s411 + $0x18] sm:$0xff]
      %v438 = vld [vmem:[%s411 + $0x20] sm:$0xf]
      %v439 = vld [vmem:[%s411 + $0x24] sm:$0xff]
      %v440 = vld [vmem:[%s411 + $0x2c] sm:$0xff]
      %v441 = vld [vmem:[%s411 + $0x34] sm:$0xff]
      %v442 = vld [vmem:[%s411 + $0x3c] sm:$0xff]
      %v443 = vld [vmem:[%s411 + $0x44] sm:$0xf]
      %v444 = vld [vmem:[%s411 + $0x48] sm:$0xff]
      %v445 = vld [vmem:[%s411 + $0x50] sm:$0xff]
      %v446 = vld [vmem:[%s411 + $0x58] sm:$0xff]
      %v447 = vld [vmem:[%s411 + $0x60] sm:$0xff]
      %v448 = vld [vmem:[%s411 + $0x68] sm:$0xf]
      %v449 = vld [vmem:[%s411 + $0x6c] sm:$0xff]
      %v450 = vld [vmem:[%s411 + $0x74] sm:$0xff]
      %v451 = vld [vmem:[%s411 + $0x7c] sm:$0xff]
      %v452 = vld [vmem:[%s411 + $0x84] sm:$0xff]
      %v453 = vld [vmem:[%s411 + $0x8c] sm:$0xf]
      %v454 = vld [vmem:[%s1] sm:$0xf]
      %v455 = vld [vmem:[%s1 + $0x4] sm:$0xf]
      %v456 = vld [vmem:[%s1 + $0x8] sm:$0xf]
      %v457 = vld [vmem:[%s1 + $0xc] sm:$0xf]
      %v458 = vld [vmem:[%s1 + $0x10] sm:$0xf]
      %v459 = vld [vmem:[%s1 + $0x14] sm:$0xf]
      %v460 = vld [vmem:[%s1 + $0x18] sm:$0xf]
      %v461 = vld [vmem:[%s1 + $0x1c] sm:$0xf]
      %v462 = vld [vmem:[%s1 + $0x20] sm:$0xf]
      %v463 = vld [vmem:[%s1 + $0x24] sm:$0xf]
      %v464 = vld [vmem:[%s1 + $0x28] sm:$0xf]
      %v465 = vld [vmem:[%s1 + $0x2c] sm:$0xf]
      %v466 = vld [vmem:[%s1 + $0x30] sm:$0xf]
      %v467 = vld [vmem:[%s1 + $0x34] sm:$0xf]
      %v468 = vld [vmem:[%s1 + $0x38] sm:$0xf]
      %v469 = vld [vmem:[%s1 + $0x3c] sm:$0xf]
      %v470 = vld [vmem:[%s1 + $0x40] sm:$0xf]
      %v471 = vld [vmem:[%s1 + $0x44] sm:$0xf]
      %v472 = vld [vmem:[%s1 + $0x48] sm:$0xf]
      %v473 = vld [vmem:[%s1 + $0x4c] sm:$0xf]
      %v474 = vld [vmem:[%s1 + $0x50] sm:$0xf]
      %v475 = vld [vmem:[%s1 + $0x54] sm:$0xf]
      %v476 = vld [vmem:[%s1 + $0x58] sm:$0xf]
      %v477 = vld [vmem:[%s1 + $0x5c] sm:$0xf]
      %v478 = vld [vmem:[%s1 + $0x60] sm:$0xf]
      %v479 = vld [vmem:[%s1 + $0x64] sm:$0xf]
      %v480 = vld [vmem:[%s1 + $0x68] sm:$0xf]
      %v481 = vld [vmem:[%s1 + $0x6c] sm:$0xf]
      %v482 = vld [vmem:[%s1 + $0x70] sm:$0xf]
      %v483 = vld [vmem:[%s1 + $0x74] sm:$0xf]
      %v484 = vld [vmem:[%s1 + $0x78] sm:$0xf]
      %v485 = vld [vmem:[%s1 + $0x7c] sm:$0xf]
      %v486 = vld [vmem:[%s1 + $0x80] sm:$0xf]
      %v487 = vld [vmem:[%s1 + $0x84] sm:$0xf]
      %v488 = vld [vmem:[%s1 + $0x88] sm:$0xf]
      %v489 = vld [vmem:[%s1 + $0x8c] sm:$0xf]
      %v490 = vld [vmem:[%s1 + $0x90] sm:$0xf]
      %v491 = vld [vmem:[%s1 + $0x94] sm:$0xf]
      %v492 = vld [vmem:[%s1 + $0x98] sm:$0xf]
      %v493 = vld [vmem:[%s1 + $0x9c] sm:$0xf]
      %v494 = vld [vmem:[%s1 + $0xa0] sm:$0xf]
      %v495 = vld [vmem:[%s1 + $0xa4] sm:$0xf]
      %v496 = vld [vmem:[%s1 + $0xa8] sm:$0xf]
      %v497 = vld [vmem:[%s1 + $0xac] sm:$0xf]
      %v498 = vld [vmem:[%s1 + $0xb0] sm:$0xf]
      %v499 = vld [vmem:[%s1 + $0xb4] sm:$0xf]
      %v500 = vld [vmem:[%s1 + $0xb8] sm:$0xf]
      %v501 = vld [vmem:[%s1 + $0xbc] sm:$0xf]
      %v502 = vld [vmem:[%s1 + $0xc0] sm:$0xf]
      %v503 = vld [vmem:[%s1 + $0xc4] sm:$0xf]
      %v504 = vld [vmem:[%s1 + $0xc8] sm:$0xf]
      %v505 = vld [vmem:[%s1 + $0xcc] sm:$0xf]
      %v506 = vld [vmem:[%s1 + $0xd0] sm:$0xf]
      %v507 = vld [vmem:[%s1 + $0xd4] sm:$0xf]
      %v508 = vld [vmem:[%s1 + $0xd8] sm:$0xf]
      %v509 = vld [vmem:[%s1 + $0xdc] sm:$0xf]
      %v510 = vld [vmem:[%s1 + $0xe0] sm:$0xf]
      %v511 = vld [vmem:[%s1 + $0xe4] sm:$0xf]
      %v512 = vld [vmem:[%s1 + $0xe8] sm:$0xf]
      %v513 = vld [vmem:[%s1 + $0xec] sm:$0xf]
      %v514 = vld [vmem:[%s1 + $0xf0] sm:$0xf]
      %v515 = vld [vmem:[%s1 + $0xf4] sm:$0xf]
      %v516 = vld [vmem:[%s1 + $0xf8] sm:$0xf]
      %v517 = vld [vmem:[%s1 + $0xfc] sm:$0xf]
      %v518 = vld [vmem:[%s1 + $0x100] sm:$0xf]
      %v519 = vld [vmem:[%s1 + $0x104] sm:$0xf]
      %v520 = vld [vmem:[%s1 + $0x108] sm:$0xf]
      %v521 = vld [vmem:[%s1 + $0x10c] sm:$0xf]
      %v522 = vld [vmem:[%s1 + $0x110] sm:$0xf]
      %v523 = vld [vmem:[%s1 + $0x114] sm:$0xf]
      %v524 = vld [vmem:[%s1 + $0x118] sm:$0xf]
      %v525 = vld [vmem:[%s1 + $0x11c] sm:$0xf]
      %v526 = vld [vmem:[%s1 + $0x120] sm:$0xf]
      %v527 = vld [vmem:[%s1 + $0x124] sm:$0xf]
      %v528 = vld [vmem:[%s1 + $0x128] sm:$0xf]
      %v529 = vld [vmem:[%s1 + $0x12c] sm:$0xf]
      %v530 = vld [vmem:[%s1 + $0x130] sm:$0xf]
      %v531 = vld [vmem:[%s1 + $0x134] sm:$0xf]
      %v532 = vld [vmem:[%s1 + $0x138] sm:$0xf]
      %v533 = vld [vmem:[%s1 + $0x13c] sm:$0xf]
      %v534 = vld [vmem:[%s1 + $0x140] sm:$0xf]
      %v535 = vld [vmem:[%s1 + $0x144] sm:$0xf]
      %v536 = vld [vmem:[%s1 + $0x148] sm:$0xf]
      %v537 = vld [vmem:[%s1 + $0x14c] sm:$0xf]
      %v538 = vld [vmem:[%s1 + $0x150] sm:$0xf]
      %v539 = vld [vmem:[%s1 + $0x154] sm:$0xf]
      %v540 = vld [vmem:[%s1 + $0x158] sm:$0xf]
      %v541 = vld [vmem:[%s1 + $0x15c] sm:$0xf]
      %v542 = vld [vmem:[%s1 + $0x160] sm:$0xf]
      %v543 = vld [vmem:[%s1 + $0x164] sm:$0xf]
      %v544 = vld [vmem:[%s1 + $0x168] sm:$0xf]
      %v545 = vld [vmem:[%s1 + $0x16c] sm:$0xf]
      %v546 = vld [vmem:[%s1 + $0x170] sm:$0xf]
      %v547 = vld [vmem:[%s1 + $0x174] sm:$0xf]
      %v548 = vld [vmem:[%s1 + $0x178] sm:$0xf]
      %v549 = vld [vmem:[%s1 + $0x17c] sm:$0xf]
      %v550 = vld [vmem:[%s1 + $0x180] sm:$0xf]
      %v551 = vld [vmem:[%s1 + $0x184] sm:$0xf]
      %v552 = vld [vmem:[%s1 + $0x188] sm:$0xf]
      %v553 = vld [vmem:[%s1 + $0x18c] sm:$0xf]
      %v554 = vld [vmem:[%s1 + $0x190] sm:$0xf]
      %v555 = vld [vmem:[%s1 + $0x194] sm:$0xf]
      %v556 = vld [vmem:[%s1 + $0x198] sm:$0xf]
      %v557 = vld [vmem:[%s1 + $0x19c] sm:$0xf]
      %v558 = vld [vmem:[%s1 + $0x1a0] sm:$0xf]
      %v559 = vld [vmem:[%s1 + $0x1a4] sm:$0xf]
      %v560 = vld [vmem:[%s1 + $0x1a8] sm:$0xf]
      %v561 = vld [vmem:[%s1 + $0x1ac] sm:$0xf]
      %v562 = vld [vmem:[%s1 + $0x1b0] sm:$0xf]
      %v563 = vld [vmem:[%s1 + $0x1b4] sm:$0xf]
      %v564 = vld [vmem:[%s1 + $0x1b8] sm:$0xf]
      %v565 = vld [vmem:[%s1 + $0x1bc] sm:$0xf]
      %v566 = vld [vmem:[%s1 + $0x1c0] sm:$0xf]
      %v567 = vld [vmem:[%s1 + $0x1c4] sm:$0xf]
      %v568 = vld [vmem:[%s1 + $0x1c8] sm:$0xf]
      %v569 = vld [vmem:[%s1 + $0x1cc] sm:$0xf]
      %v570 = vld [vmem:[%s1 + $0x1d0] sm:$0xf]
      %v571 = vld [vmem:[%s1 + $0x1d4] sm:$0xf]
      %v572 = vld [vmem:[%s1 + $0x1d8] sm:$0xf]
      %v573 = vld [vmem:[%s1 + $0x1dc] sm:$0xf]
      %v574 = vld [vmem:[%s1 + $0x1e0] sm:$0xf]
      %v575 = vld [vmem:[%s1 + $0x1e4] sm:$0xf]
      %v576 = vld [vmem:[%s1 + $0x1e8] sm:$0xf]
      %v577 = vld [vmem:[%s1 + $0x1ec] sm:$0xf]
      %v578 = vld [vmem:[%s1 + $0x1f0] sm:$0xf]
      %v579 = vld [vmem:[%s1 + $0x1f4] sm:$0xf]
      %v580 = vld [vmem:[%s1 + $0x1f8] sm:$0xf]
      %v581 = vld [vmem:[%s1 + $0x1fc] sm:$0xf]
      %v582 = vld [vmem:[%s1 + $0x200] sm:$0xf]
      %v583 = vld [vmem:[%s1 + $0x204] sm:$0xf]
      %v584 = vld [vmem:[%s1 + $0x208] sm:$0xf]
      %v585 = vld [vmem:[%s1 + $0x20c] sm:$0xf]
      %v586 = vld [vmem:[%s1 + $0x210] sm:$0xf]
      %v587 = vld [vmem:[%s1 + $0x214] sm:$0xf]
      %v588 = vld [vmem:[%s1 + $0x218] sm:$0xf]
      %v589 = vld [vmem:[%s1 + $0x21c] sm:$0xf]
      %v590 = vld [vmem:[%s1 + $0x220] sm:$0xf]
      %v591 = vld [vmem:[%s1 + $0x224] sm:$0xf]
      %v592 = vld [vmem:[%s1 + $0x228] sm:$0xf]
      %v593 = vld [vmem:[%s1 + $0x22c] sm:$0xf]
      %v594 = vld [vmem:[%s1 + $0x230] sm:$0xf]
      %v595 = vld [vmem:[%s1 + $0x234] sm:$0xf]
      %v596 = vld [vmem:[%s1 + $0x238] sm:$0xf]
      %v597 = vld [vmem:[%s1 + $0x23c] sm:$0xf]
      %v598 = vld [vmem:[%s2] sm:$0x1]
      %v600 = vlaneseq
      %v601 = vshrl.u32 %v600, 7
      %v602 = vsub.s32 0, %v601
      %v603 = vrot.slane %v598, %v602
      %v625 = vunpack.c.l.b16 %v434
      %v626 = vunpack.c.h.b16 %v434
      %v627 = vunpack.c.l.b16 %v435
      %v628 = vunpack.c.h.b16 %v435
      %v629 = vunpack.c.l.b16 %v436
      %v630 = vunpack.c.h.b16 %v436
      %v631 = vunpack.c.l.b16 %v437
      %v632 = vunpack.c.h.b16 %v437
      %v633 = vunpack.c.l.b16 %v438
      %v634 = vunpack.c.l.b16 %v439
      %v635 = vunpack.c.h.b16 %v439
      %v636 = vunpack.c.l.b16 %v440
      %v637 = vunpack.c.h.b16 %v440
      %v638 = vunpack.c.l.b16 %v441
      %v639 = vunpack.c.h.b16 %v441
      %v640 = vunpack.c.l.b16 %v442
      %v641 = vunpack.c.h.b16 %v442
      %v642 = vunpack.c.l.b16 %v443
      %v643 = vunpack.c.l.b16 %v444
      %v644 = vunpack.c.h.b16 %v444
      %v645 = vunpack.c.l.b16 %v445
      %v646 = vunpack.c.h.b16 %v445
      %v647 = vunpack.c.l.b16 %v446
      %v648 = vunpack.c.h.b16 %v446
      %v649 = vunpack.c.l.b16 %v447
      %v650 = vunpack.c.h.b16 %v447
      %v651 = vunpack.c.l.b16 %v448
      %v652 = vunpack.c.l.b16 %v449
      %v653 = vunpack.c.h.b16 %v449
      %v654 = vunpack.c.l.b16 %v450
      %v655 = vunpack.c.h.b16 %v450
      %v656 = vunpack.c.l.b16 %v451
      %v657 = vunpack.c.h.b16 %v451
      %v658 = vunpack.c.l.b16 %v452
      %v659 = vunpack.c.h.b16 %v452
      %v660 = vunpack.c.l.b16 %v453
      %v661 = vpack.c.b16 %v634, %v625
      %v662 = vpack.c.b16 %v635, %v626
      %v663 = vpack.c.b16 %v636, %v627
      %v664 = vpack.c.b16 %v637, %v628
      %v665 = vpack.c.b16 %v638, %v629
      %v666 = vpack.c.b16 %v639, %v630
      %v667 = vpack.c.b16 %v640, %v631
      %v668 = vpack.c.b16 %v641, %v632
      %v669 = vpack.c.b16 %v642, %v633
      %v670 = vpack.c.b16 %v652, %v643
      %v671 = vpack.c.b16 %v653, %v644
      %v672 = vpack.c.b16 %v654, %v645
      %v673 = vpack.c.b16 %v655, %v646
      %v674 = vpack.c.b16 %v656, %v647
      %v675 = vpack.c.b16 %v657, %v648
      %v676 = vpack.c.b16 %v658, %v649
      %v677 = vpack.c.b16 %v659, %v650
      %v678 = vpack.c.b16 %v660, %v651
      %v841 = vunpack.c.l.b16 %v454
      %v842 = vunpack.c.l.b16 %v455
      %v843 = vunpack.c.l.b16 %v456
      %v844 = vunpack.c.l.b16 %v457
      %v845 = vunpack.c.l.b16 %v458
      %v846 = vunpack.c.l.b16 %v459
      %v847 = vunpack.c.l.b16 %v460
      %v848 = vunpack.c.l.b16 %v461
      %v849 = vunpack.c.l.b16 %v462
      %v850 = vunpack.c.l.b16 %v463
      %v851 = vunpack.c.l.b16 %v464
      %v852 = vunpack.c.l.b16 %v465
      %v853 = vunpack.c.l.b16 %v466
      %v854 = vunpack.c.l.b16 %v467
      %v855 = vunpack.c.l.b16 %v468
      %v856 = vunpack.c.l.b16 %v469
      %v857 = vunpack.c.l.b16 %v470
      %v858 = vunpack.c.l.b16 %v471
      %v859 = vunpack.c.l.b16 %v472
      %v860 = vunpack.c.l.b16 %v473
      %v861 = vunpack.c.l.b16 %v474
      %v862 = vunpack.c.l.b16 %v475
      %v863 = vunpack.c.l.b16 %v476
      %v864 = vunpack.c.l.b16 %v477
      %v865 = vunpack.c.l.b16 %v478
      %v866 = vunpack.c.l.b16 %v479
      %v867 = vunpack.c.l.b16 %v480
      %v868 = vunpack.c.l.b16 %v481
      %v869 = vunpack.c.l.b16 %v482
      %v870 = vunpack.c.l.b16 %v483
      %v871 = vunpack.c.l.b16 %v484
      %v872 = vunpack.c.l.b16 %v485
      %v873 = vunpack.c.l.b16 %v486
      %v874 = vunpack.c.l.b16 %v487
      %v875 = vunpack.c.l.b16 %v488
      %v876 = vunpack.c.l.b16 %v489
      %v877 = vunpack.c.l.b16 %v490
      %v878 = vunpack.c.l.b16 %v491
      %v879 = vunpack.c.l.b16 %v492
      %v880 = vunpack.c.l.b16 %v493
      %v881 = vunpack.c.l.b16 %v494
      %v882 = vunpack.c.l.b16 %v495
      %v883 = vunpack.c.l.b16 %v496
      %v884 = vunpack.c.l.b16 %v497
      %v885 = vunpack.c.l.b16 %v498
      %v886 = vunpack.c.l.b16 %v499
      %v887 = vunpack.c.l.b16 %v500
      %v888 = vunpack.c.l.b16 %v501
      %v889 = vunpack.c.l.b16 %v502
      %v890 = vunpack.c.l.b16 %v503
      %v891 = vunpack.c.l.b16 %v504
      %v892 = vunpack.c.l.b16 %v505
      %v893 = vunpack.c.l.b16 %v506
      %v894 = vunpack.c.l.b16 %v507
      %v895 = vunpack.c.l.b16 %v508
      %v896 = vunpack.c.l.b16 %v509
      %v897 = vunpack.c.l.b16 %v510
      %v898 = vunpack.c.l.b16 %v511
      %v899 = vunpack.c.l.b16 %v512
      %v900 = vunpack.c.l.b16 %v513
      %v901 = vunpack.c.l.b16 %v514
      %v902 = vunpack.c.l.b16 %v515
      %v903 = vunpack.c.l.b16 %v516
      %v904 = vunpack.c.l.b16 %v517
      %v905 = vunpack.c.l.b16 %v518
      %v906 = vunpack.c.l.b16 %v519
      %v907 = vunpack.c.l.b16 %v520
      %v908 = vunpack.c.l.b16 %v521
      %v909 = vunpack.c.l.b16 %v522
      %v910 = vunpack.c.l.b16 %v523
      %v911 = vunpack.c.l.b16 %v524
      %v912 = vunpack.c.l.b16 %v525
      %v913 = vunpack.c.l.b16 %v526
      %v914 = vunpack.c.l.b16 %v527
      %v915 = vunpack.c.l.b16 %v528
      %v916 = vunpack.c.l.b16 %v529
      %v917 = vunpack.c.l.b16 %v530
      %v918 = vunpack.c.l.b16 %v531
      %v919 = vunpack.c.l.b16 %v532
      %v920 = vunpack.c.l.b16 %v533
      %v921 = vunpack.c.l.b16 %v534
      %v922 = vunpack.c.l.b16 %v535
      %v923 = vunpack.c.l.b16 %v536
      %v924 = vunpack.c.l.b16 %v537
      %v925 = vunpack.c.l.b16 %v538
      %v926 = vunpack.c.l.b16 %v539
      %v927 = vunpack.c.l.b16 %v540
      %v928 = vunpack.c.l.b16 %v541
      %v929 = vunpack.c.l.b16 %v542
      %v930 = vunpack.c.l.b16 %v543
      %v931 = vunpack.c.l.b16 %v544
      %v932 = vunpack.c.l.b16 %v545
      %v933 = vunpack.c.l.b16 %v546
      %v934 = vunpack.c.l.b16 %v547
      %v935 = vunpack.c.l.b16 %v548
      %v936 = vunpack.c.l.b16 %v549
      %v937 = vunpack.c.l.b16 %v550
      %v938 = vunpack.c.l.b16 %v551
      %v939 = vunpack.c.l.b16 %v552
      %v940 = vunpack.c.l.b16 %v553
      %v941 = vunpack.c.l.b16 %v554
      %v942 = vunpack.c.l.b16 %v555
      %v943 = vunpack.c.l.b16 %v556
      %v944 = vunpack.c.l.b16 %v557
      %v945 = vunpack.c.l.b16 %v558
      %v946 = vunpack.c.l.b16 %v559
      %v947 = vunpack.c.l.b16 %v560
      %v948 = vunpack.c.l.b16 %v561
      %v949 = vunpack.c.l.b16 %v562
      %v950 = vunpack.c.l.b16 %v563
      %v951 = vunpack.c.l.b16 %v564
      %v952 = vunpack.c.l.b16 %v565
      %v953 = vunpack.c.l.b16 %v566
      %v954 = vunpack.c.l.b16 %v567
      %v955 = vunpack.c.l.b16 %v568
      %v956 = vunpack.c.l.b16 %v569
      %v957 = vunpack.c.l.b16 %v570
      %v958 = vunpack.c.l.b16 %v571
      %v959 = vunpack.c.l.b16 %v572
      %v960 = vunpack.c.l.b16 %v573
      %v961 = vunpack.c.l.b16 %v574
      %v962 = vunpack.c.l.b16 %v575
      %v963 = vunpack.c.l.b16 %v576
      %v964 = vunpack.c.l.b16 %v577
      %v965 = vunpack.c.l.b16 %v578
      %v966 = vunpack.c.l.b16 %v579
      %v967 = vunpack.c.l.b16 %v580
      %v968 = vunpack.c.l.b16 %v581
      %v969 = vunpack.c.l.b16 %v582
      %v970 = vunpack.c.l.b16 %v583
      %v971 = vunpack.c.l.b16 %v584
      %v972 = vunpack.c.l.b16 %v585
      %v973 = vunpack.c.l.b16 %v586
      %v974 = vunpack.c.l.b16 %v587
      %v975 = vunpack.c.l.b16 %v588
      %v976 = vunpack.c.l.b16 %v589
      %v977 = vunpack.c.l.b16 %v590
      %v978 = vunpack.c.l.b16 %v591
      %v979 = vunpack.c.l.b16 %v592
      %v980 = vunpack.c.l.b16 %v593
      %v981 = vunpack.c.l.b16 %v594
      %v982 = vunpack.c.l.b16 %v595
      %v983 = vunpack.c.l.b16 %v596
      %v984 = vunpack.c.l.b16 %v597
      %v985 = vpack.c.b16 %v842, %v841
      %v986 = vpack.c.b16 %v844, %v843
      %v987 = vpack.c.b16 %v846, %v845
      %v988 = vpack.c.b16 %v848, %v847
      %v989 = vpack.c.b16 %v850, %v849
      %v990 = vpack.c.b16 %v852, %v851
      %v991 = vpack.c.b16 %v854, %v853
      %v992 = vpack.c.b16 %v856, %v855
      %v993 = vpack.c.b16 %v858, %v857
      %v994 = vpack.c.b16 %v860, %v859
      %v995 = vpack.c.b16 %v862, %v861
      %v996 = vpack.c.b16 %v864, %v863
      %v997 = vpack.c.b16 %v866, %v865
      %v998 = vpack.c.b16 %v868, %v867
      %v999 = vpack.c.b16 %v870, %v869
      %v1000 = vpack.c.b16 %v872, %v871
      %v1001 = vpack.c.b16 %v874, %v873
      %v1002 = vpack.c.b16 %v876, %v875
      %v1003 = vpack.c.b16 %v878, %v877
      %v1004 = vpack.c.b16 %v880, %v879
      %v1005 = vpack.c.b16 %v882, %v881
      %v1006 = vpack.c.b16 %v884, %v883
      %v1007 = vpack.c.b16 %v886, %v885
      %v1008 = vpack.c.b16 %v888, %v887
      %v1009 = vpack.c.b16 %v890, %v889
      %v1010 = vpack.c.b16 %v892, %v891
      %v1011 = vpack.c.b16 %v894, %v893
      %v1012 = vpack.c.b16 %v896, %v895
      %v1013 = vpack.c.b16 %v898, %v897
      %v1014 = vpack.c.b16 %v900, %v899
      %v1015 = vpack.c.b16 %v902, %v901
      %v1016 = vpack.c.b16 %v904, %v903
      %v1017 = vpack.c.b16 %v906, %v905
      %v1018 = vpack.c.b16 %v908, %v907
      %v1019 = vpack.c.b16 %v910, %v909
      %v1020 = vpack.c.b16 %v912, %v911
      %v1021 = vpack.c.b16 %v914, %v913
      %v1022 = vpack.c.b16 %v916, %v915
      %v1023 = vpack.c.b16 %v918, %v917
      %v1024 = vpack.c.b16 %v920, %v919
      %v1025 = vpack.c.b16 %v922, %v921
      %v1026 = vpack.c.b16 %v924, %v923
      %v1027 = vpack.c.b16 %v926, %v925
      %v1028 = vpack.c.b16 %v928, %v927
      %v1029 = vpack.c.b16 %v930, %v929
      %v1030 = vpack.c.b16 %v932, %v931
      %v1031 = vpack.c.b16 %v934, %v933
      %v1032 = vpack.c.b16 %v936, %v935
      %v1033 = vpack.c.b16 %v938, %v937
      %v1034 = vpack.c.b16 %v940, %v939
      %v1035 = vpack.c.b16 %v942, %v941
      %v1036 = vpack.c.b16 %v944, %v943
      %v1037 = vpack.c.b16 %v946, %v945
      %v1038 = vpack.c.b16 %v948, %v947
      %v1039 = vpack.c.b16 %v950, %v949
      %v1040 = vpack.c.b16 %v952, %v951
      %v1041 = vpack.c.b16 %v954, %v953
      %v1042 = vpack.c.b16 %v956, %v955
      %v1043 = vpack.c.b16 %v958, %v957
      %v1044 = vpack.c.b16 %v960, %v959
      %v1045 = vpack.c.b16 %v962, %v961
      %v1046 = vpack.c.b16 %v964, %v963
      %v1047 = vpack.c.b16 %v966, %v965
      %v1048 = vpack.c.b16 %v968, %v967
      %v1049 = vpack.c.b16 %v970, %v969
      %v1050 = vpack.c.b16 %v972, %v971
      %v1051 = vpack.c.b16 %v974, %v973
      %v1052 = vpack.c.b16 %v976, %v975
      %v1053 = vpack.c.b16 %v978, %v977
      %v1054 = vpack.c.b16 %v980, %v979
      %v1055 = vpack.c.b16 %v982, %v981
      %v1056 = vpack.c.b16 %v984, %v983
      %1129 = vmatprep.subr.bf16.mxu0 0
      %1130 = vmatpush1.bf16.msra.mxu0 %v985
      %1131 = vmatprep.subr.bf16.mxu0 0
      %1132 = vmatpush1.bf16.msra.mxu0 %v986
      %1133 = vmatprep.subr.bf16.mxu0 0
      %1134 = vmatpush1.bf16.msra.mxu0 %v987
      %1135 = vmatprep.subr.bf16.mxu0 0
      %1136 = vmatpush1.bf16.msra.mxu0 %v988
      %1137 = vmatprep.subr.bf16.mxu0 0
      %1138 = vmatpush1.bf16.msra.mxu0 %v989
      %1139 = vmatprep.subr.bf16.mxu0 0
      %1140 = vmatpush1.bf16.msra.mxu0 %v990
      %1141 = vmatprep.subr.bf16.mxu0 0
      %1142 = vmatpush1.bf16.msra.mxu0 %v991
      %1143 = vmatprep.subr.bf16.mxu0 0
      %1144 = vmatpush1.bf16.msra.mxu0 %v992
      %1145 = vmatprep.subr.bf16.mxu0 0
      %1146 = vmatpush1.bf16.msra.mxu0 %v993
      %1147 = vmatprep.subr.bf16.mxu0 0
      %1148 = vmatpush1.bf16.msra.mxu0 %v994
      %1149 = vmatprep.subr.bf16.mxu0 0
      %1150 = vmatpush1.bf16.msra.mxu0 %v995
      %1151 = vmatprep.subr.bf16.mxu0 0
      %1152 = vmatpush1.bf16.msra.mxu0 %v996
      %1153 = vmatprep.subr.bf16.mxu0 0
      %1154 = vmatpush1.bf16.msra.mxu0 %v997
      %1155 = vmatprep.subr.bf16.mxu0 0
      %1156 = vmatpush1.bf16.msra.mxu0 %v998
      %1157 = vmatprep.subr.bf16.mxu0 0
      %1158 = vmatpush1.bf16.msra.mxu0 %v999
      %1159 = vmatprep.subr.bf16.mxu0 0
      %1160 = vmatpush1.bf16.msra.mxu0 %v1000
      %1161 = vmatprep.mubr.bf16.mxu0 %v662
      %1162 = vmatmul.mubr.bf16.gmra.mrb[0].mxu0 %v661
      %v1163 = vpop.f32.mrb[0].mxu0
      %v1164 = vadd.f32 %v603, %v1163
      %v1165 = vpop.f32.mrb[0].mxu0
      %v1166 = vpop.f32.mrb[0].mxu0
      %v1167 = vadd.f32 %v603, %v1166
      %v1168 = vpop.f32.mrb[0].mxu0
      %1169 = vmatprep.mubr.bf16.mxu0 %v671
      %1170 = vmatmul.mubr.bf16.gmra.mrb[0].mxu0 %v670
      %v1171 = vpop.f32.mrb[0].mxu0
      %v1172 = vadd.f32 %v603, %v1171
      %v1173 = vpop.f32.mrb[0].mxu0
      %v1174 = vpop.f32.mrb[0].mxu0
      %v1175 = vadd.f32 %v603, %v1174
      %v1176 = vpop.f32.mrb[0].mxu0
      %1177 = vdwg.mxu0
      %1178 = vmatprep.subr.bf16.mxu0 0
      %1179 = vmatpush1.bf16.msra.mxu0 %v1001
      %1180 = vmatprep.subr.bf16.mxu0 0
      %1181 = vmatpush1.bf16.msra.mxu0 %v1002
      %1182 = vmatprep.subr.bf16.mxu0 0
      %1183 = vmatpush1.bf16.msra.mxu0 %v1003
      %1184 = vmatprep.subr.bf16.mxu0 0
      %1185 = vmatpush1.bf16.msra.mxu0 %v1004
      %1186 = vmatprep.subr.bf16.mxu0 0
      %1187 = vmatpush1.bf16.msra.mxu0 %v1005
      %1188 = vmatprep.subr.bf16.mxu0 0
      %1189 = vmatpush1.bf16.msra.mxu0 %v1006
      %1190 = vmatprep.subr.bf16.mxu0 0
      %1191 = vmatpush1.bf16.msra.mxu0 %v1007
      %1192 = vmatprep.subr.bf16.mxu0 0
      %1193 = vmatpush1.bf16.msra.mxu0 %v1008
      %1194 = vmatprep.subr.bf16.mxu0 0
      %1195 = vmatpush1.bf16.msra.mxu0 %v1009
      %1196 = vmatprep.subr.bf16.mxu0 0
      %1197 = vmatpush1.bf16.msra.mxu0 %v1010
      %1198 = vmatprep.subr.bf16.mxu0 0
      %1199 = vmatpush1.bf16.msra.mxu0 %v1011
      %1200 = vmatprep.subr.bf16.mxu0 0
      %1201 = vmatpush1.bf16.msra.mxu0 %v1012
      %1202 = vmatprep.subr.bf16.mxu0 0
      %1203 = vmatpush1.bf16.msra.mxu0 %v1013
      %1204 = vmatprep.subr.bf16.mxu0 0
      %1205 = vmatpush1.bf16.msra.mxu0 %v1014
      %1206 = vmatprep.subr.bf16.mxu0 0
      %1207 = vmatpush1.bf16.msra.mxu0 %v1015
      %1208 = vmatprep.subr.bf16.mxu0 0
      %1209 = vmatpush1.bf16.msra.mxu0 %v1016
      %1210 = vmatprep.mubr.bf16.mxu0 %v664
      %1211 = vmatmul.mubr.bf16.gmra.mrb[0].mxu0 %v663
      %v1212 = vpop.f32.mrb[0].mxu0
      %v1213 = vadd.f32 %v1164, %v1212
      %v1214 = vpop.f32.mrb[0].mxu0
      %v1215 = vpop.f32.mrb[0].mxu0
      %v1216 = vadd.f32 %v1167, %v1215
      %v1217 = vpop.f32.mrb[0].mxu0
      %1218 = vmatprep.mubr.bf16.mxu0 %v673
      %1219 = vmatmul.mubr.bf16.gmra.mrb[0].mxu0 %v672
      %v1220 = vpop.f32.mrb[0].mxu0
      %v1221 = vadd.f32 %v1172, %v1220
      %v1222 = vpop.f32.mrb[0].mxu0
      %v1223 = vpop.f32.mrb[0].mxu0
      %v1224 = vadd.f32 %v1175, %v1223
      %v1225 = vpop.f32.mrb[0].mxu0
      %1226 = vdwg.mxu0
      %1227 = vmatprep.subr.bf16.mxu0 0
      %1228 = vmatpush1.bf16.msra.mxu0 %v1017
      %1229 = vmatprep.subr.bf16.mxu0 0
      %1230 = vmatpush1.bf16.msra.mxu0 %v1018
      %1231 = vmatprep.subr.bf16.mxu0 0
      %1232 = vmatpush1.bf16.msra.mxu0 %v1019
      %1233 = vmatprep.subr.bf16.mxu0 0
      %1234 = vmatpush1.bf16.msra.mxu0 %v1020
      %1235 = vmatprep.subr.bf16.mxu0 0
      %1236 = vmatpush1.bf16.msra.mxu0 %v1021
      %1237 = vmatprep.subr.bf16.mxu0 0
      %1238 = vmatpush1.bf16.msra.mxu0 %v1022
      %1239 = vmatprep.subr.bf16.mxu0 0
      %1240 = vmatpush1.bf16.msra.mxu0 %v1023
      %1241 = vmatprep.subr.bf16.mxu0 0
      %1242 = vmatpush1.bf16.msra.mxu0 %v1024
      %1243 = vmatprep.subr.bf16.mxu0 0
      %1244 = vmatpush1.bf16.msra.mxu0 %v1025
      %1245 = vmatprep.subr.bf16.mxu0 0
      %1246 = vmatpush1.bf16.msra.mxu0 %v1026
      %1247 = vmatprep.subr.bf16.mxu0 0
      %1248 = vmatpush1.bf16.msra.mxu0 %v1027
      %1249 = vmatprep.subr.bf16.mxu0 0
      %1250 = vmatpush1.bf16.msra.mxu0 %v1028
      %1251 = vmatprep.subr.bf16.mxu0 0
      %1252 = vmatpush1.bf16.msra.mxu0 %v1029
      %1253 = vmatprep.subr.bf16.mxu0 0
      %1254 = vmatpush1.bf16.msra.mxu0 %v1030
      %1255 = vmatprep.subr.bf16.mxu0 0
      %1256 = vmatpush1.bf16.msra.mxu0 %v1031
      %1257 = vmatprep.subr.bf16.mxu0 0
      %1258 = vmatpush1.bf16.msra.mxu0 %v1032
      %1259 = vmatprep.mubr.bf16.mxu0 %v666
      %1260 = vmatmul.mubr.bf16.gmra.mrb[0].mxu0 %v665
      %v1261 = vpop.f32.mrb[0].mxu0
      %v1262 = vadd.f32 %v1213, %v1261
      %v1263 = vpop.f32.mrb[0].mxu0
      %v1264 = vpop.f32.mrb[0].mxu0
      %v1265 = vadd.f32 %v1216, %v1264
      %v1266 = vpop.f32.mrb[0].mxu0
      %1267 = vmatprep.mubr.bf16.mxu0 %v675
      %1268 = vmatmul.mubr.bf16.gmra.mrb[0].mxu0 %v674
      %v1269 = vpop.f32.mrb[0].mxu0
      %v1270 = vadd.f32 %v1221, %v1269
      %v1271 = vpop.f32.mrb[0].mxu0
      %v1272 = vpop.f32.mrb[0].mxu0
      %v1273 = vadd.f32 %v1224, %v1272
      %v1274 = vpop.f32.mrb[0].mxu0
      %1275 = vdwg.mxu0
      %1276 = vmatprep.subr.bf16.mxu0 0
      %1277 = vmatpush1.bf16.msra.mxu0 %v1033
      %1278 = vmatprep.subr.bf16.mxu0 0
      %1279 = vmatpush1.bf16.msra.mxu0 %v1034
      %1280 = vmatprep.subr.bf16.mxu0 0
      %1281 = vmatpush1.bf16.msra.mxu0 %v1035
      %1282 = vmatprep.subr.bf16.mxu0 0
      %1283 = vmatpush1.bf16.msra.mxu0 %v1036
      %1284 = vmatprep.subr.bf16.mxu0 0
      %1285 = vmatpush1.bf16.msra.mxu0 %v1037
      %1286 = vmatprep.subr.bf16.mxu0 0
      %1287 = vmatpush1.bf16.msra.mxu0 %v1038
      %1288 = vmatprep.subr.bf16.mxu0 0
      %1289 = vmatpush1.bf16.msra.mxu0 %v1039
      %1290 = vmatprep.subr.bf16.mxu0 0
      %1291 = vmatpush1.bf16.msra.mxu0 %v1040
      %1292 = vmatprep.subr.bf16.mxu0 0
      %1293 = vmatpush1.bf16.msra.mxu0 %v1041
      %1294 = vmatprep.subr.bf16.mxu0 0
      %1295 = vmatpush1.bf16.msra.mxu0 %v1042
      %1296 = vmatprep.subr.bf16.mxu0 0
      %1297 = vmatpush1.bf16.msra.mxu0 %v1043
      %1298 = vmatprep.subr.bf16.mxu0 0
      %1299 = vmatpush1.bf16.msra.mxu0 %v1044
      %1300 = vmatprep.subr.bf16.mxu0 0
      %1301 = vmatpush1.bf16.msra.mxu0 %v1045
      %1302 = vmatprep.subr.bf16.mxu0 0
      %1303 = vmatpush1.bf16.msra.mxu0 %v1046
      %1304 = vmatprep.subr.bf16.mxu0 0
      %1305 = vmatpush1.bf16.msra.mxu0 %v1047
      %1306 = vmatprep.subr.bf16.mxu0 0
      %1307 = vmatpush1.bf16.msra.mxu0 %v1048
      %1308 = vmatprep.mubr.bf16.mxu0 %v668
      %1309 = vmatmul.mubr.bf16.gmra.mrb[0].mxu0 %v667
      %v1310 = vpop.f32.mrb[0].mxu0
      %v1311 = vadd.f32 %v1262, %v1310
      %v1312 = vpop.f32.mrb[0].mxu0
      %v1313 = vpop.f32.mrb[0].mxu0
      %v1314 = vadd.f32 %v1265, %v1313
      %v1315 = vpop.f32.mrb[0].mxu0
      %1316 = vmatprep.mubr.bf16.mxu0 %v677
      %1317 = vmatmul.mubr.bf16.gmra.mrb[0].mxu0 %v676
      %v1318 = vpop.f32.mrb[0].mxu0
      %v1319 = vadd.f32 %v1270, %v1318
      %v1320 = vpop.f32.mrb[0].mxu0
      %v1321 = vpop.f32.mrb[0].mxu0
      %v1322 = vadd.f32 %v1273, %v1321
      %v1323 = vpop.f32.mrb[0].mxu0
      %1324 = vdwg.mxu0
      %1325 = vmatprep.subr.bf16.mxu0 0
      %1326 = vmatpush1.bf16.msra.mxu0 %v1049
      %1327 = vmatprep.subr.bf16.mxu0 0
      %1328 = vmatpush1.bf16.msra.mxu0 %v1050
      %1329 = vmatprep.subr.bf16.mxu0 0
      %1330 = vmatpush1.bf16.msra.mxu0 %v1051
      %1331 = vmatprep.subr.bf16.mxu0 0
      %1332 = vmatpush1.bf16.msra.mxu0 %v1052
      %1333 = vmatprep.subr.bf16.mxu0 0
      %1334 = vmatpush1.bf16.msra.mxu0 %v1053
      %1335 = vmatprep.subr.bf16.mxu0 0
      %1336 = vmatpush1.bf16.msra.mxu0 %v1054
      %1337 = vmatprep.subr.bf16.mxu0 0
      %1338 = vmatpush1.bf16.msra.mxu0 %v1055
      %1339 = vmatprep.subr.bf16.mxu0 0
      %1340 = vmatpush1.bf16.msra.mxu0 %v1056
      %1341 = vmatprep.subr.bf16.mxu0 0
      %1342 = vmatpush1.bf16.msra.mxu0 0
      %1343 = vmatprep.subr.bf16.mxu0 0
      %1344 = vmatpush1.bf16.msra.mxu0 0
      %1345 = vmatprep.subr.bf16.mxu0 0
      %1346 = vmatpush1.bf16.msra.mxu0 0
      %1347 = vmatprep.subr.bf16.mxu0 0
      %1348 = vmatpush1.bf16.msra.mxu0 0
      %1349 = vmatprep.subr.bf16.mxu0 0
      %1350 = vmatpush1.bf16.msra.mxu0 0
      %1351 = vmatprep.subr.bf16.mxu0 0
      %1352 = vmatpush1.bf16.msra.mxu0 0
      %1353 = vmatprep.subr.bf16.mxu0 0
      %1354 = vmatpush1.bf16.msra.mxu0 0
      %1355 = vmatprep.subr.bf16.mxu0 0
      %1356 = vmatpush1.bf16.msra.mxu0 0
      %1357 = vmatprep.mubr.bf16.mxu0 0
      %1358 = vmatmul.mubr.bf16.gmra.mrb[0].mxu0 %v669
      %v1359 = vpop.f32.mrb[0].mxu0
      %v1360 = vadd.f32 %v1311, %v1359
      %v1361 = vpop.f32.mrb[0].mxu0
      %v1362 = vpop.f32.mrb[0].mxu0
      %v1363 = vadd.f32 %v1314, %v1362
      %v1364 = vpop.f32.mrb[0].mxu0
      %1365 = vmatprep.mubr.bf16.mxu0 0
      %1366 = vmatmul.mubr.bf16.gmra.mrb[0].mxu0 %v678
      %v1367 = vpop.f32.mrb[0].mxu0
      %v1368 = vadd.f32 %v1319, %v1367
      %v1369 = vpop.f32.mrb[0].mxu0
      %v1370 = vpop.f32.mrb[0].mxu0
      %v1371 = vadd.f32 %v1322, %v1370
      %v1372 = vpop.f32.mrb[0].mxu0
      %1373 = vdwg.mxu0
      %v1374 = vmax.f32 %v1360, 0.0
      %v1375 = vmax.f32 %v1363, 0.0
      %v1376 = vmax.f32 %v1368, 0.0
      %v1377 = vmax.f32 %v1371, 0.0
      %v1378 = vpack.c.bf16 %v1375, %v1374
      %v1379 = vpack.c.bf16 %v1377, %v1376
      %v1380 = vld [vmem:[%s3] sm:$0xff]
      %v1381 = vld [vmem:[%s3 + $0x8] sm:$0xff]
      %v1382 = vld [vmem:[%s3 + $0x10] sm:$0xff]
      %v1383 = vld [vmem:[%s3 + $0x18] sm:$0xff]
      %v1384 = vld [vmem:[%s3 + $0x20] sm:$0xff]
      %v1385 = vld [vmem:[%s3 + $0x28] sm:$0xff]
      %v1386 = vld [vmem:[%s3 + $0x30] sm:$0xff]
      %v1387 = vld [vmem:[%s3 + $0x38] sm:$0xff]
      %v1388 = vld [vmem:[%s3 + $0x40] sm:$0xff]
      %v1389 = vld [vmem:[%s3 + $0x48] sm:$0xff]
      %v1390 = vld [vmem:[%s3 + $0x50] sm:$0xff]
      %v1391 = vld [vmem:[%s3 + $0x58] sm:$0xff]
      %v1392 = vld [vmem:[%s3 + $0x60] sm:$0xff]
      %v1393 = vld [vmem:[%s3 + $0x68] sm:$0xff]
      %v1394 = vld [vmem:[%s3 + $0x70] sm:$0xff]
      %v1395 = vld [vmem:[%s3 + $0x78] sm:$0xff]
      %v1396 = vld [vmem:[%s4] sm:$0x3]
      %v1398 = vlaneseq
      %v1399 = vshrl.u32 %v1398, 7
      %v1400 = vsub.s32 0, %v1399
      %v1401 = vrot.slane %v1396, %v1400
      %v1402 = vlaneseq
      %v1403 = vshrl.u32 %v1402, 7
      %v1404 = vsub.s32 1, %v1403
      %v1405 = vrot.slane %v1396, %v1404
      %v1424 = vunpack.c.l.b16 %v1380
      %v1425 = vunpack.c.h.b16 %v1380
      %v1426 = vunpack.c.l.b16 %v1381
      %v1427 = vunpack.c.h.b16 %v1381
      %v1428 = vunpack.c.l.b16 %v1382
      %v1429 = vunpack.c.h.b16 %v1382
      %v1430 = vunpack.c.l.b16 %v1383
      %v1431 = vunpack.c.h.b16 %v1383
      %v1432 = vunpack.c.l.b16 %v1384
      %v1433 = vunpack.c.h.b16 %v1384
      %v1434 = vunpack.c.l.b16 %v1385
      %v1435 = vunpack.c.h.b16 %v1385
      %v1436 = vunpack.c.l.b16 %v1386
      %v1437 = vunpack.c.h.b16 %v1386
      %v1438 = vunpack.c.l.b16 %v1387
      %v1439 = vunpack.c.h.b16 %v1387
      %v1440 = vunpack.c.l.b16 %v1388
      %v1441 = vunpack.c.h.b16 %v1388
      %v1442 = vunpack.c.l.b16 %v1389
      %v1443 = vunpack.c.h.b16 %v1389
      %v1444 = vunpack.c.l.b16 %v1390
      %v1445 = vunpack.c.h.b16 %v1390
      %v1446 = vunpack.c.l.b16 %v1391
      %v1447 = vunpack.c.h.b16 %v1391
      %v1448 = vunpack.c.l.b16 %v1392
      %v1449 = vunpack.c.h.b16 %v1392
      %v1450 = vunpack.c.l.b16 %v1393
      %v1451 = vunpack.c.h.b16 %v1393
      %v1452 = vunpack.c.l.b16 %v1394
      %v1453 = vunpack.c.h.b16 %v1394
      %v1454 = vunpack.c.l.b16 %v1395
      %v1455 = vunpack.c.h.b16 %v1395
      %v1456 = vpack.c.b16 %v1426, %v1424
      %v1457 = vpack.c.b16 %v1427, %v1425
      %v1458 = vpack.c.b16 %v1430, %v1428
      %v1459 = vpack.c.b16 %v1431, %v1429
      %v1460 = vpack.c.b16 %v1434, %v1432
      %v1461 = vpack.c.b16 %v1435, %v1433
      %v1462 = vpack.c.b16 %v1438, %v1436
      %v1463 = vpack.c.b16 %v1439, %v1437
      %v1464 = vpack.c.b16 %v1442, %v1440
      %v1465 = vpack.c.b16 %v1443, %v1441
      %v1466 = vpack.c.b16 %v1446, %v1444
      %v1467 = vpack.c.b16 %v1447, %v1445
      %v1468 = vpack.c.b16 %v1450, %v1448
      %v1469 = vpack.c.b16 %v1451, %v1449
      %v1470 = vpack.c.b16 %v1454, %v1452
      %v1471 = vpack.c.b16 %v1455, %v1453
      %1488 = vmatprep.subr.bf16.mxu0 %v1457
      %1489 = vmatpush1.bf16.msra.mxu0 %v1456
      %1490 = vmatprep.subr.bf16.mxu0 %v1459
      %1491 = vmatpush1.bf16.msra.mxu0 %v1458
      %1492 = vmatprep.subr.bf16.mxu0 %v1461
      %1493 = vmatpush1.bf16.msra.mxu0 %v1460
      %1494 = vmatprep.subr.bf16.mxu0 %v1463
      %1495 = vmatpush1.bf16.msra.mxu0 %v1462
      %1496 = vmatprep.subr.bf16.mxu0 %v1465
      %1497 = vmatpush1.bf16.msra.mxu0 %v1464
      %1498 = vmatprep.subr.bf16.mxu0 %v1467
      %1499 = vmatpush1.bf16.msra.mxu0 %v1466
      %1500 = vmatprep.subr.bf16.mxu0 %v1469
      %1501 = vmatpush1.bf16.msra.mxu0 %v1468
      %1502 = vmatprep.subr.bf16.mxu0 %v1471
      %1503 = vmatpush1.bf16.msra.mxu0 %v1470
      %1504 = vmatprep.subr.bf16.mxu0 0
      %1505 = vmatpush1.bf16.msra.mxu0 0
      %1506 = vmatprep.subr.bf16.mxu0 0
      %1507 = vmatpush1.bf16.msra.mxu0 0
      %1508 = vmatprep.subr.bf16.mxu0 0
      %1509 = vmatpush1.bf16.msra.mxu0 0
      %1510 = vmatprep.subr.bf16.mxu0 0
      %1511 = vmatpush1.bf16.msra.mxu0 0
      %1512 = vmatprep.subr.bf16.mxu0 0
      %1513 = vmatpush1.bf16.msra.mxu0 0
      %1514 = vmatprep.subr.bf16.mxu0 0
      %1515 = vmatpush1.bf16.msra.mxu0 0
      %1516 = vmatprep.subr.bf16.mxu0 0
      %1517 = vmatpush1.bf16.msra.mxu0 0
      %1518 = vmatprep.subr.bf16.mxu0 0
      %1519 = vmatpush1.bf16.msra.mxu0 0
      %1520 = vmatprep.mubr.bf16.mxu0 0
      %1521 = vmatmul.mubr.bf16.gmra.mrb[0].mxu0 %v1378
      %v1522 = vpop.f32.mrb[0].mxu0
      %v1523 = vadd.f32 %v1401, %v1522
      %v1524 = vpop.f32.mrb[0].mxu0
      %v1525 = vadd.f32 %v1405, %v1524
      %v1526 = vpop.f32.mrb[0].mxu0
      %v1527 = vadd.f32 %v1401, %v1526
      %v1528 = vpop.f32.mrb[0].mxu0
      %v1529 = vadd.f32 %v1405, %v1528
      %1530 = vmatprep.mubr.bf16.mxu0 0
      %1531 = vmatmul.mubr.bf16.gmra.mrb[0].mxu0 %v1379
      %v1532 = vpop.f32.mrb[0].mxu0
      %v1533 = vadd.f32 %v1401, %v1532
      %v1534 = vpop.f32.mrb[0].mxu0
      %v1535 = vadd.f32 %v1405, %v1534
      %v1536 = vpop.f32.mrb[0].mxu0
      %v1537 = vadd.f32 %v1401, %v1536
      %v1538 = vpop.f32.mrb[0].mxu0
      %v1539 = vadd.f32 %v1405, %v1538
      %1540 = vdwg.mxu0
      %v1541 = vld [vmem:[%s417] sm:$0xf]
      %v1542 = vld [vmem:[%s417 + $0x4] sm:$0xf]
      %v1543 = vld [vmem:[%s417 + $0x8] sm:$0xf]
      %v1544 = vld [vmem:[%s417 + $0xc] sm:$0xf]
      %v1545 = vld [vmem:[%s6] sm:$0xff]
      %v1546 = vld [vmem:[%s6 + $0x8] sm:$0xff]
      %v1547 = vld [vmem:[%s6 + $0x10] sm:$0xff]
      %v1548 = vld [vmem:[%s6 + $0x18] sm:$0xff]
      %v1549 = vld [vmem:[%s6 + $0x20] sm:$0xff]
      %v1550 = vld [vmem:[%s6 + $0x28] sm:$0xff]
      %v1551 = vld [vmem:[%s6 + $0x30] sm:$0xff]
      %v1552 = vld [vmem:[%s6 + $0x38] sm:$0xff]
      %v1553 = vld [vmem:[%s6 + $0x40] sm:$0xff]
      %v1554 = vld [vmem:[%s6 + $0x48] sm:$0xff]
      %v1555 = vld [vmem:[%s6 + $0x50] sm:$0xff]
      %v1556 = vld [vmem:[%s6 + $0x58] sm:$0xff]
      %v1557 = vld [vmem:[%s6 + $0x60] sm:$0xff]
      %v1558 = vld [vmem:[%s6 + $0x68] sm:$0xff]
      %v1559 = vld [vmem:[%s6 + $0x70] sm:$0xff]
      %v1560 = vld [vmem:[%s6 + $0x78] sm:$0xff]
      %v1565 = vunpack.c.l.b16 %v1541
      %v1566 = vunpack.c.l.b16 %v1542
      %v1567 = vunpack.c.l.b16 %v1543
      %v1568 = vunpack.c.l.b16 %v1544
      %v1569 = vpack.c.b16 %v1566, %v1565
      %v1570 = vpack.c.b16 %v1568, %v1567
      %v1589 = vunpack.c.l.b16 %v1545
      %v1590 = vunpack.c.h.b16 %v1545
      %v1591 = vunpack.c.l.b16 %v1546
      %v1592 = vunpack.c.h.b16 %v1546
      %v1593 = vunpack.c.l.b16 %v1547
      %v1594 = vunpack.c.h.b16 %v1547
      %v1595 = vunpack.c.l.b16 %v1548
      %v1596 = vunpack.c.h.b16 %v1548
      %v1597 = vunpack.c.l.b16 %v1549
      %v1598 = vunpack.c.h.b16 %v1549
      %v1599 = vunpack.c.l.b16 %v1550
      %v1600 = vunpack.c.h.b16 %v1550
      %v1601 = vunpack.c.l.b16 %v1551
      %v1602 = vunpack.c.h.b16 %v1551
      %v1603 = vunpack.c.l.b16 %v1552
      %v1604 = vunpack.c.h.b16 %v1552
      %v1605 = vunpack.c.l.b16 %v1553
      %v1606 = vunpack.c.h.b16 %v1553
      %v1607 = vunpack.c.l.b16 %v1554
      %v1608 = vunpack.c.h.b16 %v1554
      %v1609 = vunpack.c.l.b16 %v1555
      %v1610 = vunpack.c.h.b16 %v1555
      %v1611 = vunpack.c.l.b16 %v1556
      %v1612 = vunpack.c.h.b16 %v1556
      %v1613 = vunpack.c.l.b16 %v1557
      %v1614 = vunpack.c.h.b16 %v1557
      %v1615 = vunpack.c.l.b16 %v1558
      %v1616 = vunpack.c.h.b16 %v1558
      %v1617 = vunpack.c.l.b16 %v1559
      %v1618 = vunpack.c.h.b16 %v1559
      %v1619 = vunpack.c.l.b16 %v1560
      %v1620 = vunpack.c.h.b16 %v1560
      %v1621 = vpack.c.b16 %v1591, %v1589
      %v1622 = vpack.c.b16 %v1592, %v1590
      %v1623 = vpack.c.b16 %v1595, %v1593
      %v1624 = vpack.c.b16 %v1596, %v1594
      %v1625 = vpack.c.b16 %v1599, %v1597
      %v1626 = vpack.c.b16 %v1600, %v1598
      %v1627 = vpack.c.b16 %v1603, %v1601
      %v1628 = vpack.c.b16 %v1604, %v1602
      %v1629 = vpack.c.b16 %v1607, %v1605
      %v1630 = vpack.c.b16 %v1608, %v1606
      %v1631 = vpack.c.b16 %v1611, %v1609
      %v1632 = vpack.c.b16 %v1612, %v1610
      %v1633 = vpack.c.b16 %v1615, %v1613
      %v1634 = vpack.c.b16 %v1616, %v1614
      %v1635 = vpack.c.b16 %v1619, %v1617
      %v1636 = vpack.c.b16 %v1620, %v1618
      %1653 = vmatprep.subr.bf16.mxu0 %v1622
      %1654 = vmatpush1.bf16.msra.mxu0 %v1621
      %1655 = vmatprep.subr.bf16.mxu0 %v1624
      %1656 = vmatpush1.bf16.msra.mxu0 %v1623
      %1657 = vmatprep.subr.bf16.mxu0 %v1626
      %1658 = vmatpush1.bf16.msra.mxu0 %v1625
      %1659 = vmatprep.subr.bf16.mxu0 %v1628
      %1660 = vmatpush1.bf16.msra.mxu0 %v1627
      %1661 = vmatprep.subr.bf16.mxu0 %v1630
      %1662 = vmatpush1.bf16.msra.mxu0 %v1629
      %1663 = vmatprep.subr.bf16.mxu0 %v1632
      %1664 = vmatpush1.bf16.msra.mxu0 %v1631
      %1665 = vmatprep.subr.bf16.mxu0 %v1634
      %1666 = vmatpush1.bf16.msra.mxu0 %v1633
      %1667 = vmatprep.subr.bf16.mxu0 %v1636
      %1668 = vmatpush1.bf16.msra.mxu0 %v1635
      %1669 = vmatprep.subr.bf16.mxu0 0
      %1670 = vmatpush1.bf16.msra.mxu0 0
      %1671 = vmatprep.subr.bf16.mxu0 0
      %1672 = vmatpush1.bf16.msra.mxu0 0
      %1673 = vmatprep.subr.bf16.mxu0 0
      %1674 = vmatpush1.bf16.msra.mxu0 0
      %1675 = vmatprep.subr.bf16.mxu0 0
      %1676 = vmatpush1.bf16.msra.mxu0 0
      %1677 = vmatprep.subr.bf16.mxu0 0
      %1678 = vmatpush1.bf16.msra.mxu0 0
      %1679 = vmatprep.subr.bf16.mxu0 0
      %1680 = vmatpush1.bf16.msra.mxu0 0
      %1681 = vmatprep.subr.bf16.mxu0 0
      %1682 = vmatpush1.bf16.msra.mxu0 0
      %1683 = vmatprep.subr.bf16.mxu0 0
      %1684 = vmatpush1.bf16.msra.mxu0 0
      %1685 = vmatprep.mubr.bf16.mxu0 0
      %1686 = vmatmul.mubr.bf16.gmra.mrb[0].mxu0 %v1569
      %v1687 = vpop.f32.mrb[0].mxu0
      %v1688 = vadd.f32 0.0, %v1687
      %v1689 = vpop.f32.mrb[0].mxu0
      %v1690 = vadd.f32 0.0, %v1689
      %v1691 = vpop.f32.mrb[0].mxu0
      %v1692 = vadd.f32 0.0, %v1691
      %v1693 = vpop.f32.mrb[0].mxu0
      %v1694 = vadd.f32 0.0, %v1693
      %1695 = vmatprep.mubr.bf16.mxu0 0
      %1696 = vmatmul.mubr.bf16.gmra.mrb[0].mxu0 %v1570
      %v1697 = vpop.f32.mrb[0].mxu0
      %v1698 = vadd.f32 0.0, %v1697
      %v1699 = vpop.f32.mrb[0].mxu0
      %v1700 = vadd.f32 0.0, %v1699
      %v1701 = vpop.f32.mrb[0].mxu0
      %v1702 = vadd.f32 0.0, %v1701
      %v1703 = vpop.f32.mrb[0].mxu0
      %v1704 = vadd.f32 0.0, %v1703
      %1705 = vdwg.mxu0
      %v1706 = vadd.f32 %v1523, %v1688
      %v1707 = vadd.f32 %v1525, %v1690
      %v1708 = vadd.f32 %v1527, %v1692
      %v1709 = vadd.f32 %v1529, %v1694
      %v1710 = vadd.f32 %v1533, %v1698
      %v1711 = vadd.f32 %v1535, %v1700
      %v1712 = vadd.f32 %v1537, %v1702
      %v1713 = vadd.f32 %v1539, %v1704
      %v1714 = vld [vmem:[%s7] sm:$0x3]
      %v1716 = vlaneseq
      %v1717 = vshrl.u32 %v1716, 7
      %v1718 = vsub.s32 0, %v1717
      %v1719 = vrot.slane %v1714, %v1718
      %v1720 = vlaneseq
      %v1721 = vshrl.u32 %v1720, 7
      %v1722 = vsub.s32 1, %v1721
      %v1723 = vrot.slane %v1714, %v1722
      %v1726 = vadd.f32 %v1706, %v1719
      %v1727 = vadd.f32 %v1707, %v1723
      %v1728 = vadd.f32 %v1708, %v1719
      %v1729 = vadd.f32 %v1709, %v1723
      %v1730 = vadd.f32 %v1710, %v1719
      %v1731 = vadd.f32 %v1711, %v1723
      %v1732 = vadd.f32 %v1712, %v1719
      %v1733 = vadd.f32 %v1713, %v1723
      %v1734 = vmax.f32 %v1726, 0.0
      %v1735 = vmax.f32 %v1727, 0.0
      %v1736 = vmax.f32 %v1728, 0.0
      %v1737 = vmax.f32 %v1729, 0.0
      %v1738 = vmax.f32 %v1730, 0.0
      %v1739 = vmax.f32 %v1731, 0.0
      %v1740 = vmax.f32 %v1732, 0.0
      %v1741 = vmax.f32 %v1733, 0.0
      %v1742 = vpack.c.bf16 %v1736, %v1734
      %v1743 = vpack.c.bf16 %v1737, %v1735
      %v1744 = vpack.c.bf16 %v1740, %v1738
      %v1745 = vpack.c.bf16 %v1741, %v1739
      %v1750 = vunpack.c.l.b16 %v1742
      %v1751 = vunpack.c.l.b16 %v1743
      %v1752 = vunpack.c.h.b16 %v1742
      %v1753 = vunpack.c.h.b16 %v1743
      %v1754 = vunpack.c.l.b16 %v1744
      %v1755 = vunpack.c.l.b16 %v1745
      %v1756 = vunpack.c.h.b16 %v1744
      %v1757 = vunpack.c.h.b16 %v1745
      %v1758 = vpack.c.b16 %v1751, %v1750
      %v1759 = vpack.c.b16 %v1753, %v1752
      %v1760 = vpack.c.b16 %v1755, %v1754
      %v1761 = vpack.c.b16 %v1757, %v1756
      %1766 = vst [vmem:[%s424] sm:$0xff] %v1758
      %1767 = vst [vmem:[%s424 + $0x8] sm:$0xff] %v1759
      %1768 = vst [vmem:[%s424 + $0x10] sm:$0xff] %v1760
      %1769 = vst [vmem:[%s424 + $0x18] sm:$0xff] %v1761
      %v1770 = vld [vmem:[%s8] sm:$0xff]
      %v1771 = vld [vmem:[%s8 + $0x8] sm:$0xff]
      %v1772 = vld [vmem:[%s8 + $0x10] sm:$0xff]
      %v1773 = vld [vmem:[%s8 + $0x18] sm:$0xff]
      %v1774 = vld [vmem:[%s8 + $0x20] sm:$0xff]
      %v1775 = vld [vmem:[%s8 + $0x28] sm:$0xff]
      %v1776 = vld [vmem:[%s8 + $0x30] sm:$0xff]
      %v1777 = vld [vmem:[%s8 + $0x38] sm:$0xff]
      %v1778 = vld [vmem:[%s8 + $0x40] sm:$0xff]
      %v1779 = vld [vmem:[%s8 + $0x48] sm:$0xff]
      %v1780 = vld [vmem:[%s8 + $0x50] sm:$0xff]
      %v1781 = vld [vmem:[%s8 + $0x58] sm:$0xff]
      %v1782 = vld [vmem:[%s8 + $0x60] sm:$0xff]
      %v1783 = vld [vmem:[%s8 + $0x68] sm:$0xff]
      %v1784 = vld [vmem:[%s8 + $0x70] sm:$0xff]
      %v1785 = vld [vmem:[%s8 + $0x78] sm:$0xff]
      %v1786 = vld [vmem:[%s8 + $0x80] sm:$0xff]
      %v1787 = vld [vmem:[%s8 + $0x88] sm:$0xff]
      %v1788 = vld [vmem:[%s8 + $0x90] sm:$0xff]
      %v1789 = vld [vmem:[%s8 + $0x98] sm:$0xff]
      %v1790 = vld [vmem:[%s8 + $0xa0] sm:$0xff]
      %v1791 = vld [vmem:[%s8 + $0xa8] sm:$0xff]
      %v1792 = vld [vmem:[%s8 + $0xb0] sm:$0xff]
      %v1793 = vld [vmem:[%s8 + $0xb8] sm:$0xff]
      %v1794 = vld [vmem:[%s8 + $0xc0] sm:$0xff]
      %v1795 = vld [vmem:[%s8 + $0xc8] sm:$0xff]
      %v1796 = vld [vmem:[%s8 + $0xd0] sm:$0xff]
      %v1797 = vld [vmem:[%s8 + $0xd8] sm:$0xff]
      %v1798 = vld [vmem:[%s8 + $0xe0] sm:$0xff]
      %v1799 = vld [vmem:[%s8 + $0xe8] sm:$0xff]
      %v1800 = vld [vmem:[%s8 + $0xf0] sm:$0xff]
      %v1801 = vld [vmem:[%s8 + $0xf8] sm:$0xff]
      %v1802 = vld [vmem:[%s9] sm:$0x3]
      %v1804 = vlaneseq
      %v1805 = vshrl.u32 %v1804, 7
      %v1806 = vsub.s32 0, %v1805
      %v1807 = vrot.slane %v1802, %v1806
      %v1808 = vlaneseq
      %v1809 = vshrl.u32 %v1808, 7
      %v1810 = vsub.s32 1, %v1809
      %v1811 = vrot.slane %v1802, %v1810
      %v1846 = vunpack.c.l.b16 %v1770
      %v1847 = vunpack.c.h.b16 %v1770
      %v1848 = vunpack.c.l.b16 %v1771
      %v1849 = vunpack.c.h.b16 %v1771
      %v1850 = vunpack.c.l.b16 %v1772
      %v1851 = vunpack.c.h.b16 %v1772
      %v1852 = vunpack.c.l.b16 %v1773
      %v1853 = vunpack.c.h.b16 %v1773
      %v1854 = vunpack.c.l.b16 %v1774
      %v1855 = vunpack.c.h.b16 %v1774
      %v1856 = vunpack.c.l.b16 %v1775
      %v1857 = vunpack.c.h.b16 %v1775
      %v1858 = vunpack.c.l.b16 %v1776
      %v1859 = vunpack.c.h.b16 %v1776
      %v1860 = vunpack.c.l.b16 %v1777
      %v1861 = vunpack.c.h.b16 %v1777
      %v1862 = vunpack.c.l.b16 %v1778
      %v1863 = vunpack.c.h.b16 %v1778
      %v1864 = vunpack.c.l.b16 %v1779
      %v1865 = vunpack.c.h.b16 %v1779
      %v1866 = vunpack.c.l.b16 %v1780
      %v1867 = vunpack.c.h.b16 %v1780
      %v1868 = vunpack.c.l.b16 %v1781
      %v1869 = vunpack.c.h.b16 %v1781
      %v1870 = vunpack.c.l.b16 %v1782
      %v1871 = vunpack.c.h.b16 %v1782
      %v1872 = vunpack.c.l.b16 %v1783
      %v1873 = vunpack.c.h.b16 %v1783
      %v1874 = vunpack.c.l.b16 %v1784
      %v1875 = vunpack.c.h.b16 %v1784
      %v1876 = vunpack.c.l.b16 %v1785
      %v1877 = vunpack.c.h.b16 %v1785
      %v1878 = vunpack.c.l.b16 %v1786
      %v1879 = vunpack.c.h.b16 %v1786
      %v1880 = vunpack.c.l.b16 %v1787
      %v1881 = vunpack.c.h.b16 %v1787
      %v1882 = vunpack.c.l.b16 %v1788
      %v1883 = vunpack.c.h.b16 %v1788
      %v1884 = vunpack.c.l.b16 %v1789
      %v1885 = vunpack.c.h.b16 %v1789
      %v1886 = vunpack.c.l.b16 %v1790
      %v1887 = vunpack.c.h.b16 %v1790
      %v1888 = vunpack.c.l.b16 %v1791
      %v1889 = vunpack.c.h.b16 %v1791
      %v1890 = vunpack.c.l.b16 %v1792
      %v1891 = vunpack.c.h.b16 %v1792
      %v1892 = vunpack.c.l.b16 %v1793
      %v1893 = vunpack.c.h.b16 %v1793
      %v1894 = vunpack.c.l.b16 %v1794
      %v1895 = vunpack.c.h.b16 %v1794
      %v1896 = vunpack.c.l.b16 %v1795
      %v1897 = vunpack.c.h.b16 %v1795
      %v1898 = vunpack.c.l.b16 %v1796
      %v1899 = vunpack.c.h.b16 %v1796
      %v1900 = vunpack.c.l.b16 %v1797
      %v1901 = vunpack.c.h.b16 %v1797
      %v1902 = vunpack.c.l.b16 %v1798
      %v1903 = vunpack.c.h.b16 %v1798
      %v1904 = vunpack.c.l.b16 %v1799
      %v1905 = vunpack.c.h.b16 %v1799
      %v1906 = vunpack.c.l.b16 %v1800
      %v1907 = vunpack.c.h.b16 %v1800
      %v1908 = vunpack.c.l.b16 %v1801
      %v1909 = vunpack.c.h.b16 %v1801
      %v1910 = vpack.c.b16 %v1848, %v1846
      %v1911 = vpack.c.b16 %v1849, %v1847
      %v1912 = vpack.c.b16 %v1852, %v1850
      %v1913 = vpack.c.b16 %v1853, %v1851
      %v1914 = vpack.c.b16 %v1856, %v1854
      %v1915 = vpack.c.b16 %v1857, %v1855
      %v1916 = vpack.c.b16 %v1860, %v1858
      %v1917 = vpack.c.b16 %v1861, %v1859
      %v1918 = vpack.c.b16 %v1864, %v1862
      %v1919 = vpack.c.b16 %v1865, %v1863
      %v1920 = vpack.c.b16 %v1868, %v1866
      %v1921 = vpack.c.b16 %v1869, %v1867
      %v1922 = vpack.c.b16 %v1872, %v1870
      %v1923 = vpack.c.b16 %v1873, %v1871
      %v1924 = vpack.c.b16 %v1876, %v1874
      %v1925 = vpack.c.b16 %v1877, %v1875
      %v1926 = vpack.c.b16 %v1880, %v1878
      %v1927 = vpack.c.b16 %v1881, %v1879
      %v1928 = vpack.c.b16 %v1884, %v1882
      %v1929 = vpack.c.b16 %v1885, %v1883
      %v1930 = vpack.c.b16 %v1888, %v1886
      %v1931 = vpack.c.b16 %v1889, %v1887
      %v1932 = vpack.c.b16 %v1892, %v1890
      %v1933 = vpack.c.b16 %v1893, %v1891
      %v1934 = vpack.c.b16 %v1896, %v1894
      %v1935 = vpack.c.b16 %v1897, %v1895
      %v1936 = vpack.c.b16 %v1900, %v1898
      %v1937 = vpack.c.b16 %v1901, %v1899
      %v1938 = vpack.c.b16 %v1904, %v1902
      %v1939 = vpack.c.b16 %v1905, %v1903
      %v1940 = vpack.c.b16 %v1908, %v1906
      %v1941 = vpack.c.b16 %v1909, %v1907
      %1974 = vmatprep.subr.bf16.mxu0 %v1911
      %1975 = vmatpush1.bf16.msra.mxu0 %v1910
      %1976 = vmatprep.subr.bf16.mxu0 %v1913
      %1977 = vmatpush1.bf16.msra.mxu0 %v1912
      %1978 = vmatprep.subr.bf16.mxu0 %v1915
      %1979 = vmatpush1.bf16.msra.mxu0 %v1914
      %1980 = vmatprep.subr.bf16.mxu0 %v1917
      %1981 = vmatpush1.bf16.msra.mxu0 %v1916
      %1982 = vmatprep.subr.bf16.mxu0 %v1919
      %1983 = vmatpush1.bf16.msra.mxu0 %v1918
      %1984 = vmatprep.subr.bf16.mxu0 %v1921
      %1985 = vmatpush1.bf16.msra.mxu0 %v1920
      %1986 = vmatprep.subr.bf16.mxu0 %v1923
      %1987 = vmatpush1.bf16.msra.mxu0 %v1922
      %1988 = vmatprep.subr.bf16.mxu0 %v1925
      %1989 = vmatpush1.bf16.msra.mxu0 %v1924
      %1990 = vmatprep.subr.bf16.mxu0 %v1927
      %1991 = vmatpush1.bf16.msra.mxu0 %v1926
      %1992 = vmatprep.subr.bf16.mxu0 %v1929
      %1993 = vmatpush1.bf16.msra.mxu0 %v1928
      %1994 = vmatprep.subr.bf16.mxu0 %v1931
      %1995 = vmatpush1.bf16.msra.mxu0 %v1930
      %1996 = vmatprep.subr.bf16.mxu0 %v1933
      %1997 = vmatpush1.bf16.msra.mxu0 %v1932
      %1998 = vmatprep.subr.bf16.mxu0 %v1935
      %1999 = vmatpush1.bf16.msra.mxu0 %v1934
      %2000 = vmatprep.subr.bf16.mxu0 %v1937
      %2001 = vmatpush1.bf16.msra.mxu0 %v1936
      %2002 = vmatprep.subr.bf16.mxu0 %v1939
      %2003 = vmatpush1.bf16.msra.mxu0 %v1938
      %2004 = vmatprep.subr.bf16.mxu0 %v1941
      %2005 = vmatpush1.bf16.msra.mxu0 %v1940
      %2006 = vmatprep.mubr.bf16.mxu0 %v1743
      %2007 = vmatmul.mubr.bf16.gmra.mrb[0].mxu0 %v1742
      %v2008 = vpop.f32.mrb[0].mxu0
      %v2009 = vadd.f32 %v1807, %v2008
      %v2010 = vpop.f32.mrb[0].mxu0
      %v2011 = vadd.f32 %v1811, %v2010
      %v2012 = vpop.f32.mrb[0].mxu0
      %v2013 = vadd.f32 %v1807, %v2012
      %v2014 = vpop.f32.mrb[0].mxu0
      %v2015 = vadd.f32 %v1811, %v2014
      %2016 = vmatprep.mubr.bf16.mxu0 %v1745
      %2017 = vmatmul.mubr.bf16.gmra.mrb[0].mxu0 %v1744
      %v2018 = vpop.f32.mrb[0].mxu0
      %v2019 = vadd.f32 %v1807, %v2018
      %v2020 = vpop.f32.mrb[0].mxu0
      %v2021 = vadd.f32 %v1811, %v2020
      %v2022 = vpop.f32.mrb[0].mxu0
      %v2023 = vadd.f32 %v1807, %v2022
      %v2024 = vpop.f32.mrb[0].mxu0
      %v2025 = vadd.f32 %v1811, %v2024
      %2026 = vdwg.mxu0
      %v2027 = vmax.f32 %v2009, 0.0
      %v2028 = vmax.f32 %v2011, 0.0
      %v2029 = vmax.f32 %v2013, 0.0
      %v2030 = vmax.f32 %v2015, 0.0
      %v2031 = vmax.f32 %v2019, 0.0
      %v2032 = vmax.f32 %v2021, 0.0
      %v2033 = vmax.f32 %v2023, 0.0
      %v2034 = vmax.f32 %v2025, 0.0
      %v2035 = vpack.c.bf16 %v2029, %v2027
      %v2036 = vpack.c.bf16 %v2030, %v2028
      %v2037 = vpack.c.bf16 %v2033, %v2031
      %v2038 = vpack.c.bf16 %v2034, %v2032
      %v2043 = vunpack.c.l.b16 %v2035
      %v2044 = vunpack.c.l.b16 %v2036
      %v2045 = vunpack.c.h.b16 %v2035
      %v2046 = vunpack.c.h.b16 %v2036
      %v2047 = vunpack.c.l.b16 %v2037
      %v2048 = vunpack.c.l.b16 %v2038
      %v2049 = vunpack.c.h.b16 %v2037
      %v2050 = vunpack.c.h.b16 %v2038
      %v2051 = vpack.c.b16 %v2044, %v2043
      %v2052 = vpack.c.b16 %v2046, %v2045
      %v2053 = vpack.c.b16 %v2048, %v2047
      %v2054 = vpack.c.b16 %v2050, %v2049
      %2059 = vst [vmem:[%s431] sm:$0xff] %v2051
      %2060 = vst [vmem:[%s431 + $0x8] sm:$0xff] %v2052
      %2061 = vst [vmem:[%s431 + $0x10] sm:$0xff] %v2053
      %2062 = vst [vmem:[%s431 + $0x18] sm:$0xff] %v2054
      %s2063 = smul.u32 4, %s23
      %p2064 = scmp.lt.s32.totalorder %s2063, 7
      %s2065 = scalar_select %p2064, %s2063, 7
      %s2066 = smul.addr %s2065, 2
      %s2067 = smul.addr %s2066, 4
      %s2068 = scalar_lea.vmem %s10, %s2067
      %s2069 = smul.u32 4, %s23
      %p2070 = scmp.lt.s32.totalorder %s2069, 7
      %s2071 = scalar_select %p2070, %s2069, 7
      %s2072 = smul.addr %s2071, 2
      %s2073 = smul.addr %s2072, 4
      %s2074 = scalar_lea.vmem %s11, %s2073
      // Predicated region
      $region61: #{resnext_forward.6} parent=59 // pred_check
        %p2075 = pneg %p261
      $region62: #{resnext_forward.6} parent=59 // pred_check_branch
        %2077 = sbr.rel (%p2075) target = $region64
      $region63: #{resnext_forward.6} parent=59 // pred_region
        %s2078 = smul.u32 4, %s23
      $region64: #{resnext_forward.6} parent=59 // pred_fallthru
        _
      // Predicated region
      $region65: #{resnext_forward.6} parent=59 // pred_check
        %p2079 = pneg %p287
      $region66: #{resnext_forward.6} parent=59 // pred_check_branch
        %2081 = sbr.rel (%p2079) target = $region68
      $region67: #{resnext_forward.6} parent=59 // pred_region
        %s2082 = smul.u32 4, %s23
      $region68: #{resnext_forward.6} parent=59 // pred_fallthru
        _
    $region60: #{resnext_forward.6} parent=5 // pred_fallthru
      _
    %p2083 = scmp.le.s32.totalorder 2, %s18
    // Predicated region
    $region69: #{resnext_forward.6} parent=5 // pred_check
      %p2084 = pneg %p2083
    $region70: #{resnext_forward.6} parent=5 // pred_check_branch
      %2086 = sbr.rel (%p2084) target = $region72
    $region71: #{resnext_forward.6} parent=5 // pred_region
      %s2087 = ssub.s32 %s18, 2
      // Predicated region
      $region73: #{resnext_forward.6} parent=71 // pred_check
        %p2088 = pneg %p267
      $region74: #{resnext_forward.6} parent=71 // pred_check_branch
        %2090 = sbr.rel (%p2088) target = $region76
      $region75: #{resnext_forward.6} parent=71 // pred_region
        %s2091 = smul.u32 4, %s24
        %p2092 = scmp.lt.s32.totalorder %s2091, 7
        %s2093 = scalar_select %p2092, %s2091, 7
        %s2094 = smul.addr %s2093, 2
        %s2095 = smul.addr %s2094, 4
        %s2096 = scalar_lea.vmem %s10, %s2095
      $region76: #{resnext_forward.6} parent=71 // pred_fallthru
        _
      // Predicated region
      $region77: #{resnext_forward.6} parent=71 // pred_check
        %p2097 = pneg %p293
      $region78: #{resnext_forward.6} parent=71 // pred_check_branch
        %2099 = sbr.rel (%p2097) target = $region80
      $region79: #{resnext_forward.6} parent=71 // pred_region
        %s2100 = smul.u32 4, %s24
        %p2101 = scmp.lt.s32.totalorder %s2100, 7
        %s2102 = scalar_select %p2101, %s2100, 7
        %s2103 = smul.addr %s2102, 2
        %s2104 = smul.addr %s2103, 4
        %s2105 = scalar_lea.vmem %s11, %s2104
      $region80: #{resnext_forward.6} parent=71 // pred_fallthru
        _
    $region72: #{resnext_forward.6} parent=5 // pred_fallthru
      _
  $region6: #{resnext_forward.6} parent=0 // loop_footer
    %s22 = sadd.s32 1, %s18
  $region7: #{resnext_forward.6} parent=0 // loop_footer_branch
    %17 = sbr.rel target = $region3
  $region8: #{resnext_forward.6} parent=0 // loop_exit
    _

// kernel: resnext_forward.7
$region0: #{resnext_forward.7}
  #allocation0 [shape = 'u32[]', space=smem, size = 0x4, offset = 0x4, fixed_abs, tag = 'smem constant byte address 0x4 - core index']
  #allocation1 [shape = 'u32[144,128]{1,0:T(1,128)}', space=vmem, size = 0x12000, scoped, tag = 'internal scratch']
  %s0 = inlined_call_operand.vmem [shape: bf16[32,1152], index: 0, kind: input, shape index: {}]
  %s1 = inlined_call_operand.vmem [shape: bf16[1152,128], index: 1, kind: input, shape index: {}]
  %s2 = inlined_call_operand.vmem [shape: f32[1,128], index: 2, kind: input, shape index: {}]
  %s3 = inlined_call_operand.vmem [shape: bf16[128,256], index: 3, kind: input, shape index: {}]
  %s4 = inlined_call_operand.vmem [shape: f32[1,256], index: 4, kind: input, shape index: {}]
  %s5 = inlined_call_operand.vmem [shape: bf16[32,128], index: 5, kind: input, shape index: {}]
  %s6 = inlined_call_operand.vmem [shape: bf16[128,256], index: 6, kind: input, shape index: {}]
  %s7 = inlined_call_operand.vmem [shape: f32[1,256], index: 7, kind: input, shape index: {}]
  %s8 = inlined_call_operand.vmem [shape: f32[256,10], index: 8, kind: input, shape index: {}]
  %s9 = inlined_call_operand.vmem [shape: f32[1,10], index: 9, kind: input, shape index: {}]
  %s10 = inlined_call_operand.hbm [shape: f32[2,1,10], index: 10, kind: output, shape index: {}]
  %s11 = sld [smem:[#allocation0]]
  $region73: #{resnext_forward.7} parent=0
    _
  %s13 = ssub.s32 1, %s11
  %s14 = scalar_select 0, %s13, %s11
  $region1: #{resnext_forward.7} parent=0
    #allocation2 [shape = 'u8[1024]{0}', space=vmem, size = 0x400, scoped, tag = 'output window, operand 0']
    #allocation3 [shape = 's32[2]{0}', space=sflag, size = 0x8, scoped, tag = 'scoped memory for resnext_forward.7']
    %15 = vsyncpa [#allocation3], 0
    %s16 = scalar_lea.sflag [#allocation3], 1
    %17 = vsyncpa %s16, 0
    loop: start=0, step=1, limit=4
    $region2: #{resnext_forward.7} parent=1 // loop_pre_header
      _
    $region3: #{resnext_forward.7} parent=1 // loop_header
      %s19 = sphi 0, %s23
      %p20 = scmp.ge.s32.totalorder %s19, 4
      %s29 = sphi 0, %s31
      %s32 = sphi 0, %s29
      %s33 = sphi 0, %s32
      %s49 = sphi 0, %s33
      %s53 = sphi 0, %s53
      %s55 = sphi 0, %s53
      %s56 = sphi 0, %s55
      %s70 = sphi 0, %s56
      %s74 = sphi 0, %s74
      %s76 = sphi 0, %s74
      %s77 = sphi 0, %s76
      %s91 = sphi 0, %s77
      %s95 = sphi 0, %s95
      %s97 = sphi 0, %s95
      %s98 = sphi 0, %s97
      %s112 = sphi 0, %s98
      %s116 = sphi 0, %s116
      %s118 = sphi 0, %s116
      %s119 = sphi 0, %s118
      %s133 = sphi 0, %s119
      %s139 = sphi 0, %s141
      %s142 = sphi 0, %s139
      %s143 = sphi 0, %s142
      %s159 = sphi 0, %s143
      %s163 = sphi 0, %s163
      %s165 = sphi 0, %s163
      %s166 = sphi 0, %s165
      %s180 = sphi 0, %s166
      %s184 = sphi 0, %s184
      %s186 = sphi 0, %s184
      %s187 = sphi 0, %s186
      %s201 = sphi 0, %s187
      %s205 = sphi 0, %s205
      %s207 = sphi 0, %s205
      %s208 = sphi 0, %s207
      %s222 = sphi 0, %s208
      %s226 = sphi 0, %s226
      %s228 = sphi 0, %s226
      %s229 = sphi 0, %s228
      %s243 = sphi 0, %s229
      %s249 = sphi 0, %s251
      %s252 = sphi 0, %s249
      %s253 = sphi 0, %s252
      %s269 = sphi 0, %s253
    $region4: #{resnext_forward.7} parent=1 // loop_header_branch
      %22 = sbr.rel (%p20) target = $region8
    $region5: #{resnext_forward.7} parent=1 // loop_body
      %s24 = ssub.s32 %s19, 1
      %s25 = ssub.s32 %s19, 2
      %s26 = sadd.s32 %s19, 1
      %s27 = ssub.s32 %s19, %s26
      %p28 = scmp.eq.s32.totalorder %s27, 0
      %s30 = sadd.s32 %s29, 1
      %s31 = scalar_select %p28, %s29, %s30
      %p34 = pneg %p28
      %p35 = scmp.eq.s32.totalorder %s19, 1
      %p36 = por %p34, %p35
      %p37 = scmp.ne.s32.totalorder %s29, %s32
      %p38 = scmp.eq.s32.totalorder %s19, 0
      %p39 = por %p37, %p38
      %p40 = scmp.ne.s32.totalorder %s29, %s32
      %p41 = scmp.eq.s32.totalorder %s24, 1
      %p42 = por %p40, %p41
      %p43 = scmp.ne.s32.totalorder %s32, %s33
      %p44 = scmp.eq.s32.totalorder %s24, 0
      %p45 = por %p43, %p44
      %p46 = scmp.ne.s32.totalorder %s32, %s33
      %p47 = scmp.eq.s32.totalorder %s25, 1
      %p48 = por %p46, %p47
      %p50 = scmp.ne.s32.totalorder %s33, %s49
      %p51 = scmp.eq.s32.totalorder %s25, 0
      %p52 = por %p50, %p51
      %s54 = sadd.s32 %s53, 1
      %p57 = scmp.eq.s32.totalorder %s19, 1
      %p58 = scmp.ne.s32.totalorder %s53, %s55
      %p59 = scmp.eq.s32.totalorder %s19, 0
      %p60 = por %p58, %p59
      %p61 = scmp.ne.s32.totalorder %s53, %s55
      %p62 = scmp.eq.s32.totalorder %s24, 1
      %p63 = por %p61, %p62
      %p64 = scmp.ne.s32.totalorder %s55, %s56
      %p65 = scmp.eq.s32.totalorder %s24, 0
      %p66 = por %p64, %p65
      %p67 = scmp.ne.s32.totalorder %s55, %s56
      %p68 = scmp.eq.s32.totalorder %s25, 1
      %p69 = por %p67, %p68
      %p71 = scmp.ne.s32.totalorder %s56, %s70
      %p72 = scmp.eq.s32.totalorder %s25, 0
      %p73 = por %p71, %p72
      %s75 = sadd.s32 %s74, 1
      %p78 = scmp.eq.s32.totalorder %s19, 1
      %p79 = scmp.ne.s32.totalorder %s74, %s76
      %p80 = scmp.eq.s32.totalorder %s19, 0
      %p81 = por %p79, %p80
      %p82 = scmp.ne.s32.totalorder %s74, %s76
      %p83 = scmp.eq.s32.totalorder %s24, 1
      %p84 = por %p82, %p83
      %p85 = scmp.ne.s32.totalorder %s76, %s77
      %p86 = scmp.eq.s32.totalorder %s24, 0
      %p87 = por %p85, %p86
      %p88 = scmp.ne.s32.totalorder %s76, %s77
      %p89 = scmp.eq.s32.totalorder %s25, 1
      %p90 = por %p88, %p89
      %p92 = scmp.ne.s32.totalorder %s77, %s91
      %p93 = scmp.eq.s32.totalorder %s25, 0
      %p94 = por %p92, %p93
      %s96 = sadd.s32 %s95, 1
      %p99 = scmp.eq.s32.totalorder %s19, 1
      %p100 = scmp.ne.s32.totalorder %s95, %s97
      %p101 = scmp.eq.s32.totalorder %s19, 0
      %p102 = por %p100, %p101
      %p103 = scmp.ne.s32.totalorder %s95, %s97
      %p104 = scmp.eq.s32.totalorder %s24, 1
      %p105 = por %p103, %p104
      %p106 = scmp.ne.s32.totalorder %s97, %s98
      %p107 = scmp.eq.s32.totalorder %s24, 0
      %p108 = por %p106, %p107
      %p109 = scmp.ne.s32.totalorder %s97, %s98
      %p110 = scmp.eq.s32.totalorder %s25, 1
      %p111 = por %p109, %p110
      %p113 = scmp.ne.s32.totalorder %s98, %s112
      %p114 = scmp.eq.s32.totalorder %s25, 0
      %p115 = por %p113, %p114
      %s117 = sadd.s32 %s116, 1
      %p120 = scmp.eq.s32.totalorder %s19, 1
      %p121 = scmp.ne.s32.totalorder %s116, %s118
      %p122 = scmp.eq.s32.totalorder %s19, 0
      %p123 = por %p121, %p122
      %p124 = scmp.ne.s32.totalorder %s116, %s118
      %p125 = scmp.eq.s32.totalorder %s24, 1
      %p126 = por %p124, %p125
      %p127 = scmp.ne.s32.totalorder %s118, %s119
      %p128 = scmp.eq.s32.totalorder %s24, 0
      %p129 = por %p127, %p128
      %p130 = scmp.ne.s32.totalorder %s118, %s119
      %p131 = scmp.eq.s32.totalorder %s25, 1
      %p132 = por %p130, %p131
      %p134 = scmp.ne.s32.totalorder %s119, %s133
      %p135 = scmp.eq.s32.totalorder %s25, 0
      %p136 = por %p134, %p135
      %s137 = ssub.s32 %s19, %s26
      %p138 = scmp.eq.s32.totalorder %s137, 0
      %s140 = sadd.s32 %s139, 1
      %s141 = scalar_select %p138, %s139, %s140
      %p144 = pneg %p138
      %p145 = scmp.eq.s32.totalorder %s19, 1
      %p146 = por %p144, %p145
      %p147 = scmp.ne.s32.totalorder %s139, %s142
      %p148 = scmp.eq.s32.totalorder %s19, 0
      %p149 = por %p147, %p148
      %p150 = scmp.ne.s32.totalorder %s139, %s142
      %p151 = scmp.eq.s32.totalorder %s24, 1
      %p152 = por %p150, %p151
      %p153 = scmp.ne.s32.totalorder %s142, %s143
      %p154 = scmp.eq.s32.totalorder %s24, 0
      %p155 = por %p153, %p154
      %p156 = scmp.ne.s32.totalorder %s142, %s143
      %p157 = scmp.eq.s32.totalorder %s25, 1
      %p158 = por %p156, %p157
      %p160 = scmp.ne.s32.totalorder %s143, %s159
      %p161 = scmp.eq.s32.totalorder %s25, 0
      %p162 = por %p160, %p161
      %s164 = sadd.s32 %s163, 1
      %p167 = scmp.eq.s32.totalorder %s19, 1
      %p168 = scmp.ne.s32.totalorder %s163, %s165
      %p169 = scmp.eq.s32.totalorder %s19, 0
      %p170 = por %p168, %p169
      %p171 = scmp.ne.s32.totalorder %s163, %s165
      %p172 = scmp.eq.s32.totalorder %s24, 1
      %p173 = por %p171, %p172
      %p174 = scmp.ne.s32.totalorder %s165, %s166
      %p175 = scmp.eq.s32.totalorder %s24, 0
      %p176 = por %p174, %p175
      %p177 = scmp.ne.s32.totalorder %s165, %s166
      %p178 = scmp.eq.s32.totalorder %s25, 1
      %p179 = por %p177, %p178
      %p181 = scmp.ne.s32.totalorder %s166, %s180
      %p182 = scmp.eq.s32.totalorder %s25, 0
      %p183 = por %p181, %p182
      %s185 = sadd.s32 %s184, 1
      %p188 = scmp.eq.s32.totalorder %s19, 1
      %p189 = scmp.ne.s32.totalorder %s184, %s186
      %p190 = scmp.eq.s32.totalorder %s19, 0
      %p191 = por %p189, %p190
      %p192 = scmp.ne.s32.totalorder %s184, %s186
      %p193 = scmp.eq.s32.totalorder %s24, 1
      %p194 = por %p192, %p193
      %p195 = scmp.ne.s32.totalorder %s186, %s187
      %p196 = scmp.eq.s32.totalorder %s24, 0
      %p197 = por %p195, %p196
      %p198 = scmp.ne.s32.totalorder %s186, %s187
      %p199 = scmp.eq.s32.totalorder %s25, 1
      %p200 = por %p198, %p199
      %p202 = scmp.ne.s32.totalorder %s187, %s201
      %p203 = scmp.eq.s32.totalorder %s25, 0
      %p204 = por %p202, %p203
      %s206 = sadd.s32 %s205, 1
      %p209 = scmp.eq.s32.totalorder %s19, 1
      %p210 = scmp.ne.s32.totalorder %s205, %s207
      %p211 = scmp.eq.s32.totalorder %s19, 0
      %p212 = por %p210, %p211
      %p213 = scmp.ne.s32.totalorder %s205, %s207
      %p214 = scmp.eq.s32.totalorder %s24, 1
      %p215 = por %p213, %p214
      %p216 = scmp.ne.s32.totalorder %s207, %s208
      %p217 = scmp.eq.s32.totalorder %s24, 0
      %p218 = por %p216, %p217
      %p219 = scmp.ne.s32.totalorder %s207, %s208
      %p220 = scmp.eq.s32.totalorder %s25, 1
      %p221 = por %p219, %p220
      %p223 = scmp.ne.s32.totalorder %s208, %s222
      %p224 = scmp.eq.s32.totalorder %s25, 0
      %p225 = por %p223, %p224
      %s227 = sadd.s32 %s226, 1
      %p230 = scmp.eq.s32.totalorder %s19, 1
      %p231 = scmp.ne.s32.totalorder %s226, %s228
      %p232 = scmp.eq.s32.totalorder %s19, 0
      %p233 = por %p231, %p232
      %p234 = scmp.ne.s32.totalorder %s226, %s228
      %p235 = scmp.eq.s32.totalorder %s24, 1
      %p236 = por %p234, %p235
      %p237 = scmp.ne.s32.totalorder %s228, %s229
      %p238 = scmp.eq.s32.totalorder %s24, 0
      %p239 = por %p237, %p238
      %p240 = scmp.ne.s32.totalorder %s228, %s229
      %p241 = scmp.eq.s32.totalorder %s25, 1
      %p242 = por %p240, %p241
      %p244 = scmp.ne.s32.totalorder %s229, %s243
      %p245 = scmp.eq.s32.totalorder %s25, 0
      %p246 = por %p244, %p245
      %s247 = ssub.s32 %s19, %s26
      %p248 = scmp.eq.s32.totalorder %s247, 0
      %s250 = sadd.s32 %s249, 1
      %s251 = scalar_select %p248, %s249, %s250
      %p254 = pneg %p248
      %p255 = scmp.eq.s32.totalorder %s19, 1
      %p256 = por %p254, %p255
      %p257 = scmp.ne.s32.totalorder %s249, %s252
      %p258 = scmp.eq.s32.totalorder %s19, 0
      %p259 = por %p257, %p258
      %p260 = scmp.ne.s32.totalorder %s249, %s252
      %p261 = scmp.eq.s32.totalorder %s24, 1
      %p262 = por %p260, %p261
      %p263 = scmp.ne.s32.totalorder %s252, %s253
      %p264 = scmp.eq.s32.totalorder %s24, 0
      %p265 = por %p263, %p264
      %p266 = scmp.ne.s32.totalorder %s252, %s253
      %p267 = scmp.eq.s32.totalorder %s25, 1
      %p268 = por %p266, %p267
      %p270 = scmp.ne.s32.totalorder %s253, %s269
      %p271 = scmp.eq.s32.totalorder %s25, 0
      %p272 = por %p270, %p271
      %p273 = scmp.le.s32.totalorder 1, %s19
      %p274 = scmp.lt.s32.totalorder %s19, 3
      %p275 = pnand %p273, %p274
      %p276 = pneg %p275
      // Predicated region
      $region9: #{resnext_forward.7} parent=5 // pred_check
        _
      $region10: #{resnext_forward.7} parent=5 // pred_check_branch
        %278 = sbr.rel (%p275) target = $region12
      $region11: #{resnext_forward.7} parent=5 // pred_region
        %s279 = ssub.s32 %s19, 1
        // Predicated region
        $region13: #{resnext_forward.7} parent=11 // pred_check
          %p280 = pneg %p66
        $region14: #{resnext_forward.7} parent=11 // pred_check_branch
          %282 = sbr.rel (%p280) target = $region16
        $region15: #{resnext_forward.7} parent=11 // pred_region
          _
        $region16: #{resnext_forward.7} parent=11 // pred_fallthru
          _
        // Predicated region
        $region17: #{resnext_forward.7} parent=11 // pred_check
          %p283 = pneg %p87
        $region18: #{resnext_forward.7} parent=11 // pred_check_branch
          %285 = sbr.rel (%p283) target = $region20
        $region19: #{resnext_forward.7} parent=11 // pred_region
          _
        $region20: #{resnext_forward.7} parent=11 // pred_fallthru
          _
        // Predicated region
        $region21: #{resnext_forward.7} parent=11 // pred_check
          %p286 = pneg %p108
        $region22: #{resnext_forward.7} parent=11 // pred_check_branch
          %288 = sbr.rel (%p286) target = $region24
        $region23: #{resnext_forward.7} parent=11 // pred_region
          _
        $region24: #{resnext_forward.7} parent=11 // pred_fallthru
          _
        // Predicated region
        $region25: #{resnext_forward.7} parent=11 // pred_check
          %p289 = pneg %p129
        $region26: #{resnext_forward.7} parent=11 // pred_check_branch
          %291 = sbr.rel (%p289) target = $region28
        $region27: #{resnext_forward.7} parent=11 // pred_region
          _
        $region28: #{resnext_forward.7} parent=11 // pred_fallthru
          _
        // Predicated region
        $region29: #{resnext_forward.7} parent=11 // pred_check
          %p292 = pneg %p176
        $region30: #{resnext_forward.7} parent=11 // pred_check_branch
          %294 = sbr.rel (%p292) target = $region32
        $region31: #{resnext_forward.7} parent=11 // pred_region
          _
        $region32: #{resnext_forward.7} parent=11 // pred_fallthru
          _
        // Predicated region
        $region33: #{resnext_forward.7} parent=11 // pred_check
          %p295 = pneg %p197
        $region34: #{resnext_forward.7} parent=11 // pred_check_branch
          %297 = sbr.rel (%p295) target = $region36
        $region35: #{resnext_forward.7} parent=11 // pred_region
          _
        $region36: #{resnext_forward.7} parent=11 // pred_fallthru
          _
        // Predicated region
        $region37: #{resnext_forward.7} parent=11 // pred_check
          %p298 = pneg %p218
        $region38: #{resnext_forward.7} parent=11 // pred_check_branch
          %300 = sbr.rel (%p298) target = $region40
        $region39: #{resnext_forward.7} parent=11 // pred_region
          _
        $region40: #{resnext_forward.7} parent=11 // pred_fallthru
          _
        // Predicated region
        $region41: #{resnext_forward.7} parent=11 // pred_check
          %p301 = pneg %p239
        $region42: #{resnext_forward.7} parent=11 // pred_check_branch
          %303 = sbr.rel (%p301) target = $region44
        $region43: #{resnext_forward.7} parent=11 // pred_region
          _
        $region44: #{resnext_forward.7} parent=11 // pred_fallthru
          _
      $region12: #{resnext_forward.7} parent=5 // pred_fallthru
        _
      %p304 = scmp.lt.s32.totalorder %s19, 2
      // Predicated region
      $region45: #{resnext_forward.7} parent=5 // pred_check
        %p305 = pneg %p304
      $region46: #{resnext_forward.7} parent=5 // pred_check_branch
        %307 = sbr.rel (%p305) target = $region48
      $region47: #{resnext_forward.7} parent=5 // pred_region
        // Predicated region
        $region49: #{resnext_forward.7} parent=47 // pred_check
          %p308 = pneg %p39
        $region50: #{resnext_forward.7} parent=47 // pred_check_branch
          %310 = sbr.rel (%p308) target = $region52
        $region51: #{resnext_forward.7} parent=47 // pred_region
          %s311 = smul.u32 2, %s19
          %p312 = scmp.lt.s32.totalorder %s311, 3
          %s313 = scalar_select %p312, %s311, 3
          %s314 = smul.addr %s313, 9
          %s315 = smul.addr %s314, 4
          %s316 = scalar_lea.vmem %s0, %s315
          %s317 = smul.u32 2, %s19
        $region52: #{resnext_forward.7} parent=47 // pred_fallthru
          _
        // Predicated region
        $region53: #{resnext_forward.7} parent=47 // pred_check
          %p318 = pneg %p149
        $region54: #{resnext_forward.7} parent=47 // pred_check_branch
          %320 = sbr.rel (%p318) target = $region56
        $region55: #{resnext_forward.7} parent=47 // pred_region
          %s321 = smul.u32 2, %s19
          %p322 = scmp.lt.s32.totalorder %s321, 3
          %s323 = scalar_select %p322, %s321, 3
          %s324 = smul.addr %s323, 4
          %s325 = scalar_lea.vmem %s5, %s324
          %s326 = smul.u32 2, %s19
        $region56: #{resnext_forward.7} parent=47 // pred_fallthru
          _
      $region48: #{resnext_forward.7} parent=5 // pred_fallthru
        _
      %p327 = scmp.le.s32.totalorder 1, %s19
      %p328 = scmp.lt.s32.totalorder %s19, 3
      %p329 = pnand %p327, %p328
      %p330 = pneg %p329
      // Predicated region
      $region57: #{resnext_forward.7} parent=5 // pred_check
        _
      $region58: #{resnext_forward.7} parent=5 // pred_check_branch
        %332 = sbr.rel (%p329) target = $region60
      $region59: #{resnext_forward.7} parent=5 // pred_region
        %s333 = ssub.s32 %s19, 1
        %s334 = smul.u32 2, %s24
        %p335 = scmp.lt.s32.totalorder %s334, 3
        %s336 = scalar_select %p335, %s334, 3
        %s337 = smul.addr %s336, 9
        %s338 = smul.addr %s337, 4
        %s339 = scalar_lea.vmem %s0, %s338
        %p340 = pneg %p45
        %p341 = pneg %p42
        %p342 = pneg %p66
        %p343 = pneg %p63
        %p344 = pneg %p87
        %p345 = pneg %p84
        %p346 = pneg %p108
        %p347 = pneg %p105
        %p348 = pneg %p129
        %p349 = pneg %p126
        %s350 = smul.u32 2, %s24
        %p351 = scmp.lt.s32.totalorder %s350, 3
        %s352 = scalar_select %p351, %s350, 3
        %s353 = smul.addr %s352, 4
        %s354 = scalar_lea.vmem %s5, %s353
        %p355 = pneg %p155
        %p356 = pneg %p152
        %p357 = pneg %p176
        %p358 = pneg %p173
        %p359 = pneg %p197
        %p360 = pneg %p194
        %p361 = pneg %p218
        %p362 = pneg %p215
        %p363 = pneg %p239
        %p364 = pneg %p236
        %p365 = pneg %p265
        %p366 = pneg %p262
        %s367 = sand.u32 %s252, 1
        %s368 = scalar_lea.sflag [#allocation3], %s367
        %s369 = sand.u32 %s252, 1
        %s370 = scalar_lea.vmem [#allocation2], %s369
        %s371 = smul.u32 2, %s24
        %p372 = scmp.lt.s32.totalorder %s371, 3
        %s373 = scalar_select %p372, %s371, 3
        %s374 = smul.addr %s373, 9
        %s375 = smul.addr %s374, 4
        %s376 = scalar_lea.vmem %s0, %s375
        %s377 = smul.u32 2, %s24
        %s378 = smul.u32 2, %s24
        %p379 = scmp.lt.s32.totalorder %s378, 3
        %s380 = scalar_select %p379, %s378, 3
        %s381 = smul.addr %s380, 4
        %s382 = scalar_lea.vmem %s5, %s381
        %s383 = smul.u32 2, %s24
        %v385 = vld [vmem:[%s376] sm:$0xff]
        %v386 = vld [vmem:[%s376 + $0x8] sm:$0xff]
        %v387 = vld [vmem:[%s376 + $0x10] sm:$0xff]
        %v388 = vld [vmem:[%s376 + $0x18] sm:$0xff]
        %v389 = vld [vmem:[%s376 + $0x20] sm:$0xf]
        %v390 = vld [vmem:[%s376 + $0x24] sm:$0xff]
        %v391 = vld [vmem:[%s376 + $0x2c] sm:$0xff]
        %v392 = vld [vmem:[%s376 + $0x34] sm:$0xff]
        %v393 = vld [vmem:[%s376 + $0x3c] sm:$0xff]
        %v394 = vld [vmem:[%s376 + $0x44] sm:$0xf]
        %v395 = vld [vmem:[%s1] sm:$0xf]
        %v396 = vld [vmem:[%s1 + $0x4] sm:$0xf]
        %v397 = vld [vmem:[%s1 + $0x8] sm:$0xf]
        %v398 = vld [vmem:[%s1 + $0xc] sm:$0xf]
        %v399 = vld [vmem:[%s1 + $0x10] sm:$0xf]
        %v400 = vld [vmem:[%s1 + $0x14] sm:$0xf]
        %v401 = vld [vmem:[%s1 + $0x18] sm:$0xf]
        %v402 = vld [vmem:[%s1 + $0x1c] sm:$0xf]
        %v403 = vld [vmem:[%s1 + $0x20] sm:$0xf]
        %v404 = vld [vmem:[%s1 + $0x24] sm:$0xf]
        %v405 = vld [vmem:[%s1 + $0x28] sm:$0xf]
        %v406 = vld [vmem:[%s1 + $0x2c] sm:$0xf]
        %v407 = vld [vmem:[%s1 + $0x30] sm:$0xf]
        %v408 = vld [vmem:[%s1 + $0x34] sm:$0xf]
        %v409 = vld [vmem:[%s1 + $0x38] sm:$0xf]
        %v410 = vld [vmem:[%s1 + $0x3c] sm:$0xf]
        %v411 = vld [vmem:[%s1 + $0x40] sm:$0xf]
        %v412 = vld [vmem:[%s1 + $0x44] sm:$0xf]
        %v413 = vld [vmem:[%s1 + $0x48] sm:$0xf]
        %v414 = vld [vmem:[%s1 + $0x4c] sm:$0xf]
        %v415 = vld [vmem:[%s1 + $0x50] sm:$0xf]
        %v416 = vld [vmem:[%s1 + $0x54] sm:$0xf]
        %v417 = vld [vmem:[%s1 + $0x58] sm:$0xf]
        %v418 = vld [vmem:[%s1 + $0x5c] sm:$0xf]
        %v419 = vld [vmem:[%s1 + $0x60] sm:$0xf]
        %v420 = vld [vmem:[%s1 + $0x64] sm:$0xf]
        %v421 = vld [vmem:[%s1 + $0x68] sm:$0xf]
        %v422 = vld [vmem:[%s1 + $0x6c] sm:$0xf]
        %v423 = vld [vmem:[%s1 + $0x70] sm:$0xf]
        %v424 = vld [vmem:[%s1 + $0x74] sm:$0xf]
        %v425 = vld [vmem:[%s1 + $0x78] sm:$0xf]
        %v426 = vld [vmem:[%s1 + $0x7c] sm:$0xf]
        %v427 = vld [vmem:[%s1 + $0x80] sm:$0xf]
        %v428 = vld [vmem:[%s1 + $0x84] sm:$0xf]
        %v429 = vld [vmem:[%s1 + $0x88] sm:$0xf]
        %v430 = vld [vmem:[%s1 + $0x8c] sm:$0xf]
        %v431 = vld [vmem:[%s1 + $0x90] sm:$0xf]
        %v432 = vld [vmem:[%s1 + $0x94] sm:$0xf]
        %v433 = vld [vmem:[%s1 + $0x98] sm:$0xf]
        %v434 = vld [vmem:[%s1 + $0x9c] sm:$0xf]
        %v435 = vld [vmem:[%s1 + $0xa0] sm:$0xf]
        %v436 = vld [vmem:[%s1 + $0xa4] sm:$0xf]
        %v437 = vld [vmem:[%s1 + $0xa8] sm:$0xf]
        %v438 = vld [vmem:[%s1 + $0xac] sm:$0xf]
        %v439 = vld [vmem:[%s1 + $0xb0] sm:$0xf]
        %v440 = vld [vmem:[%s1 + $0xb4] sm:$0xf]
        %v441 = vld [vmem:[%s1 + $0xb8] sm:$0xf]
        %v442 = vld [vmem:[%s1 + $0xbc] sm:$0xf]
        %v443 = vld [vmem:[%s1 + $0xc0] sm:$0xf]
        %v444 = vld [vmem:[%s1 + $0xc4] sm:$0xf]
        %v445 = vld [vmem:[%s1 + $0xc8] sm:$0xf]
        %v446 = vld [vmem:[%s1 + $0xcc] sm:$0xf]
        %v447 = vld [vmem:[%s1 + $0xd0] sm:$0xf]
        %v448 = vld [vmem:[%s1 + $0xd4] sm:$0xf]
        %v449 = vld [vmem:[%s1 + $0xd8] sm:$0xf]
        %v450 = vld [vmem:[%s1 + $0xdc] sm:$0xf]
        %v451 = vld [vmem:[%s1 + $0xe0] sm:$0xf]
        %v452 = vld [vmem:[%s1 + $0xe4] sm:$0xf]
        %v453 = vld [vmem:[%s1 + $0xe8] sm:$0xf]
        %v454 = vld [vmem:[%s1 + $0xec] sm:$0xf]
        %v455 = vld [vmem:[%s1 + $0xf0] sm:$0xf]
        %v456 = vld [vmem:[%s1 + $0xf4] sm:$0xf]
        %v457 = vld [vmem:[%s1 + $0xf8] sm:$0xf]
        %v458 = vld [vmem:[%s1 + $0xfc] sm:$0xf]
        %v459 = vld [vmem:[%s1 + $0x100] sm:$0xf]
        %v460 = vld [vmem:[%s1 + $0x104] sm:$0xf]
        %v461 = vld [vmem:[%s1 + $0x108] sm:$0xf]
        %v462 = vld [vmem:[%s1 + $0x10c] sm:$0xf]
        %v463 = vld [vmem:[%s1 + $0x110] sm:$0xf]
        %v464 = vld [vmem:[%s1 + $0x114] sm:$0xf]
        %v465 = vld [vmem:[%s1 + $0x118] sm:$0xf]
        %v466 = vld [vmem:[%s1 + $0x11c] sm:$0xf]
        %v467 = vld [vmem:[%s1 + $0x120] sm:$0xf]
        %v468 = vld [vmem:[%s1 + $0x124] sm:$0xf]
        %v469 = vld [vmem:[%s1 + $0x128] sm:$0xf]
        %v470 = vld [vmem:[%s1 + $0x12c] sm:$0xf]
        %v471 = vld [vmem:[%s1 + $0x130] sm:$0xf]
        %v472 = vld [vmem:[%s1 + $0x134] sm:$0xf]
        %v473 = vld [vmem:[%s1 + $0x138] sm:$0xf]
        %v474 = vld [vmem:[%s1 + $0x13c] sm:$0xf]
        %v475 = vld [vmem:[%s1 + $0x140] sm:$0xf]
        %v476 = vld [vmem:[%s1 + $0x144] sm:$0xf]
        %v477 = vld [vmem:[%s1 + $0x148] sm:$0xf]
        %v478 = vld [vmem:[%s1 + $0x14c] sm:$0xf]
        %v479 = vld [vmem:[%s1 + $0x150] sm:$0xf]
        %v480 = vld [vmem:[%s1 + $0x154] sm:$0xf]
        %v481 = vld [vmem:[%s1 + $0x158] sm:$0xf]
        %v482 = vld [vmem:[%s1 + $0x15c] sm:$0xf]
        %v483 = vld [vmem:[%s1 + $0x160] sm:$0xf]
        %v484 = vld [vmem:[%s1 + $0x164] sm:$0xf]
        %v485 = vld [vmem:[%s1 + $0x168] sm:$0xf]
        %v486 = vld [vmem:[%s1 + $0x16c] sm:$0xf]
        %v487 = vld [vmem:[%s1 + $0x170] sm:$0xf]
        %v488 = vld [vmem:[%s1 + $0x174] sm:$0xf]
        %v489 = vld [vmem:[%s1 + $0x178] sm:$0xf]
        %v490 = vld [vmem:[%s1 + $0x17c] sm:$0xf]
        %v491 = vld [vmem:[%s1 + $0x180] sm:$0xf]
        %v492 = vld [vmem:[%s1 + $0x184] sm:$0xf]
        %v493 = vld [vmem:[%s1 + $0x188] sm:$0xf]
        %v494 = vld [vmem:[%s1 + $0x18c] sm:$0xf]
        %v495 = vld [vmem:[%s1 + $0x190] sm:$0xf]
        %v496 = vld [vmem:[%s1 + $0x194] sm:$0xf]
        %v497 = vld [vmem:[%s1 + $0x198] sm:$0xf]
        %v498 = vld [vmem:[%s1 + $0x19c] sm:$0xf]
        %v499 = vld [vmem:[%s1 + $0x1a0] sm:$0xf]
        %v500 = vld [vmem:[%s1 + $0x1a4] sm:$0xf]
        %v501 = vld [vmem:[%s1 + $0x1a8] sm:$0xf]
        %v502 = vld [vmem:[%s1 + $0x1ac] sm:$0xf]
        %v503 = vld [vmem:[%s1 + $0x1b0] sm:$0xf]
        %v504 = vld [vmem:[%s1 + $0x1b4] sm:$0xf]
        %v505 = vld [vmem:[%s1 + $0x1b8] sm:$0xf]
        %v506 = vld [vmem:[%s1 + $0x1bc] sm:$0xf]
        %v507 = vld [vmem:[%s1 + $0x1c0] sm:$0xf]
        %v508 = vld [vmem:[%s1 + $0x1c4] sm:$0xf]
        %v509 = vld [vmem:[%s1 + $0x1c8] sm:$0xf]
        %v510 = vld [vmem:[%s1 + $0x1cc] sm:$0xf]
        %v511 = vld [vmem:[%s1 + $0x1d0] sm:$0xf]
        %v512 = vld [vmem:[%s1 + $0x1d4] sm:$0xf]
        %v513 = vld [vmem:[%s1 + $0x1d8] sm:$0xf]
        %v514 = vld [vmem:[%s1 + $0x1dc] sm:$0xf]
        %v515 = vld [vmem:[%s1 + $0x1e0] sm:$0xf]
        %v516 = vld [vmem:[%s1 + $0x1e4] sm:$0xf]
        %v517 = vld [vmem:[%s1 + $0x1e8] sm:$0xf]
        %v518 = vld [vmem:[%s1 + $0x1ec] sm:$0xf]
        %v519 = vld [vmem:[%s1 + $0x1f0] sm:$0xf]
        %v520 = vld [vmem:[%s1 + $0x1f4] sm:$0xf]
        %v521 = vld [vmem:[%s1 + $0x1f8] sm:$0xf]
        %v522 = vld [vmem:[%s1 + $0x1fc] sm:$0xf]
        %v523 = vld [vmem:[%s1 + $0x200] sm:$0xf]
        %v524 = vld [vmem:[%s1 + $0x204] sm:$0xf]
        %v525 = vld [vmem:[%s1 + $0x208] sm:$0xf]
        %v526 = vld [vmem:[%s1 + $0x20c] sm:$0xf]
        %v527 = vld [vmem:[%s1 + $0x210] sm:$0xf]
        %v528 = vld [vmem:[%s1 + $0x214] sm:$0xf]
        %v529 = vld [vmem:[%s1 + $0x218] sm:$0xf]
        %v530 = vld [vmem:[%s1 + $0x21c] sm:$0xf]
        %v531 = vld [vmem:[%s1 + $0x220] sm:$0xf]
        %v532 = vld [vmem:[%s1 + $0x224] sm:$0xf]
        %v533 = vld [vmem:[%s1 + $0x228] sm:$0xf]
        %v534 = vld [vmem:[%s1 + $0x22c] sm:$0xf]
        %v535 = vld [vmem:[%s1 + $0x230] sm:$0xf]
        %v536 = vld [vmem:[%s1 + $0x234] sm:$0xf]
        %v537 = vld [vmem:[%s1 + $0x238] sm:$0xf]
        %v538 = vld [vmem:[%s1 + $0x23c] sm:$0xf]
        %v539 = vld [vmem:[%s2] sm:$0x1]
        %v541 = vlaneseq
        %v542 = vshrl.u32 %v541, 7
        %v543 = vsub.s32 0, %v542
        %v544 = vrot.slane %v539, %v543
        %v556 = vunpack.c.l.b16 %v385
        %v557 = vunpack.c.h.b16 %v385
        %v558 = vunpack.c.l.b16 %v386
        %v559 = vunpack.c.h.b16 %v386
        %v560 = vunpack.c.l.b16 %v387
        %v561 = vunpack.c.h.b16 %v387
        %v562 = vunpack.c.l.b16 %v388
        %v563 = vunpack.c.h.b16 %v388
        %v564 = vunpack.c.l.b16 %v389
        %v565 = vunpack.c.l.b16 %v390
        %v566 = vunpack.c.h.b16 %v390
        %v567 = vunpack.c.l.b16 %v391
        %v568 = vunpack.c.h.b16 %v391
        %v569 = vunpack.c.l.b16 %v392
        %v570 = vunpack.c.h.b16 %v392
        %v571 = vunpack.c.l.b16 %v393
        %v572 = vunpack.c.h.b16 %v393
        %v573 = vunpack.c.l.b16 %v394
        %v574 = vpack.c.b16 %v565, %v556
        %v575 = vpack.c.b16 %v566, %v557
        %v576 = vpack.c.b16 %v567, %v558
        %v577 = vpack.c.b16 %v568, %v559
        %v578 = vpack.c.b16 %v569, %v560
        %v579 = vpack.c.b16 %v570, %v561
        %v580 = vpack.c.b16 %v571, %v562
        %v581 = vpack.c.b16 %v572, %v563
        %v582 = vpack.c.b16 %v573, %v564
        %v736 = vunpack.c.l.b16 %v395
        %v737 = vunpack.c.l.b16 %v396
        %v738 = vunpack.c.l.b16 %v397
        %v739 = vunpack.c.l.b16 %v398
        %v740 = vunpack.c.l.b16 %v399
        %v741 = vunpack.c.l.b16 %v400
        %v742 = vunpack.c.l.b16 %v401
        %v743 = vunpack.c.l.b16 %v402
        %v744 = vunpack.c.l.b16 %v403
        %v745 = vunpack.c.l.b16 %v404
        %v746 = vunpack.c.l.b16 %v405
        %v747 = vunpack.c.l.b16 %v406
        %v748 = vunpack.c.l.b16 %v407
        %v749 = vunpack.c.l.b16 %v408
        %v750 = vunpack.c.l.b16 %v409
        %v751 = vunpack.c.l.b16 %v410
        %v752 = vunpack.c.l.b16 %v411
        %v753 = vunpack.c.l.b16 %v412
        %v754 = vunpack.c.l.b16 %v413
        %v755 = vunpack.c.l.b16 %v414
        %v756 = vunpack.c.l.b16 %v415
        %v757 = vunpack.c.l.b16 %v416
        %v758 = vunpack.c.l.b16 %v417
        %v759 = vunpack.c.l.b16 %v418
        %v760 = vunpack.c.l.b16 %v419
        %v761 = vunpack.c.l.b16 %v420
        %v762 = vunpack.c.l.b16 %v421
        %v763 = vunpack.c.l.b16 %v422
        %v764 = vunpack.c.l.b16 %v423
        %v765 = vunpack.c.l.b16 %v424
        %v766 = vunpack.c.l.b16 %v425
        %v767 = vunpack.c.l.b16 %v426
        %v768 = vunpack.c.l.b16 %v427
        %v769 = vunpack.c.l.b16 %v428
        %v770 = vunpack.c.l.b16 %v429
        %v771 = vunpack.c.l.b16 %v430
        %v772 = vunpack.c.l.b16 %v431
        %v773 = vunpack.c.l.b16 %v432
        %v774 = vunpack.c.l.b16 %v433
        %v775 = vunpack.c.l.b16 %v434
        %v776 = vunpack.c.l.b16 %v435
        %v777 = vunpack.c.l.b16 %v436
        %v778 = vunpack.c.l.b16 %v437
        %v779 = vunpack.c.l.b16 %v438
        %v780 = vunpack.c.l.b16 %v439
        %v781 = vunpack.c.l.b16 %v440
        %v782 = vunpack.c.l.b16 %v441
        %v783 = vunpack.c.l.b16 %v442
        %v784 = vunpack.c.l.b16 %v443
        %v785 = vunpack.c.l.b16 %v444
        %v786 = vunpack.c.l.b16 %v445
        %v787 = vunpack.c.l.b16 %v446
        %v788 = vunpack.c.l.b16 %v447
        %v789 = vunpack.c.l.b16 %v448
        %v790 = vunpack.c.l.b16 %v449
        %v791 = vunpack.c.l.b16 %v450
        %v792 = vunpack.c.l.b16 %v451
        %v793 = vunpack.c.l.b16 %v452
        %v794 = vunpack.c.l.b16 %v453
        %v795 = vunpack.c.l.b16 %v454
        %v796 = vunpack.c.l.b16 %v455
        %v797 = vunpack.c.l.b16 %v456
        %v798 = vunpack.c.l.b16 %v457
        %v799 = vunpack.c.l.b16 %v458
        %v800 = vunpack.c.l.b16 %v459
        %v801 = vunpack.c.l.b16 %v460
        %v802 = vunpack.c.l.b16 %v461
        %v803 = vunpack.c.l.b16 %v462
        %v804 = vunpack.c.l.b16 %v463
        %v805 = vunpack.c.l.b16 %v464
        %v806 = vunpack.c.l.b16 %v465
        %v807 = vunpack.c.l.b16 %v466
        %v808 = vunpack.c.l.b16 %v467
        %v809 = vunpack.c.l.b16 %v468
        %v810 = vunpack.c.l.b16 %v469
        %v811 = vunpack.c.l.b16 %v470
        %v812 = vunpack.c.l.b16 %v471
        %v813 = vunpack.c.l.b16 %v472
        %v814 = vunpack.c.l.b16 %v473
        %v815 = vunpack.c.l.b16 %v474
        %v816 = vunpack.c.l.b16 %v475
        %v817 = vunpack.c.l.b16 %v476
        %v818 = vunpack.c.l.b16 %v477
        %v819 = vunpack.c.l.b16 %v478
        %v820 = vunpack.c.l.b16 %v479
        %v821 = vunpack.c.l.b16 %v480
        %v822 = vunpack.c.l.b16 %v481
        %v823 = vunpack.c.l.b16 %v482
        %v824 = vunpack.c.l.b16 %v483
        %v825 = vunpack.c.l.b16 %v484
        %v826 = vunpack.c.l.b16 %v485
        %v827 = vunpack.c.l.b16 %v486
        %v828 = vunpack.c.l.b16 %v487
        %v829 = vunpack.c.l.b16 %v488
        %v830 = vunpack.c.l.b16 %v489
        %v831 = vunpack.c.l.b16 %v490
        %v832 = vunpack.c.l.b16 %v491
        %v833 = vunpack.c.l.b16 %v492
        %v834 = vunpack.c.l.b16 %v493
        %v835 = vunpack.c.l.b16 %v494
        %v836 = vunpack.c.l.b16 %v495
        %v837 = vunpack.c.l.b16 %v496
        %v838 = vunpack.c.l.b16 %v497
        %v839 = vunpack.c.l.b16 %v498
        %v840 = vunpack.c.l.b16 %v499
        %v841 = vunpack.c.l.b16 %v500
        %v842 = vunpack.c.l.b16 %v501
        %v843 = vunpack.c.l.b16 %v502
        %v844 = vunpack.c.l.b16 %v503
        %v845 = vunpack.c.l.b16 %v504
        %v846 = vunpack.c.l.b16 %v505
        %v847 = vunpack.c.l.b16 %v506
        %v848 = vunpack.c.l.b16 %v507
        %v849 = vunpack.c.l.b16 %v508
        %v850 = vunpack.c.l.b16 %v509
        %v851 = vunpack.c.l.b16 %v510
        %v852 = vunpack.c.l.b16 %v511
        %v853 = vunpack.c.l.b16 %v512
        %v854 = vunpack.c.l.b16 %v513
        %v855 = vunpack.c.l.b16 %v514
        %v856 = vunpack.c.l.b16 %v515
        %v857 = vunpack.c.l.b16 %v516
        %v858 = vunpack.c.l.b16 %v517
        %v859 = vunpack.c.l.b16 %v518
        %v860 = vunpack.c.l.b16 %v519
        %v861 = vunpack.c.l.b16 %v520
        %v862 = vunpack.c.l.b16 %v521
        %v863 = vunpack.c.l.b16 %v522
        %v864 = vunpack.c.l.b16 %v523
        %v865 = vunpack.c.l.b16 %v524
        %v866 = vunpack.c.l.b16 %v525
        %v867 = vunpack.c.l.b16 %v526
        %v868 = vunpack.c.l.b16 %v527
        %v869 = vunpack.c.l.b16 %v528
        %v870 = vunpack.c.l.b16 %v529
        %v871 = vunpack.c.l.b16 %v530
        %v872 = vunpack.c.l.b16 %v531
        %v873 = vunpack.c.l.b16 %v532
        %v874 = vunpack.c.l.b16 %v533
        %v875 = vunpack.c.l.b16 %v534
        %v876 = vunpack.c.l.b16 %v535
        %v877 = vunpack.c.l.b16 %v536
        %v878 = vunpack.c.l.b16 %v537
        %v879 = vunpack.c.l.b16 %v538
        %v880 = vpack.c.b16 %v737, %v736
        %v881 = vpack.c.b16 %v739, %v738
        %v882 = vpack.c.b16 %v741, %v740
        %v883 = vpack.c.b16 %v743, %v742
        %v884 = vpack.c.b16 %v745, %v744
        %v885 = vpack.c.b16 %v747, %v746
        %v886 = vpack.c.b16 %v749, %v748
        %v887 = vpack.c.b16 %v751, %v750
        %v888 = vpack.c.b16 %v753, %v752
        %v889 = vpack.c.b16 %v755, %v754
        %v890 = vpack.c.b16 %v757, %v756
        %v891 = vpack.c.b16 %v759, %v758
        %v892 = vpack.c.b16 %v761, %v760
        %v893 = vpack.c.b16 %v763, %v762
        %v894 = vpack.c.b16 %v765, %v764
        %v895 = vpack.c.b16 %v767, %v766
        %v896 = vpack.c.b16 %v769, %v768
        %v897 = vpack.c.b16 %v771, %v770
        %v898 = vpack.c.b16 %v773, %v772
        %v899 = vpack.c.b16 %v775, %v774
        %v900 = vpack.c.b16 %v777, %v776
        %v901 = vpack.c.b16 %v779, %v778
        %v902 = vpack.c.b16 %v781, %v780
        %v903 = vpack.c.b16 %v783, %v782
        %v904 = vpack.c.b16 %v785, %v784
        %v905 = vpack.c.b16 %v787, %v786
        %v906 = vpack.c.b16 %v789, %v788
        %v907 = vpack.c.b16 %v791, %v790
        %v908 = vpack.c.b16 %v793, %v792
        %v909 = vpack.c.b16 %v795, %v794
        %v910 = vpack.c.b16 %v797, %v796
        %v911 = vpack.c.b16 %v799, %v798
        %v912 = vpack.c.b16 %v801, %v800
        %v913 = vpack.c.b16 %v803, %v802
        %v914 = vpack.c.b16 %v805, %v804
        %v915 = vpack.c.b16 %v807, %v806
        %v916 = vpack.c.b16 %v809, %v808
        %v917 = vpack.c.b16 %v811, %v810
        %v918 = vpack.c.b16 %v813, %v812
        %v919 = vpack.c.b16 %v815, %v814
        %v920 = vpack.c.b16 %v817, %v816
        %v921 = vpack.c.b16 %v819, %v818
        %v922 = vpack.c.b16 %v821, %v820
        %v923 = vpack.c.b16 %v823, %v822
        %v924 = vpack.c.b16 %v825, %v824
        %v925 = vpack.c.b16 %v827, %v826
        %v926 = vpack.c.b16 %v829, %v828
        %v927 = vpack.c.b16 %v831, %v830
        %v928 = vpack.c.b16 %v833, %v832
        %v929 = vpack.c.b16 %v835, %v834
        %v930 = vpack.c.b16 %v837, %v836
        %v931 = vpack.c.b16 %v839, %v838
        %v932 = vpack.c.b16 %v841, %v840
        %v933 = vpack.c.b16 %v843, %v842
        %v934 = vpack.c.b16 %v845, %v844
        %v935 = vpack.c.b16 %v847, %v846
        %v936 = vpack.c.b16 %v849, %v848
        %v937 = vpack.c.b16 %v851, %v850
        %v938 = vpack.c.b16 %v853, %v852
        %v939 = vpack.c.b16 %v855, %v854
        %v940 = vpack.c.b16 %v857, %v856
        %v941 = vpack.c.b16 %v859, %v858
        %v942 = vpack.c.b16 %v861, %v860
        %v943 = vpack.c.b16 %v863, %v862
        %v944 = vpack.c.b16 %v865, %v864
        %v945 = vpack.c.b16 %v867, %v866
        %v946 = vpack.c.b16 %v869, %v868
        %v947 = vpack.c.b16 %v871, %v870
        %v948 = vpack.c.b16 %v873, %v872
        %v949 = vpack.c.b16 %v875, %v874
        %v950 = vpack.c.b16 %v877, %v876
        %v951 = vpack.c.b16 %v879, %v878
        %1024 = vmatprep.subr.bf16.mxu0 0
        %1025 = vmatpush1.bf16.msra.mxu0 %v880
        %1026 = vmatprep.subr.bf16.mxu0 0
        %1027 = vmatpush1.bf16.msra.mxu0 %v881
        %1028 = vmatprep.subr.bf16.mxu0 0
        %1029 = vmatpush1.bf16.msra.mxu0 %v882
        %1030 = vmatprep.subr.bf16.mxu0 0
        %1031 = vmatpush1.bf16.msra.mxu0 %v883
        %1032 = vmatprep.subr.bf16.mxu0 0
        %1033 = vmatpush1.bf16.msra.mxu0 %v884
        %1034 = vmatprep.subr.bf16.mxu0 0
        %1035 = vmatpush1.bf16.msra.mxu0 %v885
        %1036 = vmatprep.subr.bf16.mxu0 0
        %1037 = vmatpush1.bf16.msra.mxu0 %v886
        %1038 = vmatprep.subr.bf16.mxu0 0
        %1039 = vmatpush1.bf16.msra.mxu0 %v887
        %1040 = vmatprep.subr.bf16.mxu0 0
        %1041 = vmatpush1.bf16.msra.mxu0 %v888
        %1042 = vmatprep.subr.bf16.mxu0 0
        %1043 = vmatpush1.bf16.msra.mxu0 %v889
        %1044 = vmatprep.subr.bf16.mxu0 0
        %1045 = vmatpush1.bf16.msra.mxu0 %v890
        %1046 = vmatprep.subr.bf16.mxu0 0
        %1047 = vmatpush1.bf16.msra.mxu0 %v891
        %1048 = vmatprep.subr.bf16.mxu0 0
        %1049 = vmatpush1.bf16.msra.mxu0 %v892
        %1050 = vmatprep.subr.bf16.mxu0 0
        %1051 = vmatpush1.bf16.msra.mxu0 %v893
        %1052 = vmatprep.subr.bf16.mxu0 0
        %1053 = vmatpush1.bf16.msra.mxu0 %v894
        %1054 = vmatprep.subr.bf16.mxu0 0
        %1055 = vmatpush1.bf16.msra.mxu0 %v895
        %1056 = vmatprep.mubr.bf16.mxu0 %v575
        %1057 = vmatmul.mubr.bf16.gmra.mrb[0].mxu0 %v574
        %v1058 = vpop.f32.mrb[0].mxu0
        %v1059 = vadd.f32 %v544, %v1058
        %v1060 = vpop.f32.mrb[0].mxu0
        %v1061 = vpop.f32.mrb[0].mxu0
        %v1062 = vadd.f32 %v544, %v1061
        %v1063 = vpop.f32.mrb[0].mxu0
        %1064 = vdwg.mxu0
        %1065 = vmatprep.subr.bf16.mxu0 0
        %1066 = vmatpush1.bf16.msra.mxu0 %v896
        %1067 = vmatprep.subr.bf16.mxu0 0
        %1068 = vmatpush1.bf16.msra.mxu0 %v897
        %1069 = vmatprep.subr.bf16.mxu0 0
        %1070 = vmatpush1.bf16.msra.mxu0 %v898
        %1071 = vmatprep.subr.bf16.mxu0 0
        %1072 = vmatpush1.bf16.msra.mxu0 %v899
        %1073 = vmatprep.subr.bf16.mxu0 0
        %1074 = vmatpush1.bf16.msra.mxu0 %v900
        %1075 = vmatprep.subr.bf16.mxu0 0
        %1076 = vmatpush1.bf16.msra.mxu0 %v901
        %1077 = vmatprep.subr.bf16.mxu0 0
        %1078 = vmatpush1.bf16.msra.mxu0 %v902
        %1079 = vmatprep.subr.bf16.mxu0 0
        %1080 = vmatpush1.bf16.msra.mxu0 %v903
        %1081 = vmatprep.subr.bf16.mxu0 0
        %1082 = vmatpush1.bf16.msra.mxu0 %v904
        %1083 = vmatprep.subr.bf16.mxu0 0
        %1084 = vmatpush1.bf16.msra.mxu0 %v905
        %1085 = vmatprep.subr.bf16.mxu0 0
        %1086 = vmatpush1.bf16.msra.mxu0 %v906
        %1087 = vmatprep.subr.bf16.mxu0 0
        %1088 = vmatpush1.bf16.msra.mxu0 %v907
        %1089 = vmatprep.subr.bf16.mxu0 0
        %1090 = vmatpush1.bf16.msra.mxu0 %v908
        %1091 = vmatprep.subr.bf16.mxu0 0
        %1092 = vmatpush1.bf16.msra.mxu0 %v909
        %1093 = vmatprep.subr.bf16.mxu0 0
        %1094 = vmatpush1.bf16.msra.mxu0 %v910
        %1095 = vmatprep.subr.bf16.mxu0 0
        %1096 = vmatpush1.bf16.msra.mxu0 %v911
        %1097 = vmatprep.mubr.bf16.mxu0 %v577
        %1098 = vmatmul.mubr.bf16.gmra.mrb[0].mxu0 %v576
        %v1099 = vpop.f32.mrb[0].mxu0
        %v1100 = vadd.f32 %v1059, %v1099
        %v1101 = vpop.f32.mrb[0].mxu0
        %v1102 = vpop.f32.mrb[0].mxu0
        %v1103 = vadd.f32 %v1062, %v1102
        %v1104 = vpop.f32.mrb[0].mxu0
        %1105 = vdwg.mxu0
        %1106 = vmatprep.subr.bf16.mxu0 0
        %1107 = vmatpush1.bf16.msra.mxu0 %v912
        %1108 = vmatprep.subr.bf16.mxu0 0
        %1109 = vmatpush1.bf16.msra.mxu0 %v913
        %1110 = vmatprep.subr.bf16.mxu0 0
        %1111 = vmatpush1.bf16.msra.mxu0 %v914
        %1112 = vmatprep.subr.bf16.mxu0 0
        %1113 = vmatpush1.bf16.msra.mxu0 %v915
        %1114 = vmatprep.subr.bf16.mxu0 0
        %1115 = vmatpush1.bf16.msra.mxu0 %v916
        %1116 = vmatprep.subr.bf16.mxu0 0
        %1117 = vmatpush1.bf16.msra.mxu0 %v917
        %1118 = vmatprep.subr.bf16.mxu0 0
        %1119 = vmatpush1.bf16.msra.mxu0 %v918
        %1120 = vmatprep.subr.bf16.mxu0 0
        %1121 = vmatpush1.bf16.msra.mxu0 %v919
        %1122 = vmatprep.subr.bf16.mxu0 0
        %1123 = vmatpush1.bf16.msra.mxu0 %v920
        %1124 = vmatprep.subr.bf16.mxu0 0
        %1125 = vmatpush1.bf16.msra.mxu0 %v921
        %1126 = vmatprep.subr.bf16.mxu0 0
        %1127 = vmatpush1.bf16.msra.mxu0 %v922
        %1128 = vmatprep.subr.bf16.mxu0 0
        %1129 = vmatpush1.bf16.msra.mxu0 %v923
        %1130 = vmatprep.subr.bf16.mxu0 0
        %1131 = vmatpush1.bf16.msra.mxu0 %v924
        %1132 = vmatprep.subr.bf16.mxu0 0
        %1133 = vmatpush1.bf16.msra.mxu0 %v925
        %1134 = vmatprep.subr.bf16.mxu0 0
        %1135 = vmatpush1.bf16.msra.mxu0 %v926
        %1136 = vmatprep.subr.bf16.mxu0 0
        %1137 = vmatpush1.bf16.msra.mxu0 %v927
        %1138 = vmatprep.mubr.bf16.mxu0 %v579
        %1139 = vmatmul.mubr.bf16.gmra.mrb[0].mxu0 %v578
        %v1140 = vpop.f32.mrb[0].mxu0
        %v1141 = vadd.f32 %v1100, %v1140
        %v1142 = vpop.f32.mrb[0].mxu0
        %v1143 = vpop.f32.mrb[0].mxu0
        %v1144 = vadd.f32 %v1103, %v1143
        %v1145 = vpop.f32.mrb[0].mxu0
        %1146 = vdwg.mxu0
        %1147 = vmatprep.subr.bf16.mxu0 0
        %1148 = vmatpush1.bf16.msra.mxu0 %v928
        %1149 = vmatprep.subr.bf16.mxu0 0
        %1150 = vmatpush1.bf16.msra.mxu0 %v929
        %1151 = vmatprep.subr.bf16.mxu0 0
        %1152 = vmatpush1.bf16.msra.mxu0 %v930
        %1153 = vmatprep.subr.bf16.mxu0 0
        %1154 = vmatpush1.bf16.msra.mxu0 %v931
        %1155 = vmatprep.subr.bf16.mxu0 0
        %1156 = vmatpush1.bf16.msra.mxu0 %v932
        %1157 = vmatprep.subr.bf16.mxu0 0
        %1158 = vmatpush1.bf16.msra.mxu0 %v933
        %1159 = vmatprep.subr.bf16.mxu0 0
        %1160 = vmatpush1.bf16.msra.mxu0 %v934
        %1161 = vmatprep.subr.bf16.mxu0 0
        %1162 = vmatpush1.bf16.msra.mxu0 %v935
        %1163 = vmatprep.subr.bf16.mxu0 0
        %1164 = vmatpush1.bf16.msra.mxu0 %v936
        %1165 = vmatprep.subr.bf16.mxu0 0
        %1166 = vmatpush1.bf16.msra.mxu0 %v937
        %1167 = vmatprep.subr.bf16.mxu0 0
        %1168 = vmatpush1.bf16.msra.mxu0 %v938
        %1169 = vmatprep.subr.bf16.mxu0 0
        %1170 = vmatpush1.bf16.msra.mxu0 %v939
        %1171 = vmatprep.subr.bf16.mxu0 0
        %1172 = vmatpush1.bf16.msra.mxu0 %v940
        %1173 = vmatprep.subr.bf16.mxu0 0
        %1174 = vmatpush1.bf16.msra.mxu0 %v941
        %1175 = vmatprep.subr.bf16.mxu0 0
        %1176 = vmatpush1.bf16.msra.mxu0 %v942
        %1177 = vmatprep.subr.bf16.mxu0 0
        %1178 = vmatpush1.bf16.msra.mxu0 %v943
        %1179 = vmatprep.mubr.bf16.mxu0 %v581
        %1180 = vmatmul.mubr.bf16.gmra.mrb[0].mxu0 %v580
        %v1181 = vpop.f32.mrb[0].mxu0
        %v1182 = vadd.f32 %v1141, %v1181
        %v1183 = vpop.f32.mrb[0].mxu0
        %v1184 = vpop.f32.mrb[0].mxu0
        %v1185 = vadd.f32 %v1144, %v1184
        %v1186 = vpop.f32.mrb[0].mxu0
        %1187 = vdwg.mxu0
        %1188 = vmatprep.subr.bf16.mxu0 0
        %1189 = vmatpush1.bf16.msra.mxu0 %v944
        %1190 = vmatprep.subr.bf16.mxu0 0
        %1191 = vmatpush1.bf16.msra.mxu0 %v945
        %1192 = vmatprep.subr.bf16.mxu0 0
        %1193 = vmatpush1.bf16.msra.mxu0 %v946
        %1194 = vmatprep.subr.bf16.mxu0 0
        %1195 = vmatpush1.bf16.msra.mxu0 %v947
        %1196 = vmatprep.subr.bf16.mxu0 0
        %1197 = vmatpush1.bf16.msra.mxu0 %v948
        %1198 = vmatprep.subr.bf16.mxu0 0
        %1199 = vmatpush1.bf16.msra.mxu0 %v949
        %1200 = vmatprep.subr.bf16.mxu0 0
        %1201 = vmatpush1.bf16.msra.mxu0 %v950
        %1202 = vmatprep.subr.bf16.mxu0 0
        %1203 = vmatpush1.bf16.msra.mxu0 %v951
        %1204 = vmatprep.subr.bf16.mxu0 0
        %1205 = vmatpush1.bf16.msra.mxu0 0
        %1206 = vmatprep.subr.bf16.mxu0 0
        %1207 = vmatpush1.bf16.msra.mxu0 0
        %1208 = vmatprep.subr.bf16.mxu0 0
        %1209 = vmatpush1.bf16.msra.mxu0 0
        %1210 = vmatprep.subr.bf16.mxu0 0
        %1211 = vmatpush1.bf16.msra.mxu0 0
        %1212 = vmatprep.subr.bf16.mxu0 0
        %1213 = vmatpush1.bf16.msra.mxu0 0
        %1214 = vmatprep.subr.bf16.mxu0 0
        %1215 = vmatpush1.bf16.msra.mxu0 0
        %1216 = vmatprep.subr.bf16.mxu0 0
        %1217 = vmatpush1.bf16.msra.mxu0 0
        %1218 = vmatprep.subr.bf16.mxu0 0
        %1219 = vmatpush1.bf16.msra.mxu0 0
        %1220 = vmatprep.mubr.bf16.mxu0 0
        %1221 = vmatmul.mubr.bf16.gmra.mrb[0].mxu0 %v582
        %v1222 = vpop.f32.mrb[0].mxu0
        %v1223 = vadd.f32 %v1182, %v1222
        %v1224 = vpop.f32.mrb[0].mxu0
        %v1225 = vpop.f32.mrb[0].mxu0
        %v1226 = vadd.f32 %v1185, %v1225
        %v1227 = vpop.f32.mrb[0].mxu0
        %1228 = vdwg.mxu0
        %v1229 = vmax.f32 %v1223, 0.0
        %v1230 = vmax.f32 %v1226, 0.0
        %v1231 = vpack.c.bf16 %v1230, %v1229
        %v1232 = vld [vmem:[%s3] sm:$0xff]
        %v1233 = vld [vmem:[%s3 + $0x8] sm:$0xff]
        %v1234 = vld [vmem:[%s3 + $0x10] sm:$0xff]
        %v1235 = vld [vmem:[%s3 + $0x18] sm:$0xff]
        %v1236 = vld [vmem:[%s3 + $0x20] sm:$0xff]
        %v1237 = vld [vmem:[%s3 + $0x28] sm:$0xff]
        %v1238 = vld [vmem:[%s3 + $0x30] sm:$0xff]
        %v1239 = vld [vmem:[%s3 + $0x38] sm:$0xff]
        %v1240 = vld [vmem:[%s3 + $0x40] sm:$0xff]
        %v1241 = vld [vmem:[%s3 + $0x48] sm:$0xff]
        %v1242 = vld [vmem:[%s3 + $0x50] sm:$0xff]
        %v1243 = vld [vmem:[%s3 + $0x58] sm:$0xff]
        %v1244 = vld [vmem:[%s3 + $0x60] sm:$0xff]
        %v1245 = vld [vmem:[%s3 + $0x68] sm:$0xff]
        %v1246 = vld [vmem:[%s3 + $0x70] sm:$0xff]
        %v1247 = vld [vmem:[%s3 + $0x78] sm:$0xff]
        %v1248 = vld [vmem:[%s4] sm:$0x3]
        %v1250 = vlaneseq
        %v1251 = vshrl.u32 %v1250, 7
        %v1252 = vsub.s32 0, %v1251
        %v1253 = vrot.slane %v1248, %v1252
        %v1254 = vlaneseq
        %v1255 = vshrl.u32 %v1254, 7
        %v1256 = vsub.s32 1, %v1255
        %v1257 = vrot.slane %v1248, %v1256
        %v1276 = vunpack.c.l.b16 %v1232
        %v1277 = vunpack.c.h.b16 %v1232
        %v1278 = vunpack.c.l.b16 %v1233
        %v1279 = vunpack.c.h.b16 %v1233
        %v1280 = vunpack.c.l.b16 %v1234
        %v1281 = vunpack.c.h.b16 %v1234
        %v1282 = vunpack.c.l.b16 %v1235
        %v1283 = vunpack.c.h.b16 %v1235
        %v1284 = vunpack.c.l.b16 %v1236
        %v1285 = vunpack.c.h.b16 %v1236
        %v1286 = vunpack.c.l.b16 %v1237
        %v1287 = vunpack.c.h.b16 %v1237
        %v1288 = vunpack.c.l.b16 %v1238
        %v1289 = vunpack.c.h.b16 %v1238
        %v1290 = vunpack.c.l.b16 %v1239
        %v1291 = vunpack.c.h.b16 %v1239
        %v1292 = vunpack.c.l.b16 %v1240
        %v1293 = vunpack.c.h.b16 %v1240
        %v1294 = vunpack.c.l.b16 %v1241
        %v1295 = vunpack.c.h.b16 %v1241
        %v1296 = vunpack.c.l.b16 %v1242
        %v1297 = vunpack.c.h.b16 %v1242
        %v1298 = vunpack.c.l.b16 %v1243
        %v1299 = vunpack.c.h.b16 %v1243
        %v1300 = vunpack.c.l.b16 %v1244
        %v1301 = vunpack.c.h.b16 %v1244
        %v1302 = vunpack.c.l.b16 %v1245
        %v1303 = vunpack.c.h.b16 %v1245
        %v1304 = vunpack.c.l.b16 %v1246
        %v1305 = vunpack.c.h.b16 %v1246
        %v1306 = vunpack.c.l.b16 %v1247
        %v1307 = vunpack.c.h.b16 %v1247
        %v1308 = vpack.c.b16 %v1278, %v1276
        %v1309 = vpack.c.b16 %v1279, %v1277
        %v1310 = vpack.c.b16 %v1282, %v1280
        %v1311 = vpack.c.b16 %v1283, %v1281
        %v1312 = vpack.c.b16 %v1286, %v1284
        %v1313 = vpack.c.b16 %v1287, %v1285
        %v1314 = vpack.c.b16 %v1290, %v1288
        %v1315 = vpack.c.b16 %v1291, %v1289
        %v1316 = vpack.c.b16 %v1294, %v1292
        %v1317 = vpack.c.b16 %v1295, %v1293
        %v1318 = vpack.c.b16 %v1298, %v1296
        %v1319 = vpack.c.b16 %v1299, %v1297
        %v1320 = vpack.c.b16 %v1302, %v1300
        %v1321 = vpack.c.b16 %v1303, %v1301
        %v1322 = vpack.c.b16 %v1306, %v1304
        %v1323 = vpack.c.b16 %v1307, %v1305
        %1340 = vmatprep.subr.bf16.mxu0 %v1309
        %1341 = vmatpush1.bf16.msra.mxu0 %v1308
        %1342 = vmatprep.subr.bf16.mxu0 %v1311
        %1343 = vmatpush1.bf16.msra.mxu0 %v1310
        %1344 = vmatprep.subr.bf16.mxu0 %v1313
        %1345 = vmatpush1.bf16.msra.mxu0 %v1312
        %1346 = vmatprep.subr.bf16.mxu0 %v1315
        %1347 = vmatpush1.bf16.msra.mxu0 %v1314
        %1348 = vmatprep.subr.bf16.mxu0 %v1317
        %1349 = vmatpush1.bf16.msra.mxu0 %v1316
        %1350 = vmatprep.subr.bf16.mxu0 %v1319
        %1351 = vmatpush1.bf16.msra.mxu0 %v1318
        %1352 = vmatprep.subr.bf16.mxu0 %v1321
        %1353 = vmatpush1.bf16.msra.mxu0 %v1320
        %1354 = vmatprep.subr.bf16.mxu0 %v1323
        %1355 = vmatpush1.bf16.msra.mxu0 %v1322
        %1356 = vmatprep.subr.bf16.mxu0 0
        %1357 = vmatpush1.bf16.msra.mxu0 0
        %1358 = vmatprep.subr.bf16.mxu0 0
        %1359 = vmatpush1.bf16.msra.mxu0 0
        %1360 = vmatprep.subr.bf16.mxu0 0
        %1361 = vmatpush1.bf16.msra.mxu0 0
        %1362 = vmatprep.subr.bf16.mxu0 0
        %1363 = vmatpush1.bf16.msra.mxu0 0
        %1364 = vmatprep.subr.bf16.mxu0 0
        %1365 = vmatpush1.bf16.msra.mxu0 0
        %1366 = vmatprep.subr.bf16.mxu0 0
        %1367 = vmatpush1.bf16.msra.mxu0 0
        %1368 = vmatprep.subr.bf16.mxu0 0
        %1369 = vmatpush1.bf16.msra.mxu0 0
        %1370 = vmatprep.subr.bf16.mxu0 0
        %1371 = vmatpush1.bf16.msra.mxu0 0
        %1372 = vmatprep.mubr.bf16.mxu0 0
        %1373 = vmatmul.mubr.bf16.gmra.mrb[0].mxu0 %v1231
        %v1374 = vpop.f32.mrb[0].mxu0
        %v1375 = vadd.f32 %v1253, %v1374
        %v1376 = vpop.f32.mrb[0].mxu0
        %v1377 = vadd.f32 %v1257, %v1376
        %v1378 = vpop.f32.mrb[0].mxu0
        %v1379 = vadd.f32 %v1253, %v1378
        %v1380 = vpop.f32.mrb[0].mxu0
        %v1381 = vadd.f32 %v1257, %v1380
        %1382 = vdwg.mxu0
        %v1383 = vld [vmem:[%s382] sm:$0xf]
        %v1384 = vld [vmem:[%s382 + $0x4] sm:$0xf]
        %v1385 = vld [vmem:[%s6] sm:$0xff]
        %v1386 = vld [vmem:[%s6 + $0x8] sm:$0xff]
        %v1387 = vld [vmem:[%s6 + $0x10] sm:$0xff]
        %v1388 = vld [vmem:[%s6 + $0x18] sm:$0xff]
        %v1389 = vld [vmem:[%s6 + $0x20] sm:$0xff]
        %v1390 = vld [vmem:[%s6 + $0x28] sm:$0xff]
        %v1391 = vld [vmem:[%s6 + $0x30] sm:$0xff]
        %v1392 = vld [vmem:[%s6 + $0x38] sm:$0xff]
        %v1393 = vld [vmem:[%s6 + $0x40] sm:$0xff]
        %v1394 = vld [vmem:[%s6 + $0x48] sm:$0xff]
        %v1395 = vld [vmem:[%s6 + $0x50] sm:$0xff]
        %v1396 = vld [vmem:[%s6 + $0x58] sm:$0xff]
        %v1397 = vld [vmem:[%s6 + $0x60] sm:$0xff]
        %v1398 = vld [vmem:[%s6 + $0x68] sm:$0xff]
        %v1399 = vld [vmem:[%s6 + $0x70] sm:$0xff]
        %v1400 = vld [vmem:[%s6 + $0x78] sm:$0xff]
        %v1403 = vunpack.c.l.b16 %v1383
        %v1404 = vunpack.c.l.b16 %v1384
        %v1405 = vpack.c.b16 %v1404, %v1403
        %v1423 = vunpack.c.l.b16 %v1385
        %v1424 = vunpack.c.h.b16 %v1385
        %v1425 = vunpack.c.l.b16 %v1386
        %v1426 = vunpack.c.h.b16 %v1386
        %v1427 = vunpack.c.l.b16 %v1387
        %v1428 = vunpack.c.h.b16 %v1387
        %v1429 = vunpack.c.l.b16 %v1388
        %v1430 = vunpack.c.h.b16 %v1388
        %v1431 = vunpack.c.l.b16 %v1389
        %v1432 = vunpack.c.h.b16 %v1389
        %v1433 = vunpack.c.l.b16 %v1390
        %v1434 = vunpack.c.h.b16 %v1390
        %v1435 = vunpack.c.l.b16 %v1391
        %v1436 = vunpack.c.h.b16 %v1391
        %v1437 = vunpack.c.l.b16 %v1392
        %v1438 = vunpack.c.h.b16 %v1392
        %v1439 = vunpack.c.l.b16 %v1393
        %v1440 = vunpack.c.h.b16 %v1393
        %v1441 = vunpack.c.l.b16 %v1394
        %v1442 = vunpack.c.h.b16 %v1394
        %v1443 = vunpack.c.l.b16 %v1395
        %v1444 = vunpack.c.h.b16 %v1395
        %v1445 = vunpack.c.l.b16 %v1396
        %v1446 = vunpack.c.h.b16 %v1396
        %v1447 = vunpack.c.l.b16 %v1397
        %v1448 = vunpack.c.h.b16 %v1397
        %v1449 = vunpack.c.l.b16 %v1398
        %v1450 = vunpack.c.h.b16 %v1398
        %v1451 = vunpack.c.l.b16 %v1399
        %v1452 = vunpack.c.h.b16 %v1399
        %v1453 = vunpack.c.l.b16 %v1400
        %v1454 = vunpack.c.h.b16 %v1400
        %v1455 = vpack.c.b16 %v1425, %v1423
        %v1456 = vpack.c.b16 %v1426, %v1424
        %v1457 = vpack.c.b16 %v1429, %v1427
        %v1458 = vpack.c.b16 %v1430, %v1428
        %v1459 = vpack.c.b16 %v1433, %v1431
        %v1460 = vpack.c.b16 %v1434, %v1432
        %v1461 = vpack.c.b16 %v1437, %v1435
        %v1462 = vpack.c.b16 %v1438, %v1436
        %v1463 = vpack.c.b16 %v1441, %v1439
        %v1464 = vpack.c.b16 %v1442, %v1440
        %v1465 = vpack.c.b16 %v1445, %v1443
        %v1466 = vpack.c.b16 %v1446, %v1444
        %v1467 = vpack.c.b16 %v1449, %v1447
        %v1468 = vpack.c.b16 %v1450, %v1448
        %v1469 = vpack.c.b16 %v1453, %v1451
        %v1470 = vpack.c.b16 %v1454, %v1452
        %1487 = vmatprep.subr.bf16.mxu0 %v1456
        %1488 = vmatpush1.bf16.msra.mxu0 %v1455
        %1489 = vmatprep.subr.bf16.mxu0 %v1458
        %1490 = vmatpush1.bf16.msra.mxu0 %v1457
        %1491 = vmatprep.subr.bf16.mxu0 %v1460
        %1492 = vmatpush1.bf16.msra.mxu0 %v1459
        %1493 = vmatprep.subr.bf16.mxu0 %v1462
        %1494 = vmatpush1.bf16.msra.mxu0 %v1461
        %1495 = vmatprep.subr.bf16.mxu0 %v1464
        %1496 = vmatpush1.bf16.msra.mxu0 %v1463
        %1497 = vmatprep.subr.bf16.mxu0 %v1466
        %1498 = vmatpush1.bf16.msra.mxu0 %v1465
        %1499 = vmatprep.subr.bf16.mxu0 %v1468
        %1500 = vmatpush1.bf16.msra.mxu0 %v1467
        %1501 = vmatprep.subr.bf16.mxu0 %v1470
        %1502 = vmatpush1.bf16.msra.mxu0 %v1469
        %1503 = vmatprep.subr.bf16.mxu0 0
        %1504 = vmatpush1.bf16.msra.mxu0 0
        %1505 = vmatprep.subr.bf16.mxu0 0
        %1506 = vmatpush1.bf16.msra.mxu0 0
        %1507 = vmatprep.subr.bf16.mxu0 0
        %1508 = vmatpush1.bf16.msra.mxu0 0
        %1509 = vmatprep.subr.bf16.mxu0 0
        %1510 = vmatpush1.bf16.msra.mxu0 0
        %1511 = vmatprep.subr.bf16.mxu0 0
        %1512 = vmatpush1.bf16.msra.mxu0 0
        %1513 = vmatprep.subr.bf16.mxu0 0
        %1514 = vmatpush1.bf16.msra.mxu0 0
        %1515 = vmatprep.subr.bf16.mxu0 0
        %1516 = vmatpush1.bf16.msra.mxu0 0
        %1517 = vmatprep.subr.bf16.mxu0 0
        %1518 = vmatpush1.bf16.msra.mxu0 0
        %1519 = vmatprep.mubr.bf16.mxu0 0
        %1520 = vmatmul.mubr.bf16.gmra.mrb[0].mxu0 %v1405
        %v1521 = vpop.f32.mrb[0].mxu0
        %v1522 = vadd.f32 0.0, %v1521
        %v1523 = vpop.f32.mrb[0].mxu0
        %v1524 = vadd.f32 0.0, %v1523
        %v1525 = vpop.f32.mrb[0].mxu0
        %v1526 = vadd.f32 0.0, %v1525
        %v1527 = vpop.f32.mrb[0].mxu0
        %v1528 = vadd.f32 0.0, %v1527
        %1529 = vdwg.mxu0
        %v1530 = vadd.f32 %v1375, %v1522
        %v1531 = vadd.f32 %v1377, %v1524
        %v1532 = vadd.f32 %v1379, %v1526
        %v1533 = vadd.f32 %v1381, %v1528
        %v1534 = vld [vmem:[%s7] sm:$0x3]
        %v1536 = vlaneseq
        %v1537 = vshrl.u32 %v1536, 7
        %v1538 = vsub.s32 0, %v1537
        %v1539 = vrot.slane %v1534, %v1538
        %v1540 = vlaneseq
        %v1541 = vshrl.u32 %v1540, 7
        %v1542 = vsub.s32 1, %v1541
        %v1543 = vrot.slane %v1534, %v1542
        %v1546 = vadd.f32 %v1530, %v1539
        %v1547 = vadd.f32 %v1531, %v1543
        %v1548 = vadd.f32 %v1532, %v1539
        %v1549 = vadd.f32 %v1533, %v1543
        %v1550 = vmax.f32 %v1546, 0.0
        %v1551 = vmax.f32 %v1547, 0.0
        %v1552 = vmax.f32 %v1548, 0.0
        %v1553 = vmax.f32 %v1549, 0.0
        %v1554 = vadd.f32 %v1550, %v1552
        %v1555 = vrot.slane %v1554, 4
        %v1556 = vadd.f32 %v1554, %v1555
        %v1557 = vrot.slane %v1556, 2
        %v1558 = vadd.f32 %v1556, %v1557
        %v1559 = vrot.slane %v1558, 1
        %v1560 = vadd.f32 %v1558, %v1559
        %v1561 = vadd.f32 %v1551, %v1553
        %v1562 = vrot.slane %v1561, 4
        %v1563 = vadd.f32 %v1561, %v1562
        %v1564 = vrot.slane %v1563, 2
        %v1565 = vadd.f32 %v1563, %v1564
        %v1566 = vrot.slane %v1565, 1
        %v1567 = vadd.f32 %v1565, %v1566
        %v1568 = vmul.f32 %v1560, 0.015625
        %v1569 = vmul.f32 %v1567, 0.015625
        %v1570 = vld [vmem:[%s8] sm:$0xff]
        %v1571 = vld [vmem:[%s8 + $0x8] sm:$0xff]
        %v1572 = vld [vmem:[%s8 + $0x10] sm:$0xff]
        %v1573 = vld [vmem:[%s8 + $0x18] sm:$0xff]
        %v1574 = vld [vmem:[%s8 + $0x20] sm:$0xff]
        %v1575 = vld [vmem:[%s8 + $0x28] sm:$0xff]
        %v1576 = vld [vmem:[%s8 + $0x30] sm:$0xff]
        %v1577 = vld [vmem:[%s8 + $0x38] sm:$0xff]
        %v1578 = vld [vmem:[%s8 + $0x40] sm:$0xff]
        %v1579 = vld [vmem:[%s8 + $0x48] sm:$0xff]
        %v1580 = vld [vmem:[%s8 + $0x50] sm:$0xff]
        %v1581 = vld [vmem:[%s8 + $0x58] sm:$0xff]
        %v1582 = vld [vmem:[%s8 + $0x60] sm:$0xff]
        %v1583 = vld [vmem:[%s8 + $0x68] sm:$0xff]
        %v1584 = vld [vmem:[%s8 + $0x70] sm:$0xff]
        %v1585 = vld [vmem:[%s8 + $0x78] sm:$0xff]
        %v1586 = vld [vmem:[%s8 + $0x80] sm:$0xff]
        %v1587 = vld [vmem:[%s8 + $0x88] sm:$0xff]
        %v1588 = vld [vmem:[%s8 + $0x90] sm:$0xff]
        %v1589 = vld [vmem:[%s8 + $0x98] sm:$0xff]
        %v1590 = vld [vmem:[%s8 + $0xa0] sm:$0xff]
        %v1591 = vld [vmem:[%s8 + $0xa8] sm:$0xff]
        %v1592 = vld [vmem:[%s8 + $0xb0] sm:$0xff]
        %v1593 = vld [vmem:[%s8 + $0xb8] sm:$0xff]
        %v1594 = vld [vmem:[%s8 + $0xc0] sm:$0xff]
        %v1595 = vld [vmem:[%s8 + $0xc8] sm:$0xff]
        %v1596 = vld [vmem:[%s8 + $0xd0] sm:$0xff]
        %v1597 = vld [vmem:[%s8 + $0xd8] sm:$0xff]
        %v1598 = vld [vmem:[%s8 + $0xe0] sm:$0xff]
        %v1599 = vld [vmem:[%s8 + $0xe8] sm:$0xff]
        %v1600 = vld [vmem:[%s8 + $0xf0] sm:$0xff]
        %v1601 = vld [vmem:[%s8 + $0xf8] sm:$0xff]
        %v1602 = vld [vmem:[%s9] sm:$0x1]
        %1603 = vmatprep.subr.mxu0 0.0
        %1604 = vmatpush1.msra.mxu0 %v1570
        %1605 = vmatprep.subr.mxu0 0.0
        %1606 = vmatpush1.msra.mxu0 %v1571
        %1607 = vmatprep.subr.mxu0 0.0
        %1608 = vmatpush1.msra.mxu0 %v1572
        %1609 = vmatprep.subr.mxu0 0.0
        %1610 = vmatpush1.msra.mxu0 %v1573
        %1611 = vmatprep.subr.mxu0 0.0
        %1612 = vmatpush1.msra.mxu0 %v1574
        %1613 = vmatprep.subr.mxu0 0.0
        %1614 = vmatpush1.msra.mxu0 %v1575
        %1615 = vmatprep.subr.mxu0 0.0
        %1616 = vmatpush1.msra.mxu0 %v1576
        %1617 = vmatprep.subr.mxu0 0.0
        %1618 = vmatpush1.msra.mxu0 %v1577
        %1619 = vmatprep.subr.mxu0 0.0
        %1620 = vmatpush1.msra.mxu0 %v1578
        %1621 = vmatprep.subr.mxu0 0.0
        %1622 = vmatpush1.msra.mxu0 %v1579
        %1623 = vmatprep.subr.mxu0 0.0
        %1624 = vmatpush1.msra.mxu0 %v1580
        %1625 = vmatprep.subr.mxu0 0.0
        %1626 = vmatpush1.msra.mxu0 %v1581
        %1627 = vmatprep.subr.mxu0 0.0
        %1628 = vmatpush1.msra.mxu0 %v1582
        %1629 = vmatprep.subr.mxu0 0.0
        %1630 = vmatpush1.msra.mxu0 %v1583
        %1631 = vmatprep.subr.mxu0 0.0
        %1632 = vmatpush1.msra.mxu0 %v1584
        %1633 = vmatprep.subr.mxu0 0.0
        %1634 = vmatpush1.msra.mxu0 %v1585
        %1635 = vmatprep.subr.mxu0 0.0
        %1636 = vmatpush1.msra.mxu0 %v1586
        %1637 = vmatprep.subr.mxu0 0.0
        %1638 = vmatpush1.msra.mxu0 %v1587
        %1639 = vmatprep.subr.mxu0 0.0
        %1640 = vmatpush1.msra.mxu0 %v1588
        %1641 = vmatprep.subr.mxu0 0.0
        %1642 = vmatpush1.msra.mxu0 %v1589
        %1643 = vmatprep.subr.mxu0 0.0
        %1644 = vmatpush1.msra.mxu0 %v1590
        %1645 = vmatprep.subr.mxu0 0.0
        %1646 = vmatpush1.msra.mxu0 %v1591
        %1647 = vmatprep.subr.mxu0 0.0
        %1648 = vmatpush1.msra.mxu0 %v1592
        %1649 = vmatprep.subr.mxu0 0.0
        %1650 = vmatpush1.msra.mxu0 %v1593
        %1651 = vmatprep.subr.mxu0 0.0
        %1652 = vmatpush1.msra.mxu0 %v1594
        %1653 = vmatprep.subr.mxu0 0.0
        %1654 = vmatpush1.msra.mxu0 %v1595
        %1655 = vmatprep.subr.mxu0 0.0
        %1656 = vmatpush1.msra.mxu0 %v1596
        %1657 = vmatprep.subr.mxu0 0.0
        %1658 = vmatpush1.msra.mxu0 %v1597
        %1659 = vmatprep.subr.mxu0 0.0
        %1660 = vmatpush1.msra.mxu0 %v1598
        %1661 = vmatprep.subr.mxu0 0.0
        %1662 = vmatpush1.msra.mxu0 %v1599
        %1663 = vmatprep.subr.mxu0 0.0
        %1664 = vmatpush1.msra.mxu0 %v1600
        %1665 = vmatprep.subr.mxu0 0.0
        %1666 = vmatpush1.msra.mxu0 %v1601
        %1667 = vmatprep.mubr.f32.mxu0 %v1569
        %1668 = vmatmul.mubr.f32.gmra.mrb[0].mxu0 %v1568
        %v1669 = vpop.f32.mrb[0].mxu0
        %v1670 = vadd.f32 %v1602, %v1669
        %v1671 = vpop.f32.mrb[0].mxu0
        %1672 = vdwg.mxu0
        %vm1673 = vcmask 73728
        %1674 = vst.msk [vmem:[%s370] sm:$0x1] %vm1673, %v1670
        %s1675 = sand.u32 %s252, 1
        %s1676 = scalar_lea.sflag [#allocation3], %s1675
        %s1677 = sand.u32 %s252, 1
        %s1678 = scalar_lea.vmem [#allocation2], %s1677
        // Predicated region
        $region61: #{resnext_forward.7} parent=59 // pred_check
          %p1679 = pneg %p262
        $region62: #{resnext_forward.7} parent=59 // pred_check_branch
          %1681 = sbr.rel (%p1679) target = $region64
        $region63: #{resnext_forward.7} parent=59 // pred_region
          %s1683 = ssub.s32 16, 16
          %1684 = vsyncadd %s1676, %s1683
          %s1685 = smul.addr %s24, 16
          %s1686 = scalar_lea.hbm %s10, %s1685
          %s1688 = sshll.u32 %s1678, 4
          %s1689 = int_to_ptr.vmem [resolvable:$true] %s1688
          %1691 = dma.vmem_to_hbm [thread:$0]  %s1689, 16, %s1686, %s1676
        $region64: #{resnext_forward.7} parent=59 // pred_fallthru
          _
      $region60: #{resnext_forward.7} parent=5 // pred_fallthru
        _
      %p1692 = scmp.le.s32.totalorder 2, %s19
      // Predicated region
      $region65: #{resnext_forward.7} parent=5 // pred_check
        %p1693 = pneg %p1692
      $region66: #{resnext_forward.7} parent=5 // pred_check_branch
        %1695 = sbr.rel (%p1693) target = $region68
      $region67: #{resnext_forward.7} parent=5 // pred_region
        %s1696 = ssub.s32 %s19, 2
        // Predicated region
        $region69: #{resnext_forward.7} parent=67 // pred_check
          %p1697 = pneg %p268
        $region70: #{resnext_forward.7} parent=67 // pred_check_branch
          %1699 = sbr.rel (%p1697) target = $region72
        $region71: #{resnext_forward.7} parent=67 // pred_region
          %s1700 = sand.u32 %s253, 1
          %s1701 = scalar_lea.sflag [#allocation3], %s1700
          %s1702 = sand.u32 %s253, 1
          %s1703 = scalar_lea.vmem [#allocation2], %s1702
          %1704 = dma.done %s1701, 16
        $region72: #{resnext_forward.7} parent=67 // pred_fallthru
          _
      $region68: #{resnext_forward.7} parent=5 // pred_fallthru
        _
    $region6: #{resnext_forward.7} parent=1 // loop_footer
      %s23 = sadd.s32 1, %s19
    $region7: #{resnext_forward.7} parent=1 // loop_footer_branch
      %18 = sbr.rel target = $region3
    $region8: #{resnext_forward.7} parent=1 // loop_exit
      _
    %1705 = vsyncpa [#allocation3], 1
    %s1706 = scalar_lea.sflag [#allocation3], 1
    %1707 = vsyncpa %s1706, 1

</llo_original>
